<compile_context>
chip_gen: v6e
topology: v6e:2x2x1
jax: 0.10.0
libtpu: 0.0.40
codegen_flags: <defaults>
</compile_context>

<pallas_src>
import functools
import math

import jax
import jax.numpy as jnp
from jax import lax
from jax.experimental import pallas as pl
from jax.experimental.pallas import tpu as pltpu

# ----------------------- model hyper-params (small, synthetic) --------------
IN_FEAT = 64          # input feature dim C (stands in for the 128 mel bins)
SUBSAMPLING = 2       # time subsampling factor of the pre-encoder
D_MODEL = 128         # conformer d_model (stands in for 512)
HEADS = 4
HEAD_DIM = D_MODEL // HEADS
FF_DIM = 256
CONV_K = 5            # depthwise conv kernel size (real model: 9)
N_LAYERS = 2
D_DEC = 128           # encoder_decoder_proj output dim
LN_EPS = 1e-5
NEG_INF = -1e9


# --------------------------- in-kernel math helpers --------------------------
def _sigmoid(x):
    return 1.0 / (1.0 + jnp.exp(-x))


def _swish(x):
    return x * _sigmoid(x)


def _mm(x, w, bias=None):
    """MXU matmul: bf16 operands, f32 accumulation."""
    y = jnp.dot(x.astype(w.dtype), w, preferred_element_type=jnp.float32)
    return y if bias is None else y + bias


def _layernorm(x, g, b):
    m = jnp.mean(x, axis=-1, keepdims=True)
    v = jnp.mean((x - m) ** 2, axis=-1, keepdims=True)
    return (x - m) * lax.rsqrt(v + LN_EPS) * g + b


def _feed_forward(x, w1, b1, w2, b2):
    h = _swish(_mm(x, w1, b1))
    return _mm(h, w2, b2)


def _mhsa(x, wq, bq, wk, bk, wv, bv, wo, bo, key_bias):
    """All heads inside one kernel as lane slices of the (T, D) tile."""
    q = _mm(x, wq, bq)          # (T, D) f32
    k = _mm(x, wk, bk)
    v = _mm(x, wv, bv)
    scale = 1.0 / math.sqrt(HEAD_DIM)
    out = None
    for h in range(HEADS):
        sl = slice(h * HEAD_DIM, (h + 1) * HEAD_DIM)
        qh, kh, vh = q[:, sl], k[:, sl], v[:, sl]
        s = lax.dot_general(qh.astype(jnp.bfloat16), kh.astype(jnp.bfloat16),
                            (((1,), (1,)), ((), ())),
                            preferred_element_type=jnp.float32) * scale
        s = s + key_bias                       # (T, T) + (1, T) padding mask
        m = jnp.max(s, axis=-1, keepdims=True)
        e = jnp.exp(s - m)
        denom = jnp.sum(e, axis=-1, keepdims=True)
        p = e * pl.reciprocal(denom, approx=True)          # EUP, not VALU
        ctx = jnp.dot(p.astype(jnp.bfloat16), vh.astype(jnp.bfloat16),
                      preferred_element_type=jnp.float32)  # (T, dh)
        # concat-of-heads @ Wo  ==  sum_h ctx_h @ Wo[h*dh:(h+1)*dh, :]
        o_h = _mm(ctx, wo[sl, :])
        out = o_h if out is None else out + o_h
    return out + bo


def _conv_module(x, pw1_w, pw1_b, dw_w, dw_b, bn_s, bn_b, pw2_w, pw2_b,
                 time_valid):
    """Conformer conv module: pointwise->GLU->depthwise->BN->swish->pointwise."""
    T = x.shape[0]
    y = _mm(x, pw1_w, pw1_b)                   # (T, 2D)
    a = y[:, :D_MODEL]
    g = y[:, D_MODEL:]
    y = a * _sigmoid(g)                        # GLU
    y = jnp.where(time_valid, y, 0.0)          # zero padded frames before conv

    # depthwise conv along time ('same' padding) via XLU rolls + masks
    pad = (CONV_K - 1) // 2
    tpos = lax.broadcasted_iota(jnp.int32, (T, 1), 0)
    acc = y * dw_w[pad]                        # center tap
    for j in range(CONV_K):
        off = j - pad
        if off == 0:
            continue
        shifted = pltpu.roll(y, shift=(-off) % T, axis=0)  # row t <- y[t+off]
        valid = (tpos + off >= 0) & (tpos + off < T)
        acc = acc + jnp.where(valid, shifted, 0.0) * dw_w[j]
    y = acc + dw_b
    y = y * bn_s + bn_b                        # inference-folded BatchNorm
    y = _swish(y)
    return _mm(y, pw2_w, pw2_b)


def _conformer_layer(h, p, l, key_bias, time_valid):
    # FF1 (half-step)
    h = h + 0.5 * _feed_forward(
        _layernorm(h, p["ln_ff1_g"][l], p["ln_ff1_b"][l]),
        p["ff1_w1"][l], p["ff1_b1"][l], p["ff1_w2"][l], p["ff1_b2"][l])
    # MHSA
    h = h + _mhsa(
        _layernorm(h, p["ln_att_g"][l], p["ln_att_b"][l]),
        p["att_wq"][l], p["att_bq"][l], p["att_wk"][l], p["att_bk"][l],
        p["att_wv"][l], p["att_bv"][l], p["att_wo"][l], p["att_bo"][l],
        key_bias)
    # Conv module
    h = h + _conv_module(
        _layernorm(h, p["ln_conv_g"][l], p["ln_conv_b"][l]),
        p["conv_pw1_w"][l], p["conv_pw1_b"][l],
        p["conv_dw_w"][l], p["conv_dw_b"][l],
        p["conv_bn_s"][l], p["conv_bn_b"][l],
        p["conv_pw2_w"][l], p["conv_pw2_b"][l],
        time_valid)
    # FF2 (half-step)
    h = h + 0.5 * _feed_forward(
        _layernorm(h, p["ln_ff2_g"][l], p["ln_ff2_b"][l]),
        p["ff2_w1"][l], p["ff2_b1"][l], p["ff2_w2"][l], p["ff2_b2"][l])
    # per-layer final LayerNorm
    return _layernorm(h, p["ln_out_g"][l], p["ln_out_b"][l])


# ------------------------------- fused kernel --------------------------------
def _encoder_kernel(lens_ref, x_ref, *refs, treedef):
    n = treedef.num_leaves
    p = jax.tree_util.tree_unflatten(treedef, list(refs[:n]))   # dict of Refs
    out_ref = refs[n]

    b = pl.program_id(0)
    length = lens_ref[b]                       # scalar (SMEM)

    x = x_ref[0].astype(jnp.float32)           # (T', S*C)
    T = x.shape[0]

    # padding masks built in-kernel (nothing materialised in HBM)
    tpos = lax.broadcasted_iota(jnp.int32, (T, 1), 0)
    time_valid = tpos < length                                     # (T', 1)
    kpos = lax.broadcasted_iota(jnp.int32, (1, T), 1)
    key_bias = jnp.where(kpos < length, 0.0, NEG_INF).astype(jnp.float32)

    # pre-encode: frame-stacked strided "conv" == single linear projection
    h = _mm(x, p["pre_w"][...], p["pre_b"][...])                   # (T', D)

    for l in range(N_LAYERS):
        h = _conformer_layer(h, p, l, key_bias, time_valid)

    # encoder_decoder_proj
    enc = _mm(h, p["proj_w"][...], p["proj_b"][...])               # (T', Ddec)
    out_ref[0] = enc.astype(out_ref.dtype)


# ------------------------------- host wrapper ---------------------------------
def encoder_wrapper_forward(params, x, x_len):
    """Mirrors EncoderWrapper.forward.
    x:(N,T,C) f32, x_len:(N,) int -> (enc_states, encoded_len, enc_mask)."""
    N, T, C = x.shape
    S = SUBSAMPLING
    T_out = T // S

    # x.permute(0,2,1) in the PyTorch wrapper only adapts to NeMo's
    # channels-first convention; this encoder is written feature-last, so the
    # permutes are identity layout-wise.
    encoded_len = jnp.minimum((x_len.astype(jnp.int32) + S - 1) // S,
                              T_out).astype(jnp.int32)
    x_stacked = x[:, :T_out * S, :].reshape(N, T_out, S * C)

    flat, treedef = jax.tree_util.tree_flatten(params)

    def _full_block(a):
        nd = a.ndim
        return pl.BlockSpec(a.shape, lambda i, lens, nd=nd: (0,) * nd)

    grid_spec = pltpu.PrefetchScalarGridSpec(
        num_scalar_prefetch=1,                 # encoded_len -> SMEM
        grid=(N,),
        in_specs=[pl.BlockSpec((1, T_out, S * C), lambda i, lens: (i, 0, 0))]
                + [_full_block(a) for a in flat],
        out_specs=pl.BlockSpec((1, T_out, D_DEC), lambda i, lens: (i, 0, 0)),
    )

    enc_states = pl.pallas_call(
        functools.partial(_encoder_kernel, treedef=treedef),
        out_shape=jax.ShapeDtypeStruct((N, T_out, D_DEC), jnp.float32),
        grid_spec=grid_spec,
        compiler_params=pltpu.CompilerParams(
            dimension_semantics=("parallel",)),   # megacore split on v7x
    )(encoded_len, x_stacked, *flat)

    # lens_to_mask(encoded_len, T_out) -- a module output, so it must be
    # materialised anyway; trivial in plain JAX.
    enc_mask = jnp.arange(T_out)[None, :] < encoded_len[:, None]
    return enc_states, encoded_len, enc_mask


# ------------------------------ parameter init --------------------------------
def init_params(key):
    keys = iter(jax.random.split(key, 128))

    def wbf16(shape, scale=0.02):              # MXU weights stored in bf16
        return (jax.random.normal(next(keys), shape, jnp.float32)
                * scale).astype(jnp.bfloat16)

    def wf32(shape, scale=0.02):               # biases / elementwise params
        return jax.random.normal(next(keys), shape, jnp.float32) * scale

    L, D, F, K = N_LAYERS, D_MODEL, FF_DIM, CONV_K
    ones = jnp.ones((L, 1, D), jnp.float32)
    zeros = jnp.zeros((L, 1, D), jnp.float32)

    return {
        # pre-encoder (subsampling) and final projection
        "pre_w": wbf16((SUBSAMPLING * IN_FEAT, D)), "pre_b": wf32((1, D)),
        "proj_w": wbf16((D, D_DEC)), "proj_b": wf32((1, D_DEC)),
        # per-layer weights, stacked on a leading layer axis
        "ln_ff1_g": ones, "ln_ff1_b": zeros,
        "ff1_w1": wbf16((L, D, F)), "ff1_b1": wf32((L, 1, F)),
        "ff1_w2": wbf16((L, F, D)), "ff1_b2": wf32((L, 1, D)),
        "ln_att_g": ones, "ln_att_b": zeros,
        "att_wq": wbf16((L, D, D)), "att_bq": wf32((L, 1, D)),
        "att_wk": wbf16((L, D, D)), "att_bk": wf32((L, 1, D)),
        "att_wv": wbf16((L, D, D)), "att_bv": wf32((L, 1, D)),
        "att_wo": wbf16((L, D, D)), "att_bo": wf32((L, 1, D)),
        "ln_conv_g": ones, "ln_conv_b": zeros,
        "conv_pw1_w": wbf16((L, D, 2 * D)), "conv_pw1_b": wf32((L, 1, 2 * D)),
        "conv_dw_w": wf32((L, K, D), scale=0.1), "conv_dw_b": wf32((L, 1, D)),
        "conv_bn_s": ones, "conv_bn_b": zeros,
        "conv_pw2_w": wbf16((L, D, D)), "conv_pw2_b": wf32((L, 1, D)),
        "ln_ff2_g": ones, "ln_ff2_b": zeros,
        "ff2_w1": wbf16((L, D, F)), "ff2_b1": wf32((L, 1, F)),
        "ff2_w2": wbf16((L, F, D)), "ff2_b2": wf32((L, 1, D)),
        "ln_out_g": ones, "ln_out_b": zeros,
    }


# ----------------------------------- main --------------------------------------
if __name__ == "__main__":
    N, T, C = 2, 16, IN_FEAT
    root = jax.random.PRNGKey(0)
    k_param, k_x = jax.random.split(root)

    params = init_params(k_param)
    x = jax.random.normal(k_x, (N, T, C), jnp.float32) * 0.5
    x_len = jnp.array([16, 11], dtype=jnp.int32)

    fwd = jax.jit(encoder_wrapper_forward)
    enc_states, encoded_len, enc_mask = fwd(params, x, x_len)
    jax.block_until_ready((enc_states, encoded_len, enc_mask))

    T_out = T // SUBSAMPLING
    assert enc_states.shape == (N, T_out, D_DEC), enc_states.shape
    assert encoded_len.shape == (N,), encoded_len.shape
    assert enc_mask.shape == (N, T_out), enc_mask.shape
    assert enc_mask.dtype == jnp.bool_, enc_mask.dtype
    assert int(encoded_len[0]) == 8 and int(encoded_len[1]) == 6
    assert bool(jnp.all(jnp.isfinite(enc_states)))
    print("KERNEL_OK")
</pallas_src>

<mosaic_0001>
module attributes {stable_mosaic.version = 11 : i64} {
  func.func @_encoder_kernel(%arg0: i32, %arg1: memref<2xi32, #tpu.memory_space<smem>>, %arg2: memref<1x8x128xf32, #tpu.memory_space<vmem>>, %arg3: memref<2x1x128xf32, #tpu.memory_space<vmem>>, %arg4: memref<2x1x128xf32, #tpu.memory_space<vmem>>, %arg5: memref<2x1x128xf32, #tpu.memory_space<vmem>>, %arg6: memref<2x1x128xf32, #tpu.memory_space<vmem>>, %arg7: memref<2x128x128xbf16, #tpu.memory_space<vmem>>, %arg8: memref<2x128x128xbf16, #tpu.memory_space<vmem>>, %arg9: memref<2x128x128xbf16, #tpu.memory_space<vmem>>, %arg10: memref<2x128x128xbf16, #tpu.memory_space<vmem>>, %arg11: memref<2x1x128xf32, #tpu.memory_space<vmem>>, %arg12: memref<2x1x128xf32, #tpu.memory_space<vmem>>, %arg13: memref<2x1x128xf32, #tpu.memory_space<vmem>>, %arg14: memref<2x5x128xf32, #tpu.memory_space<vmem>>, %arg15: memref<2x1x256xf32, #tpu.memory_space<vmem>>, %arg16: memref<2x128x256xbf16, #tpu.memory_space<vmem>>, %arg17: memref<2x1x128xf32, #tpu.memory_space<vmem>>, %arg18: memref<2x128x128xbf16, #tpu.memory_space<vmem>>, %arg19: memref<2x1x256xf32, #tpu.memory_space<vmem>>, %arg20: memref<2x1x128xf32, #tpu.memory_space<vmem>>, %arg21: memref<2x128x256xbf16, #tpu.memory_space<vmem>>, %arg22: memref<2x256x128xbf16, #tpu.memory_space<vmem>>, %arg23: memref<2x1x256xf32, #tpu.memory_space<vmem>>, %arg24: memref<2x1x128xf32, #tpu.memory_space<vmem>>, %arg25: memref<2x128x256xbf16, #tpu.memory_space<vmem>>, %arg26: memref<2x256x128xbf16, #tpu.memory_space<vmem>>, %arg27: memref<2x1x128xf32, #tpu.memory_space<vmem>>, %arg28: memref<2x1x128xf32, #tpu.memory_space<vmem>>, %arg29: memref<2x1x128xf32, #tpu.memory_space<vmem>>, %arg30: memref<2x1x128xf32, #tpu.memory_space<vmem>>, %arg31: memref<2x1x128xf32, #tpu.memory_space<vmem>>, %arg32: memref<2x1x128xf32, #tpu.memory_space<vmem>>, %arg33: memref<2x1x128xf32, #tpu.memory_space<vmem>>, %arg34: memref<2x1x128xf32, #tpu.memory_space<vmem>>, %arg35: memref<2x1x128xf32, #tpu.memory_space<vmem>>, %arg36: memref<2x1x128xf32, #tpu.memory_space<vmem>>, %arg37: memref<1x128xf32, #tpu.memory_space<vmem>>, %arg38: memref<128x128xbf16, #tpu.memory_space<vmem>>, %arg39: memref<1x128xf32, #tpu.memory_space<vmem>>, %arg40: memref<128x128xbf16, #tpu.memory_space<vmem>>, %arg41: memref<1x8x128xf32, #tpu.memory_space<vmem>>) attributes {dimension_semantics = [#tpu.dimension_semantics<parallel>], iteration_bounds = array<i64: 2>, scalar_prefetch = 1 : i64, scratch_operands = 0 : i64, tpu.core_type = #tpu.core_type<tc>, window_params = [{transform_indices = @transform_0, window_bounds = array<i64: 1, 8, 128>}, {pipeline_mode = #tpu.pipeline_mode<synchronous>, transform_indices = @transform_1, window_bounds = array<i64: 2, 1, 128>}, {pipeline_mode = #tpu.pipeline_mode<synchronous>, transform_indices = @transform_2, window_bounds = array<i64: 2, 1, 128>}, {pipeline_mode = #tpu.pipeline_mode<synchronous>, transform_indices = @transform_3, window_bounds = array<i64: 2, 1, 128>}, {pipeline_mode = #tpu.pipeline_mode<synchronous>, transform_indices = @transform_4, window_bounds = array<i64: 2, 1, 128>}, {pipeline_mode = #tpu.pipeline_mode<synchronous>, transform_indices = @transform_5, window_bounds = array<i64: 2, 128, 128>}, {pipeline_mode = #tpu.pipeline_mode<synchronous>, transform_indices = @transform_6, window_bounds = array<i64: 2, 128, 128>}, {pipeline_mode = #tpu.pipeline_mode<synchronous>, transform_indices = @transform_7, window_bounds = array<i64: 2, 128, 128>}, {pipeline_mode = #tpu.pipeline_mode<synchronous>, transform_indices = @transform_8, window_bounds = array<i64: 2, 128, 128>}, {pipeline_mode = #tpu.pipeline_mode<synchronous>, transform_indices = @transform_9, window_bounds = array<i64: 2, 1, 128>}, {pipeline_mode = #tpu.pipeline_mode<synchronous>, transform_indices = @transform_10, window_bounds = array<i64: 2, 1, 128>}, {pipeline_mode = #tpu.pipeline_mode<synchronous>, transform_indices = @transform_11, window_bounds = array<i64: 2, 1, 128>}, {pipeline_mode = #tpu.pipeline_mode<synchronous>, transform_indices = @transform_12, window_bounds = array<i64: 2, 5, 128>}, {pipeline_mode = #tpu.pipeline_mode<synchronous>, transform_indices = @transform_13, window_bounds = array<i64: 2, 1, 256>}, {pipeline_mode = #tpu.pipeline_mode<synchronous>, transform_indices = @transform_14, window_bounds = array<i64: 2, 128, 256>}, {pipeline_mode = #tpu.pipeline_mode<synchronous>, transform_indices = @transform_15, window_bounds = array<i64: 2, 1, 128>}, {pipeline_mode = #tpu.pipeline_mode<synchronous>, transform_indices = @transform_16, window_bounds = array<i64: 2, 128, 128>}, {pipeline_mode = #tpu.pipeline_mode<synchronous>, transform_indices = @transform_17, window_bounds = array<i64: 2, 1, 256>}, {pipeline_mode = #tpu.pipeline_mode<synchronous>, transform_indices = @transform_18, window_bounds = array<i64: 2, 1, 128>}, {pipeline_mode = #tpu.pipeline_mode<synchronous>, transform_indices = @transform_19, window_bounds = array<i64: 2, 128, 256>}, {pipeline_mode = #tpu.pipeline_mode<synchronous>, transform_indices = @transform_20, window_bounds = array<i64: 2, 256, 128>}, {pipeline_mode = #tpu.pipeline_mode<synchronous>, transform_indices = @transform_21, window_bounds = array<i64: 2, 1, 256>}, {pipeline_mode = #tpu.pipeline_mode<synchronous>, transform_indices = @transform_22, window_bounds = array<i64: 2, 1, 128>}, {pipeline_mode = #tpu.pipeline_mode<synchronous>, transform_indices = @transform_23, window_bounds = array<i64: 2, 128, 256>}, {pipeline_mode = #tpu.pipeline_mode<synchronous>, transform_indices = @transform_24, window_bounds = array<i64: 2, 256, 128>}, {pipeline_mode = #tpu.pipeline_mode<synchronous>, transform_indices = @transform_25, window_bounds = array<i64: 2, 1, 128>}, {pipeline_mode = #tpu.pipeline_mode<synchronous>, transform_indices = @transform_26, window_bounds = array<i64: 2, 1, 128>}, {pipeline_mode = #tpu.pipeline_mode<synchronous>, transform_indices = @transform_27, window_bounds = array<i64: 2, 1, 128>}, {pipeline_mode = #tpu.pipeline_mode<synchronous>, transform_indices = @transform_28, window_bounds = array<i64: 2, 1, 128>}, {pipeline_mode = #tpu.pipeline_mode<synchronous>, transform_indices = @transform_29, window_bounds = array<i64: 2, 1, 128>}, {pipeline_mode = #tpu.pipeline_mode<synchronous>, transform_indices = @transform_30, window_bounds = array<i64: 2, 1, 128>}, {pipeline_mode = #tpu.pipeline_mode<synchronous>, transform_indices = @transform_31, window_bounds = array<i64: 2, 1, 128>}, {pipeline_mode = #tpu.pipeline_mode<synchronous>, transform_indices = @transform_32, window_bounds = array<i64: 2, 1, 128>}, {pipeline_mode = #tpu.pipeline_mode<synchronous>, transform_indices = @transform_33, window_bounds = array<i64: 2, 1, 128>}, {pipeline_mode = #tpu.pipeline_mode<synchronous>, transform_indices = @transform_34, window_bounds = array<i64: 2, 1, 128>}, {pipeline_mode = #tpu.pipeline_mode<synchronous>, transform_indices = @transform_35, window_bounds = array<i64: 1, 128>}, {pipeline_mode = #tpu.pipeline_mode<synchronous>, transform_indices = @transform_36, window_bounds = array<i64: 128, 128>}, {pipeline_mode = #tpu.pipeline_mode<synchronous>, transform_indices = @transform_37, window_bounds = array<i64: 1, 128>}, {pipeline_mode = #tpu.pipeline_mode<synchronous>, transform_indices = @transform_38, window_bounds = array<i64: 128, 128>}, {transform_indices = @transform_39, window_bounds = array<i64: 1, 8, 128>}]} {
    %0 = arith.index_cast %arg0 : i32 to index
    %1 = memref.load %arg1[%0] : memref<2xi32, #tpu.memory_space<smem>>
    %c0 = arith.constant 0 : index
    %c0_0 = arith.constant 0 : index
    %c0_1 = arith.constant 0 : index
    %2 = vector.load %arg2[%c0, %c0_0, %c0_1] : memref<1x8x128xf32, #tpu.memory_space<vmem>>, vector<1x8x128xf32>
    %3 = vector.shape_cast %2 : vector<1x8x128xf32> to vector<8x128xf32>
    %4 = tpu.iota {dimensions = array<i32: 0>} : vector<8x1xi32>
    %5 = vector.broadcast %1 : i32 to vector<8x1xi32>
    %6 = arith.cmpi slt, %4, %5 : vector<8x1xi32>
    %7 = tpu.iota {dimensions = array<i32: 1>} : vector<1x8xi32>
    %8 = vector.broadcast %1 : i32 to vector<1x8xi32>
    %9 = arith.cmpi slt, %7, %8 : vector<1x8xi32>
    %cst = arith.constant 0.000000e+00 : f32
    %cst_2 = arith.constant -1.000000e+09 : f32
    %10 = vector.broadcast %cst : f32 to vector<1x8xf32>
    %11 = vector.broadcast %cst_2 : f32 to vector<1x8xf32>
    %12 = arith.select %9, %10, %11 : vector<1x8xi1>, vector<1x8xf32>
    %c0_3 = arith.constant 0 : index
    %c0_4 = arith.constant 0 : index
    %13 = vector.load %arg38[%c0_3, %c0_4] : memref<128x128xbf16, #tpu.memory_space<vmem>>, vector<128x128xbf16>
    %c0_5 = arith.constant 0 : index
    %c0_6 = arith.constant 0 : index
    %14 = vector.load %arg37[%c0_5, %c0_6] : memref<1x128xf32, #tpu.memory_space<vmem>>, vector<1x128xf32>
    %15 = arith.truncf %3 : vector<8x128xf32> to vector<8x128xbf16>
    %cst_7 = arith.constant dense<0.000000e+00> : vector<8x128xf32>
    %16 = tpu.matmul %15, %13, %cst_7 {dimension_numbers = #tpu.dot_dimension_numbers<[1], [0], [0], [1], [0, 0, 1, 1], [], []>} : vector<8x128xbf16>, vector<128x128xbf16>, vector<8x128xf32> -> vector<8x128xf32>
    %17 = vector.broadcast %14 : vector<1x128xf32> to vector<8x128xf32>
    %18 = arith.addf %16, %17 : vector<8x128xf32>
    %c0_8 = arith.constant 0 : index
    %c0_9 = arith.constant 0 : index
    %c0_10 = arith.constant 0 : index
    %19 = vector.load %arg32[%c0_8, %c0_9, %c0_10] : memref<2x1x128xf32, #tpu.memory_space<vmem>>, vector<1x1x128xf32>
    %20 = vector.shape_cast %19 : vector<1x1x128xf32> to vector<1x128xf32>
    %c0_11 = arith.constant 0 : index
    %c0_12 = arith.constant 0 : index
    %c0_13 = arith.constant 0 : index
    %21 = vector.load %arg31[%c0_11, %c0_12, %c0_13] : memref<2x1x128xf32, #tpu.memory_space<vmem>>, vector<1x1x128xf32>
    %22 = vector.shape_cast %21 : vector<1x1x128xf32> to vector<1x128xf32>
    %cst_14 = arith.constant dense<0.000000e+00> : vector<8xf32>
    %23 = vector.multi_reduction <add>, %18, %cst_14 [1] : vector<8x128xf32> to vector<8xf32>
    %24 = vector.shape_cast %23 : vector<8xf32> to vector<8x1xf32>
    %cst_15 = arith.constant 1.280000e+02 : f32
    %25 = vector.broadcast %cst_15 : f32 to vector<8x1xf32>
    %26 = arith.divf %24, %25 : vector<8x1xf32>
    %27 = vector.broadcast %26 : vector<8x1xf32> to vector<8x128xf32>
    %28 = arith.subf %18, %27 : vector<8x128xf32>
    %29 = arith.mulf %28, %28 : vector<8x128xf32>
    %cst_16 = arith.constant dense<0.000000e+00> : vector<8xf32>
    %30 = vector.multi_reduction <add>, %29, %cst_16 [1] : vector<8x128xf32> to vector<8xf32>
    %31 = vector.shape_cast %30 : vector<8xf32> to vector<8x1xf32>
    %cst_17 = arith.constant 1.280000e+02 : f32
    %32 = vector.broadcast %cst_17 : f32 to vector<8x1xf32>
    %33 = arith.divf %31, %32 : vector<8x1xf32>
    %34 = vector.broadcast %26 : vector<8x1xf32> to vector<8x128xf32>
    %35 = arith.subf %18, %34 : vector<8x128xf32>
    %cst_18 = arith.constant 9.99999974E-6 : f32
    %36 = vector.broadcast %cst_18 : f32 to vector<8x1xf32>
    %37 = arith.addf %33, %36 : vector<8x1xf32>
    %38 = math.rsqrt %37 : vector<8x1xf32>
    %39 = vector.broadcast %38 : vector<8x1xf32> to vector<8x128xf32>
    %40 = arith.mulf %35, %39 : vector<8x128xf32>
    %41 = vector.broadcast %20 : vector<1x128xf32> to vector<8x128xf32>
    %42 = arith.mulf %40, %41 : vector<8x128xf32>
    %43 = vector.broadcast %22 : vector<1x128xf32> to vector<8x128xf32>
    %44 = arith.addf %42, %43 : vector<8x128xf32>
    %c0_19 = arith.constant 0 : index
    %c0_20 = arith.constant 0 : index
    %c0_21 = arith.constant 0 : index
    %45 = vector.load %arg21[%c0_19, %c0_20, %c0_21] : memref<2x128x256xbf16, #tpu.memory_space<vmem>>, vector<1x128x256xbf16>
    %46 = vector.shape_cast %45 : vector<1x128x256xbf16> to vector<128x256xbf16>
    %c0_22 = arith.constant 0 : index
    %c0_23 = arith.constant 0 : index
    %c0_24 = arith.constant 0 : index
    %47 = vector.load %arg19[%c0_22, %c0_23, %c0_24] : memref<2x1x256xf32, #tpu.memory_space<vmem>>, vector<1x1x256xf32>
    %48 = vector.shape_cast %47 : vector<1x1x256xf32> to vector<1x256xf32>
    %c0_25 = arith.constant 0 : index
    %c0_26 = arith.constant 0 : index
    %c0_27 = arith.constant 0 : index
    %49 = vector.load %arg22[%c0_25, %c0_26, %c0_27] : memref<2x256x128xbf16, #tpu.memory_space<vmem>>, vector<1x256x128xbf16>
    %50 = vector.shape_cast %49 : vector<1x256x128xbf16> to vector<256x128xbf16>
    %c0_28 = arith.constant 0 : index
    %c0_29 = arith.constant 0 : index
    %c0_30 = arith.constant 0 : index
    %51 = vector.load %arg20[%c0_28, %c0_29, %c0_30] : memref<2x1x128xf32, #tpu.memory_space<vmem>>, vector<1x1x128xf32>
    %52 = vector.shape_cast %51 : vector<1x1x128xf32> to vector<1x128xf32>
    %53 = arith.truncf %44 : vector<8x128xf32> to vector<8x128xbf16>
    %cst_31 = arith.constant dense<0.000000e+00> : vector<8x256xf32>
    %54 = tpu.matmul %53, %46, %cst_31 {dimension_numbers = #tpu.dot_dimension_numbers<[1], [0], [0], [1], [0, 0, 1, 1], [], []>} : vector<8x128xbf16>, vector<128x256xbf16>, vector<8x256xf32> -> vector<8x256xf32>
    %55 = vector.broadcast %48 : vector<1x256xf32> to vector<8x256xf32>
    %56 = arith.addf %54, %55 : vector<8x256xf32>
    %cst_32 = arith.constant 0.000000e+00 : f32
    %57 = vector.broadcast %cst_32 : f32 to vector<8x256xf32>
    %58 = arith.subf %57, %56 : vector<8x256xf32>
    %59 = math.exp %58 : vector<8x256xf32>
    %cst_33 = arith.constant 1.000000e+00 : f32
    %60 = vector.broadcast %cst_33 : f32 to vector<8x256xf32>
    %61 = arith.addf %60, %59 : vector<8x256xf32>
    %cst_34 = arith.constant 1.000000e+00 : f32
    %62 = vector.broadcast %cst_34 : f32 to vector<8x256xf32>
    %63 = arith.divf %62, %61 : vector<8x256xf32>
    %64 = arith.mulf %56, %63 : vector<8x256xf32>
    %65 = arith.truncf %64 : vector<8x256xf32> to vector<8x256xbf16>
    %cst_35 = arith.constant dense<0.000000e+00> : vector<8x128xf32>
    %66 = tpu.matmul %65, %50, %cst_35 {dimension_numbers = #tpu.dot_dimension_numbers<[1], [0], [0], [1], [0, 0, 1, 1], [], []>} : vector<8x256xbf16>, vector<256x128xbf16>, vector<8x128xf32> -> vector<8x128xf32>
    %67 = vector.broadcast %52 : vector<1x128xf32> to vector<8x128xf32>
    %68 = arith.addf %66, %67 : vector<8x128xf32>
    %cst_36 = arith.constant 5.000000e-01 : f32
    %69 = vector.broadcast %cst_36 : f32 to vector<8x128xf32>
    %70 = arith.mulf %69, %68 : vector<8x128xf32>
    %71 = arith.addf %18, %70 : vector<8x128xf32>
    %c0_37 = arith.constant 0 : index
    %c0_38 = arith.constant 0 : index
    %c0_39 = arith.constant 0 : index
    %72 = vector.load %arg28[%c0_37, %c0_38, %c0_39] : memref<2x1x128xf32, #tpu.memory_space<vmem>>, vector<1x1x128xf32>
    %73 = vector.shape_cast %72 : vector<1x1x128xf32> to vector<1x128xf32>
    %c0_40 = arith.constant 0 : index
    %c0_41 = arith.constant 0 : index
    %c0_42 = arith.constant 0 : index
    %74 = vector.load %arg27[%c0_40, %c0_41, %c0_42] : memref<2x1x128xf32, #tpu.memory_space<vmem>>, vector<1x1x128xf32>
    %75 = vector.shape_cast %74 : vector<1x1x128xf32> to vector<1x128xf32>
    %cst_43 = arith.constant dense<0.000000e+00> : vector<8xf32>
    %76 = vector.multi_reduction <add>, %71, %cst_43 [1] : vector<8x128xf32> to vector<8xf32>
    %77 = vector.shape_cast %76 : vector<8xf32> to vector<8x1xf32>
    %cst_44 = arith.constant 1.280000e+02 : f32
    %78 = vector.broadcast %cst_44 : f32 to vector<8x1xf32>
    %79 = arith.divf %77, %78 : vector<8x1xf32>
    %80 = vector.broadcast %79 : vector<8x1xf32> to vector<8x128xf32>
    %81 = arith.subf %71, %80 : vector<8x128xf32>
    %82 = arith.mulf %81, %81 : vector<8x128xf32>
    %cst_45 = arith.constant dense<0.000000e+00> : vector<8xf32>
    %83 = vector.multi_reduction <add>, %82, %cst_45 [1] : vector<8x128xf32> to vector<8xf32>
    %84 = vector.shape_cast %83 : vector<8xf32> to vector<8x1xf32>
    %cst_46 = arith.constant 1.280000e+02 : f32
    %85 = vector.broadcast %cst_46 : f32 to vector<8x1xf32>
    %86 = arith.divf %84, %85 : vector<8x1xf32>
    %87 = vector.broadcast %79 : vector<8x1xf32> to vector<8x128xf32>
    %88 = arith.subf %71, %87 : vector<8x128xf32>
    %cst_47 = arith.constant 9.99999974E-6 : f32
    %89 = vector.broadcast %cst_47 : f32 to vector<8x1xf32>
    %90 = arith.addf %86, %89 : vector<8x1xf32>
    %91 = math.rsqrt %90 : vector<8x1xf32>
    %92 = vector.broadcast %91 : vector<8x1xf32> to vector<8x128xf32>
    %93 = arith.mulf %88, %92 : vector<8x128xf32>
    %94 = vector.broadcast %73 : vector<1x128xf32> to vector<8x128xf32>
    %95 = arith.mulf %93, %94 : vector<8x128xf32>
    %96 = vector.broadcast %75 : vector<1x128xf32> to vector<8x128xf32>
    %97 = arith.addf %95, %96 : vector<8x128xf32>
    %c0_48 = arith.constant 0 : index
    %c0_49 = arith.constant 0 : index
    %c0_50 = arith.constant 0 : index
    %98 = vector.load %arg9[%c0_48, %c0_49, %c0_50] : memref<2x128x128xbf16, #tpu.memory_space<vmem>>, vector<1x128x128xbf16>
    %99 = vector.shape_cast %98 : vector<1x128x128xbf16> to vector<128x128xbf16>
    %c0_51 = arith.constant 0 : index
    %c0_52 = arith.constant 0 : index
    %c0_53 = arith.constant 0 : index
    %100 = vector.load %arg5[%c0_51, %c0_52, %c0_53] : memref<2x1x128xf32, #tpu.memory_space<vmem>>, vector<1x1x128xf32>
    %101 = vector.shape_cast %100 : vector<1x1x128xf32> to vector<1x128xf32>
    %c0_54 = arith.constant 0 : index
    %c0_55 = arith.constant 0 : index
    %c0_56 = arith.constant 0 : index
    %102 = vector.load %arg7[%c0_54, %c0_55, %c0_56] : memref<2x128x128xbf16, #tpu.memory_space<vmem>>, vector<1x128x128xbf16>
    %103 = vector.shape_cast %102 : vector<1x128x128xbf16> to vector<128x128xbf16>
    %c0_57 = arith.constant 0 : index
    %c0_58 = arith.constant 0 : index
    %c0_59 = arith.constant 0 : index
    %104 = vector.load %arg3[%c0_57, %c0_58, %c0_59] : memref<2x1x128xf32, #tpu.memory_space<vmem>>, vector<1x1x128xf32>
    %105 = vector.shape_cast %104 : vector<1x1x128xf32> to vector<1x128xf32>
    %c0_60 = arith.constant 0 : index
    %c0_61 = arith.constant 0 : index
    %c0_62 = arith.constant 0 : index
    %106 = vector.load %arg10[%c0_60, %c0_61, %c0_62] : memref<2x128x128xbf16, #tpu.memory_space<vmem>>, vector<1x128x128xbf16>
    %107 = vector.shape_cast %106 : vector<1x128x128xbf16> to vector<128x128xbf16>
    %c0_63 = arith.constant 0 : index
    %c0_64 = arith.constant 0 : index
    %c0_65 = arith.constant 0 : index
    %108 = vector.load %arg6[%c0_63, %c0_64, %c0_65] : memref<2x1x128xf32, #tpu.memory_space<vmem>>, vector<1x1x128xf32>
    %109 = vector.shape_cast %108 : vector<1x1x128xf32> to vector<1x128xf32>
    %c0_66 = arith.constant 0 : index
    %c0_67 = arith.constant 0 : index
    %c0_68 = arith.constant 0 : index
    %110 = vector.load %arg8[%c0_66, %c0_67, %c0_68] : memref<2x128x128xbf16, #tpu.memory_space<vmem>>, vector<1x128x128xbf16>
    %111 = vector.shape_cast %110 : vector<1x128x128xbf16> to vector<128x128xbf16>
    %c0_69 = arith.constant 0 : index
    %c0_70 = arith.constant 0 : index
    %c0_71 = arith.constant 0 : index
    %112 = vector.load %arg4[%c0_69, %c0_70, %c0_71] : memref<2x1x128xf32, #tpu.memory_space<vmem>>, vector<1x1x128xf32>
    %113 = vector.shape_cast %112 : vector<1x1x128xf32> to vector<1x128xf32>
    %114 = arith.truncf %97 : vector<8x128xf32> to vector<8x128xbf16>
    %cst_72 = arith.constant dense<0.000000e+00> : vector<8x128xf32>
    %115 = tpu.matmul %114, %99, %cst_72 {dimension_numbers = #tpu.dot_dimension_numbers<[1], [0], [0], [1], [0, 0, 1, 1], [], []>} : vector<8x128xbf16>, vector<128x128xbf16>, vector<8x128xf32> -> vector<8x128xf32>
    %116 = vector.broadcast %101 : vector<1x128xf32> to vector<8x128xf32>
    %117 = arith.addf %115, %116 : vector<8x128xf32>
    %118 = arith.truncf %97 : vector<8x128xf32> to vector<8x128xbf16>
    %cst_73 = arith.constant dense<0.000000e+00> : vector<8x128xf32>
    %119 = tpu.matmul %118, %103, %cst_73 {dimension_numbers = #tpu.dot_dimension_numbers<[1], [0], [0], [1], [0, 0, 1, 1], [], []>} : vector<8x128xbf16>, vector<128x128xbf16>, vector<8x128xf32> -> vector<8x128xf32>
    %120 = vector.broadcast %105 : vector<1x128xf32> to vector<8x128xf32>
    %121 = arith.addf %119, %120 : vector<8x128xf32>
    %122 = arith.truncf %97 : vector<8x128xf32> to vector<8x128xbf16>
    %cst_74 = arith.constant dense<0.000000e+00> : vector<8x128xf32>
    %123 = tpu.matmul %122, %107, %cst_74 {dimension_numbers = #tpu.dot_dimension_numbers<[1], [0], [0], [1], [0, 0, 1, 1], [], []>} : vector<8x128xbf16>, vector<128x128xbf16>, vector<8x128xf32> -> vector<8x128xf32>
    %124 = vector.broadcast %109 : vector<1x128xf32> to vector<8x128xf32>
    %125 = arith.addf %123, %124 : vector<8x128xf32>
    %126 = vector.extract_strided_slice %117 {offsets = [0, 0], sizes = [8, 32], strides = [1, 1]} : vector<8x128xf32> to vector<8x32xf32>
    %127 = vector.extract_strided_slice %121 {offsets = [0, 0], sizes = [8, 32], strides = [1, 1]} : vector<8x128xf32> to vector<8x32xf32>
    %128 = vector.extract_strided_slice %125 {offsets = [0, 0], sizes = [8, 32], strides = [1, 1]} : vector<8x128xf32> to vector<8x32xf32>
    %129 = arith.truncf %126 : vector<8x32xf32> to vector<8x32xbf16>
    %130 = arith.truncf %127 : vector<8x32xf32> to vector<8x32xbf16>
    %cst_75 = arith.constant dense<0.000000e+00> : vector<8x8xf32>
    %131 = tpu.matmul %129, %130, %cst_75 {dimension_numbers = #tpu.dot_dimension_numbers<[1], [1], [0], [0], [0, 0, 1, 0], [], []>} : vector<8x32xbf16>, vector<8x32xbf16>, vector<8x8xf32> -> vector<8x8xf32>
    %cst_76 = arith.constant 0.176776692 : f32
    %132 = vector.broadcast %cst_76 : f32 to vector<8x8xf32>
    %133 = arith.mulf %131, %132 : vector<8x8xf32>
    %134 = vector.broadcast %12 : vector<1x8xf32> to vector<8x8xf32>
    %135 = arith.addf %133, %134 : vector<8x8xf32>
    %cst_77 = arith.constant dense<0xFF800000> : vector<8xf32>
    %136 = vector.multi_reduction <maximumf>, %135, %cst_77 [1] : vector<8x8xf32> to vector<8xf32>
    %137 = vector.shape_cast %136 : vector<8xf32> to vector<8x1xf32>
    %138 = vector.broadcast %137 : vector<8x1xf32> to vector<8x8xf32>
    %139 = arith.subf %135, %138 : vector<8x8xf32>
    %140 = math.exp %139 : vector<8x8xf32>
    %cst_78 = arith.constant dense<0.000000e+00> : vector<8xf32>
    %141 = vector.multi_reduction <add>, %140, %cst_78 [1] : vector<8x8xf32> to vector<8xf32>
    %142 = vector.shape_cast %141 : vector<8xf32> to vector<8x1xf32>
    %143 = tpu.reciprocal %142 {approx = true} : vector<8x1xf32> -> vector<8x1xf32>
    %144 = vector.broadcast %143 : vector<8x1xf32> to vector<8x8xf32>
    %145 = arith.mulf %140, %144 : vector<8x8xf32>
    %146 = arith.truncf %145 : vector<8x8xf32> to vector<8x8xbf16>
    %147 = arith.truncf %128 : vector<8x32xf32> to vector<8x32xbf16>
    %cst_79 = arith.constant dense<0.000000e+00> : vector<8x32xf32>
    %148 = tpu.matmul %146, %147, %cst_79 {dimension_numbers = #tpu.dot_dimension_numbers<[1], [0], [0], [1], [0, 0, 1, 1], [], []>} : vector<8x8xbf16>, vector<8x32xbf16>, vector<8x32xf32> -> vector<8x32xf32>
    %149 = vector.extract_strided_slice %111 {offsets = [0, 0], sizes = [32, 128], strides = [1, 1]} : vector<128x128xbf16> to vector<32x128xbf16>
    %150 = arith.truncf %148 : vector<8x32xf32> to vector<8x32xbf16>
    %cst_80 = arith.constant dense<0.000000e+00> : vector<8x128xf32>
    %151 = tpu.matmul %150, %149, %cst_80 {dimension_numbers = #tpu.dot_dimension_numbers<[1], [0], [0], [1], [0, 0, 1, 1], [], []>} : vector<8x32xbf16>, vector<32x128xbf16>, vector<8x128xf32> -> vector<8x128xf32>
    %152 = vector.extract_strided_slice %117 {offsets = [0, 32], sizes = [8, 32], strides = [1, 1]} : vector<8x128xf32> to vector<8x32xf32>
    %153 = vector.extract_strided_slice %121 {offsets = [0, 32], sizes = [8, 32], strides = [1, 1]} : vector<8x128xf32> to vector<8x32xf32>
    %154 = vector.extract_strided_slice %125 {offsets = [0, 32], sizes = [8, 32], strides = [1, 1]} : vector<8x128xf32> to vector<8x32xf32>
    %155 = arith.truncf %152 : vector<8x32xf32> to vector<8x32xbf16>
    %156 = arith.truncf %153 : vector<8x32xf32> to vector<8x32xbf16>
    %cst_81 = arith.constant dense<0.000000e+00> : vector<8x8xf32>
    %157 = tpu.matmul %155, %156, %cst_81 {dimension_numbers = #tpu.dot_dimension_numbers<[1], [1], [0], [0], [0, 0, 1, 0], [], []>} : vector<8x32xbf16>, vector<8x32xbf16>, vector<8x8xf32> -> vector<8x8xf32>
    %cst_82 = arith.constant 0.176776692 : f32
    %158 = vector.broadcast %cst_82 : f32 to vector<8x8xf32>
    %159 = arith.mulf %157, %158 : vector<8x8xf32>
    %160 = vector.broadcast %12 : vector<1x8xf32> to vector<8x8xf32>
    %161 = arith.addf %159, %160 : vector<8x8xf32>
    %cst_83 = arith.constant dense<0xFF800000> : vector<8xf32>
    %162 = vector.multi_reduction <maximumf>, %161, %cst_83 [1] : vector<8x8xf32> to vector<8xf32>
    %163 = vector.shape_cast %162 : vector<8xf32> to vector<8x1xf32>
    %164 = vector.broadcast %163 : vector<8x1xf32> to vector<8x8xf32>
    %165 = arith.subf %161, %164 : vector<8x8xf32>
    %166 = math.exp %165 : vector<8x8xf32>
    %cst_84 = arith.constant dense<0.000000e+00> : vector<8xf32>
    %167 = vector.multi_reduction <add>, %166, %cst_84 [1] : vector<8x8xf32> to vector<8xf32>
    %168 = vector.shape_cast %167 : vector<8xf32> to vector<8x1xf32>
    %169 = tpu.reciprocal %168 {approx = true} : vector<8x1xf32> -> vector<8x1xf32>
    %170 = vector.broadcast %169 : vector<8x1xf32> to vector<8x8xf32>
    %171 = arith.mulf %166, %170 : vector<8x8xf32>
    %172 = arith.truncf %171 : vector<8x8xf32> to vector<8x8xbf16>
    %173 = arith.truncf %154 : vector<8x32xf32> to vector<8x32xbf16>
    %cst_85 = arith.constant dense<0.000000e+00> : vector<8x32xf32>
    %174 = tpu.matmul %172, %173, %cst_85 {dimension_numbers = #tpu.dot_dimension_numbers<[1], [0], [0], [1], [0, 0, 1, 1], [], []>} : vector<8x8xbf16>, vector<8x32xbf16>, vector<8x32xf32> -> vector<8x32xf32>
    %175 = vector.extract_strided_slice %111 {offsets = [32, 0], sizes = [32, 128], strides = [1, 1]} : vector<128x128xbf16> to vector<32x128xbf16>
    %176 = arith.truncf %174 : vector<8x32xf32> to vector<8x32xbf16>
    %cst_86 = arith.constant dense<0.000000e+00> : vector<8x128xf32>
    %177 = tpu.matmul %176, %175, %cst_86 {dimension_numbers = #tpu.dot_dimension_numbers<[1], [0], [0], [1], [0, 0, 1, 1], [], []>} : vector<8x32xbf16>, vector<32x128xbf16>, vector<8x128xf32> -> vector<8x128xf32>
    %178 = arith.addf %151, %177 : vector<8x128xf32>
    %179 = vector.extract_strided_slice %117 {offsets = [0, 64], sizes = [8, 32], strides = [1, 1]} : vector<8x128xf32> to vector<8x32xf32>
    %180 = vector.extract_strided_slice %121 {offsets = [0, 64], sizes = [8, 32], strides = [1, 1]} : vector<8x128xf32> to vector<8x32xf32>
    %181 = vector.extract_strided_slice %125 {offsets = [0, 64], sizes = [8, 32], strides = [1, 1]} : vector<8x128xf32> to vector<8x32xf32>
    %182 = arith.truncf %179 : vector<8x32xf32> to vector<8x32xbf16>
    %183 = arith.truncf %180 : vector<8x32xf32> to vector<8x32xbf16>
    %cst_87 = arith.constant dense<0.000000e+00> : vector<8x8xf32>
    %184 = tpu.matmul %182, %183, %cst_87 {dimension_numbers = #tpu.dot_dimension_numbers<[1], [1], [0], [0], [0, 0, 1, 0], [], []>} : vector<8x32xbf16>, vector<8x32xbf16>, vector<8x8xf32> -> vector<8x8xf32>
    %cst_88 = arith.constant 0.176776692 : f32
    %185 = vector.broadcast %cst_88 : f32 to vector<8x8xf32>
    %186 = arith.mulf %184, %185 : vector<8x8xf32>
    %187 = vector.broadcast %12 : vector<1x8xf32> to vector<8x8xf32>
    %188 = arith.addf %186, %187 : vector<8x8xf32>
    %cst_89 = arith.constant dense<0xFF800000> : vector<8xf32>
    %189 = vector.multi_reduction <maximumf>, %188, %cst_89 [1] : vector<8x8xf32> to vector<8xf32>
    %190 = vector.shape_cast %189 : vector<8xf32> to vector<8x1xf32>
    %191 = vector.broadcast %190 : vector<8x1xf32> to vector<8x8xf32>
    %192 = arith.subf %188, %191 : vector<8x8xf32>
    %193 = math.exp %192 : vector<8x8xf32>
    %cst_90 = arith.constant dense<0.000000e+00> : vector<8xf32>
    %194 = vector.multi_reduction <add>, %193, %cst_90 [1] : vector<8x8xf32> to vector<8xf32>
    %195 = vector.shape_cast %194 : vector<8xf32> to vector<8x1xf32>
    %196 = tpu.reciprocal %195 {approx = true} : vector<8x1xf32> -> vector<8x1xf32>
    %197 = vector.broadcast %196 : vector<8x1xf32> to vector<8x8xf32>
    %198 = arith.mulf %193, %197 : vector<8x8xf32>
    %199 = arith.truncf %198 : vector<8x8xf32> to vector<8x8xbf16>
    %200 = arith.truncf %181 : vector<8x32xf32> to vector<8x32xbf16>
    %cst_91 = arith.constant dense<0.000000e+00> : vector<8x32xf32>
    %201 = tpu.matmul %199, %200, %cst_91 {dimension_numbers = #tpu.dot_dimension_numbers<[1], [0], [0], [1], [0, 0, 1, 1], [], []>} : vector<8x8xbf16>, vector<8x32xbf16>, vector<8x32xf32> -> vector<8x32xf32>
    %202 = vector.extract_strided_slice %111 {offsets = [64, 0], sizes = [32, 128], strides = [1, 1]} : vector<128x128xbf16> to vector<32x128xbf16>
    %203 = arith.truncf %201 : vector<8x32xf32> to vector<8x32xbf16>
    %cst_92 = arith.constant dense<0.000000e+00> : vector<8x128xf32>
    %204 = tpu.matmul %203, %202, %cst_92 {dimension_numbers = #tpu.dot_dimension_numbers<[1], [0], [0], [1], [0, 0, 1, 1], [], []>} : vector<8x32xbf16>, vector<32x128xbf16>, vector<8x128xf32> -> vector<8x128xf32>
    %205 = arith.addf %178, %204 : vector<8x128xf32>
    %206 = vector.extract_strided_slice %117 {offsets = [0, 96], sizes = [8, 32], strides = [1, 1]} : vector<8x128xf32> to vector<8x32xf32>
    %207 = vector.extract_strided_slice %121 {offsets = [0, 96], sizes = [8, 32], strides = [1, 1]} : vector<8x128xf32> to vector<8x32xf32>
    %208 = vector.extract_strided_slice %125 {offsets = [0, 96], sizes = [8, 32], strides = [1, 1]} : vector<8x128xf32> to vector<8x32xf32>
    %209 = arith.truncf %206 : vector<8x32xf32> to vector<8x32xbf16>
    %210 = arith.truncf %207 : vector<8x32xf32> to vector<8x32xbf16>
    %cst_93 = arith.constant dense<0.000000e+00> : vector<8x8xf32>
    %211 = tpu.matmul %209, %210, %cst_93 {dimension_numbers = #tpu.dot_dimension_numbers<[1], [1], [0], [0], [0, 0, 1, 0], [], []>} : vector<8x32xbf16>, vector<8x32xbf16>, vector<8x8xf32> -> vector<8x8xf32>
    %cst_94 = arith.constant 0.176776692 : f32
    %212 = vector.broadcast %cst_94 : f32 to vector<8x8xf32>
    %213 = arith.mulf %211, %212 : vector<8x8xf32>
    %214 = vector.broadcast %12 : vector<1x8xf32> to vector<8x8xf32>
    %215 = arith.addf %213, %214 : vector<8x8xf32>
    %cst_95 = arith.constant dense<0xFF800000> : vector<8xf32>
    %216 = vector.multi_reduction <maximumf>, %215, %cst_95 [1] : vector<8x8xf32> to vector<8xf32>
    %217 = vector.shape_cast %216 : vector<8xf32> to vector<8x1xf32>
    %218 = vector.broadcast %217 : vector<8x1xf32> to vector<8x8xf32>
    %219 = arith.subf %215, %218 : vector<8x8xf32>
    %220 = math.exp %219 : vector<8x8xf32>
    %cst_96 = arith.constant dense<0.000000e+00> : vector<8xf32>
    %221 = vector.multi_reduction <add>, %220, %cst_96 [1] : vector<8x8xf32> to vector<8xf32>
    %222 = vector.shape_cast %221 : vector<8xf32> to vector<8x1xf32>
    %223 = tpu.reciprocal %222 {approx = true} : vector<8x1xf32> -> vector<8x1xf32>
    %224 = vector.broadcast %223 : vector<8x1xf32> to vector<8x8xf32>
    %225 = arith.mulf %220, %224 : vector<8x8xf32>
    %226 = arith.truncf %225 : vector<8x8xf32> to vector<8x8xbf16>
    %227 = arith.truncf %208 : vector<8x32xf32> to vector<8x32xbf16>
    %cst_97 = arith.constant dense<0.000000e+00> : vector<8x32xf32>
    %228 = tpu.matmul %226, %227, %cst_97 {dimension_numbers = #tpu.dot_dimension_numbers<[1], [0], [0], [1], [0, 0, 1, 1], [], []>} : vector<8x8xbf16>, vector<8x32xbf16>, vector<8x32xf32> -> vector<8x32xf32>
    %229 = vector.extract_strided_slice %111 {offsets = [96, 0], sizes = [32, 128], strides = [1, 1]} : vector<128x128xbf16> to vector<32x128xbf16>
    %230 = arith.truncf %228 : vector<8x32xf32> to vector<8x32xbf16>
    %cst_98 = arith.constant dense<0.000000e+00> : vector<8x128xf32>
    %231 = tpu.matmul %230, %229, %cst_98 {dimension_numbers = #tpu.dot_dimension_numbers<[1], [0], [0], [1], [0, 0, 1, 1], [], []>} : vector<8x32xbf16>, vector<32x128xbf16>, vector<8x128xf32> -> vector<8x128xf32>
    %232 = arith.addf %205, %231 : vector<8x128xf32>
    %233 = vector.broadcast %113 : vector<1x128xf32> to vector<8x128xf32>
    %234 = arith.addf %232, %233 : vector<8x128xf32>
    %235 = arith.addf %71, %234 : vector<8x128xf32>
    %c0_99 = arith.constant 0 : index
    %c0_100 = arith.constant 0 : index
    %c0_101 = arith.constant 0 : index
    %236 = vector.load %arg30[%c0_99, %c0_100, %c0_101] : memref<2x1x128xf32, #tpu.memory_space<vmem>>, vector<1x1x128xf32>
    %237 = vector.shape_cast %236 : vector<1x1x128xf32> to vector<1x128xf32>
    %c0_102 = arith.constant 0 : index
    %c0_103 = arith.constant 0 : index
    %c0_104 = arith.constant 0 : index
    %238 = vector.load %arg29[%c0_102, %c0_103, %c0_104] : memref<2x1x128xf32, #tpu.memory_space<vmem>>, vector<1x1x128xf32>
    %239 = vector.shape_cast %238 : vector<1x1x128xf32> to vector<1x128xf32>
    %cst_105 = arith.constant dense<0.000000e+00> : vector<8xf32>
    %240 = vector.multi_reduction <add>, %235, %cst_105 [1] : vector<8x128xf32> to vector<8xf32>
    %241 = vector.shape_cast %240 : vector<8xf32> to vector<8x1xf32>
    %cst_106 = arith.constant 1.280000e+02 : f32
    %242 = vector.broadcast %cst_106 : f32 to vector<8x1xf32>
    %243 = arith.divf %241, %242 : vector<8x1xf32>
    %244 = vector.broadcast %243 : vector<8x1xf32> to vector<8x128xf32>
    %245 = arith.subf %235, %244 : vector<8x128xf32>
    %246 = arith.mulf %245, %245 : vector<8x128xf32>
    %cst_107 = arith.constant dense<0.000000e+00> : vector<8xf32>
    %247 = vector.multi_reduction <add>, %246, %cst_107 [1] : vector<8x128xf32> to vector<8xf32>
    %248 = vector.shape_cast %247 : vector<8xf32> to vector<8x1xf32>
    %cst_108 = arith.constant 1.280000e+02 : f32
    %249 = vector.broadcast %cst_108 : f32 to vector<8x1xf32>
    %250 = arith.divf %248, %249 : vector<8x1xf32>
    %251 = vector.broadcast %243 : vector<8x1xf32> to vector<8x128xf32>
    %252 = arith.subf %235, %251 : vector<8x128xf32>
    %cst_109 = arith.constant 9.99999974E-6 : f32
    %253 = vector.broadcast %cst_109 : f32 to vector<8x1xf32>
    %254 = arith.addf %250, %253 : vector<8x1xf32>
    %255 = math.rsqrt %254 : vector<8x1xf32>
    %256 = vector.broadcast %255 : vector<8x1xf32> to vector<8x128xf32>
    %257 = arith.mulf %252, %256 : vector<8x128xf32>
    %258 = vector.broadcast %237 : vector<1x128xf32> to vector<8x128xf32>
    %259 = arith.mulf %257, %258 : vector<8x128xf32>
    %260 = vector.broadcast %239 : vector<1x128xf32> to vector<8x128xf32>
    %261 = arith.addf %259, %260 : vector<8x128xf32>
    %c0_110 = arith.constant 0 : index
    %c0_111 = arith.constant 0 : index
    %c0_112 = arith.constant 0 : index
    %262 = vector.load %arg16[%c0_110, %c0_111, %c0_112] : memref<2x128x256xbf16, #tpu.memory_space<vmem>>, vector<1x128x256xbf16>
    %263 = vector.shape_cast %262 : vector<1x128x256xbf16> to vector<128x256xbf16>
    %c0_113 = arith.constant 0 : index
    %c0_114 = arith.constant 0 : index
    %c0_115 = arith.constant 0 : index
    %264 = vector.load %arg15[%c0_113, %c0_114, %c0_115] : memref<2x1x256xf32, #tpu.memory_space<vmem>>, vector<1x1x256xf32>
    %265 = vector.shape_cast %264 : vector<1x1x256xf32> to vector<1x256xf32>
    %c0_116 = arith.constant 0 : index
    %c0_117 = arith.constant 0 : index
    %c0_118 = arith.constant 0 : index
    %266 = vector.load %arg14[%c0_116, %c0_117, %c0_118] : memref<2x5x128xf32, #tpu.memory_space<vmem>>, vector<1x5x128xf32>
    %267 = vector.shape_cast %266 : vector<1x5x128xf32> to vector<5x128xf32>
    %c0_119 = arith.constant 0 : index
    %c0_120 = arith.constant 0 : index
    %c0_121 = arith.constant 0 : index
    %268 = vector.load %arg13[%c0_119, %c0_120, %c0_121] : memref<2x1x128xf32, #tpu.memory_space<vmem>>, vector<1x1x128xf32>
    %269 = vector.shape_cast %268 : vector<1x1x128xf32> to vector<1x128xf32>
    %c0_122 = arith.constant 0 : index
    %c0_123 = arith.constant 0 : index
    %c0_124 = arith.constant 0 : index
    %270 = vector.load %arg12[%c0_122, %c0_123, %c0_124] : memref<2x1x128xf32, #tpu.memory_space<vmem>>, vector<1x1x128xf32>
    %271 = vector.shape_cast %270 : vector<1x1x128xf32> to vector<1x128xf32>
    %c0_125 = arith.constant 0 : index
    %c0_126 = arith.constant 0 : index
    %c0_127 = arith.constant 0 : index
    %272 = vector.load %arg11[%c0_125, %c0_126, %c0_127] : memref<2x1x128xf32, #tpu.memory_space<vmem>>, vector<1x1x128xf32>
    %273 = vector.shape_cast %272 : vector<1x1x128xf32> to vector<1x128xf32>
    %c0_128 = arith.constant 0 : index
    %c0_129 = arith.constant 0 : index
    %c0_130 = arith.constant 0 : index
    %274 = vector.load %arg18[%c0_128, %c0_129, %c0_130] : memref<2x128x128xbf16, #tpu.memory_space<vmem>>, vector<1x128x128xbf16>
    %275 = vector.shape_cast %274 : vector<1x128x128xbf16> to vector<128x128xbf16>
    %c0_131 = arith.constant 0 : index
    %c0_132 = arith.constant 0 : index
    %c0_133 = arith.constant 0 : index
    %276 = vector.load %arg17[%c0_131, %c0_132, %c0_133] : memref<2x1x128xf32, #tpu.memory_space<vmem>>, vector<1x1x128xf32>
    %277 = vector.shape_cast %276 : vector<1x1x128xf32> to vector<1x128xf32>
    %278 = arith.truncf %261 : vector<8x128xf32> to vector<8x128xbf16>
    %cst_134 = arith.constant dense<0.000000e+00> : vector<8x256xf32>
    %279 = tpu.matmul %278, %263, %cst_134 {dimension_numbers = #tpu.dot_dimension_numbers<[1], [0], [0], [1], [0, 0, 1, 1], [], []>} : vector<8x128xbf16>, vector<128x256xbf16>, vector<8x256xf32> -> vector<8x256xf32>
    %280 = vector.broadcast %265 : vector<1x256xf32> to vector<8x256xf32>
    %281 = arith.addf %279, %280 : vector<8x256xf32>
    %282 = vector.extract_strided_slice %281 {offsets = [0, 0], sizes = [8, 128], strides = [1, 1]} : vector<8x256xf32> to vector<8x128xf32>
    %283 = vector.extract_strided_slice %281 {offsets = [0, 128], sizes = [8, 128], strides = [1, 1]} : vector<8x256xf32> to vector<8x128xf32>
    %cst_135 = arith.constant 0.000000e+00 : f32
    %284 = vector.broadcast %cst_135 : f32 to vector<8x128xf32>
    %285 = arith.subf %284, %283 : vector<8x128xf32>
    %286 = math.exp %285 : vector<8x128xf32>
    %cst_136 = arith.constant 1.000000e+00 : f32
    %287 = vector.broadcast %cst_136 : f32 to vector<8x128xf32>
    %288 = arith.addf %287, %286 : vector<8x128xf32>
    %cst_137 = arith.constant 1.000000e+00 : f32
    %289 = vector.broadcast %cst_137 : f32 to vector<8x128xf32>
    %290 = arith.divf %289, %288 : vector<8x128xf32>
    %291 = arith.mulf %282, %290 : vector<8x128xf32>
    %cst_138 = arith.constant 0.000000e+00 : f32
    %292 = vector.shape_cast %6 : vector<8x1xi1> to vector<8x1xi1>
    %293 = vector.broadcast %292 : vector<8x1xi1> to vector<8x128xi1>
    %294 = vector.broadcast %cst_138 : f32 to vector<8x128xf32>
    %295 = arith.select %293, %291, %294 : vector<8x128xi1>, vector<8x128xf32>
    %296 = tpu.iota {dimensions = array<i32: 0>} : vector<8x1xi32>
    %297 = vector.extract_strided_slice %267 {offsets = [2, 0], sizes = [1, 128], strides = [1, 1]} : vector<5x128xf32> to vector<1x128xf32>
    %298 = vector.shape_cast %297 : vector<1x128xf32> to vector<128xf32>
    %299 = vector.shape_cast %298 : vector<128xf32> to vector<1x128xf32>
    %300 = vector.broadcast %299 : vector<1x128xf32> to vector<8x128xf32>
    %301 = arith.mulf %295, %300 : vector<8x128xf32>
    %c2_i32 = arith.constant 2 : i32
    %302 = tpu.dynamic_rotate %295 by %c2_i32 dim 0 : vector<8x128xf32>, i32 -> vector<8x128xf32>
    %c-2_i32 = arith.constant -2 : i32
    %303 = vector.broadcast %c-2_i32 : i32 to vector<8x1xi32>
    %304 = arith.addi %296, %303 : vector<8x1xi32>
    %c0_i32 = arith.constant 0 : i32
    %305 = vector.broadcast %c0_i32 : i32 to vector<8x1xi32>
    %306 = arith.cmpi sge, %304, %305 : vector<8x1xi32>
    %c-2_i32_139 = arith.constant -2 : i32
    %307 = vector.broadcast %c-2_i32_139 : i32 to vector<8x1xi32>
    %308 = arith.addi %296, %307 : vector<8x1xi32>
    %c8_i32 = arith.constant 8 : i32
    %309 = vector.broadcast %c8_i32 : i32 to vector<8x1xi32>
    %310 = arith.cmpi slt, %308, %309 : vector<8x1xi32>
    %311 = arith.andi %306, %310 : vector<8x1xi1>
    %cst_140 = arith.constant 0.000000e+00 : f32
    %312 = vector.shape_cast %311 : vector<8x1xi1> to vector<8x1xi1>
    %313 = vector.broadcast %312 : vector<8x1xi1> to vector<8x128xi1>
    %314 = vector.broadcast %cst_140 : f32 to vector<8x128xf32>
    %315 = arith.select %313, %302, %314 : vector<8x128xi1>, vector<8x128xf32>
    %316 = vector.extract_strided_slice %267 {offsets = [0, 0], sizes = [1, 128], strides = [1, 1]} : vector<5x128xf32> to vector<1x128xf32>
    %317 = vector.shape_cast %316 : vector<1x128xf32> to vector<128xf32>
    %318 = vector.shape_cast %317 : vector<128xf32> to vector<1x128xf32>
    %319 = vector.broadcast %318 : vector<1x128xf32> to vector<8x128xf32>
    %320 = arith.mulf %315, %319 : vector<8x128xf32>
    %321 = arith.addf %301, %320 : vector<8x128xf32>
    %c1_i32 = arith.constant 1 : i32
    %322 = tpu.dynamic_rotate %295 by %c1_i32 dim 0 : vector<8x128xf32>, i32 -> vector<8x128xf32>
    %c-1_i32 = arith.constant -1 : i32
    %323 = vector.broadcast %c-1_i32 : i32 to vector<8x1xi32>
    %324 = arith.addi %296, %323 : vector<8x1xi32>
    %c0_i32_141 = arith.constant 0 : i32
    %325 = vector.broadcast %c0_i32_141 : i32 to vector<8x1xi32>
    %326 = arith.cmpi sge, %324, %325 : vector<8x1xi32>
    %c-1_i32_142 = arith.constant -1 : i32
    %327 = vector.broadcast %c-1_i32_142 : i32 to vector<8x1xi32>
    %328 = arith.addi %296, %327 : vector<8x1xi32>
    %c8_i32_143 = arith.constant 8 : i32
    %329 = vector.broadcast %c8_i32_143 : i32 to vector<8x1xi32>
    %330 = arith.cmpi slt, %328, %329 : vector<8x1xi32>
    %331 = arith.andi %326, %330 : vector<8x1xi1>
    %cst_144 = arith.constant 0.000000e+00 : f32
    %332 = vector.shape_cast %331 : vector<8x1xi1> to vector<8x1xi1>
    %333 = vector.broadcast %332 : vector<8x1xi1> to vector<8x128xi1>
    %334 = vector.broadcast %cst_144 : f32 to vector<8x128xf32>
    %335 = arith.select %333, %322, %334 : vector<8x128xi1>, vector<8x128xf32>
    %336 = vector.extract_strided_slice %267 {offsets = [1, 0], sizes = [1, 128], strides = [1, 1]} : vector<5x128xf32> to vector<1x128xf32>
    %337 = vector.shape_cast %336 : vector<1x128xf32> to vector<128xf32>
    %338 = vector.shape_cast %337 : vector<128xf32> to vector<1x128xf32>
    %339 = vector.broadcast %338 : vector<1x128xf32> to vector<8x128xf32>
    %340 = arith.mulf %335, %339 : vector<8x128xf32>
    %341 = arith.addf %321, %340 : vector<8x128xf32>
    %c7_i32 = arith.constant 7 : i32
    %342 = tpu.dynamic_rotate %295 by %c7_i32 dim 0 : vector<8x128xf32>, i32 -> vector<8x128xf32>
    %c1_i32_145 = arith.constant 1 : i32
    %343 = vector.broadcast %c1_i32_145 : i32 to vector<8x1xi32>
    %344 = arith.addi %296, %343 : vector<8x1xi32>
    %c0_i32_146 = arith.constant 0 : i32
    %345 = vector.broadcast %c0_i32_146 : i32 to vector<8x1xi32>
    %346 = arith.cmpi sge, %344, %345 : vector<8x1xi32>
    %c1_i32_147 = arith.constant 1 : i32
    %347 = vector.broadcast %c1_i32_147 : i32 to vector<8x1xi32>
    %348 = arith.addi %296, %347 : vector<8x1xi32>
    %c8_i32_148 = arith.constant 8 : i32
    %349 = vector.broadcast %c8_i32_148 : i32 to vector<8x1xi32>
    %350 = arith.cmpi slt, %348, %349 : vector<8x1xi32>
    %351 = arith.andi %346, %350 : vector<8x1xi1>
    %cst_149 = arith.constant 0.000000e+00 : f32
    %352 = vector.shape_cast %351 : vector<8x1xi1> to vector<8x1xi1>
    %353 = vector.broadcast %352 : vector<8x1xi1> to vector<8x128xi1>
    %354 = vector.broadcast %cst_149 : f32 to vector<8x128xf32>
    %355 = arith.select %353, %342, %354 : vector<8x128xi1>, vector<8x128xf32>
    %356 = vector.extract_strided_slice %267 {offsets = [3, 0], sizes = [1, 128], strides = [1, 1]} : vector<5x128xf32> to vector<1x128xf32>
    %357 = vector.shape_cast %356 : vector<1x128xf32> to vector<128xf32>
    %358 = vector.shape_cast %357 : vector<128xf32> to vector<1x128xf32>
    %359 = vector.broadcast %358 : vector<1x128xf32> to vector<8x128xf32>
    %360 = arith.mulf %355, %359 : vector<8x128xf32>
    %361 = arith.addf %341, %360 : vector<8x128xf32>
    %c6_i32 = arith.constant 6 : i32
    %362 = tpu.dynamic_rotate %295 by %c6_i32 dim 0 : vector<8x128xf32>, i32 -> vector<8x128xf32>
    %c2_i32_150 = arith.constant 2 : i32
    %363 = vector.broadcast %c2_i32_150 : i32 to vector<8x1xi32>
    %364 = arith.addi %296, %363 : vector<8x1xi32>
    %c0_i32_151 = arith.constant 0 : i32
    %365 = vector.broadcast %c0_i32_151 : i32 to vector<8x1xi32>
    %366 = arith.cmpi sge, %364, %365 : vector<8x1xi32>
    %c2_i32_152 = arith.constant 2 : i32
    %367 = vector.broadcast %c2_i32_152 : i32 to vector<8x1xi32>
    %368 = arith.addi %296, %367 : vector<8x1xi32>
    %c8_i32_153 = arith.constant 8 : i32
    %369 = vector.broadcast %c8_i32_153 : i32 to vector<8x1xi32>
    %370 = arith.cmpi slt, %368, %369 : vector<8x1xi32>
    %371 = arith.andi %366, %370 : vector<8x1xi1>
    %cst_154 = arith.constant 0.000000e+00 : f32
    %372 = vector.shape_cast %371 : vector<8x1xi1> to vector<8x1xi1>
    %373 = vector.broadcast %372 : vector<8x1xi1> to vector<8x128xi1>
    %374 = vector.broadcast %cst_154 : f32 to vector<8x128xf32>
    %375 = arith.select %373, %362, %374 : vector<8x128xi1>, vector<8x128xf32>
    %376 = vector.extract_strided_slice %267 {offsets = [4, 0], sizes = [1, 128], strides = [1, 1]} : vector<5x128xf32> to vector<1x128xf32>
    %377 = vector.shape_cast %376 : vector<1x128xf32> to vector<128xf32>
    %378 = vector.shape_cast %377 : vector<128xf32> to vector<1x128xf32>
    %379 = vector.broadcast %378 : vector<1x128xf32> to vector<8x128xf32>
    %380 = arith.mulf %375, %379 : vector<8x128xf32>
    %381 = arith.addf %361, %380 : vector<8x128xf32>
    %382 = vector.broadcast %269 : vector<1x128xf32> to vector<8x128xf32>
    %383 = arith.addf %381, %382 : vector<8x128xf32>
    %384 = vector.broadcast %271 : vector<1x128xf32> to vector<8x128xf32>
    %385 = arith.mulf %383, %384 : vector<8x128xf32>
    %386 = vector.broadcast %273 : vector<1x128xf32> to vector<8x128xf32>
    %387 = arith.addf %385, %386 : vector<8x128xf32>
    %cst_155 = arith.constant 0.000000e+00 : f32
    %388 = vector.broadcast %cst_155 : f32 to vector<8x128xf32>
    %389 = arith.subf %388, %387 : vector<8x128xf32>
    %390 = math.exp %389 : vector<8x128xf32>
    %cst_156 = arith.constant 1.000000e+00 : f32
    %391 = vector.broadcast %cst_156 : f32 to vector<8x128xf32>
    %392 = arith.addf %391, %390 : vector<8x128xf32>
    %cst_157 = arith.constant 1.000000e+00 : f32
    %393 = vector.broadcast %cst_157 : f32 to vector<8x128xf32>
    %394 = arith.divf %393, %392 : vector<8x128xf32>
    %395 = arith.mulf %387, %394 : vector<8x128xf32>
    %396 = arith.truncf %395 : vector<8x128xf32> to vector<8x128xbf16>
    %cst_158 = arith.constant dense<0.000000e+00> : vector<8x128xf32>
    %397 = tpu.matmul %396, %275, %cst_158 {dimension_numbers = #tpu.dot_dimension_numbers<[1], [0], [0], [1], [0, 0, 1, 1], [], []>} : vector<8x128xbf16>, vector<128x128xbf16>, vector<8x128xf32> -> vector<8x128xf32>
    %398 = vector.broadcast %277 : vector<1x128xf32> to vector<8x128xf32>
    %399 = arith.addf %397, %398 : vector<8x128xf32>
    %400 = arith.addf %235, %399 : vector<8x128xf32>
    %c0_159 = arith.constant 0 : index
    %c0_160 = arith.constant 0 : index
    %c0_161 = arith.constant 0 : index
    %401 = vector.load %arg34[%c0_159, %c0_160, %c0_161] : memref<2x1x128xf32, #tpu.memory_space<vmem>>, vector<1x1x128xf32>
    %402 = vector.shape_cast %401 : vector<1x1x128xf32> to vector<1x128xf32>
    %c0_162 = arith.constant 0 : index
    %c0_163 = arith.constant 0 : index
    %c0_164 = arith.constant 0 : index
    %403 = vector.load %arg33[%c0_162, %c0_163, %c0_164] : memref<2x1x128xf32, #tpu.memory_space<vmem>>, vector<1x1x128xf32>
    %404 = vector.shape_cast %403 : vector<1x1x128xf32> to vector<1x128xf32>
    %cst_165 = arith.constant dense<0.000000e+00> : vector<8xf32>
    %405 = vector.multi_reduction <add>, %400, %cst_165 [1] : vector<8x128xf32> to vector<8xf32>
    %406 = vector.shape_cast %405 : vector<8xf32> to vector<8x1xf32>
    %cst_166 = arith.constant 1.280000e+02 : f32
    %407 = vector.broadcast %cst_166 : f32 to vector<8x1xf32>
    %408 = arith.divf %406, %407 : vector<8x1xf32>
    %409 = vector.broadcast %408 : vector<8x1xf32> to vector<8x128xf32>
    %410 = arith.subf %400, %409 : vector<8x128xf32>
    %411 = arith.mulf %410, %410 : vector<8x128xf32>
    %cst_167 = arith.constant dense<0.000000e+00> : vector<8xf32>
    %412 = vector.multi_reduction <add>, %411, %cst_167 [1] : vector<8x128xf32> to vector<8xf32>
    %413 = vector.shape_cast %412 : vector<8xf32> to vector<8x1xf32>
    %cst_168 = arith.constant 1.280000e+02 : f32
    %414 = vector.broadcast %cst_168 : f32 to vector<8x1xf32>
    %415 = arith.divf %413, %414 : vector<8x1xf32>
    %416 = vector.broadcast %408 : vector<8x1xf32> to vector<8x128xf32>
    %417 = arith.subf %400, %416 : vector<8x128xf32>
    %cst_169 = arith.constant 9.99999974E-6 : f32
    %418 = vector.broadcast %cst_169 : f32 to vector<8x1xf32>
    %419 = arith.addf %415, %418 : vector<8x1xf32>
    %420 = math.rsqrt %419 : vector<8x1xf32>
    %421 = vector.broadcast %420 : vector<8x1xf32> to vector<8x128xf32>
    %422 = arith.mulf %417, %421 : vector<8x128xf32>
    %423 = vector.broadcast %402 : vector<1x128xf32> to vector<8x128xf32>
    %424 = arith.mulf %422, %423 : vector<8x128xf32>
    %425 = vector.broadcast %404 : vector<1x128xf32> to vector<8x128xf32>
    %426 = arith.addf %424, %425 : vector<8x128xf32>
    %c0_170 = arith.constant 0 : index
    %c0_171 = arith.constant 0 : index
    %c0_172 = arith.constant 0 : index
    %427 = vector.load %arg25[%c0_170, %c0_171, %c0_172] : memref<2x128x256xbf16, #tpu.memory_space<vmem>>, vector<1x128x256xbf16>
    %428 = vector.shape_cast %427 : vector<1x128x256xbf16> to vector<128x256xbf16>
    %c0_173 = arith.constant 0 : index
    %c0_174 = arith.constant 0 : index
    %c0_175 = arith.constant 0 : index
    %429 = vector.load %arg23[%c0_173, %c0_174, %c0_175] : memref<2x1x256xf32, #tpu.memory_space<vmem>>, vector<1x1x256xf32>
    %430 = vector.shape_cast %429 : vector<1x1x256xf32> to vector<1x256xf32>
    %c0_176 = arith.constant 0 : index
    %c0_177 = arith.constant 0 : index
    %c0_178 = arith.constant 0 : index
    %431 = vector.load %arg26[%c0_176, %c0_177, %c0_178] : memref<2x256x128xbf16, #tpu.memory_space<vmem>>, vector<1x256x128xbf16>
    %432 = vector.shape_cast %431 : vector<1x256x128xbf16> to vector<256x128xbf16>
    %c0_179 = arith.constant 0 : index
    %c0_180 = arith.constant 0 : index
    %c0_181 = arith.constant 0 : index
    %433 = vector.load %arg24[%c0_179, %c0_180, %c0_181] : memref<2x1x128xf32, #tpu.memory_space<vmem>>, vector<1x1x128xf32>
    %434 = vector.shape_cast %433 : vector<1x1x128xf32> to vector<1x128xf32>
    %435 = arith.truncf %426 : vector<8x128xf32> to vector<8x128xbf16>
    %cst_182 = arith.constant dense<0.000000e+00> : vector<8x256xf32>
    %436 = tpu.matmul %435, %428, %cst_182 {dimension_numbers = #tpu.dot_dimension_numbers<[1], [0], [0], [1], [0, 0, 1, 1], [], []>} : vector<8x128xbf16>, vector<128x256xbf16>, vector<8x256xf32> -> vector<8x256xf32>
    %437 = vector.broadcast %430 : vector<1x256xf32> to vector<8x256xf32>
    %438 = arith.addf %436, %437 : vector<8x256xf32>
    %cst_183 = arith.constant 0.000000e+00 : f32
    %439 = vector.broadcast %cst_183 : f32 to vector<8x256xf32>
    %440 = arith.subf %439, %438 : vector<8x256xf32>
    %441 = math.exp %440 : vector<8x256xf32>
    %cst_184 = arith.constant 1.000000e+00 : f32
    %442 = vector.broadcast %cst_184 : f32 to vector<8x256xf32>
    %443 = arith.addf %442, %441 : vector<8x256xf32>
    %cst_185 = arith.constant 1.000000e+00 : f32
    %444 = vector.broadcast %cst_185 : f32 to vector<8x256xf32>
    %445 = arith.divf %444, %443 : vector<8x256xf32>
    %446 = arith.mulf %438, %445 : vector<8x256xf32>
    %447 = arith.truncf %446 : vector<8x256xf32> to vector<8x256xbf16>
    %cst_186 = arith.constant dense<0.000000e+00> : vector<8x128xf32>
    %448 = tpu.matmul %447, %432, %cst_186 {dimension_numbers = #tpu.dot_dimension_numbers<[1], [0], [0], [1], [0, 0, 1, 1], [], []>} : vector<8x256xbf16>, vector<256x128xbf16>, vector<8x128xf32> -> vector<8x128xf32>
    %449 = vector.broadcast %434 : vector<1x128xf32> to vector<8x128xf32>
    %450 = arith.addf %448, %449 : vector<8x128xf32>
    %cst_187 = arith.constant 5.000000e-01 : f32
    %451 = vector.broadcast %cst_187 : f32 to vector<8x128xf32>
    %452 = arith.mulf %451, %450 : vector<8x128xf32>
    %453 = arith.addf %400, %452 : vector<8x128xf32>
    %c0_188 = arith.constant 0 : index
    %c0_189 = arith.constant 0 : index
    %c0_190 = arith.constant 0 : index
    %454 = vector.load %arg36[%c0_188, %c0_189, %c0_190] : memref<2x1x128xf32, #tpu.memory_space<vmem>>, vector<1x1x128xf32>
    %455 = vector.shape_cast %454 : vector<1x1x128xf32> to vector<1x128xf32>
    %c0_191 = arith.constant 0 : index
    %c0_192 = arith.constant 0 : index
    %c0_193 = arith.constant 0 : index
    %456 = vector.load %arg35[%c0_191, %c0_192, %c0_193] : memref<2x1x128xf32, #tpu.memory_space<vmem>>, vector<1x1x128xf32>
    %457 = vector.shape_cast %456 : vector<1x1x128xf32> to vector<1x128xf32>
    %cst_194 = arith.constant dense<0.000000e+00> : vector<8xf32>
    %458 = vector.multi_reduction <add>, %453, %cst_194 [1] : vector<8x128xf32> to vector<8xf32>
    %459 = vector.shape_cast %458 : vector<8xf32> to vector<8x1xf32>
    %cst_195 = arith.constant 1.280000e+02 : f32
    %460 = vector.broadcast %cst_195 : f32 to vector<8x1xf32>
    %461 = arith.divf %459, %460 : vector<8x1xf32>
    %462 = vector.broadcast %461 : vector<8x1xf32> to vector<8x128xf32>
    %463 = arith.subf %453, %462 : vector<8x128xf32>
    %464 = arith.mulf %463, %463 : vector<8x128xf32>
    %cst_196 = arith.constant dense<0.000000e+00> : vector<8xf32>
    %465 = vector.multi_reduction <add>, %464, %cst_196 [1] : vector<8x128xf32> to vector<8xf32>
    %466 = vector.shape_cast %465 : vector<8xf32> to vector<8x1xf32>
    %cst_197 = arith.constant 1.280000e+02 : f32
    %467 = vector.broadcast %cst_197 : f32 to vector<8x1xf32>
    %468 = arith.divf %466, %467 : vector<8x1xf32>
    %469 = vector.broadcast %461 : vector<8x1xf32> to vector<8x128xf32>
    %470 = arith.subf %453, %469 : vector<8x128xf32>
    %cst_198 = arith.constant 9.99999974E-6 : f32
    %471 = vector.broadcast %cst_198 : f32 to vector<8x1xf32>
    %472 = arith.addf %468, %471 : vector<8x1xf32>
    %473 = math.rsqrt %472 : vector<8x1xf32>
    %474 = vector.broadcast %473 : vector<8x1xf32> to vector<8x128xf32>
    %475 = arith.mulf %470, %474 : vector<8x128xf32>
    %476 = vector.broadcast %455 : vector<1x128xf32> to vector<8x128xf32>
    %477 = arith.mulf %475, %476 : vector<8x128xf32>
    %478 = vector.broadcast %457 : vector<1x128xf32> to vector<8x128xf32>
    %479 = arith.addf %477, %478 : vector<8x128xf32>
    %c1 = arith.constant 1 : index
    %c0_199 = arith.constant 0 : index
    %c0_200 = arith.constant 0 : index
    %480 = vector.load %arg32[%c1, %c0_199, %c0_200] : memref<2x1x128xf32, #tpu.memory_space<vmem>>, vector<1x1x128xf32>
    %481 = vector.shape_cast %480 : vector<1x1x128xf32> to vector<1x128xf32>
    %c1_201 = arith.constant 1 : index
    %c0_202 = arith.constant 0 : index
    %c0_203 = arith.constant 0 : index
    %482 = vector.load %arg31[%c1_201, %c0_202, %c0_203] : memref<2x1x128xf32, #tpu.memory_space<vmem>>, vector<1x1x128xf32>
    %483 = vector.shape_cast %482 : vector<1x1x128xf32> to vector<1x128xf32>
    %cst_204 = arith.constant dense<0.000000e+00> : vector<8xf32>
    %484 = vector.multi_reduction <add>, %479, %cst_204 [1] : vector<8x128xf32> to vector<8xf32>
    %485 = vector.shape_cast %484 : vector<8xf32> to vector<8x1xf32>
    %cst_205 = arith.constant 1.280000e+02 : f32
    %486 = vector.broadcast %cst_205 : f32 to vector<8x1xf32>
    %487 = arith.divf %485, %486 : vector<8x1xf32>
    %488 = vector.broadcast %487 : vector<8x1xf32> to vector<8x128xf32>
    %489 = arith.subf %479, %488 : vector<8x128xf32>
    %490 = arith.mulf %489, %489 : vector<8x128xf32>
    %cst_206 = arith.constant dense<0.000000e+00> : vector<8xf32>
    %491 = vector.multi_reduction <add>, %490, %cst_206 [1] : vector<8x128xf32> to vector<8xf32>
    %492 = vector.shape_cast %491 : vector<8xf32> to vector<8x1xf32>
    %cst_207 = arith.constant 1.280000e+02 : f32
    %493 = vector.broadcast %cst_207 : f32 to vector<8x1xf32>
    %494 = arith.divf %492, %493 : vector<8x1xf32>
    %495 = vector.broadcast %487 : vector<8x1xf32> to vector<8x128xf32>
    %496 = arith.subf %479, %495 : vector<8x128xf32>
    %cst_208 = arith.constant 9.99999974E-6 : f32
    %497 = vector.broadcast %cst_208 : f32 to vector<8x1xf32>
    %498 = arith.addf %494, %497 : vector<8x1xf32>
    %499 = math.rsqrt %498 : vector<8x1xf32>
    %500 = vector.broadcast %499 : vector<8x1xf32> to vector<8x128xf32>
    %501 = arith.mulf %496, %500 : vector<8x128xf32>
    %502 = vector.broadcast %481 : vector<1x128xf32> to vector<8x128xf32>
    %503 = arith.mulf %501, %502 : vector<8x128xf32>
    %504 = vector.broadcast %483 : vector<1x128xf32> to vector<8x128xf32>
    %505 = arith.addf %503, %504 : vector<8x128xf32>
    %c1_209 = arith.constant 1 : index
    %c0_210 = arith.constant 0 : index
    %c0_211 = arith.constant 0 : index
    %506 = vector.load %arg21[%c1_209, %c0_210, %c0_211] : memref<2x128x256xbf16, #tpu.memory_space<vmem>>, vector<1x128x256xbf16>
    %507 = vector.shape_cast %506 : vector<1x128x256xbf16> to vector<128x256xbf16>
    %c1_212 = arith.constant 1 : index
    %c0_213 = arith.constant 0 : index
    %c0_214 = arith.constant 0 : index
    %508 = vector.load %arg19[%c1_212, %c0_213, %c0_214] : memref<2x1x256xf32, #tpu.memory_space<vmem>>, vector<1x1x256xf32>
    %509 = vector.shape_cast %508 : vector<1x1x256xf32> to vector<1x256xf32>
    %c1_215 = arith.constant 1 : index
    %c0_216 = arith.constant 0 : index
    %c0_217 = arith.constant 0 : index
    %510 = vector.load %arg22[%c1_215, %c0_216, %c0_217] : memref<2x256x128xbf16, #tpu.memory_space<vmem>>, vector<1x256x128xbf16>
    %511 = vector.shape_cast %510 : vector<1x256x128xbf16> to vector<256x128xbf16>
    %c1_218 = arith.constant 1 : index
    %c0_219 = arith.constant 0 : index
    %c0_220 = arith.constant 0 : index
    %512 = vector.load %arg20[%c1_218, %c0_219, %c0_220] : memref<2x1x128xf32, #tpu.memory_space<vmem>>, vector<1x1x128xf32>
    %513 = vector.shape_cast %512 : vector<1x1x128xf32> to vector<1x128xf32>
    %514 = arith.truncf %505 : vector<8x128xf32> to vector<8x128xbf16>
    %cst_221 = arith.constant dense<0.000000e+00> : vector<8x256xf32>
    %515 = tpu.matmul %514, %507, %cst_221 {dimension_numbers = #tpu.dot_dimension_numbers<[1], [0], [0], [1], [0, 0, 1, 1], [], []>} : vector<8x128xbf16>, vector<128x256xbf16>, vector<8x256xf32> -> vector<8x256xf32>
    %516 = vector.broadcast %509 : vector<1x256xf32> to vector<8x256xf32>
    %517 = arith.addf %515, %516 : vector<8x256xf32>
    %cst_222 = arith.constant 0.000000e+00 : f32
    %518 = vector.broadcast %cst_222 : f32 to vector<8x256xf32>
    %519 = arith.subf %518, %517 : vector<8x256xf32>
    %520 = math.exp %519 : vector<8x256xf32>
    %cst_223 = arith.constant 1.000000e+00 : f32
    %521 = vector.broadcast %cst_223 : f32 to vector<8x256xf32>
    %522 = arith.addf %521, %520 : vector<8x256xf32>
    %cst_224 = arith.constant 1.000000e+00 : f32
    %523 = vector.broadcast %cst_224 : f32 to vector<8x256xf32>
    %524 = arith.divf %523, %522 : vector<8x256xf32>
    %525 = arith.mulf %517, %524 : vector<8x256xf32>
    %526 = arith.truncf %525 : vector<8x256xf32> to vector<8x256xbf16>
    %cst_225 = arith.constant dense<0.000000e+00> : vector<8x128xf32>
    %527 = tpu.matmul %526, %511, %cst_225 {dimension_numbers = #tpu.dot_dimension_numbers<[1], [0], [0], [1], [0, 0, 1, 1], [], []>} : vector<8x256xbf16>, vector<256x128xbf16>, vector<8x128xf32> -> vector<8x128xf32>
    %528 = vector.broadcast %513 : vector<1x128xf32> to vector<8x128xf32>
    %529 = arith.addf %527, %528 : vector<8x128xf32>
    %cst_226 = arith.constant 5.000000e-01 : f32
    %530 = vector.broadcast %cst_226 : f32 to vector<8x128xf32>
    %531 = arith.mulf %530, %529 : vector<8x128xf32>
    %532 = arith.addf %479, %531 : vector<8x128xf32>
    %c1_227 = arith.constant 1 : index
    %c0_228 = arith.constant 0 : index
    %c0_229 = arith.constant 0 : index
    %533 = vector.load %arg28[%c1_227, %c0_228, %c0_229] : memref<2x1x128xf32, #tpu.memory_space<vmem>>, vector<1x1x128xf32>
    %534 = vector.shape_cast %533 : vector<1x1x128xf32> to vector<1x128xf32>
    %c1_230 = arith.constant 1 : index
    %c0_231 = arith.constant 0 : index
    %c0_232 = arith.constant 0 : index
    %535 = vector.load %arg27[%c1_230, %c0_231, %c0_232] : memref<2x1x128xf32, #tpu.memory_space<vmem>>, vector<1x1x128xf32>
    %536 = vector.shape_cast %535 : vector<1x1x128xf32> to vector<1x128xf32>
    %cst_233 = arith.constant dense<0.000000e+00> : vector<8xf32>
    %537 = vector.multi_reduction <add>, %532, %cst_233 [1] : vector<8x128xf32> to vector<8xf32>
    %538 = vector.shape_cast %537 : vector<8xf32> to vector<8x1xf32>
    %cst_234 = arith.constant 1.280000e+02 : f32
    %539 = vector.broadcast %cst_234 : f32 to vector<8x1xf32>
    %540 = arith.divf %538, %539 : vector<8x1xf32>
    %541 = vector.broadcast %540 : vector<8x1xf32> to vector<8x128xf32>
    %542 = arith.subf %532, %541 : vector<8x128xf32>
    %543 = arith.mulf %542, %542 : vector<8x128xf32>
    %cst_235 = arith.constant dense<0.000000e+00> : vector<8xf32>
    %544 = vector.multi_reduction <add>, %543, %cst_235 [1] : vector<8x128xf32> to vector<8xf32>
    %545 = vector.shape_cast %544 : vector<8xf32> to vector<8x1xf32>
    %cst_236 = arith.constant 1.280000e+02 : f32
    %546 = vector.broadcast %cst_236 : f32 to vector<8x1xf32>
    %547 = arith.divf %545, %546 : vector<8x1xf32>
    %548 = vector.broadcast %540 : vector<8x1xf32> to vector<8x128xf32>
    %549 = arith.subf %532, %548 : vector<8x128xf32>
    %cst_237 = arith.constant 9.99999974E-6 : f32
    %550 = vector.broadcast %cst_237 : f32 to vector<8x1xf32>
    %551 = arith.addf %547, %550 : vector<8x1xf32>
    %552 = math.rsqrt %551 : vector<8x1xf32>
    %553 = vector.broadcast %552 : vector<8x1xf32> to vector<8x128xf32>
    %554 = arith.mulf %549, %553 : vector<8x128xf32>
    %555 = vector.broadcast %534 : vector<1x128xf32> to vector<8x128xf32>
    %556 = arith.mulf %554, %555 : vector<8x128xf32>
    %557 = vector.broadcast %536 : vector<1x128xf32> to vector<8x128xf32>
    %558 = arith.addf %556, %557 : vector<8x128xf32>
    %c1_238 = arith.constant 1 : index
    %c0_239 = arith.constant 0 : index
    %c0_240 = arith.constant 0 : index
    %559 = vector.load %arg9[%c1_238, %c0_239, %c0_240] : memref<2x128x128xbf16, #tpu.memory_space<vmem>>, vector<1x128x128xbf16>
    %560 = vector.shape_cast %559 : vector<1x128x128xbf16> to vector<128x128xbf16>
    %c1_241 = arith.constant 1 : index
    %c0_242 = arith.constant 0 : index
    %c0_243 = arith.constant 0 : index
    %561 = vector.load %arg5[%c1_241, %c0_242, %c0_243] : memref<2x1x128xf32, #tpu.memory_space<vmem>>, vector<1x1x128xf32>
    %562 = vector.shape_cast %561 : vector<1x1x128xf32> to vector<1x128xf32>
    %c1_244 = arith.constant 1 : index
    %c0_245 = arith.constant 0 : index
    %c0_246 = arith.constant 0 : index
    %563 = vector.load %arg7[%c1_244, %c0_245, %c0_246] : memref<2x128x128xbf16, #tpu.memory_space<vmem>>, vector<1x128x128xbf16>
    %564 = vector.shape_cast %563 : vector<1x128x128xbf16> to vector<128x128xbf16>
    %c1_247 = arith.constant 1 : index
    %c0_248 = arith.constant 0 : index
    %c0_249 = arith.constant 0 : index
    %565 = vector.load %arg3[%c1_247, %c0_248, %c0_249] : memref<2x1x128xf32, #tpu.memory_space<vmem>>, vector<1x1x128xf32>
    %566 = vector.shape_cast %565 : vector<1x1x128xf32> to vector<1x128xf32>
    %c1_250 = arith.constant 1 : index
    %c0_251 = arith.constant 0 : index
    %c0_252 = arith.constant 0 : index
    %567 = vector.load %arg10[%c1_250, %c0_251, %c0_252] : memref<2x128x128xbf16, #tpu.memory_space<vmem>>, vector<1x128x128xbf16>
    %568 = vector.shape_cast %567 : vector<1x128x128xbf16> to vector<128x128xbf16>
    %c1_253 = arith.constant 1 : index
    %c0_254 = arith.constant 0 : index
    %c0_255 = arith.constant 0 : index
    %569 = vector.load %arg6[%c1_253, %c0_254, %c0_255] : memref<2x1x128xf32, #tpu.memory_space<vmem>>, vector<1x1x128xf32>
    %570 = vector.shape_cast %569 : vector<1x1x128xf32> to vector<1x128xf32>
    %c1_256 = arith.constant 1 : index
    %c0_257 = arith.constant 0 : index
    %c0_258 = arith.constant 0 : index
    %571 = vector.load %arg8[%c1_256, %c0_257, %c0_258] : memref<2x128x128xbf16, #tpu.memory_space<vmem>>, vector<1x128x128xbf16>
    %572 = vector.shape_cast %571 : vector<1x128x128xbf16> to vector<128x128xbf16>
    %c1_259 = arith.constant 1 : index
    %c0_260 = arith.constant 0 : index
    %c0_261 = arith.constant 0 : index
    %573 = vector.load %arg4[%c1_259, %c0_260, %c0_261] : memref<2x1x128xf32, #tpu.memory_space<vmem>>, vector<1x1x128xf32>
    %574 = vector.shape_cast %573 : vector<1x1x128xf32> to vector<1x128xf32>
    %575 = arith.truncf %558 : vector<8x128xf32> to vector<8x128xbf16>
    %cst_262 = arith.constant dense<0.000000e+00> : vector<8x128xf32>
    %576 = tpu.matmul %575, %560, %cst_262 {dimension_numbers = #tpu.dot_dimension_numbers<[1], [0], [0], [1], [0, 0, 1, 1], [], []>} : vector<8x128xbf16>, vector<128x128xbf16>, vector<8x128xf32> -> vector<8x128xf32>
    %577 = vector.broadcast %562 : vector<1x128xf32> to vector<8x128xf32>
    %578 = arith.addf %576, %577 : vector<8x128xf32>
    %579 = arith.truncf %558 : vector<8x128xf32> to vector<8x128xbf16>
    %cst_263 = arith.constant dense<0.000000e+00> : vector<8x128xf32>
    %580 = tpu.matmul %579, %564, %cst_263 {dimension_numbers = #tpu.dot_dimension_numbers<[1], [0], [0], [1], [0, 0, 1, 1], [], []>} : vector<8x128xbf16>, vector<128x128xbf16>, vector<8x128xf32> -> vector<8x128xf32>
    %581 = vector.broadcast %566 : vector<1x128xf32> to vector<8x128xf32>
    %582 = arith.addf %580, %581 : vector<8x128xf32>
    %583 = arith.truncf %558 : vector<8x128xf32> to vector<8x128xbf16>
    %cst_264 = arith.constant dense<0.000000e+00> : vector<8x128xf32>
    %584 = tpu.matmul %583, %568, %cst_264 {dimension_numbers = #tpu.dot_dimension_numbers<[1], [0], [0], [1], [0, 0, 1, 1], [], []>} : vector<8x128xbf16>, vector<128x128xbf16>, vector<8x128xf32> -> vector<8x128xf32>
    %585 = vector.broadcast %570 : vector<1x128xf32> to vector<8x128xf32>
    %586 = arith.addf %584, %585 : vector<8x128xf32>
    %587 = vector.extract_strided_slice %578 {offsets = [0, 0], sizes = [8, 32], strides = [1, 1]} : vector<8x128xf32> to vector<8x32xf32>
    %588 = vector.extract_strided_slice %582 {offsets = [0, 0], sizes = [8, 32], strides = [1, 1]} : vector<8x128xf32> to vector<8x32xf32>
    %589 = vector.extract_strided_slice %586 {offsets = [0, 0], sizes = [8, 32], strides = [1, 1]} : vector<8x128xf32> to vector<8x32xf32>
    %590 = arith.truncf %587 : vector<8x32xf32> to vector<8x32xbf16>
    %591 = arith.truncf %588 : vector<8x32xf32> to vector<8x32xbf16>
    %cst_265 = arith.constant dense<0.000000e+00> : vector<8x8xf32>
    %592 = tpu.matmul %590, %591, %cst_265 {dimension_numbers = #tpu.dot_dimension_numbers<[1], [1], [0], [0], [0, 0, 1, 0], [], []>} : vector<8x32xbf16>, vector<8x32xbf16>, vector<8x8xf32> -> vector<8x8xf32>
    %cst_266 = arith.constant 0.176776692 : f32
    %593 = vector.broadcast %cst_266 : f32 to vector<8x8xf32>
    %594 = arith.mulf %592, %593 : vector<8x8xf32>
    %595 = vector.broadcast %12 : vector<1x8xf32> to vector<8x8xf32>
    %596 = arith.addf %594, %595 : vector<8x8xf32>
    %cst_267 = arith.constant dense<0xFF800000> : vector<8xf32>
    %597 = vector.multi_reduction <maximumf>, %596, %cst_267 [1] : vector<8x8xf32> to vector<8xf32>
    %598 = vector.shape_cast %597 : vector<8xf32> to vector<8x1xf32>
    %599 = vector.broadcast %598 : vector<8x1xf32> to vector<8x8xf32>
    %600 = arith.subf %596, %599 : vector<8x8xf32>
    %601 = math.exp %600 : vector<8x8xf32>
    %cst_268 = arith.constant dense<0.000000e+00> : vector<8xf32>
    %602 = vector.multi_reduction <add>, %601, %cst_268 [1] : vector<8x8xf32> to vector<8xf32>
    %603 = vector.shape_cast %602 : vector<8xf32> to vector<8x1xf32>
    %604 = tpu.reciprocal %603 {approx = true} : vector<8x1xf32> -> vector<8x1xf32>
    %605 = vector.broadcast %604 : vector<8x1xf32> to vector<8x8xf32>
    %606 = arith.mulf %601, %605 : vector<8x8xf32>
    %607 = arith.truncf %606 : vector<8x8xf32> to vector<8x8xbf16>
    %608 = arith.truncf %589 : vector<8x32xf32> to vector<8x32xbf16>
    %cst_269 = arith.constant dense<0.000000e+00> : vector<8x32xf32>
    %609 = tpu.matmul %607, %608, %cst_269 {dimension_numbers = #tpu.dot_dimension_numbers<[1], [0], [0], [1], [0, 0, 1, 1], [], []>} : vector<8x8xbf16>, vector<8x32xbf16>, vector<8x32xf32> -> vector<8x32xf32>
    %610 = vector.extract_strided_slice %572 {offsets = [0, 0], sizes = [32, 128], strides = [1, 1]} : vector<128x128xbf16> to vector<32x128xbf16>
    %611 = arith.truncf %609 : vector<8x32xf32> to vector<8x32xbf16>
    %cst_270 = arith.constant dense<0.000000e+00> : vector<8x128xf32>
    %612 = tpu.matmul %611, %610, %cst_270 {dimension_numbers = #tpu.dot_dimension_numbers<[1], [0], [0], [1], [0, 0, 1, 1], [], []>} : vector<8x32xbf16>, vector<32x128xbf16>, vector<8x128xf32> -> vector<8x128xf32>
    %613 = vector.extract_strided_slice %578 {offsets = [0, 32], sizes = [8, 32], strides = [1, 1]} : vector<8x128xf32> to vector<8x32xf32>
    %614 = vector.extract_strided_slice %582 {offsets = [0, 32], sizes = [8, 32], strides = [1, 1]} : vector<8x128xf32> to vector<8x32xf32>
    %615 = vector.extract_strided_slice %586 {offsets = [0, 32], sizes = [8, 32], strides = [1, 1]} : vector<8x128xf32> to vector<8x32xf32>
    %616 = arith.truncf %613 : vector<8x32xf32> to vector<8x32xbf16>
    %617 = arith.truncf %614 : vector<8x32xf32> to vector<8x32xbf16>
    %cst_271 = arith.constant dense<0.000000e+00> : vector<8x8xf32>
    %618 = tpu.matmul %616, %617, %cst_271 {dimension_numbers = #tpu.dot_dimension_numbers<[1], [1], [0], [0], [0, 0, 1, 0], [], []>} : vector<8x32xbf16>, vector<8x32xbf16>, vector<8x8xf32> -> vector<8x8xf32>
    %cst_272 = arith.constant 0.176776692 : f32
    %619 = vector.broadcast %cst_272 : f32 to vector<8x8xf32>
    %620 = arith.mulf %618, %619 : vector<8x8xf32>
    %621 = vector.broadcast %12 : vector<1x8xf32> to vector<8x8xf32>
    %622 = arith.addf %620, %621 : vector<8x8xf32>
    %cst_273 = arith.constant dense<0xFF800000> : vector<8xf32>
    %623 = vector.multi_reduction <maximumf>, %622, %cst_273 [1] : vector<8x8xf32> to vector<8xf32>
    %624 = vector.shape_cast %623 : vector<8xf32> to vector<8x1xf32>
    %625 = vector.broadcast %624 : vector<8x1xf32> to vector<8x8xf32>
    %626 = arith.subf %622, %625 : vector<8x8xf32>
    %627 = math.exp %626 : vector<8x8xf32>
    %cst_274 = arith.constant dense<0.000000e+00> : vector<8xf32>
    %628 = vector.multi_reduction <add>, %627, %cst_274 [1] : vector<8x8xf32> to vector<8xf32>
    %629 = vector.shape_cast %628 : vector<8xf32> to vector<8x1xf32>
    %630 = tpu.reciprocal %629 {approx = true} : vector<8x1xf32> -> vector<8x1xf32>
    %631 = vector.broadcast %630 : vector<8x1xf32> to vector<8x8xf32>
    %632 = arith.mulf %627, %631 : vector<8x8xf32>
    %633 = arith.truncf %632 : vector<8x8xf32> to vector<8x8xbf16>
    %634 = arith.truncf %615 : vector<8x32xf32> to vector<8x32xbf16>
    %cst_275 = arith.constant dense<0.000000e+00> : vector<8x32xf32>
    %635 = tpu.matmul %633, %634, %cst_275 {dimension_numbers = #tpu.dot_dimension_numbers<[1], [0], [0], [1], [0, 0, 1, 1], [], []>} : vector<8x8xbf16>, vector<8x32xbf16>, vector<8x32xf32> -> vector<8x32xf32>
    %636 = vector.extract_strided_slice %572 {offsets = [32, 0], sizes = [32, 128], strides = [1, 1]} : vector<128x128xbf16> to vector<32x128xbf16>
    %637 = arith.truncf %635 : vector<8x32xf32> to vector<8x32xbf16>
    %cst_276 = arith.constant dense<0.000000e+00> : vector<8x128xf32>
    %638 = tpu.matmul %637, %636, %cst_276 {dimension_numbers = #tpu.dot_dimension_numbers<[1], [0], [0], [1], [0, 0, 1, 1], [], []>} : vector<8x32xbf16>, vector<32x128xbf16>, vector<8x128xf32> -> vector<8x128xf32>
    %639 = arith.addf %612, %638 : vector<8x128xf32>
    %640 = vector.extract_strided_slice %578 {offsets = [0, 64], sizes = [8, 32], strides = [1, 1]} : vector<8x128xf32> to vector<8x32xf32>
    %641 = vector.extract_strided_slice %582 {offsets = [0, 64], sizes = [8, 32], strides = [1, 1]} : vector<8x128xf32> to vector<8x32xf32>
    %642 = vector.extract_strided_slice %586 {offsets = [0, 64], sizes = [8, 32], strides = [1, 1]} : vector<8x128xf32> to vector<8x32xf32>
    %643 = arith.truncf %640 : vector<8x32xf32> to vector<8x32xbf16>
    %644 = arith.truncf %641 : vector<8x32xf32> to vector<8x32xbf16>
    %cst_277 = arith.constant dense<0.000000e+00> : vector<8x8xf32>
    %645 = tpu.matmul %643, %644, %cst_277 {dimension_numbers = #tpu.dot_dimension_numbers<[1], [1], [0], [0], [0, 0, 1, 0], [], []>} : vector<8x32xbf16>, vector<8x32xbf16>, vector<8x8xf32> -> vector<8x8xf32>
    %cst_278 = arith.constant 0.176776692 : f32
    %646 = vector.broadcast %cst_278 : f32 to vector<8x8xf32>
    %647 = arith.mulf %645, %646 : vector<8x8xf32>
    %648 = vector.broadcast %12 : vector<1x8xf32> to vector<8x8xf32>
    %649 = arith.addf %647, %648 : vector<8x8xf32>
    %cst_279 = arith.constant dense<0xFF800000> : vector<8xf32>
    %650 = vector.multi_reduction <maximumf>, %649, %cst_279 [1] : vector<8x8xf32> to vector<8xf32>
    %651 = vector.shape_cast %650 : vector<8xf32> to vector<8x1xf32>
    %652 = vector.broadcast %651 : vector<8x1xf32> to vector<8x8xf32>
    %653 = arith.subf %649, %652 : vector<8x8xf32>
    %654 = math.exp %653 : vector<8x8xf32>
    %cst_280 = arith.constant dense<0.000000e+00> : vector<8xf32>
    %655 = vector.multi_reduction <add>, %654, %cst_280 [1] : vector<8x8xf32> to vector<8xf32>
    %656 = vector.shape_cast %655 : vector<8xf32> to vector<8x1xf32>
    %657 = tpu.reciprocal %656 {approx = true} : vector<8x1xf32> -> vector<8x1xf32>
    %658 = vector.broadcast %657 : vector<8x1xf32> to vector<8x8xf32>
    %659 = arith.mulf %654, %658 : vector<8x8xf32>
    %660 = arith.truncf %659 : vector<8x8xf32> to vector<8x8xbf16>
    %661 = arith.truncf %642 : vector<8x32xf32> to vector<8x32xbf16>
    %cst_281 = arith.constant dense<0.000000e+00> : vector<8x32xf32>
    %662 = tpu.matmul %660, %661, %cst_281 {dimension_numbers = #tpu.dot_dimension_numbers<[1], [0], [0], [1], [0, 0, 1, 1], [], []>} : vector<8x8xbf16>, vector<8x32xbf16>, vector<8x32xf32> -> vector<8x32xf32>
    %663 = vector.extract_strided_slice %572 {offsets = [64, 0], sizes = [32, 128], strides = [1, 1]} : vector<128x128xbf16> to vector<32x128xbf16>
    %664 = arith.truncf %662 : vector<8x32xf32> to vector<8x32xbf16>
    %cst_282 = arith.constant dense<0.000000e+00> : vector<8x128xf32>
    %665 = tpu.matmul %664, %663, %cst_282 {dimension_numbers = #tpu.dot_dimension_numbers<[1], [0], [0], [1], [0, 0, 1, 1], [], []>} : vector<8x32xbf16>, vector<32x128xbf16>, vector<8x128xf32> -> vector<8x128xf32>
    %666 = arith.addf %639, %665 : vector<8x128xf32>
    %667 = vector.extract_strided_slice %578 {offsets = [0, 96], sizes = [8, 32], strides = [1, 1]} : vector<8x128xf32> to vector<8x32xf32>
    %668 = vector.extract_strided_slice %582 {offsets = [0, 96], sizes = [8, 32], strides = [1, 1]} : vector<8x128xf32> to vector<8x32xf32>
    %669 = vector.extract_strided_slice %586 {offsets = [0, 96], sizes = [8, 32], strides = [1, 1]} : vector<8x128xf32> to vector<8x32xf32>
    %670 = arith.truncf %667 : vector<8x32xf32> to vector<8x32xbf16>
    %671 = arith.truncf %668 : vector<8x32xf32> to vector<8x32xbf16>
    %cst_283 = arith.constant dense<0.000000e+00> : vector<8x8xf32>
    %672 = tpu.matmul %670, %671, %cst_283 {dimension_numbers = #tpu.dot_dimension_numbers<[1], [1], [0], [0], [0, 0, 1, 0], [], []>} : vector<8x32xbf16>, vector<8x32xbf16>, vector<8x8xf32> -> vector<8x8xf32>
    %cst_284 = arith.constant 0.176776692 : f32
    %673 = vector.broadcast %cst_284 : f32 to vector<8x8xf32>
    %674 = arith.mulf %672, %673 : vector<8x8xf32>
    %675 = vector.broadcast %12 : vector<1x8xf32> to vector<8x8xf32>
    %676 = arith.addf %674, %675 : vector<8x8xf32>
    %cst_285 = arith.constant dense<0xFF800000> : vector<8xf32>
    %677 = vector.multi_reduction <maximumf>, %676, %cst_285 [1] : vector<8x8xf32> to vector<8xf32>
    %678 = vector.shape_cast %677 : vector<8xf32> to vector<8x1xf32>
    %679 = vector.broadcast %678 : vector<8x1xf32> to vector<8x8xf32>
    %680 = arith.subf %676, %679 : vector<8x8xf32>
    %681 = math.exp %680 : vector<8x8xf32>
    %cst_286 = arith.constant dense<0.000000e+00> : vector<8xf32>
    %682 = vector.multi_reduction <add>, %681, %cst_286 [1] : vector<8x8xf32> to vector<8xf32>
    %683 = vector.shape_cast %682 : vector<8xf32> to vector<8x1xf32>
    %684 = tpu.reciprocal %683 {approx = true} : vector<8x1xf32> -> vector<8x1xf32>
    %685 = vector.broadcast %684 : vector<8x1xf32> to vector<8x8xf32>
    %686 = arith.mulf %681, %685 : vector<8x8xf32>
    %687 = arith.truncf %686 : vector<8x8xf32> to vector<8x8xbf16>
    %688 = arith.truncf %669 : vector<8x32xf32> to vector<8x32xbf16>
    %cst_287 = arith.constant dense<0.000000e+00> : vector<8x32xf32>
    %689 = tpu.matmul %687, %688, %cst_287 {dimension_numbers = #tpu.dot_dimension_numbers<[1], [0], [0], [1], [0, 0, 1, 1], [], []>} : vector<8x8xbf16>, vector<8x32xbf16>, vector<8x32xf32> -> vector<8x32xf32>
    %690 = vector.extract_strided_slice %572 {offsets = [96, 0], sizes = [32, 128], strides = [1, 1]} : vector<128x128xbf16> to vector<32x128xbf16>
    %691 = arith.truncf %689 : vector<8x32xf32> to vector<8x32xbf16>
    %cst_288 = arith.constant dense<0.000000e+00> : vector<8x128xf32>
    %692 = tpu.matmul %691, %690, %cst_288 {dimension_numbers = #tpu.dot_dimension_numbers<[1], [0], [0], [1], [0, 0, 1, 1], [], []>} : vector<8x32xbf16>, vector<32x128xbf16>, vector<8x128xf32> -> vector<8x128xf32>
    %693 = arith.addf %666, %692 : vector<8x128xf32>
    %694 = vector.broadcast %574 : vector<1x128xf32> to vector<8x128xf32>
    %695 = arith.addf %693, %694 : vector<8x128xf32>
    %696 = arith.addf %532, %695 : vector<8x128xf32>
    %c1_289 = arith.constant 1 : index
    %c0_290 = arith.constant 0 : index
    %c0_291 = arith.constant 0 : index
    %697 = vector.load %arg30[%c1_289, %c0_290, %c0_291] : memref<2x1x128xf32, #tpu.memory_space<vmem>>, vector<1x1x128xf32>
    %698 = vector.shape_cast %697 : vector<1x1x128xf32> to vector<1x128xf32>
    %c1_292 = arith.constant 1 : index
    %c0_293 = arith.constant 0 : index
    %c0_294 = arith.constant 0 : index
    %699 = vector.load %arg29[%c1_292, %c0_293, %c0_294] : memref<2x1x128xf32, #tpu.memory_space<vmem>>, vector<1x1x128xf32>
    %700 = vector.shape_cast %699 : vector<1x1x128xf32> to vector<1x128xf32>
    %cst_295 = arith.constant dense<0.000000e+00> : vector<8xf32>
    %701 = vector.multi_reduction <add>, %696, %cst_295 [1] : vector<8x128xf32> to vector<8xf32>
    %702 = vector.shape_cast %701 : vector<8xf32> to vector<8x1xf32>
    %cst_296 = arith.constant 1.280000e+02 : f32
    %703 = vector.broadcast %cst_296 : f32 to vector<8x1xf32>
    %704 = arith.divf %702, %703 : vector<8x1xf32>
    %705 = vector.broadcast %704 : vector<8x1xf32> to vector<8x128xf32>
    %706 = arith.subf %696, %705 : vector<8x128xf32>
    %707 = arith.mulf %706, %706 : vector<8x128xf32>
    %cst_297 = arith.constant dense<0.000000e+00> : vector<8xf32>
    %708 = vector.multi_reduction <add>, %707, %cst_297 [1] : vector<8x128xf32> to vector<8xf32>
    %709 = vector.shape_cast %708 : vector<8xf32> to vector<8x1xf32>
    %cst_298 = arith.constant 1.280000e+02 : f32
    %710 = vector.broadcast %cst_298 : f32 to vector<8x1xf32>
    %711 = arith.divf %709, %710 : vector<8x1xf32>
    %712 = vector.broadcast %704 : vector<8x1xf32> to vector<8x128xf32>
    %713 = arith.subf %696, %712 : vector<8x128xf32>
    %cst_299 = arith.constant 9.99999974E-6 : f32
    %714 = vector.broadcast %cst_299 : f32 to vector<8x1xf32>
    %715 = arith.addf %711, %714 : vector<8x1xf32>
    %716 = math.rsqrt %715 : vector<8x1xf32>
    %717 = vector.broadcast %716 : vector<8x1xf32> to vector<8x128xf32>
    %718 = arith.mulf %713, %717 : vector<8x128xf32>
    %719 = vector.broadcast %698 : vector<1x128xf32> to vector<8x128xf32>
    %720 = arith.mulf %718, %719 : vector<8x128xf32>
    %721 = vector.broadcast %700 : vector<1x128xf32> to vector<8x128xf32>
    %722 = arith.addf %720, %721 : vector<8x128xf32>
    %c1_300 = arith.constant 1 : index
    %c0_301 = arith.constant 0 : index
    %c0_302 = arith.constant 0 : index
    %723 = vector.load %arg16[%c1_300, %c0_301, %c0_302] : memref<2x128x256xbf16, #tpu.memory_space<vmem>>, vector<1x128x256xbf16>
    %724 = vector.shape_cast %723 : vector<1x128x256xbf16> to vector<128x256xbf16>
    %c1_303 = arith.constant 1 : index
    %c0_304 = arith.constant 0 : index
    %c0_305 = arith.constant 0 : index
    %725 = vector.load %arg15[%c1_303, %c0_304, %c0_305] : memref<2x1x256xf32, #tpu.memory_space<vmem>>, vector<1x1x256xf32>
    %726 = vector.shape_cast %725 : vector<1x1x256xf32> to vector<1x256xf32>
    %c1_306 = arith.constant 1 : index
    %c0_307 = arith.constant 0 : index
    %c0_308 = arith.constant 0 : index
    %727 = vector.load %arg14[%c1_306, %c0_307, %c0_308] : memref<2x5x128xf32, #tpu.memory_space<vmem>>, vector<1x5x128xf32>
    %728 = vector.shape_cast %727 : vector<1x5x128xf32> to vector<5x128xf32>
    %c1_309 = arith.constant 1 : index
    %c0_310 = arith.constant 0 : index
    %c0_311 = arith.constant 0 : index
    %729 = vector.load %arg13[%c1_309, %c0_310, %c0_311] : memref<2x1x128xf32, #tpu.memory_space<vmem>>, vector<1x1x128xf32>
    %730 = vector.shape_cast %729 : vector<1x1x128xf32> to vector<1x128xf32>
    %c1_312 = arith.constant 1 : index
    %c0_313 = arith.constant 0 : index
    %c0_314 = arith.constant 0 : index
    %731 = vector.load %arg12[%c1_312, %c0_313, %c0_314] : memref<2x1x128xf32, #tpu.memory_space<vmem>>, vector<1x1x128xf32>
    %732 = vector.shape_cast %731 : vector<1x1x128xf32> to vector<1x128xf32>
    %c1_315 = arith.constant 1 : index
    %c0_316 = arith.constant 0 : index
    %c0_317 = arith.constant 0 : index
    %733 = vector.load %arg11[%c1_315, %c0_316, %c0_317] : memref<2x1x128xf32, #tpu.memory_space<vmem>>, vector<1x1x128xf32>
    %734 = vector.shape_cast %733 : vector<1x1x128xf32> to vector<1x128xf32>
    %c1_318 = arith.constant 1 : index
    %c0_319 = arith.constant 0 : index
    %c0_320 = arith.constant 0 : index
    %735 = vector.load %arg18[%c1_318, %c0_319, %c0_320] : memref<2x128x128xbf16, #tpu.memory_space<vmem>>, vector<1x128x128xbf16>
    %736 = vector.shape_cast %735 : vector<1x128x128xbf16> to vector<128x128xbf16>
    %c1_321 = arith.constant 1 : index
    %c0_322 = arith.constant 0 : index
    %c0_323 = arith.constant 0 : index
    %737 = vector.load %arg17[%c1_321, %c0_322, %c0_323] : memref<2x1x128xf32, #tpu.memory_space<vmem>>, vector<1x1x128xf32>
    %738 = vector.shape_cast %737 : vector<1x1x128xf32> to vector<1x128xf32>
    %739 = arith.truncf %722 : vector<8x128xf32> to vector<8x128xbf16>
    %cst_324 = arith.constant dense<0.000000e+00> : vector<8x256xf32>
    %740 = tpu.matmul %739, %724, %cst_324 {dimension_numbers = #tpu.dot_dimension_numbers<[1], [0], [0], [1], [0, 0, 1, 1], [], []>} : vector<8x128xbf16>, vector<128x256xbf16>, vector<8x256xf32> -> vector<8x256xf32>
    %741 = vector.broadcast %726 : vector<1x256xf32> to vector<8x256xf32>
    %742 = arith.addf %740, %741 : vector<8x256xf32>
    %743 = vector.extract_strided_slice %742 {offsets = [0, 0], sizes = [8, 128], strides = [1, 1]} : vector<8x256xf32> to vector<8x128xf32>
    %744 = vector.extract_strided_slice %742 {offsets = [0, 128], sizes = [8, 128], strides = [1, 1]} : vector<8x256xf32> to vector<8x128xf32>
    %cst_325 = arith.constant 0.000000e+00 : f32
    %745 = vector.broadcast %cst_325 : f32 to vector<8x128xf32>
    %746 = arith.subf %745, %744 : vector<8x128xf32>
    %747 = math.exp %746 : vector<8x128xf32>
    %cst_326 = arith.constant 1.000000e+00 : f32
    %748 = vector.broadcast %cst_326 : f32 to vector<8x128xf32>
    %749 = arith.addf %748, %747 : vector<8x128xf32>
    %cst_327 = arith.constant 1.000000e+00 : f32
    %750 = vector.broadcast %cst_327 : f32 to vector<8x128xf32>
    %751 = arith.divf %750, %749 : vector<8x128xf32>
    %752 = arith.mulf %743, %751 : vector<8x128xf32>
    %cst_328 = arith.constant 0.000000e+00 : f32
    %753 = vector.shape_cast %6 : vector<8x1xi1> to vector<8x1xi1>
    %754 = vector.broadcast %753 : vector<8x1xi1> to vector<8x128xi1>
    %755 = vector.broadcast %cst_328 : f32 to vector<8x128xf32>
    %756 = arith.select %754, %752, %755 : vector<8x128xi1>, vector<8x128xf32>
    %757 = tpu.iota {dimensions = array<i32: 0>} : vector<8x1xi32>
    %758 = vector.extract_strided_slice %728 {offsets = [2, 0], sizes = [1, 128], strides = [1, 1]} : vector<5x128xf32> to vector<1x128xf32>
    %759 = vector.shape_cast %758 : vector<1x128xf32> to vector<128xf32>
    %760 = vector.shape_cast %759 : vector<128xf32> to vector<1x128xf32>
    %761 = vector.broadcast %760 : vector<1x128xf32> to vector<8x128xf32>
    %762 = arith.mulf %756, %761 : vector<8x128xf32>
    %c2_i32_329 = arith.constant 2 : i32
    %763 = tpu.dynamic_rotate %756 by %c2_i32_329 dim 0 : vector<8x128xf32>, i32 -> vector<8x128xf32>
    %c-2_i32_330 = arith.constant -2 : i32
    %764 = vector.broadcast %c-2_i32_330 : i32 to vector<8x1xi32>
    %765 = arith.addi %757, %764 : vector<8x1xi32>
    %c0_i32_331 = arith.constant 0 : i32
    %766 = vector.broadcast %c0_i32_331 : i32 to vector<8x1xi32>
    %767 = arith.cmpi sge, %765, %766 : vector<8x1xi32>
    %c-2_i32_332 = arith.constant -2 : i32
    %768 = vector.broadcast %c-2_i32_332 : i32 to vector<8x1xi32>
    %769 = arith.addi %757, %768 : vector<8x1xi32>
    %c8_i32_333 = arith.constant 8 : i32
    %770 = vector.broadcast %c8_i32_333 : i32 to vector<8x1xi32>
    %771 = arith.cmpi slt, %769, %770 : vector<8x1xi32>
    %772 = arith.andi %767, %771 : vector<8x1xi1>
    %cst_334 = arith.constant 0.000000e+00 : f32
    %773 = vector.shape_cast %772 : vector<8x1xi1> to vector<8x1xi1>
    %774 = vector.broadcast %773 : vector<8x1xi1> to vector<8x128xi1>
    %775 = vector.broadcast %cst_334 : f32 to vector<8x128xf32>
    %776 = arith.select %774, %763, %775 : vector<8x128xi1>, vector<8x128xf32>
    %777 = vector.extract_strided_slice %728 {offsets = [0, 0], sizes = [1, 128], strides = [1, 1]} : vector<5x128xf32> to vector<1x128xf32>
    %778 = vector.shape_cast %777 : vector<1x128xf32> to vector<128xf32>
    %779 = vector.shape_cast %778 : vector<128xf32> to vector<1x128xf32>
    %780 = vector.broadcast %779 : vector<1x128xf32> to vector<8x128xf32>
    %781 = arith.mulf %776, %780 : vector<8x128xf32>
    %782 = arith.addf %762, %781 : vector<8x128xf32>
    %c1_i32_335 = arith.constant 1 : i32
    %783 = tpu.dynamic_rotate %756 by %c1_i32_335 dim 0 : vector<8x128xf32>, i32 -> vector<8x128xf32>
    %c-1_i32_336 = arith.constant -1 : i32
    %784 = vector.broadcast %c-1_i32_336 : i32 to vector<8x1xi32>
    %785 = arith.addi %757, %784 : vector<8x1xi32>
    %c0_i32_337 = arith.constant 0 : i32
    %786 = vector.broadcast %c0_i32_337 : i32 to vector<8x1xi32>
    %787 = arith.cmpi sge, %785, %786 : vector<8x1xi32>
    %c-1_i32_338 = arith.constant -1 : i32
    %788 = vector.broadcast %c-1_i32_338 : i32 to vector<8x1xi32>
    %789 = arith.addi %757, %788 : vector<8x1xi32>
    %c8_i32_339 = arith.constant 8 : i32
    %790 = vector.broadcast %c8_i32_339 : i32 to vector<8x1xi32>
    %791 = arith.cmpi slt, %789, %790 : vector<8x1xi32>
    %792 = arith.andi %787, %791 : vector<8x1xi1>
    %cst_340 = arith.constant 0.000000e+00 : f32
    %793 = vector.shape_cast %792 : vector<8x1xi1> to vector<8x1xi1>
    %794 = vector.broadcast %793 : vector<8x1xi1> to vector<8x128xi1>
    %795 = vector.broadcast %cst_340 : f32 to vector<8x128xf32>
    %796 = arith.select %794, %783, %795 : vector<8x128xi1>, vector<8x128xf32>
    %797 = vector.extract_strided_slice %728 {offsets = [1, 0], sizes = [1, 128], strides = [1, 1]} : vector<5x128xf32> to vector<1x128xf32>
    %798 = vector.shape_cast %797 : vector<1x128xf32> to vector<128xf32>
    %799 = vector.shape_cast %798 : vector<128xf32> to vector<1x128xf32>
    %800 = vector.broadcast %799 : vector<1x128xf32> to vector<8x128xf32>
    %801 = arith.mulf %796, %800 : vector<8x128xf32>
    %802 = arith.addf %782, %801 : vector<8x128xf32>
    %c7_i32_341 = arith.constant 7 : i32
    %803 = tpu.dynamic_rotate %756 by %c7_i32_341 dim 0 : vector<8x128xf32>, i32 -> vector<8x128xf32>
    %c1_i32_342 = arith.constant 1 : i32
    %804 = vector.broadcast %c1_i32_342 : i32 to vector<8x1xi32>
    %805 = arith.addi %757, %804 : vector<8x1xi32>
    %c0_i32_343 = arith.constant 0 : i32
    %806 = vector.broadcast %c0_i32_343 : i32 to vector<8x1xi32>
    %807 = arith.cmpi sge, %805, %806 : vector<8x1xi32>
    %c1_i32_344 = arith.constant 1 : i32
    %808 = vector.broadcast %c1_i32_344 : i32 to vector<8x1xi32>
    %809 = arith.addi %757, %808 : vector<8x1xi32>
    %c8_i32_345 = arith.constant 8 : i32
    %810 = vector.broadcast %c8_i32_345 : i32 to vector<8x1xi32>
    %811 = arith.cmpi slt, %809, %810 : vector<8x1xi32>
    %812 = arith.andi %807, %811 : vector<8x1xi1>
    %cst_346 = arith.constant 0.000000e+00 : f32
    %813 = vector.shape_cast %812 : vector<8x1xi1> to vector<8x1xi1>
    %814 = vector.broadcast %813 : vector<8x1xi1> to vector<8x128xi1>
    %815 = vector.broadcast %cst_346 : f32 to vector<8x128xf32>
    %816 = arith.select %814, %803, %815 : vector<8x128xi1>, vector<8x128xf32>
    %817 = vector.extract_strided_slice %728 {offsets = [3, 0], sizes = [1, 128], strides = [1, 1]} : vector<5x128xf32> to vector<1x128xf32>
    %818 = vector.shape_cast %817 : vector<1x128xf32> to vector<128xf32>
    %819 = vector.shape_cast %818 : vector<128xf32> to vector<1x128xf32>
    %820 = vector.broadcast %819 : vector<1x128xf32> to vector<8x128xf32>
    %821 = arith.mulf %816, %820 : vector<8x128xf32>
    %822 = arith.addf %802, %821 : vector<8x128xf32>
    %c6_i32_347 = arith.constant 6 : i32
    %823 = tpu.dynamic_rotate %756 by %c6_i32_347 dim 0 : vector<8x128xf32>, i32 -> vector<8x128xf32>
    %c2_i32_348 = arith.constant 2 : i32
    %824 = vector.broadcast %c2_i32_348 : i32 to vector<8x1xi32>
    %825 = arith.addi %757, %824 : vector<8x1xi32>
    %c0_i32_349 = arith.constant 0 : i32
    %826 = vector.broadcast %c0_i32_349 : i32 to vector<8x1xi32>
    %827 = arith.cmpi sge, %825, %826 : vector<8x1xi32>
    %c2_i32_350 = arith.constant 2 : i32
    %828 = vector.broadcast %c2_i32_350 : i32 to vector<8x1xi32>
    %829 = arith.addi %757, %828 : vector<8x1xi32>
    %c8_i32_351 = arith.constant 8 : i32
    %830 = vector.broadcast %c8_i32_351 : i32 to vector<8x1xi32>
    %831 = arith.cmpi slt, %829, %830 : vector<8x1xi32>
    %832 = arith.andi %827, %831 : vector<8x1xi1>
    %cst_352 = arith.constant 0.000000e+00 : f32
    %833 = vector.shape_cast %832 : vector<8x1xi1> to vector<8x1xi1>
    %834 = vector.broadcast %833 : vector<8x1xi1> to vector<8x128xi1>
    %835 = vector.broadcast %cst_352 : f32 to vector<8x128xf32>
    %836 = arith.select %834, %823, %835 : vector<8x128xi1>, vector<8x128xf32>
    %837 = vector.extract_strided_slice %728 {offsets = [4, 0], sizes = [1, 128], strides = [1, 1]} : vector<5x128xf32> to vector<1x128xf32>
    %838 = vector.shape_cast %837 : vector<1x128xf32> to vector<128xf32>
    %839 = vector.shape_cast %838 : vector<128xf32> to vector<1x128xf32>
    %840 = vector.broadcast %839 : vector<1x128xf32> to vector<8x128xf32>
    %841 = arith.mulf %836, %840 : vector<8x128xf32>
    %842 = arith.addf %822, %841 : vector<8x128xf32>
    %843 = vector.broadcast %730 : vector<1x128xf32> to vector<8x128xf32>
    %844 = arith.addf %842, %843 : vector<8x128xf32>
    %845 = vector.broadcast %732 : vector<1x128xf32> to vector<8x128xf32>
    %846 = arith.mulf %844, %845 : vector<8x128xf32>
    %847 = vector.broadcast %734 : vector<1x128xf32> to vector<8x128xf32>
    %848 = arith.addf %846, %847 : vector<8x128xf32>
    %cst_353 = arith.constant 0.000000e+00 : f32
    %849 = vector.broadcast %cst_353 : f32 to vector<8x128xf32>
    %850 = arith.subf %849, %848 : vector<8x128xf32>
    %851 = math.exp %850 : vector<8x128xf32>
    %cst_354 = arith.constant 1.000000e+00 : f32
    %852 = vector.broadcast %cst_354 : f32 to vector<8x128xf32>
    %853 = arith.addf %852, %851 : vector<8x128xf32>
    %cst_355 = arith.constant 1.000000e+00 : f32
    %854 = vector.broadcast %cst_355 : f32 to vector<8x128xf32>
    %855 = arith.divf %854, %853 : vector<8x128xf32>
    %856 = arith.mulf %848, %855 : vector<8x128xf32>
    %857 = arith.truncf %856 : vector<8x128xf32> to vector<8x128xbf16>
    %cst_356 = arith.constant dense<0.000000e+00> : vector<8x128xf32>
    %858 = tpu.matmul %857, %736, %cst_356 {dimension_numbers = #tpu.dot_dimension_numbers<[1], [0], [0], [1], [0, 0, 1, 1], [], []>} : vector<8x128xbf16>, vector<128x128xbf16>, vector<8x128xf32> -> vector<8x128xf32>
    %859 = vector.broadcast %738 : vector<1x128xf32> to vector<8x128xf32>
    %860 = arith.addf %858, %859 : vector<8x128xf32>
    %861 = arith.addf %696, %860 : vector<8x128xf32>
    %c1_357 = arith.constant 1 : index
    %c0_358 = arith.constant 0 : index
    %c0_359 = arith.constant 0 : index
    %862 = vector.load %arg34[%c1_357, %c0_358, %c0_359] : memref<2x1x128xf32, #tpu.memory_space<vmem>>, vector<1x1x128xf32>
    %863 = vector.shape_cast %862 : vector<1x1x128xf32> to vector<1x128xf32>
    %c1_360 = arith.constant 1 : index
    %c0_361 = arith.constant 0 : index
    %c0_362 = arith.constant 0 : index
    %864 = vector.load %arg33[%c1_360, %c0_361, %c0_362] : memref<2x1x128xf32, #tpu.memory_space<vmem>>, vector<1x1x128xf32>
    %865 = vector.shape_cast %864 : vector<1x1x128xf32> to vector<1x128xf32>
    %cst_363 = arith.constant dense<0.000000e+00> : vector<8xf32>
    %866 = vector.multi_reduction <add>, %861, %cst_363 [1] : vector<8x128xf32> to vector<8xf32>
    %867 = vector.shape_cast %866 : vector<8xf32> to vector<8x1xf32>
    %cst_364 = arith.constant 1.280000e+02 : f32
    %868 = vector.broadcast %cst_364 : f32 to vector<8x1xf32>
    %869 = arith.divf %867, %868 : vector<8x1xf32>
    %870 = vector.broadcast %869 : vector<8x1xf32> to vector<8x128xf32>
    %871 = arith.subf %861, %870 : vector<8x128xf32>
    %872 = arith.mulf %871, %871 : vector<8x128xf32>
    %cst_365 = arith.constant dense<0.000000e+00> : vector<8xf32>
    %873 = vector.multi_reduction <add>, %872, %cst_365 [1] : vector<8x128xf32> to vector<8xf32>
    %874 = vector.shape_cast %873 : vector<8xf32> to vector<8x1xf32>
    %cst_366 = arith.constant 1.280000e+02 : f32
    %875 = vector.broadcast %cst_366 : f32 to vector<8x1xf32>
    %876 = arith.divf %874, %875 : vector<8x1xf32>
    %877 = vector.broadcast %869 : vector<8x1xf32> to vector<8x128xf32>
    %878 = arith.subf %861, %877 : vector<8x128xf32>
    %cst_367 = arith.constant 9.99999974E-6 : f32
    %879 = vector.broadcast %cst_367 : f32 to vector<8x1xf32>
    %880 = arith.addf %876, %879 : vector<8x1xf32>
    %881 = math.rsqrt %880 : vector<8x1xf32>
    %882 = vector.broadcast %881 : vector<8x1xf32> to vector<8x128xf32>
    %883 = arith.mulf %878, %882 : vector<8x128xf32>
    %884 = vector.broadcast %863 : vector<1x128xf32> to vector<8x128xf32>
    %885 = arith.mulf %883, %884 : vector<8x128xf32>
    %886 = vector.broadcast %865 : vector<1x128xf32> to vector<8x128xf32>
    %887 = arith.addf %885, %886 : vector<8x128xf32>
    %c1_368 = arith.constant 1 : index
    %c0_369 = arith.constant 0 : index
    %c0_370 = arith.constant 0 : index
    %888 = vector.load %arg25[%c1_368, %c0_369, %c0_370] : memref<2x128x256xbf16, #tpu.memory_space<vmem>>, vector<1x128x256xbf16>
    %889 = vector.shape_cast %888 : vector<1x128x256xbf16> to vector<128x256xbf16>
    %c1_371 = arith.constant 1 : index
    %c0_372 = arith.constant 0 : index
    %c0_373 = arith.constant 0 : index
    %890 = vector.load %arg23[%c1_371, %c0_372, %c0_373] : memref<2x1x256xf32, #tpu.memory_space<vmem>>, vector<1x1x256xf32>
    %891 = vector.shape_cast %890 : vector<1x1x256xf32> to vector<1x256xf32>
    %c1_374 = arith.constant 1 : index
    %c0_375 = arith.constant 0 : index
    %c0_376 = arith.constant 0 : index
    %892 = vector.load %arg26[%c1_374, %c0_375, %c0_376] : memref<2x256x128xbf16, #tpu.memory_space<vmem>>, vector<1x256x128xbf16>
    %893 = vector.shape_cast %892 : vector<1x256x128xbf16> to vector<256x128xbf16>
    %c1_377 = arith.constant 1 : index
    %c0_378 = arith.constant 0 : index
    %c0_379 = arith.constant 0 : index
    %894 = vector.load %arg24[%c1_377, %c0_378, %c0_379] : memref<2x1x128xf32, #tpu.memory_space<vmem>>, vector<1x1x128xf32>
    %895 = vector.shape_cast %894 : vector<1x1x128xf32> to vector<1x128xf32>
    %896 = arith.truncf %887 : vector<8x128xf32> to vector<8x128xbf16>
    %cst_380 = arith.constant dense<0.000000e+00> : vector<8x256xf32>
    %897 = tpu.matmul %896, %889, %cst_380 {dimension_numbers = #tpu.dot_dimension_numbers<[1], [0], [0], [1], [0, 0, 1, 1], [], []>} : vector<8x128xbf16>, vector<128x256xbf16>, vector<8x256xf32> -> vector<8x256xf32>
    %898 = vector.broadcast %891 : vector<1x256xf32> to vector<8x256xf32>
    %899 = arith.addf %897, %898 : vector<8x256xf32>
    %cst_381 = arith.constant 0.000000e+00 : f32
    %900 = vector.broadcast %cst_381 : f32 to vector<8x256xf32>
    %901 = arith.subf %900, %899 : vector<8x256xf32>
    %902 = math.exp %901 : vector<8x256xf32>
    %cst_382 = arith.constant 1.000000e+00 : f32
    %903 = vector.broadcast %cst_382 : f32 to vector<8x256xf32>
    %904 = arith.addf %903, %902 : vector<8x256xf32>
    %cst_383 = arith.constant 1.000000e+00 : f32
    %905 = vector.broadcast %cst_383 : f32 to vector<8x256xf32>
    %906 = arith.divf %905, %904 : vector<8x256xf32>
    %907 = arith.mulf %899, %906 : vector<8x256xf32>
    %908 = arith.truncf %907 : vector<8x256xf32> to vector<8x256xbf16>
    %cst_384 = arith.constant dense<0.000000e+00> : vector<8x128xf32>
    %909 = tpu.matmul %908, %893, %cst_384 {dimension_numbers = #tpu.dot_dimension_numbers<[1], [0], [0], [1], [0, 0, 1, 1], [], []>} : vector<8x256xbf16>, vector<256x128xbf16>, vector<8x128xf32> -> vector<8x128xf32>
    %910 = vector.broadcast %895 : vector<1x128xf32> to vector<8x128xf32>
    %911 = arith.addf %909, %910 : vector<8x128xf32>
    %cst_385 = arith.constant 5.000000e-01 : f32
    %912 = vector.broadcast %cst_385 : f32 to vector<8x128xf32>
    %913 = arith.mulf %912, %911 : vector<8x128xf32>
    %914 = arith.addf %861, %913 : vector<8x128xf32>
    %c1_386 = arith.constant 1 : index
    %c0_387 = arith.constant 0 : index
    %c0_388 = arith.constant 0 : index
    %915 = vector.load %arg36[%c1_386, %c0_387, %c0_388] : memref<2x1x128xf32, #tpu.memory_space<vmem>>, vector<1x1x128xf32>
    %916 = vector.shape_cast %915 : vector<1x1x128xf32> to vector<1x128xf32>
    %c1_389 = arith.constant 1 : index
    %c0_390 = arith.constant 0 : index
    %c0_391 = arith.constant 0 : index
    %917 = vector.load %arg35[%c1_389, %c0_390, %c0_391] : memref<2x1x128xf32, #tpu.memory_space<vmem>>, vector<1x1x128xf32>
    %918 = vector.shape_cast %917 : vector<1x1x128xf32> to vector<1x128xf32>
    %cst_392 = arith.constant dense<0.000000e+00> : vector<8xf32>
    %919 = vector.multi_reduction <add>, %914, %cst_392 [1] : vector<8x128xf32> to vector<8xf32>
    %920 = vector.shape_cast %919 : vector<8xf32> to vector<8x1xf32>
    %cst_393 = arith.constant 1.280000e+02 : f32
    %921 = vector.broadcast %cst_393 : f32 to vector<8x1xf32>
    %922 = arith.divf %920, %921 : vector<8x1xf32>
    %923 = vector.broadcast %922 : vector<8x1xf32> to vector<8x128xf32>
    %924 = arith.subf %914, %923 : vector<8x128xf32>
    %925 = arith.mulf %924, %924 : vector<8x128xf32>
    %cst_394 = arith.constant dense<0.000000e+00> : vector<8xf32>
    %926 = vector.multi_reduction <add>, %925, %cst_394 [1] : vector<8x128xf32> to vector<8xf32>
    %927 = vector.shape_cast %926 : vector<8xf32> to vector<8x1xf32>
    %cst_395 = arith.constant 1.280000e+02 : f32
    %928 = vector.broadcast %cst_395 : f32 to vector<8x1xf32>
    %929 = arith.divf %927, %928 : vector<8x1xf32>
    %930 = vector.broadcast %922 : vector<8x1xf32> to vector<8x128xf32>
    %931 = arith.subf %914, %930 : vector<8x128xf32>
    %cst_396 = arith.constant 9.99999974E-6 : f32
    %932 = vector.broadcast %cst_396 : f32 to vector<8x1xf32>
    %933 = arith.addf %929, %932 : vector<8x1xf32>
    %934 = math.rsqrt %933 : vector<8x1xf32>
    %935 = vector.broadcast %934 : vector<8x1xf32> to vector<8x128xf32>
    %936 = arith.mulf %931, %935 : vector<8x128xf32>
    %937 = vector.broadcast %916 : vector<1x128xf32> to vector<8x128xf32>
    %938 = arith.mulf %936, %937 : vector<8x128xf32>
    %939 = vector.broadcast %918 : vector<1x128xf32> to vector<8x128xf32>
    %940 = arith.addf %938, %939 : vector<8x128xf32>
    %c0_397 = arith.constant 0 : index
    %c0_398 = arith.constant 0 : index
    %941 = vector.load %arg40[%c0_397, %c0_398] : memref<128x128xbf16, #tpu.memory_space<vmem>>, vector<128x128xbf16>
    %c0_399 = arith.constant 0 : index
    %c0_400 = arith.constant 0 : index
    %942 = vector.load %arg39[%c0_399, %c0_400] : memref<1x128xf32, #tpu.memory_space<vmem>>, vector<1x128xf32>
    %943 = arith.truncf %940 : vector<8x128xf32> to vector<8x128xbf16>
    %cst_401 = arith.constant dense<0.000000e+00> : vector<8x128xf32>
    %944 = tpu.matmul %943, %941, %cst_401 {dimension_numbers = #tpu.dot_dimension_numbers<[1], [0], [0], [1], [0, 0, 1, 1], [], []>} : vector<8x128xbf16>, vector<128x128xbf16>, vector<8x128xf32> -> vector<8x128xf32>
    %945 = vector.broadcast %942 : vector<1x128xf32> to vector<8x128xf32>
    %946 = arith.addf %944, %945 : vector<8x128xf32>
    %c0_402 = arith.constant 0 : index
    %c0_403 = arith.constant 0 : index
    %c0_404 = arith.constant 0 : index
    %947 = vector.load %arg41[%c0_402, %c0_403, %c0_404] : memref<1x8x128xf32, #tpu.memory_space<vmem>>, vector<1x8x128xf32>
    %948 = vector.shape_cast %947 : vector<1x8x128xf32> to vector<8x128xf32>
    %949 = vector.shape_cast %946 : vector<8x128xf32> to vector<1x8x128xf32>
    tpu.vector_store %arg41[%c0_402, %c0_403, %c0_404], %949 {strides = array<i32>} : memref<1x8x128xf32, #tpu.memory_space<vmem>>, vector<1x8x128xf32>,
    return
  }
  func.func @transform_0(%arg0: i32, %arg1: memref<2xi32, #tpu.memory_space<smem>>) -> (i32, i32, i32) {
    %c0_i32 = arith.constant 0 : i32
    %c0_i32_0 = arith.constant 0 : i32
    %c0_i32_1 = arith.constant 0 : i32
    return %arg0, %c0_i32, %c0_i32_0 : i32, i32, i32
  }
  func.func @transform_1(%arg0: i32, %arg1: memref<2xi32, #tpu.memory_space<smem>>) -> (i32, i32, i32) {
    %c0_i32 = arith.constant 0 : i32
    %c0_i32_0 = arith.constant 0 : i32
    %c0_i32_1 = arith.constant 0 : i32
    %c0_i32_2 = arith.constant 0 : i32
    return %c0_i32, %c0_i32_0, %c0_i32_1 : i32, i32, i32
  }
  func.func @transform_2(%arg0: i32, %arg1: memref<2xi32, #tpu.memory_space<smem>>) -> (i32, i32, i32) {
    %c0_i32 = arith.constant 0 : i32
    %c0_i32_0 = arith.constant 0 : i32
    %c0_i32_1 = arith.constant 0 : i32
    %c0_i32_2 = arith.constant 0 : i32
    return %c0_i32, %c0_i32_0, %c0_i32_1 : i32, i32, i32
  }
  func.func @transform_3(%arg0: i32, %arg1: memref<2xi32, #tpu.memory_space<smem>>) -> (i32, i32, i32) {
    %c0_i32 = arith.constant 0 : i32
    %c0_i32_0 = arith.constant 0 : i32
    %c0_i32_1 = arith.constant 0 : i32
    %c0_i32_2 = arith.constant 0 : i32
    return %c0_i32, %c0_i32_0, %c0_i32_1 : i32, i32, i32
  }
  func.func @transform_4(%arg0: i32, %arg1: memref<2xi32, #tpu.memory_space<smem>>) -> (i32, i32, i32) {
    %c0_i32 = arith.constant 0 : i32
    %c0_i32_0 = arith.constant 0 : i32
    %c0_i32_1 = arith.constant 0 : i32
    %c0_i32_2 = arith.constant 0 : i32
    return %c0_i32, %c0_i32_0, %c0_i32_1 : i32, i32, i32
  }
  func.func @transform_5(%arg0: i32, %arg1: memref<2xi32, #tpu.memory_space<smem>>) -> (i32, i32, i32) {
    %c0_i32 = arith.constant 0 : i32
    %c0_i32_0 = arith.constant 0 : i32
    %c0_i32_1 = arith.constant 0 : i32
    %c0_i32_2 = arith.constant 0 : i32
    return %c0_i32, %c0_i32_0, %c0_i32_1 : i32, i32, i32
  }
  func.func @transform_6(%arg0: i32, %arg1: memref<2xi32, #tpu.memory_space<smem>>) -> (i32, i32, i32) {
    %c0_i32 = arith.constant 0 : i32
    %c0_i32_0 = arith.constant 0 : i32
    %c0_i32_1 = arith.constant 0 : i32
    %c0_i32_2 = arith.constant 0 : i32
    return %c0_i32, %c0_i32_0, %c0_i32_1 : i32, i32, i32
  }
  func.func @transform_7(%arg0: i32, %arg1: memref<2xi32, #tpu.memory_space<smem>>) -> (i32, i32, i32) {
    %c0_i32 = arith.constant 0 : i32
    %c0_i32_0 = arith.constant 0 : i32
    %c0_i32_1 = arith.constant 0 : i32
    %c0_i32_2 = arith.constant 0 : i32
    return %c0_i32, %c0_i32_0, %c0_i32_1 : i32, i32, i32
  }
  func.func @transform_8(%arg0: i32, %arg1: memref<2xi32, #tpu.memory_space<smem>>) -> (i32, i32, i32) {
    %c0_i32 = arith.constant 0 : i32
    %c0_i32_0 = arith.constant 0 : i32
    %c0_i32_1 = arith.constant 0 : i32
    %c0_i32_2 = arith.constant 0 : i32
    return %c0_i32, %c0_i32_0, %c0_i32_1 : i32, i32, i32
  }
  func.func @transform_9(%arg0: i32, %arg1: memref<2xi32, #tpu.memory_space<smem>>) -> (i32, i32, i32) {
    %c0_i32 = arith.constant 0 : i32
    %c0_i32_0 = arith.constant 0 : i32
    %c0_i32_1 = arith.constant 0 : i32
    %c0_i32_2 = arith.constant 0 : i32
    return %c0_i32, %c0_i32_0, %c0_i32_1 : i32, i32, i32
  }
  func.func @transform_10(%arg0: i32, %arg1: memref<2xi32, #tpu.memory_space<smem>>) -> (i32, i32, i32) {
    %c0_i32 = arith.constant 0 : i32
    %c0_i32_0 = arith.constant 0 : i32
    %c0_i32_1 = arith.constant 0 : i32
    %c0_i32_2 = arith.constant 0 : i32
    return %c0_i32, %c0_i32_0, %c0_i32_1 : i32, i32, i32
  }
  func.func @transform_11(%arg0: i32, %arg1: memref<2xi32, #tpu.memory_space<smem>>) -> (i32, i32, i32) {
    %c0_i32 = arith.constant 0 : i32
    %c0_i32_0 = arith.constant 0 : i32
    %c0_i32_1 = arith.constant 0 : i32
    %c0_i32_2 = arith.constant 0 : i32
    return %c0_i32, %c0_i32_0, %c0_i32_1 : i32, i32, i32
  }
  func.func @transform_12(%arg0: i32, %arg1: memref<2xi32, #tpu.memory_space<smem>>) -> (i32, i32, i32) {
    %c0_i32 = arith.constant 0 : i32
    %c0_i32_0 = arith.constant 0 : i32
    %c0_i32_1 = arith.constant 0 : i32
    %c0_i32_2 = arith.constant 0 : i32
    return %c0_i32, %c0_i32_0, %c0_i32_1 : i32, i32, i32
  }
  func.func @transform_13(%arg0: i32, %arg1: memref<2xi32, #tpu.memory_space<smem>>) -> (i32, i32, i32) {
    %c0_i32 = arith.constant 0 : i32
    %c0_i32_0 = arith.constant 0 : i32
    %c0_i32_1 = arith.constant 0 : i32
    %c0_i32_2 = arith.constant 0 : i32
    return %c0_i32, %c0_i32_0, %c0_i32_1 : i32, i32, i32
  }
  func.func @transform_14(%arg0: i32, %arg1: memref<2xi32, #tpu.memory_space<smem>>) -> (i32, i32, i32) {
    %c0_i32 = arith.constant 0 : i32
    %c0_i32_0 = arith.constant 0 : i32
    %c0_i32_1 = arith.constant 0 : i32
    %c0_i32_2 = arith.constant 0 : i32
    return %c0_i32, %c0_i32_0, %c0_i32_1 : i32, i32, i32
  }
  func.func @transform_15(%arg0: i32, %arg1: memref<2xi32, #tpu.memory_space<smem>>) -> (i32, i32, i32) {
    %c0_i32 = arith.constant 0 : i32
    %c0_i32_0 = arith.constant 0 : i32
    %c0_i32_1 = arith.constant 0 : i32
    %c0_i32_2 = arith.constant 0 : i32
    return %c0_i32, %c0_i32_0, %c0_i32_1 : i32, i32, i32
  }
  func.func @transform_16(%arg0: i32, %arg1: memref<2xi32, #tpu.memory_space<smem>>) -> (i32, i32, i32) {
    %c0_i32 = arith.constant 0 : i32
    %c0_i32_0 = arith.constant 0 : i32
    %c0_i32_1 = arith.constant 0 : i32
    %c0_i32_2 = arith.constant 0 : i32
    return %c0_i32, %c0_i32_0, %c0_i32_1 : i32, i32, i32
  }
  func.func @transform_17(%arg0: i32, %arg1: memref<2xi32, #tpu.memory_space<smem>>) -> (i32, i32, i32) {
    %c0_i32 = arith.constant 0 : i32
    %c0_i32_0 = arith.constant 0 : i32
    %c0_i32_1 = arith.constant 0 : i32
    %c0_i32_2 = arith.constant 0 : i32
    return %c0_i32, %c0_i32_0, %c0_i32_1 : i32, i32, i32
  }
  func.func @transform_18(%arg0: i32, %arg1: memref<2xi32, #tpu.memory_space<smem>>) -> (i32, i32, i32) {
    %c0_i32 = arith.constant 0 : i32
    %c0_i32_0 = arith.constant 0 : i32
    %c0_i32_1 = arith.constant 0 : i32
    %c0_i32_2 = arith.constant 0 : i32
    return %c0_i32, %c0_i32_0, %c0_i32_1 : i32, i32, i32
  }
  func.func @transform_19(%arg0: i32, %arg1: memref<2xi32, #tpu.memory_space<smem>>) -> (i32, i32, i32) {
    %c0_i32 = arith.constant 0 : i32
    %c0_i32_0 = arith.constant 0 : i32
    %c0_i32_1 = arith.constant 0 : i32
    %c0_i32_2 = arith.constant 0 : i32
    return %c0_i32, %c0_i32_0, %c0_i32_1 : i32, i32, i32
  }
  func.func @transform_20(%arg0: i32, %arg1: memref<2xi32, #tpu.memory_space<smem>>) -> (i32, i32, i32) {
    %c0_i32 = arith.constant 0 : i32
    %c0_i32_0 = arith.constant 0 : i32
    %c0_i32_1 = arith.constant 0 : i32
    %c0_i32_2 = arith.constant 0 : i32
    return %c0_i32, %c0_i32_0, %c0_i32_1 : i32, i32, i32
  }
  func.func @transform_21(%arg0: i32, %arg1: memref<2xi32, #tpu.memory_space<smem>>) -> (i32, i32, i32) {
    %c0_i32 = arith.constant 0 : i32
    %c0_i32_0 = arith.constant 0 : i32
    %c0_i32_1 = arith.constant 0 : i32
    %c0_i32_2 = arith.constant 0 : i32
    return %c0_i32, %c0_i32_0, %c0_i32_1 : i32, i32, i32
  }
  func.func @transform_22(%arg0: i32, %arg1: memref<2xi32, #tpu.memory_space<smem>>) -> (i32, i32, i32) {
    %c0_i32 = arith.constant 0 : i32
    %c0_i32_0 = arith.constant 0 : i32
    %c0_i32_1 = arith.constant 0 : i32
    %c0_i32_2 = arith.constant 0 : i32
    return %c0_i32, %c0_i32_0, %c0_i32_1 : i32, i32, i32
  }
  func.func @transform_23(%arg0: i32, %arg1: memref<2xi32, #tpu.memory_space<smem>>) -> (i32, i32, i32) {
    %c0_i32 = arith.constant 0 : i32
    %c0_i32_0 = arith.constant 0 : i32
    %c0_i32_1 = arith.constant 0 : i32
    %c0_i32_2 = arith.constant 0 : i32
    return %c0_i32, %c0_i32_0, %c0_i32_1 : i32, i32, i32
  }
  func.func @transform_24(%arg0: i32, %arg1: memref<2xi32, #tpu.memory_space<smem>>) -> (i32, i32, i32) {
    %c0_i32 = arith.constant 0 : i32
    %c0_i32_0 = arith.constant 0 : i32
    %c0_i32_1 = arith.constant 0 : i32
    %c0_i32_2 = arith.constant 0 : i32
    return %c0_i32, %c0_i32_0, %c0_i32_1 : i32, i32, i32
  }
  func.func @transform_25(%arg0: i32, %arg1: memref<2xi32, #tpu.memory_space<smem>>) -> (i32, i32, i32) {
    %c0_i32 = arith.constant 0 : i32
    %c0_i32_0 = arith.constant 0 : i32
    %c0_i32_1 = arith.constant 0 : i32
    %c0_i32_2 = arith.constant 0 : i32
    return %c0_i32, %c0_i32_0, %c0_i32_1 : i32, i32, i32
  }
  func.func @transform_26(%arg0: i32, %arg1: memref<2xi32, #tpu.memory_space<smem>>) -> (i32, i32, i32) {
    %c0_i32 = arith.constant 0 : i32
    %c0_i32_0 = arith.constant 0 : i32
    %c0_i32_1 = arith.constant 0 : i32
    %c0_i32_2 = arith.constant 0 : i32
    return %c0_i32, %c0_i32_0, %c0_i32_1 : i32, i32, i32
  }
  func.func @transform_27(%arg0: i32, %arg1: memref<2xi32, #tpu.memory_space<smem>>) -> (i32, i32, i32) {
    %c0_i32 = arith.constant 0 : i32
    %c0_i32_0 = arith.constant 0 : i32
    %c0_i32_1 = arith.constant 0 : i32
    %c0_i32_2 = arith.constant 0 : i32
    return %c0_i32, %c0_i32_0, %c0_i32_1 : i32, i32, i32
  }
  func.func @transform_28(%arg0: i32, %arg1: memref<2xi32, #tpu.memory_space<smem>>) -> (i32, i32, i32) {
    %c0_i32 = arith.constant 0 : i32
    %c0_i32_0 = arith.constant 0 : i32
    %c0_i32_1 = arith.constant 0 : i32
    %c0_i32_2 = arith.constant 0 : i32
    return %c0_i32, %c0_i32_0, %c0_i32_1 : i32, i32, i32
  }
  func.func @transform_29(%arg0: i32, %arg1: memref<2xi32, #tpu.memory_space<smem>>) -> (i32, i32, i32) {
    %c0_i32 = arith.constant 0 : i32
    %c0_i32_0 = arith.constant 0 : i32
    %c0_i32_1 = arith.constant 0 : i32
    %c0_i32_2 = arith.constant 0 : i32
    return %c0_i32, %c0_i32_0, %c0_i32_1 : i32, i32, i32
  }
  func.func @transform_30(%arg0: i32, %arg1: memref<2xi32, #tpu.memory_space<smem>>) -> (i32, i32, i32) {
    %c0_i32 = arith.constant 0 : i32
    %c0_i32_0 = arith.constant 0 : i32
    %c0_i32_1 = arith.constant 0 : i32
    %c0_i32_2 = arith.constant 0 : i32
    return %c0_i32, %c0_i32_0, %c0_i32_1 : i32, i32, i32
  }
  func.func @transform_31(%arg0: i32, %arg1: memref<2xi32, #tpu.memory_space<smem>>) -> (i32, i32, i32) {
    %c0_i32 = arith.constant 0 : i32
    %c0_i32_0 = arith.constant 0 : i32
    %c0_i32_1 = arith.constant 0 : i32
    %c0_i32_2 = arith.constant 0 : i32
    return %c0_i32, %c0_i32_0, %c0_i32_1 : i32, i32, i32
  }
  func.func @transform_32(%arg0: i32, %arg1: memref<2xi32, #tpu.memory_space<smem>>) -> (i32, i32, i32) {
    %c0_i32 = arith.constant 0 : i32
    %c0_i32_0 = arith.constant 0 : i32
    %c0_i32_1 = arith.constant 0 : i32
    %c0_i32_2 = arith.constant 0 : i32
    return %c0_i32, %c0_i32_0, %c0_i32_1 : i32, i32, i32
  }
  func.func @transform_33(%arg0: i32, %arg1: memref<2xi32, #tpu.memory_space<smem>>) -> (i32, i32, i32) {
    %c0_i32 = arith.constant 0 : i32
    %c0_i32_0 = arith.constant 0 : i32
    %c0_i32_1 = arith.constant 0 : i32
    %c0_i32_2 = arith.constant 0 : i32
    return %c0_i32, %c0_i32_0, %c0_i32_1 : i32, i32, i32
  }
  func.func @transform_34(%arg0: i32, %arg1: memref<2xi32, #tpu.memory_space<smem>>) -> (i32, i32, i32) {
    %c0_i32 = arith.constant 0 : i32
    %c0_i32_0 = arith.constant 0 : i32
    %c0_i32_1 = arith.constant 0 : i32
    %c0_i32_2 = arith.constant 0 : i32
    return %c0_i32, %c0_i32_0, %c0_i32_1 : i32, i32, i32
  }
  func.func @transform_35(%arg0: i32, %arg1: memref<2xi32, #tpu.memory_space<smem>>) -> (i32, i32) {
    %c0_i32 = arith.constant 0 : i32
    %c0_i32_0 = arith.constant 0 : i32
    %c0_i32_1 = arith.constant 0 : i32
    return %c0_i32, %c0_i32_0 : i32, i32
  }
  func.func @transform_36(%arg0: i32, %arg1: memref<2xi32, #tpu.memory_space<smem>>) -> (i32, i32) {
    %c0_i32 = arith.constant 0 : i32
    %c0_i32_0 = arith.constant 0 : i32
    %c0_i32_1 = arith.constant 0 : i32
    return %c0_i32, %c0_i32_0 : i32, i32
  }
  func.func @transform_37(%arg0: i32, %arg1: memref<2xi32, #tpu.memory_space<smem>>) -> (i32, i32) {
    %c0_i32 = arith.constant 0 : i32
    %c0_i32_0 = arith.constant 0 : i32
    %c0_i32_1 = arith.constant 0 : i32
    return %c0_i32, %c0_i32_0 : i32, i32
  }
  func.func @transform_38(%arg0: i32, %arg1: memref<2xi32, #tpu.memory_space<smem>>) -> (i32, i32) {
    %c0_i32 = arith.constant 0 : i32
    %c0_i32_0 = arith.constant 0 : i32
    %c0_i32_1 = arith.constant 0 : i32
    return %c0_i32, %c0_i32_0 : i32, i32
  }
  func.func @transform_39(%arg0: i32, %arg1: memref<2xi32, #tpu.memory_space<smem>>) -> (i32, i32, i32) {
    %c0_i32 = arith.constant 0 : i32
    %c0_i32_0 = arith.constant 0 : i32
    %c0_i32_1 = arith.constant 0 : i32
    return %arg0, %c0_i32, %c0_i32_0 : i32, i32, i32
  }
}

</mosaic_0001>

<llo_original>
// kernel: encoder_wrapper_forward.1
$region0: #{encoder_wrapper_forward.1}
  #allocation0 [shape = 'u32[]', space=smem, size = 0x4, offset = 0x4, fixed_abs, tag = 'smem constant byte address 0x4 - core index']
  #allocation1 [shape = 'u32[144,128]{1,0:T(1,128)}', space=vmem, size = 0x12000, scoped, tag = 'internal scratch']
  #allocation2 [shape = 's32[1]{0}', space=sflag, size = 0x4, scoped, tag = 'scoped memory for encoder_wrapper_forward.1']
  #allocation3 [shape = 'u8[512]{0}', space=smem, size = 0x200, scoped, tag = 'prefetched SMEM operand 0']
  %s0 = inlined_call_operand.smem [shape: u32[41], index: -1, kind: input, shape index: {}]
  %s1 = sld [smem:[%s0]]
  %s2 = scalar_lea.smem %s0, 1
  %s3 = sld [smem:[%s2]]
  %s4 = scalar_lea.smem %s0, 2
  %s5 = sld [smem:[%s4]]
  %s6 = scalar_lea.smem %s0, 3
  %s7 = sld [smem:[%s6]]
  %s8 = scalar_lea.smem %s0, 4
  %s9 = sld [smem:[%s8]]
  %s10 = scalar_lea.smem %s0, 5
  %s11 = sld [smem:[%s10]]
  %s12 = scalar_lea.smem %s0, 6
  %s13 = sld [smem:[%s12]]
  %s14 = scalar_lea.smem %s0, 7
  %s15 = sld [smem:[%s14]]
  %s16 = scalar_lea.smem %s0, 8
  %s17 = sld [smem:[%s16]]
  %s18 = scalar_lea.smem %s0, 9
  %s19 = sld [smem:[%s18]]
  %s20 = scalar_lea.smem %s0, 10
  %s21 = sld [smem:[%s20]]
  %s22 = scalar_lea.smem %s0, 11
  %s23 = sld [smem:[%s22]]
  %s24 = scalar_lea.smem %s0, 12
  %s25 = sld [smem:[%s24]]
  %s26 = scalar_lea.smem %s0, 13
  %s27 = sld [smem:[%s26]]
  %s28 = scalar_lea.smem %s0, 14
  %s29 = sld [smem:[%s28]]
  %s30 = scalar_lea.smem %s0, 15
  %s31 = sld [smem:[%s30]]
  %s32 = scalar_lea.smem %s0, 16
  %s33 = sld [smem:[%s32]]
  %s34 = scalar_lea.smem %s0, 17
  %s35 = sld [smem:[%s34]]
  %s36 = scalar_lea.smem %s0, 18
  %s37 = sld [smem:[%s36]]
  %s38 = scalar_lea.smem %s0, 19
  %s39 = sld [smem:[%s38]]
  %s40 = scalar_lea.smem %s0, 20
  %s41 = sld [smem:[%s40]]
  %s42 = scalar_lea.smem %s0, 21
  %s43 = sld [smem:[%s42]]
  %s44 = scalar_lea.smem %s0, 22
  %s45 = sld [smem:[%s44]]
  %s46 = scalar_lea.smem %s0, 23
  %s47 = sld [smem:[%s46]]
  %s48 = scalar_lea.smem %s0, 24
  %s49 = sld [smem:[%s48]]
  %s50 = scalar_lea.smem %s0, 25
  %s51 = sld [smem:[%s50]]
  %s52 = scalar_lea.smem %s0, 26
  %s53 = sld [smem:[%s52]]
  %s54 = scalar_lea.smem %s0, 27
  %s55 = sld [smem:[%s54]]
  %s56 = scalar_lea.smem %s0, 28
  %s57 = sld [smem:[%s56]]
  %s58 = scalar_lea.smem %s0, 29
  %s59 = sld [smem:[%s58]]
  %s60 = scalar_lea.smem %s0, 30
  %s61 = sld [smem:[%s60]]
  %s62 = scalar_lea.smem %s0, 31
  %s63 = sld [smem:[%s62]]
  %s64 = scalar_lea.smem %s0, 32
  %s65 = sld [smem:[%s64]]
  %s66 = scalar_lea.smem %s0, 33
  %s67 = sld [smem:[%s66]]
  %s68 = scalar_lea.smem %s0, 34
  %s69 = sld [smem:[%s68]]
  %s70 = scalar_lea.smem %s0, 35
  %s71 = sld [smem:[%s70]]
  %s72 = scalar_lea.smem %s0, 36
  %s73 = sld [smem:[%s72]]
  %s74 = scalar_lea.smem %s0, 37
  %s75 = sld [smem:[%s74]]
  %s76 = scalar_lea.smem %s0, 38
  %s77 = sld [smem:[%s76]]
  %s78 = scalar_lea.smem %s0, 39
  %s79 = sld [smem:[%s78]]
  %s80 = scalar_lea.smem %s0, 40
  %s81 = sld [smem:[%s80]]
  %s82 = sld [smem:[#allocation0]]
  $region329: #{encoder_wrapper_forward.1} parent=0
    _
  %s84 = ssub.s32 1, %s82
  %s85 = scalar_select 0, %s84, %s82
  %s86 = sshll.u32 %s1, 4
  %s87 = int_to_ptr.vmem [resolvable:$true] %s86
  %89 = dma.vmem_to_smem %s87, 16, [#allocation3], [#allocation2]
  %90 = dma.done [#allocation2], 16
  %91 = sfence
  $region1: #{encoder_wrapper_forward.1} parent=0
    #allocation4 [shape = 'u8[1024]{0}', space=vmem, size = 0x400, scoped, tag = 'input window, operand 3, single buffered']
    #allocation5 [shape = 's32[2]{0}', space=sflag, size = 0x8, scoped, tag = 'scoped memory for encoder_wrapper_forward.1']
    #allocation6 [shape = 's32[2]{0}', space=sflag, size = 0x8, scoped, tag = 'scoped memory for encoder_wrapper_forward.1']
    #allocation7 [shape = 'u8[1024]{0}', space=vmem, size = 0x400, scoped, tag = 'input window, operand 4, single buffered']
    #allocation8 [shape = 's32[1]{0}', space=sflag, size = 0x4, scoped, tag = 'scoped memory for encoder_wrapper_forward.1']
    #allocation9 [shape = 'u8[1024]{0}', space=vmem, size = 0x400, scoped, tag = 'input window, operand 5, single buffered']
    #allocation10 [shape = 'u8[65536]{0}', space=vmem, size = 0x10000, scoped, tag = 'input window, operand 7, single buffered']
    #allocation11 [shape = 's32[1]{0}', space=sflag, size = 0x4, scoped, tag = 'scoped memory for encoder_wrapper_forward.1']
    #allocation12 [shape = 'u8[65536]{0}', space=vmem, size = 0x10000, scoped, tag = 'input window, operand 8, single buffered']
    #allocation13 [shape = 'u8[65536]{0}', space=vmem, size = 0x10000, scoped, tag = 'input window, operand 9, single buffered']
    #allocation14 [shape = 's32[1]{0}', space=sflag, size = 0x4, scoped, tag = 'scoped memory for encoder_wrapper_forward.1']
    #allocation15 [shape = 'u8[1024]{0}', space=vmem, size = 0x400, scoped, tag = 'input window, operand 10, single buffered']
    #allocation16 [shape = 'u8[1024]{0}', space=vmem, size = 0x400, scoped, tag = 'input window, operand 11, single buffered']
    #allocation17 [shape = 's32[1]{0}', space=sflag, size = 0x4, scoped, tag = 'scoped memory for encoder_wrapper_forward.1']
    #allocation18 [shape = 'u8[1024]{0}', space=vmem, size = 0x400, scoped, tag = 'input window, operand 12, single buffered']
    #allocation19 [shape = 'u8[2048]{0}', space=vmem, size = 0x800, scoped, tag = 'input window, operand 14, single buffered']
    #allocation20 [shape = 's32[1]{0}', space=sflag, size = 0x4, scoped, tag = 'scoped memory for encoder_wrapper_forward.1']
    #allocation21 [shape = 'u8[131072]{0}', space=vmem, size = 0x20000, scoped, tag = 'input window, operand 15, single buffered']
    #allocation22 [shape = 'u8[1024]{0}', space=vmem, size = 0x400, scoped, tag = 'input window, operand 16, single buffered']
    #allocation23 [shape = 's32[1]{0}', space=sflag, size = 0x4, scoped, tag = 'scoped memory for encoder_wrapper_forward.1']
    #allocation24 [shape = 'u8[65536]{0}', space=vmem, size = 0x10000, scoped, tag = 'input window, operand 17, single buffered']
    #allocation25 [shape = 'u8[2048]{0}', space=vmem, size = 0x800, scoped, tag = 'input window, operand 18, single buffered']
    #allocation26 [shape = 's32[1]{0}', space=sflag, size = 0x4, scoped, tag = 'scoped memory for encoder_wrapper_forward.1']
    #allocation27 [shape = 'u8[1024]{0}', space=vmem, size = 0x400, scoped, tag = 'input window, operand 19, single buffered']
    #allocation28 [shape = 'u8[131072]{0}', space=vmem, size = 0x20000, scoped, tag = 'input window, operand 20, single buffered']
    #allocation29 [shape = 's32[1]{0}', space=sflag, size = 0x4, scoped, tag = 'scoped memory for encoder_wrapper_forward.1']
    #allocation30 [shape = 'u8[131072]{0}', space=vmem, size = 0x20000, scoped, tag = 'input window, operand 21, single buffered']
    #allocation31 [shape = 'u8[2048]{0}', space=vmem, size = 0x800, scoped, tag = 'input window, operand 22, single buffered']
    #allocation32 [shape = 's32[1]{0}', space=sflag, size = 0x4, scoped, tag = 'scoped memory for encoder_wrapper_forward.1']
    #allocation33 [shape = 'u8[1024]{0}', space=vmem, size = 0x400, scoped, tag = 'input window, operand 23, single buffered']
    #allocation34 [shape = 'u8[131072]{0}', space=vmem, size = 0x20000, scoped, tag = 'input window, operand 24, single buffered']
    #allocation35 [shape = 's32[1]{0}', space=sflag, size = 0x4, scoped, tag = 'scoped memory for encoder_wrapper_forward.1']
    #allocation36 [shape = 'u8[131072]{0}', space=vmem, size = 0x20000, scoped, tag = 'input window, operand 25, single buffered']
    #allocation37 [shape = 'u8[1024]{0}', space=vmem, size = 0x400, scoped, tag = 'input window, operand 26, single buffered']
    #allocation38 [shape = 's32[1]{0}', space=sflag, size = 0x4, scoped, tag = 'scoped memory for encoder_wrapper_forward.1']
    #allocation39 [shape = 'u8[1024]{0}', space=vmem, size = 0x400, scoped, tag = 'input window, operand 27, single buffered']
    #allocation40 [shape = 'u8[1024]{0}', space=vmem, size = 0x400, scoped, tag = 'input window, operand 28, single buffered']
    #allocation41 [shape = 's32[1]{0}', space=sflag, size = 0x4, scoped, tag = 'scoped memory for encoder_wrapper_forward.1']
    #allocation42 [shape = 'u8[1024]{0}', space=vmem, size = 0x400, scoped, tag = 'input window, operand 29, single buffered']
    #allocation43 [shape = 'u8[1024]{0}', space=vmem, size = 0x400, scoped, tag = 'input window, operand 30, single buffered']
    #allocation44 [shape = 's32[1]{0}', space=sflag, size = 0x4, scoped, tag = 'scoped memory for encoder_wrapper_forward.1']
    #allocation45 [shape = 'u8[1024]{0}', space=vmem, size = 0x400, scoped, tag = 'input window, operand 31, single buffered']
    #allocation46 [shape = 'u8[1024]{0}', space=vmem, size = 0x400, scoped, tag = 'input window, operand 32, single buffered']
    #allocation47 [shape = 's32[1]{0}', space=sflag, size = 0x4, scoped, tag = 'scoped memory for encoder_wrapper_forward.1']
    #allocation48 [shape = 'u8[1024]{0}', space=vmem, size = 0x400, scoped, tag = 'input window, operand 33, single buffered']
    #allocation49 [shape = 'u8[1024]{0}', space=vmem, size = 0x400, scoped, tag = 'input window, operand 34, single buffered']
    #allocation50 [shape = 's32[1]{0}', space=sflag, size = 0x4, scoped, tag = 'scoped memory for encoder_wrapper_forward.1']
    #allocation51 [shape = 'u8[1024]{0}', space=vmem, size = 0x400, scoped, tag = 'input window, operand 35, single buffered']
    #allocation52 [shape = 'u8[512]{0}', space=vmem, size = 0x400, scoped, tag = 'input window, operand 36, single buffered']
    #allocation53 [shape = 's32[1]{0}', space=sflag, size = 0x4, scoped, tag = 'scoped memory for encoder_wrapper_forward.1']
    #allocation54 [shape = 'u8[32768]{0}', space=vmem, size = 0x8000, scoped, tag = 'input window, operand 37, single buffered']
    #allocation55 [shape = 'u8[512]{0}', space=vmem, size = 0x400, scoped, tag = 'input window, operand 38, single buffered']
    #allocation56 [shape = 's32[1]{0}', space=sflag, size = 0x4, scoped, tag = 'scoped memory for encoder_wrapper_forward.1']
    #allocation57 [shape = 'u8[32768]{0}', space=vmem, size = 0x8000, scoped, tag = 'input window, operand 39, single buffered']
    #allocation58 [shape = 'u8[8192]{0}', space=vmem, size = 0x2000, scoped, tag = 'output window, operand 0']
    %92 = vsyncpa [#allocation5], 0
    %93 = vsyncpa [#allocation8], 0
    %94 = vsyncpa [#allocation11], 0
    %95 = vsyncpa [#allocation14], 0
    %96 = vsyncpa [#allocation17], 0
    %97 = vsyncpa [#allocation20], 0
    %98 = vsyncpa [#allocation23], 0
    %99 = vsyncpa [#allocation26], 0
    %100 = vsyncpa [#allocation29], 0
    %101 = vsyncpa [#allocation32], 0
    %102 = vsyncpa [#allocation35], 0
    %103 = vsyncpa [#allocation38], 0
    %104 = vsyncpa [#allocation41], 0
    %105 = vsyncpa [#allocation44], 0
    %106 = vsyncpa [#allocation47], 0
    %107 = vsyncpa [#allocation50], 0
    %108 = vsyncpa [#allocation53], 0
    %109 = vsyncpa [#allocation56], 0
    %110 = vsyncpa [#allocation6], 0
    %s111 = scalar_lea.sflag [#allocation6], 1
    %112 = vsyncpa %s111, 0
    loop: start=0, step=1, limit=4
    $region2: #{encoder_wrapper_forward.1} parent=1 // loop_pre_header
      _
    $region3: #{encoder_wrapper_forward.1} parent=1 // loop_header
      %s114 = sphi 0, %s118
      %p115 = scmp.ge.s32.totalorder %s114, 4
      %s124 = sphi 0, %s126
      %s127 = sphi 0, %s124
      %s128 = sphi 0, %s127
      %s144 = sphi 0, %s128
      %s148 = sphi 0, %s148
      %s150 = sphi 0, %s148
      %s151 = sphi 0, %s150
      %s165 = sphi 0, %s151
      %s169 = sphi 0, %s169
      %s171 = sphi 0, %s169
      %s172 = sphi 0, %s171
      %s186 = sphi 0, %s172
      %s190 = sphi 0, %s190
      %s192 = sphi 0, %s190
      %s193 = sphi 0, %s192
      %s207 = sphi 0, %s193
      %s211 = sphi 0, %s211
      %s213 = sphi 0, %s211
      %s214 = sphi 0, %s213
      %s228 = sphi 0, %s214
      %s232 = sphi 0, %s232
      %s234 = sphi 0, %s232
      %s235 = sphi 0, %s234
      %s249 = sphi 0, %s235
      %s253 = sphi 0, %s253
      %s255 = sphi 0, %s253
      %s256 = sphi 0, %s255
      %s270 = sphi 0, %s256
      %s274 = sphi 0, %s274
      %s276 = sphi 0, %s274
      %s277 = sphi 0, %s276
      %s291 = sphi 0, %s277
      %s295 = sphi 0, %s295
      %s297 = sphi 0, %s295
      %s298 = sphi 0, %s297
      %s312 = sphi 0, %s298
      %s316 = sphi 0, %s316
      %s318 = sphi 0, %s316
      %s319 = sphi 0, %s318
      %s333 = sphi 0, %s319
      %s337 = sphi 0, %s337
      %s339 = sphi 0, %s337
      %s340 = sphi 0, %s339
      %s354 = sphi 0, %s340
      %s358 = sphi 0, %s358
      %s360 = sphi 0, %s358
      %s361 = sphi 0, %s360
      %s375 = sphi 0, %s361
      %s379 = sphi 0, %s379
      %s381 = sphi 0, %s379
      %s382 = sphi 0, %s381
      %s396 = sphi 0, %s382
      %s400 = sphi 0, %s400
      %s402 = sphi 0, %s400
      %s403 = sphi 0, %s402
      %s417 = sphi 0, %s403
      %s421 = sphi 0, %s421
      %s423 = sphi 0, %s421
      %s424 = sphi 0, %s423
      %s438 = sphi 0, %s424
      %s442 = sphi 0, %s442
      %s444 = sphi 0, %s442
      %s445 = sphi 0, %s444
      %s459 = sphi 0, %s445
      %s463 = sphi 0, %s463
      %s465 = sphi 0, %s463
      %s466 = sphi 0, %s465
      %s480 = sphi 0, %s466
      %s484 = sphi 0, %s484
      %s486 = sphi 0, %s484
      %s487 = sphi 0, %s486
      %s501 = sphi 0, %s487
      %s505 = sphi 0, %s505
      %s507 = sphi 0, %s505
      %s508 = sphi 0, %s507
      %s522 = sphi 0, %s508
      %s526 = sphi 0, %s526
      %s528 = sphi 0, %s526
      %s529 = sphi 0, %s528
      %s543 = sphi 0, %s529
      %s547 = sphi 0, %s547
      %s549 = sphi 0, %s547
      %s550 = sphi 0, %s549
      %s564 = sphi 0, %s550
      %s568 = sphi 0, %s568
      %s570 = sphi 0, %s568
      %s571 = sphi 0, %s570
      %s585 = sphi 0, %s571
      %s589 = sphi 0, %s589
      %s591 = sphi 0, %s589
      %s592 = sphi 0, %s591
      %s606 = sphi 0, %s592
      %s610 = sphi 0, %s610
      %s612 = sphi 0, %s610
      %s613 = sphi 0, %s612
      %s627 = sphi 0, %s613
      %s631 = sphi 0, %s631
      %s633 = sphi 0, %s631
      %s634 = sphi 0, %s633
      %s648 = sphi 0, %s634
      %s652 = sphi 0, %s652
      %s654 = sphi 0, %s652
      %s655 = sphi 0, %s654
      %s669 = sphi 0, %s655
      %s673 = sphi 0, %s673
      %s675 = sphi 0, %s673
      %s676 = sphi 0, %s675
      %s690 = sphi 0, %s676
      %s694 = sphi 0, %s694
      %s696 = sphi 0, %s694
      %s697 = sphi 0, %s696
      %s711 = sphi 0, %s697
      %s715 = sphi 0, %s715
      %s717 = sphi 0, %s715
      %s718 = sphi 0, %s717
      %s732 = sphi 0, %s718
      %s736 = sphi 0, %s736
      %s738 = sphi 0, %s736
      %s739 = sphi 0, %s738
      %s753 = sphi 0, %s739
      %s757 = sphi 0, %s757
      %s759 = sphi 0, %s757
      %s760 = sphi 0, %s759
      %s774 = sphi 0, %s760
      %s778 = sphi 0, %s778
      %s780 = sphi 0, %s778
      %s781 = sphi 0, %s780
      %s795 = sphi 0, %s781
      %s799 = sphi 0, %s799
      %s801 = sphi 0, %s799
      %s802 = sphi 0, %s801
      %s816 = sphi 0, %s802
      %s820 = sphi 0, %s820
      %s822 = sphi 0, %s820
      %s823 = sphi 0, %s822
      %s837 = sphi 0, %s823
      %s841 = sphi 0, %s841
      %s843 = sphi 0, %s841
      %s844 = sphi 0, %s843
      %s858 = sphi 0, %s844
      %s862 = sphi 0, %s862
      %s864 = sphi 0, %s862
      %s865 = sphi 0, %s864
      %s879 = sphi 0, %s865
      %s883 = sphi 0, %s883
      %s885 = sphi 0, %s883
      %s886 = sphi 0, %s885
      %s900 = sphi 0, %s886
      %s904 = sphi 0, %s904
      %s906 = sphi 0, %s904
      %s907 = sphi 0, %s906
      %s921 = sphi 0, %s907
      %s925 = sphi 0, %s925
      %s927 = sphi 0, %s925
      %s928 = sphi 0, %s927
      %s942 = sphi 0, %s928
      %s948 = sphi 0, %s950
      %s951 = sphi 0, %s948
      %s952 = sphi 0, %s951
      %s968 = sphi 0, %s952
    $region4: #{encoder_wrapper_forward.1} parent=1 // loop_header_branch
      %117 = sbr.rel (%p115) target = $region8
    $region5: #{encoder_wrapper_forward.1} parent=1 // loop_body
      %s119 = ssub.s32 %s114, 1
      %s120 = ssub.s32 %s114, 2
      %s121 = sadd.s32 %s114, 1
      %s122 = ssub.s32 %s114, %s121
      %p123 = scmp.eq.s32.totalorder %s122, 0
      %s125 = sadd.s32 %s124, 1
      %s126 = scalar_select %p123, %s124, %s125
      %p129 = pneg %p123
      %p130 = scmp.eq.s32.totalorder %s114, 1
      %p131 = por %p129, %p130
      %p132 = scmp.ne.s32.totalorder %s124, %s127
      %p133 = scmp.eq.s32.totalorder %s114, 0
      %p134 = por %p132, %p133
      %p135 = scmp.ne.s32.totalorder %s124, %s127
      %p136 = scmp.eq.s32.totalorder %s119, 1
      %p137 = por %p135, %p136
      %p138 = scmp.ne.s32.totalorder %s127, %s128
      %p139 = scmp.eq.s32.totalorder %s119, 0
      %p140 = por %p138, %p139
      %p141 = scmp.ne.s32.totalorder %s127, %s128
      %p142 = scmp.eq.s32.totalorder %s120, 1
      %p143 = por %p141, %p142
      %p145 = scmp.ne.s32.totalorder %s128, %s144
      %p146 = scmp.eq.s32.totalorder %s120, 0
      %p147 = por %p145, %p146
      %s149 = sadd.s32 %s148, 1
      %p152 = scmp.eq.s32.totalorder %s114, 1
      %p153 = scmp.ne.s32.totalorder %s148, %s150
      %p154 = scmp.eq.s32.totalorder %s114, 0
      %p155 = por %p153, %p154
      %p156 = scmp.ne.s32.totalorder %s148, %s150
      %p157 = scmp.eq.s32.totalorder %s119, 1
      %p158 = por %p156, %p157
      %p159 = scmp.ne.s32.totalorder %s150, %s151
      %p160 = scmp.eq.s32.totalorder %s119, 0
      %p161 = por %p159, %p160
      %p162 = scmp.ne.s32.totalorder %s150, %s151
      %p163 = scmp.eq.s32.totalorder %s120, 1
      %p164 = por %p162, %p163
      %p166 = scmp.ne.s32.totalorder %s151, %s165
      %p167 = scmp.eq.s32.totalorder %s120, 0
      %p168 = por %p166, %p167
      %s170 = sadd.s32 %s169, 1
      %p173 = scmp.eq.s32.totalorder %s114, 1
      %p174 = scmp.ne.s32.totalorder %s169, %s171
      %p175 = scmp.eq.s32.totalorder %s114, 0
      %p176 = por %p174, %p175
      %p177 = scmp.ne.s32.totalorder %s169, %s171
      %p178 = scmp.eq.s32.totalorder %s119, 1
      %p179 = por %p177, %p178
      %p180 = scmp.ne.s32.totalorder %s171, %s172
      %p181 = scmp.eq.s32.totalorder %s119, 0
      %p182 = por %p180, %p181
      %p183 = scmp.ne.s32.totalorder %s171, %s172
      %p184 = scmp.eq.s32.totalorder %s120, 1
      %p185 = por %p183, %p184
      %p187 = scmp.ne.s32.totalorder %s172, %s186
      %p188 = scmp.eq.s32.totalorder %s120, 0
      %p189 = por %p187, %p188
      %s191 = sadd.s32 %s190, 1
      %p194 = scmp.eq.s32.totalorder %s114, 1
      %p195 = scmp.ne.s32.totalorder %s190, %s192
      %p196 = scmp.eq.s32.totalorder %s114, 0
      %p197 = por %p195, %p196
      %p198 = scmp.ne.s32.totalorder %s190, %s192
      %p199 = scmp.eq.s32.totalorder %s119, 1
      %p200 = por %p198, %p199
      %p201 = scmp.ne.s32.totalorder %s192, %s193
      %p202 = scmp.eq.s32.totalorder %s119, 0
      %p203 = por %p201, %p202
      %p204 = scmp.ne.s32.totalorder %s192, %s193
      %p205 = scmp.eq.s32.totalorder %s120, 1
      %p206 = por %p204, %p205
      %p208 = scmp.ne.s32.totalorder %s193, %s207
      %p209 = scmp.eq.s32.totalorder %s120, 0
      %p210 = por %p208, %p209
      %s212 = sadd.s32 %s211, 1
      %p215 = scmp.eq.s32.totalorder %s114, 1
      %p216 = scmp.ne.s32.totalorder %s211, %s213
      %p217 = scmp.eq.s32.totalorder %s114, 0
      %p218 = por %p216, %p217
      %p219 = scmp.ne.s32.totalorder %s211, %s213
      %p220 = scmp.eq.s32.totalorder %s119, 1
      %p221 = por %p219, %p220
      %p222 = scmp.ne.s32.totalorder %s213, %s214
      %p223 = scmp.eq.s32.totalorder %s119, 0
      %p224 = por %p222, %p223
      %p225 = scmp.ne.s32.totalorder %s213, %s214
      %p226 = scmp.eq.s32.totalorder %s120, 1
      %p227 = por %p225, %p226
      %p229 = scmp.ne.s32.totalorder %s214, %s228
      %p230 = scmp.eq.s32.totalorder %s120, 0
      %p231 = por %p229, %p230
      %s233 = sadd.s32 %s232, 1
      %p236 = scmp.eq.s32.totalorder %s114, 1
      %p237 = scmp.ne.s32.totalorder %s232, %s234
      %p238 = scmp.eq.s32.totalorder %s114, 0
      %p239 = por %p237, %p238
      %p240 = scmp.ne.s32.totalorder %s232, %s234
      %p241 = scmp.eq.s32.totalorder %s119, 1
      %p242 = por %p240, %p241
      %p243 = scmp.ne.s32.totalorder %s234, %s235
      %p244 = scmp.eq.s32.totalorder %s119, 0
      %p245 = por %p243, %p244
      %p246 = scmp.ne.s32.totalorder %s234, %s235
      %p247 = scmp.eq.s32.totalorder %s120, 1
      %p248 = por %p246, %p247
      %p250 = scmp.ne.s32.totalorder %s235, %s249
      %p251 = scmp.eq.s32.totalorder %s120, 0
      %p252 = por %p250, %p251
      %s254 = sadd.s32 %s253, 1
      %p257 = scmp.eq.s32.totalorder %s114, 1
      %p258 = scmp.ne.s32.totalorder %s253, %s255
      %p259 = scmp.eq.s32.totalorder %s114, 0
      %p260 = por %p258, %p259
      %p261 = scmp.ne.s32.totalorder %s253, %s255
      %p262 = scmp.eq.s32.totalorder %s119, 1
      %p263 = por %p261, %p262
      %p264 = scmp.ne.s32.totalorder %s255, %s256
      %p265 = scmp.eq.s32.totalorder %s119, 0
      %p266 = por %p264, %p265
      %p267 = scmp.ne.s32.totalorder %s255, %s256
      %p268 = scmp.eq.s32.totalorder %s120, 1
      %p269 = por %p267, %p268
      %p271 = scmp.ne.s32.totalorder %s256, %s270
      %p272 = scmp.eq.s32.totalorder %s120, 0
      %p273 = por %p271, %p272
      %s275 = sadd.s32 %s274, 1
      %p278 = scmp.eq.s32.totalorder %s114, 1
      %p279 = scmp.ne.s32.totalorder %s274, %s276
      %p280 = scmp.eq.s32.totalorder %s114, 0
      %p281 = por %p279, %p280
      %p282 = scmp.ne.s32.totalorder %s274, %s276
      %p283 = scmp.eq.s32.totalorder %s119, 1
      %p284 = por %p282, %p283
      %p285 = scmp.ne.s32.totalorder %s276, %s277
      %p286 = scmp.eq.s32.totalorder %s119, 0
      %p287 = por %p285, %p286
      %p288 = scmp.ne.s32.totalorder %s276, %s277
      %p289 = scmp.eq.s32.totalorder %s120, 1
      %p290 = por %p288, %p289
      %p292 = scmp.ne.s32.totalorder %s277, %s291
      %p293 = scmp.eq.s32.totalorder %s120, 0
      %p294 = por %p292, %p293
      %s296 = sadd.s32 %s295, 1
      %p299 = scmp.eq.s32.totalorder %s114, 1
      %p300 = scmp.ne.s32.totalorder %s295, %s297
      %p301 = scmp.eq.s32.totalorder %s114, 0
      %p302 = por %p300, %p301
      %p303 = scmp.ne.s32.totalorder %s295, %s297
      %p304 = scmp.eq.s32.totalorder %s119, 1
      %p305 = por %p303, %p304
      %p306 = scmp.ne.s32.totalorder %s297, %s298
      %p307 = scmp.eq.s32.totalorder %s119, 0
      %p308 = por %p306, %p307
      %p309 = scmp.ne.s32.totalorder %s297, %s298
      %p310 = scmp.eq.s32.totalorder %s120, 1
      %p311 = por %p309, %p310
      %p313 = scmp.ne.s32.totalorder %s298, %s312
      %p314 = scmp.eq.s32.totalorder %s120, 0
      %p315 = por %p313, %p314
      %s317 = sadd.s32 %s316, 1
      %p320 = scmp.eq.s32.totalorder %s114, 1
      %p321 = scmp.ne.s32.totalorder %s316, %s318
      %p322 = scmp.eq.s32.totalorder %s114, 0
      %p323 = por %p321, %p322
      %p324 = scmp.ne.s32.totalorder %s316, %s318
      %p325 = scmp.eq.s32.totalorder %s119, 1
      %p326 = por %p324, %p325
      %p327 = scmp.ne.s32.totalorder %s318, %s319
      %p328 = scmp.eq.s32.totalorder %s119, 0
      %p329 = por %p327, %p328
      %p330 = scmp.ne.s32.totalorder %s318, %s319
      %p331 = scmp.eq.s32.totalorder %s120, 1
      %p332 = por %p330, %p331
      %p334 = scmp.ne.s32.totalorder %s319, %s333
      %p335 = scmp.eq.s32.totalorder %s120, 0
      %p336 = por %p334, %p335
      %s338 = sadd.s32 %s337, 1
      %p341 = scmp.eq.s32.totalorder %s114, 1
      %p342 = scmp.ne.s32.totalorder %s337, %s339
      %p343 = scmp.eq.s32.totalorder %s114, 0
      %p344 = por %p342, %p343
      %p345 = scmp.ne.s32.totalorder %s337, %s339
      %p346 = scmp.eq.s32.totalorder %s119, 1
      %p347 = por %p345, %p346
      %p348 = scmp.ne.s32.totalorder %s339, %s340
      %p349 = scmp.eq.s32.totalorder %s119, 0
      %p350 = por %p348, %p349
      %p351 = scmp.ne.s32.totalorder %s339, %s340
      %p352 = scmp.eq.s32.totalorder %s120, 1
      %p353 = por %p351, %p352
      %p355 = scmp.ne.s32.totalorder %s340, %s354
      %p356 = scmp.eq.s32.totalorder %s120, 0
      %p357 = por %p355, %p356
      %s359 = sadd.s32 %s358, 1
      %p362 = scmp.eq.s32.totalorder %s114, 1
      %p363 = scmp.ne.s32.totalorder %s358, %s360
      %p364 = scmp.eq.s32.totalorder %s114, 0
      %p365 = por %p363, %p364
      %p366 = scmp.ne.s32.totalorder %s358, %s360
      %p367 = scmp.eq.s32.totalorder %s119, 1
      %p368 = por %p366, %p367
      %p369 = scmp.ne.s32.totalorder %s360, %s361
      %p370 = scmp.eq.s32.totalorder %s119, 0
      %p371 = por %p369, %p370
      %p372 = scmp.ne.s32.totalorder %s360, %s361
      %p373 = scmp.eq.s32.totalorder %s120, 1
      %p374 = por %p372, %p373
      %p376 = scmp.ne.s32.totalorder %s361, %s375
      %p377 = scmp.eq.s32.totalorder %s120, 0
      %p378 = por %p376, %p377
      %s380 = sadd.s32 %s379, 1
      %p383 = scmp.eq.s32.totalorder %s114, 1
      %p384 = scmp.ne.s32.totalorder %s379, %s381
      %p385 = scmp.eq.s32.totalorder %s114, 0
      %p386 = por %p384, %p385
      %p387 = scmp.ne.s32.totalorder %s379, %s381
      %p388 = scmp.eq.s32.totalorder %s119, 1
      %p389 = por %p387, %p388
      %p390 = scmp.ne.s32.totalorder %s381, %s382
      %p391 = scmp.eq.s32.totalorder %s119, 0
      %p392 = por %p390, %p391
      %p393 = scmp.ne.s32.totalorder %s381, %s382
      %p394 = scmp.eq.s32.totalorder %s120, 1
      %p395 = por %p393, %p394
      %p397 = scmp.ne.s32.totalorder %s382, %s396
      %p398 = scmp.eq.s32.totalorder %s120, 0
      %p399 = por %p397, %p398
      %s401 = sadd.s32 %s400, 1
      %p404 = scmp.eq.s32.totalorder %s114, 1
      %p405 = scmp.ne.s32.totalorder %s400, %s402
      %p406 = scmp.eq.s32.totalorder %s114, 0
      %p407 = por %p405, %p406
      %p408 = scmp.ne.s32.totalorder %s400, %s402
      %p409 = scmp.eq.s32.totalorder %s119, 1
      %p410 = por %p408, %p409
      %p411 = scmp.ne.s32.totalorder %s402, %s403
      %p412 = scmp.eq.s32.totalorder %s119, 0
      %p413 = por %p411, %p412
      %p414 = scmp.ne.s32.totalorder %s402, %s403
      %p415 = scmp.eq.s32.totalorder %s120, 1
      %p416 = por %p414, %p415
      %p418 = scmp.ne.s32.totalorder %s403, %s417
      %p419 = scmp.eq.s32.totalorder %s120, 0
      %p420 = por %p418, %p419
      %s422 = sadd.s32 %s421, 1
      %p425 = scmp.eq.s32.totalorder %s114, 1
      %p426 = scmp.ne.s32.totalorder %s421, %s423
      %p427 = scmp.eq.s32.totalorder %s114, 0
      %p428 = por %p426, %p427
      %p429 = scmp.ne.s32.totalorder %s421, %s423
      %p430 = scmp.eq.s32.totalorder %s119, 1
      %p431 = por %p429, %p430
      %p432 = scmp.ne.s32.totalorder %s423, %s424
      %p433 = scmp.eq.s32.totalorder %s119, 0
      %p434 = por %p432, %p433
      %p435 = scmp.ne.s32.totalorder %s423, %s424
      %p436 = scmp.eq.s32.totalorder %s120, 1
      %p437 = por %p435, %p436
      %p439 = scmp.ne.s32.totalorder %s424, %s438
      %p440 = scmp.eq.s32.totalorder %s120, 0
      %p441 = por %p439, %p440
      %s443 = sadd.s32 %s442, 1
      %p446 = scmp.eq.s32.totalorder %s114, 1
      %p447 = scmp.ne.s32.totalorder %s442, %s444
      %p448 = scmp.eq.s32.totalorder %s114, 0
      %p449 = por %p447, %p448
      %p450 = scmp.ne.s32.totalorder %s442, %s444
      %p451 = scmp.eq.s32.totalorder %s119, 1
      %p452 = por %p450, %p451
      %p453 = scmp.ne.s32.totalorder %s444, %s445
      %p454 = scmp.eq.s32.totalorder %s119, 0
      %p455 = por %p453, %p454
      %p456 = scmp.ne.s32.totalorder %s444, %s445
      %p457 = scmp.eq.s32.totalorder %s120, 1
      %p458 = por %p456, %p457
      %p460 = scmp.ne.s32.totalorder %s445, %s459
      %p461 = scmp.eq.s32.totalorder %s120, 0
      %p462 = por %p460, %p461
      %s464 = sadd.s32 %s463, 1
      %p467 = scmp.eq.s32.totalorder %s114, 1
      %p468 = scmp.ne.s32.totalorder %s463, %s465
      %p469 = scmp.eq.s32.totalorder %s114, 0
      %p470 = por %p468, %p469
      %p471 = scmp.ne.s32.totalorder %s463, %s465
      %p472 = scmp.eq.s32.totalorder %s119, 1
      %p473 = por %p471, %p472
      %p474 = scmp.ne.s32.totalorder %s465, %s466
      %p475 = scmp.eq.s32.totalorder %s119, 0
      %p476 = por %p474, %p475
      %p477 = scmp.ne.s32.totalorder %s465, %s466
      %p478 = scmp.eq.s32.totalorder %s120, 1
      %p479 = por %p477, %p478
      %p481 = scmp.ne.s32.totalorder %s466, %s480
      %p482 = scmp.eq.s32.totalorder %s120, 0
      %p483 = por %p481, %p482
      %s485 = sadd.s32 %s484, 1
      %p488 = scmp.eq.s32.totalorder %s114, 1
      %p489 = scmp.ne.s32.totalorder %s484, %s486
      %p490 = scmp.eq.s32.totalorder %s114, 0
      %p491 = por %p489, %p490
      %p492 = scmp.ne.s32.totalorder %s484, %s486
      %p493 = scmp.eq.s32.totalorder %s119, 1
      %p494 = por %p492, %p493
      %p495 = scmp.ne.s32.totalorder %s486, %s487
      %p496 = scmp.eq.s32.totalorder %s119, 0
      %p497 = por %p495, %p496
      %p498 = scmp.ne.s32.totalorder %s486, %s487
      %p499 = scmp.eq.s32.totalorder %s120, 1
      %p500 = por %p498, %p499
      %p502 = scmp.ne.s32.totalorder %s487, %s501
      %p503 = scmp.eq.s32.totalorder %s120, 0
      %p504 = por %p502, %p503
      %s506 = sadd.s32 %s505, 1
      %p509 = scmp.eq.s32.totalorder %s114, 1
      %p510 = scmp.ne.s32.totalorder %s505, %s507
      %p511 = scmp.eq.s32.totalorder %s114, 0
      %p512 = por %p510, %p511
      %p513 = scmp.ne.s32.totalorder %s505, %s507
      %p514 = scmp.eq.s32.totalorder %s119, 1
      %p515 = por %p513, %p514
      %p516 = scmp.ne.s32.totalorder %s507, %s508
      %p517 = scmp.eq.s32.totalorder %s119, 0
      %p518 = por %p516, %p517
      %p519 = scmp.ne.s32.totalorder %s507, %s508
      %p520 = scmp.eq.s32.totalorder %s120, 1
      %p521 = por %p519, %p520
      %p523 = scmp.ne.s32.totalorder %s508, %s522
      %p524 = scmp.eq.s32.totalorder %s120, 0
      %p525 = por %p523, %p524
      %s527 = sadd.s32 %s526, 1
      %p530 = scmp.eq.s32.totalorder %s114, 1
      %p531 = scmp.ne.s32.totalorder %s526, %s528
      %p532 = scmp.eq.s32.totalorder %s114, 0
      %p533 = por %p531, %p532
      %p534 = scmp.ne.s32.totalorder %s526, %s528
      %p535 = scmp.eq.s32.totalorder %s119, 1
      %p536 = por %p534, %p535
      %p537 = scmp.ne.s32.totalorder %s528, %s529
      %p538 = scmp.eq.s32.totalorder %s119, 0
      %p539 = por %p537, %p538
      %p540 = scmp.ne.s32.totalorder %s528, %s529
      %p541 = scmp.eq.s32.totalorder %s120, 1
      %p542 = por %p540, %p541
      %p544 = scmp.ne.s32.totalorder %s529, %s543
      %p545 = scmp.eq.s32.totalorder %s120, 0
      %p546 = por %p544, %p545
      %s548 = sadd.s32 %s547, 1
      %p551 = scmp.eq.s32.totalorder %s114, 1
      %p552 = scmp.ne.s32.totalorder %s547, %s549
      %p553 = scmp.eq.s32.totalorder %s114, 0
      %p554 = por %p552, %p553
      %p555 = scmp.ne.s32.totalorder %s547, %s549
      %p556 = scmp.eq.s32.totalorder %s119, 1
      %p557 = por %p555, %p556
      %p558 = scmp.ne.s32.totalorder %s549, %s550
      %p559 = scmp.eq.s32.totalorder %s119, 0
      %p560 = por %p558, %p559
      %p561 = scmp.ne.s32.totalorder %s549, %s550
      %p562 = scmp.eq.s32.totalorder %s120, 1
      %p563 = por %p561, %p562
      %p565 = scmp.ne.s32.totalorder %s550, %s564
      %p566 = scmp.eq.s32.totalorder %s120, 0
      %p567 = por %p565, %p566
      %s569 = sadd.s32 %s568, 1
      %p572 = scmp.eq.s32.totalorder %s114, 1
      %p573 = scmp.ne.s32.totalorder %s568, %s570
      %p574 = scmp.eq.s32.totalorder %s114, 0
      %p575 = por %p573, %p574
      %p576 = scmp.ne.s32.totalorder %s568, %s570
      %p577 = scmp.eq.s32.totalorder %s119, 1
      %p578 = por %p576, %p577
      %p579 = scmp.ne.s32.totalorder %s570, %s571
      %p580 = scmp.eq.s32.totalorder %s119, 0
      %p581 = por %p579, %p580
      %p582 = scmp.ne.s32.totalorder %s570, %s571
      %p583 = scmp.eq.s32.totalorder %s120, 1
      %p584 = por %p582, %p583
      %p586 = scmp.ne.s32.totalorder %s571, %s585
      %p587 = scmp.eq.s32.totalorder %s120, 0
      %p588 = por %p586, %p587
      %s590 = sadd.s32 %s589, 1
      %p593 = scmp.eq.s32.totalorder %s114, 1
      %p594 = scmp.ne.s32.totalorder %s589, %s591
      %p595 = scmp.eq.s32.totalorder %s114, 0
      %p596 = por %p594, %p595
      %p597 = scmp.ne.s32.totalorder %s589, %s591
      %p598 = scmp.eq.s32.totalorder %s119, 1
      %p599 = por %p597, %p598
      %p600 = scmp.ne.s32.totalorder %s591, %s592
      %p601 = scmp.eq.s32.totalorder %s119, 0
      %p602 = por %p600, %p601
      %p603 = scmp.ne.s32.totalorder %s591, %s592
      %p604 = scmp.eq.s32.totalorder %s120, 1
      %p605 = por %p603, %p604
      %p607 = scmp.ne.s32.totalorder %s592, %s606
      %p608 = scmp.eq.s32.totalorder %s120, 0
      %p609 = por %p607, %p608
      %s611 = sadd.s32 %s610, 1
      %p614 = scmp.eq.s32.totalorder %s114, 1
      %p615 = scmp.ne.s32.totalorder %s610, %s612
      %p616 = scmp.eq.s32.totalorder %s114, 0
      %p617 = por %p615, %p616
      %p618 = scmp.ne.s32.totalorder %s610, %s612
      %p619 = scmp.eq.s32.totalorder %s119, 1
      %p620 = por %p618, %p619
      %p621 = scmp.ne.s32.totalorder %s612, %s613
      %p622 = scmp.eq.s32.totalorder %s119, 0
      %p623 = por %p621, %p622
      %p624 = scmp.ne.s32.totalorder %s612, %s613
      %p625 = scmp.eq.s32.totalorder %s120, 1
      %p626 = por %p624, %p625
      %p628 = scmp.ne.s32.totalorder %s613, %s627
      %p629 = scmp.eq.s32.totalorder %s120, 0
      %p630 = por %p628, %p629
      %s632 = sadd.s32 %s631, 1
      %p635 = scmp.eq.s32.totalorder %s114, 1
      %p636 = scmp.ne.s32.totalorder %s631, %s633
      %p637 = scmp.eq.s32.totalorder %s114, 0
      %p638 = por %p636, %p637
      %p639 = scmp.ne.s32.totalorder %s631, %s633
      %p640 = scmp.eq.s32.totalorder %s119, 1
      %p641 = por %p639, %p640
      %p642 = scmp.ne.s32.totalorder %s633, %s634
      %p643 = scmp.eq.s32.totalorder %s119, 0
      %p644 = por %p642, %p643
      %p645 = scmp.ne.s32.totalorder %s633, %s634
      %p646 = scmp.eq.s32.totalorder %s120, 1
      %p647 = por %p645, %p646
      %p649 = scmp.ne.s32.totalorder %s634, %s648
      %p650 = scmp.eq.s32.totalorder %s120, 0
      %p651 = por %p649, %p650
      %s653 = sadd.s32 %s652, 1
      %p656 = scmp.eq.s32.totalorder %s114, 1
      %p657 = scmp.ne.s32.totalorder %s652, %s654
      %p658 = scmp.eq.s32.totalorder %s114, 0
      %p659 = por %p657, %p658
      %p660 = scmp.ne.s32.totalorder %s652, %s654
      %p661 = scmp.eq.s32.totalorder %s119, 1
      %p662 = por %p660, %p661
      %p663 = scmp.ne.s32.totalorder %s654, %s655
      %p664 = scmp.eq.s32.totalorder %s119, 0
      %p665 = por %p663, %p664
      %p666 = scmp.ne.s32.totalorder %s654, %s655
      %p667 = scmp.eq.s32.totalorder %s120, 1
      %p668 = por %p666, %p667
      %p670 = scmp.ne.s32.totalorder %s655, %s669
      %p671 = scmp.eq.s32.totalorder %s120, 0
      %p672 = por %p670, %p671
      %s674 = sadd.s32 %s673, 1
      %p677 = scmp.eq.s32.totalorder %s114, 1
      %p678 = scmp.ne.s32.totalorder %s673, %s675
      %p679 = scmp.eq.s32.totalorder %s114, 0
      %p680 = por %p678, %p679
      %p681 = scmp.ne.s32.totalorder %s673, %s675
      %p682 = scmp.eq.s32.totalorder %s119, 1
      %p683 = por %p681, %p682
      %p684 = scmp.ne.s32.totalorder %s675, %s676
      %p685 = scmp.eq.s32.totalorder %s119, 0
      %p686 = por %p684, %p685
      %p687 = scmp.ne.s32.totalorder %s675, %s676
      %p688 = scmp.eq.s32.totalorder %s120, 1
      %p689 = por %p687, %p688
      %p691 = scmp.ne.s32.totalorder %s676, %s690
      %p692 = scmp.eq.s32.totalorder %s120, 0
      %p693 = por %p691, %p692
      %s695 = sadd.s32 %s694, 1
      %p698 = scmp.eq.s32.totalorder %s114, 1
      %p699 = scmp.ne.s32.totalorder %s694, %s696
      %p700 = scmp.eq.s32.totalorder %s114, 0
      %p701 = por %p699, %p700
      %p702 = scmp.ne.s32.totalorder %s694, %s696
      %p703 = scmp.eq.s32.totalorder %s119, 1
      %p704 = por %p702, %p703
      %p705 = scmp.ne.s32.totalorder %s696, %s697
      %p706 = scmp.eq.s32.totalorder %s119, 0
      %p707 = por %p705, %p706
      %p708 = scmp.ne.s32.totalorder %s696, %s697
      %p709 = scmp.eq.s32.totalorder %s120, 1
      %p710 = por %p708, %p709
      %p712 = scmp.ne.s32.totalorder %s697, %s711
      %p713 = scmp.eq.s32.totalorder %s120, 0
      %p714 = por %p712, %p713
      %s716 = sadd.s32 %s715, 1
      %p719 = scmp.eq.s32.totalorder %s114, 1
      %p720 = scmp.ne.s32.totalorder %s715, %s717
      %p721 = scmp.eq.s32.totalorder %s114, 0
      %p722 = por %p720, %p721
      %p723 = scmp.ne.s32.totalorder %s715, %s717
      %p724 = scmp.eq.s32.totalorder %s119, 1
      %p725 = por %p723, %p724
      %p726 = scmp.ne.s32.totalorder %s717, %s718
      %p727 = scmp.eq.s32.totalorder %s119, 0
      %p728 = por %p726, %p727
      %p729 = scmp.ne.s32.totalorder %s717, %s718
      %p730 = scmp.eq.s32.totalorder %s120, 1
      %p731 = por %p729, %p730
      %p733 = scmp.ne.s32.totalorder %s718, %s732
      %p734 = scmp.eq.s32.totalorder %s120, 0
      %p735 = por %p733, %p734
      %s737 = sadd.s32 %s736, 1
      %p740 = scmp.eq.s32.totalorder %s114, 1
      %p741 = scmp.ne.s32.totalorder %s736, %s738
      %p742 = scmp.eq.s32.totalorder %s114, 0
      %p743 = por %p741, %p742
      %p744 = scmp.ne.s32.totalorder %s736, %s738
      %p745 = scmp.eq.s32.totalorder %s119, 1
      %p746 = por %p744, %p745
      %p747 = scmp.ne.s32.totalorder %s738, %s739
      %p748 = scmp.eq.s32.totalorder %s119, 0
      %p749 = por %p747, %p748
      %p750 = scmp.ne.s32.totalorder %s738, %s739
      %p751 = scmp.eq.s32.totalorder %s120, 1
      %p752 = por %p750, %p751
      %p754 = scmp.ne.s32.totalorder %s739, %s753
      %p755 = scmp.eq.s32.totalorder %s120, 0
      %p756 = por %p754, %p755
      %s758 = sadd.s32 %s757, 1
      %p761 = scmp.eq.s32.totalorder %s114, 1
      %p762 = scmp.ne.s32.totalorder %s757, %s759
      %p763 = scmp.eq.s32.totalorder %s114, 0
      %p764 = por %p762, %p763
      %p765 = scmp.ne.s32.totalorder %s757, %s759
      %p766 = scmp.eq.s32.totalorder %s119, 1
      %p767 = por %p765, %p766
      %p768 = scmp.ne.s32.totalorder %s759, %s760
      %p769 = scmp.eq.s32.totalorder %s119, 0
      %p770 = por %p768, %p769
      %p771 = scmp.ne.s32.totalorder %s759, %s760
      %p772 = scmp.eq.s32.totalorder %s120, 1
      %p773 = por %p771, %p772
      %p775 = scmp.ne.s32.totalorder %s760, %s774
      %p776 = scmp.eq.s32.totalorder %s120, 0
      %p777 = por %p775, %p776
      %s779 = sadd.s32 %s778, 1
      %p782 = scmp.eq.s32.totalorder %s114, 1
      %p783 = scmp.ne.s32.totalorder %s778, %s780
      %p784 = scmp.eq.s32.totalorder %s114, 0
      %p785 = por %p783, %p784
      %p786 = scmp.ne.s32.totalorder %s778, %s780
      %p787 = scmp.eq.s32.totalorder %s119, 1
      %p788 = por %p786, %p787
      %p789 = scmp.ne.s32.totalorder %s780, %s781
      %p790 = scmp.eq.s32.totalorder %s119, 0
      %p791 = por %p789, %p790
      %p792 = scmp.ne.s32.totalorder %s780, %s781
      %p793 = scmp.eq.s32.totalorder %s120, 1
      %p794 = por %p792, %p793
      %p796 = scmp.ne.s32.totalorder %s781, %s795
      %p797 = scmp.eq.s32.totalorder %s120, 0
      %p798 = por %p796, %p797
      %s800 = sadd.s32 %s799, 1
      %p803 = scmp.eq.s32.totalorder %s114, 1
      %p804 = scmp.ne.s32.totalorder %s799, %s801
      %p805 = scmp.eq.s32.totalorder %s114, 0
      %p806 = por %p804, %p805
      %p807 = scmp.ne.s32.totalorder %s799, %s801
      %p808 = scmp.eq.s32.totalorder %s119, 1
      %p809 = por %p807, %p808
      %p810 = scmp.ne.s32.totalorder %s801, %s802
      %p811 = scmp.eq.s32.totalorder %s119, 0
      %p812 = por %p810, %p811
      %p813 = scmp.ne.s32.totalorder %s801, %s802
      %p814 = scmp.eq.s32.totalorder %s120, 1
      %p815 = por %p813, %p814
      %p817 = scmp.ne.s32.totalorder %s802, %s816
      %p818 = scmp.eq.s32.totalorder %s120, 0
      %p819 = por %p817, %p818
      %s821 = sadd.s32 %s820, 1
      %p824 = scmp.eq.s32.totalorder %s114, 1
      %p825 = scmp.ne.s32.totalorder %s820, %s822
      %p826 = scmp.eq.s32.totalorder %s114, 0
      %p827 = por %p825, %p826
      %p828 = scmp.ne.s32.totalorder %s820, %s822
      %p829 = scmp.eq.s32.totalorder %s119, 1
      %p830 = por %p828, %p829
      %p831 = scmp.ne.s32.totalorder %s822, %s823
      %p832 = scmp.eq.s32.totalorder %s119, 0
      %p833 = por %p831, %p832
      %p834 = scmp.ne.s32.totalorder %s822, %s823
      %p835 = scmp.eq.s32.totalorder %s120, 1
      %p836 = por %p834, %p835
      %p838 = scmp.ne.s32.totalorder %s823, %s837
      %p839 = scmp.eq.s32.totalorder %s120, 0
      %p840 = por %p838, %p839
      %s842 = sadd.s32 %s841, 1
      %p845 = scmp.eq.s32.totalorder %s114, 1
      %p846 = scmp.ne.s32.totalorder %s841, %s843
      %p847 = scmp.eq.s32.totalorder %s114, 0
      %p848 = por %p846, %p847
      %p849 = scmp.ne.s32.totalorder %s841, %s843
      %p850 = scmp.eq.s32.totalorder %s119, 1
      %p851 = por %p849, %p850
      %p852 = scmp.ne.s32.totalorder %s843, %s844
      %p853 = scmp.eq.s32.totalorder %s119, 0
      %p854 = por %p852, %p853
      %p855 = scmp.ne.s32.totalorder %s843, %s844
      %p856 = scmp.eq.s32.totalorder %s120, 1
      %p857 = por %p855, %p856
      %p859 = scmp.ne.s32.totalorder %s844, %s858
      %p860 = scmp.eq.s32.totalorder %s120, 0
      %p861 = por %p859, %p860
      %s863 = sadd.s32 %s862, 1
      %p866 = scmp.eq.s32.totalorder %s114, 1
      %p867 = scmp.ne.s32.totalorder %s862, %s864
      %p868 = scmp.eq.s32.totalorder %s114, 0
      %p869 = por %p867, %p868
      %p870 = scmp.ne.s32.totalorder %s862, %s864
      %p871 = scmp.eq.s32.totalorder %s119, 1
      %p872 = por %p870, %p871
      %p873 = scmp.ne.s32.totalorder %s864, %s865
      %p874 = scmp.eq.s32.totalorder %s119, 0
      %p875 = por %p873, %p874
      %p876 = scmp.ne.s32.totalorder %s864, %s865
      %p877 = scmp.eq.s32.totalorder %s120, 1
      %p878 = por %p876, %p877
      %p880 = scmp.ne.s32.totalorder %s865, %s879
      %p881 = scmp.eq.s32.totalorder %s120, 0
      %p882 = por %p880, %p881
      %s884 = sadd.s32 %s883, 1
      %p887 = scmp.eq.s32.totalorder %s114, 1
      %p888 = scmp.ne.s32.totalorder %s883, %s885
      %p889 = scmp.eq.s32.totalorder %s114, 0
      %p890 = por %p888, %p889
      %p891 = scmp.ne.s32.totalorder %s883, %s885
      %p892 = scmp.eq.s32.totalorder %s119, 1
      %p893 = por %p891, %p892
      %p894 = scmp.ne.s32.totalorder %s885, %s886
      %p895 = scmp.eq.s32.totalorder %s119, 0
      %p896 = por %p894, %p895
      %p897 = scmp.ne.s32.totalorder %s885, %s886
      %p898 = scmp.eq.s32.totalorder %s120, 1
      %p899 = por %p897, %p898
      %p901 = scmp.ne.s32.totalorder %s886, %s900
      %p902 = scmp.eq.s32.totalorder %s120, 0
      %p903 = por %p901, %p902
      %s905 = sadd.s32 %s904, 1
      %p908 = scmp.eq.s32.totalorder %s114, 1
      %p909 = scmp.ne.s32.totalorder %s904, %s906
      %p910 = scmp.eq.s32.totalorder %s114, 0
      %p911 = por %p909, %p910
      %p912 = scmp.ne.s32.totalorder %s904, %s906
      %p913 = scmp.eq.s32.totalorder %s119, 1
      %p914 = por %p912, %p913
      %p915 = scmp.ne.s32.totalorder %s906, %s907
      %p916 = scmp.eq.s32.totalorder %s119, 0
      %p917 = por %p915, %p916
      %p918 = scmp.ne.s32.totalorder %s906, %s907
      %p919 = scmp.eq.s32.totalorder %s120, 1
      %p920 = por %p918, %p919
      %p922 = scmp.ne.s32.totalorder %s907, %s921
      %p923 = scmp.eq.s32.totalorder %s120, 0
      %p924 = por %p922, %p923
      %s926 = sadd.s32 %s925, 1
      %p929 = scmp.eq.s32.totalorder %s114, 1
      %p930 = scmp.ne.s32.totalorder %s925, %s927
      %p931 = scmp.eq.s32.totalorder %s114, 0
      %p932 = por %p930, %p931
      %p933 = scmp.ne.s32.totalorder %s925, %s927
      %p934 = scmp.eq.s32.totalorder %s119, 1
      %p935 = por %p933, %p934
      %p936 = scmp.ne.s32.totalorder %s927, %s928
      %p937 = scmp.eq.s32.totalorder %s119, 0
      %p938 = por %p936, %p937
      %p939 = scmp.ne.s32.totalorder %s927, %s928
      %p940 = scmp.eq.s32.totalorder %s120, 1
      %p941 = por %p939, %p940
      %p943 = scmp.ne.s32.totalorder %s928, %s942
      %p944 = scmp.eq.s32.totalorder %s120, 0
      %p945 = por %p943, %p944
      %s946 = ssub.s32 %s114, %s121
      %p947 = scmp.eq.s32.totalorder %s946, 0
      %s949 = sadd.s32 %s948, 1
      %s950 = scalar_select %p947, %s948, %s949
      %p953 = pneg %p947
      %p954 = scmp.eq.s32.totalorder %s114, 1
      %p955 = por %p953, %p954
      %p956 = scmp.ne.s32.totalorder %s948, %s951
      %p957 = scmp.eq.s32.totalorder %s114, 0
      %p958 = por %p956, %p957
      %p959 = scmp.ne.s32.totalorder %s948, %s951
      %p960 = scmp.eq.s32.totalorder %s119, 1
      %p961 = por %p959, %p960
      %p962 = scmp.ne.s32.totalorder %s951, %s952
      %p963 = scmp.eq.s32.totalorder %s119, 0
      %p964 = por %p962, %p963
      %p965 = scmp.ne.s32.totalorder %s951, %s952
      %p966 = scmp.eq.s32.totalorder %s120, 1
      %p967 = por %p965, %p966
      %p969 = scmp.ne.s32.totalorder %s952, %s968
      %p970 = scmp.eq.s32.totalorder %s120, 0
      %p971 = por %p969, %p970
      %p972 = scmp.le.s32.totalorder 1, %s114
      %p973 = scmp.lt.s32.totalorder %s114, 3
      %p974 = pnand %p972, %p973
      %p975 = pneg %p974
      // Predicated region
      $region9: #{encoder_wrapper_forward.1} parent=5 // pred_check
        _
      $region10: #{encoder_wrapper_forward.1} parent=5 // pred_check_branch
        %977 = sbr.rel (%p974) target = $region12
      $region11: #{encoder_wrapper_forward.1} parent=5 // pred_region
        %s978 = ssub.s32 %s114, 1
        // Predicated region
        $region13: #{encoder_wrapper_forward.1} parent=11 // pred_check
          %p979 = pneg %p161
        $region14: #{encoder_wrapper_forward.1} parent=11 // pred_check_branch
          %981 = sbr.rel (%p979) target = $region16
        $region15: #{encoder_wrapper_forward.1} parent=11 // pred_region
          _
        $region16: #{encoder_wrapper_forward.1} parent=11 // pred_fallthru
          _
        // Predicated region
        $region17: #{encoder_wrapper_forward.1} parent=11 // pred_check
          %p982 = pneg %p182
        $region18: #{encoder_wrapper_forward.1} parent=11 // pred_check_branch
          %984 = sbr.rel (%p982) target = $region20
        $region19: #{encoder_wrapper_forward.1} parent=11 // pred_region
          %s986 = ssub.s32 32, 32
          %987 = vsyncadd [#allocation5], %s986
          %s988 = sshll.u32 [#allocation4], 4
          %s989 = int_to_ptr.vmem [resolvable:$true] %s988
          %994 = dma.hbm_to_vmem [thread:$0]  %s7, 32, %s989, [#allocation5], 16, 16, 1
        $region20: #{encoder_wrapper_forward.1} parent=11 // pred_fallthru
          _
        // Predicated region
        $region21: #{encoder_wrapper_forward.1} parent=11 // pred_check
          %p995 = pneg %p203
        $region22: #{encoder_wrapper_forward.1} parent=11 // pred_check_branch
          %997 = sbr.rel (%p995) target = $region24
        $region23: #{encoder_wrapper_forward.1} parent=11 // pred_region
          %s999 = ssub.s32 32, 32
          %1000 = vsyncadd [#allocation8], %s999
          %s1001 = sshll.u32 [#allocation7], 4
          %s1002 = int_to_ptr.vmem [resolvable:$true] %s1001
          %1007 = dma.hbm_to_vmem [thread:$0]  %s9, 32, %s1002, [#allocation8], 16, 16, 1
        $region24: #{encoder_wrapper_forward.1} parent=11 // pred_fallthru
          _
        // Predicated region
        $region25: #{encoder_wrapper_forward.1} parent=11 // pred_check
          %p1008 = pneg %p224
        $region26: #{encoder_wrapper_forward.1} parent=11 // pred_check_branch
          %1010 = sbr.rel (%p1008) target = $region28
        $region27: #{encoder_wrapper_forward.1} parent=11 // pred_region
          %s1012 = ssub.s32 32, 32
          %1013 = vsyncadd [#allocation8], %s1012
          %s1014 = sshll.u32 [#allocation9], 4
          %s1015 = int_to_ptr.vmem [resolvable:$true] %s1014
          %1020 = dma.hbm_to_vmem [thread:$0]  %s11, 32, %s1015, [#allocation8], 16, 16, 1
        $region28: #{encoder_wrapper_forward.1} parent=11 // pred_fallthru
          _
        // Predicated region
        $region29: #{encoder_wrapper_forward.1} parent=11 // pred_check
          %p1021 = pneg %p245
        $region30: #{encoder_wrapper_forward.1} parent=11 // pred_check_branch
          %1023 = sbr.rel (%p1021) target = $region32
        $region31: #{encoder_wrapper_forward.1} parent=11 // pred_region
          _
        $region32: #{encoder_wrapper_forward.1} parent=11 // pred_fallthru
          _
        // Predicated region
        $region33: #{encoder_wrapper_forward.1} parent=11 // pred_check
          %p1024 = pneg %p266
        $region34: #{encoder_wrapper_forward.1} parent=11 // pred_check_branch
          %1026 = sbr.rel (%p1024) target = $region36
        $region35: #{encoder_wrapper_forward.1} parent=11 // pred_region
          %s1028 = ssub.s32 2048, 2048
          %1029 = vsyncadd [#allocation11], %s1028
          %s1030 = sshll.u32 [#allocation10], 4
          %s1031 = int_to_ptr.vmem [resolvable:$true] %s1030
          %1036 = dma.hbm_to_vmem [thread:$0]  %s15, 2048, %s1031, [#allocation11], 64, 64, 4
        $region36: #{encoder_wrapper_forward.1} parent=11 // pred_fallthru
          _
        // Predicated region
        $region37: #{encoder_wrapper_forward.1} parent=11 // pred_check
          %p1037 = pneg %p287
        $region38: #{encoder_wrapper_forward.1} parent=11 // pred_check_branch
          %1039 = sbr.rel (%p1037) target = $region40
        $region39: #{encoder_wrapper_forward.1} parent=11 // pred_region
          %s1041 = ssub.s32 2048, 2048
          %1042 = vsyncadd [#allocation11], %s1041
          %s1043 = sshll.u32 [#allocation12], 4
          %s1044 = int_to_ptr.vmem [resolvable:$true] %s1043
          %1049 = dma.hbm_to_vmem [thread:$0]  %s17, 2048, %s1044, [#allocation11], 64, 64, 4
        $region40: #{encoder_wrapper_forward.1} parent=11 // pred_fallthru
          _
        // Predicated region
        $region41: #{encoder_wrapper_forward.1} parent=11 // pred_check
          %p1050 = pneg %p308
        $region42: #{encoder_wrapper_forward.1} parent=11 // pred_check_branch
          %1052 = sbr.rel (%p1050) target = $region44
        $region43: #{encoder_wrapper_forward.1} parent=11 // pred_region
          %s1054 = ssub.s32 2048, 2048
          %1055 = vsyncadd [#allocation14], %s1054
          %s1056 = sshll.u32 [#allocation13], 4
          %s1057 = int_to_ptr.vmem [resolvable:$true] %s1056
          %1062 = dma.hbm_to_vmem [thread:$0]  %s19, 2048, %s1057, [#allocation14], 64, 64, 4
        $region44: #{encoder_wrapper_forward.1} parent=11 // pred_fallthru
          _
        // Predicated region
        $region45: #{encoder_wrapper_forward.1} parent=11 // pred_check
          %p1063 = pneg %p329
        $region46: #{encoder_wrapper_forward.1} parent=11 // pred_check_branch
          %1065 = sbr.rel (%p1063) target = $region48
        $region47: #{encoder_wrapper_forward.1} parent=11 // pred_region
          %s1067 = ssub.s32 32, 32
          %1068 = vsyncadd [#allocation14], %s1067
          %s1069 = sshll.u32 [#allocation15], 4
          %s1070 = int_to_ptr.vmem [resolvable:$true] %s1069
          %1075 = dma.hbm_to_vmem [thread:$0]  %s21, 32, %s1070, [#allocation14], 16, 16, 1
        $region48: #{encoder_wrapper_forward.1} parent=11 // pred_fallthru
          _
        // Predicated region
        $region49: #{encoder_wrapper_forward.1} parent=11 // pred_check
          %p1076 = pneg %p350
        $region50: #{encoder_wrapper_forward.1} parent=11 // pred_check_branch
          %1078 = sbr.rel (%p1076) target = $region52
        $region51: #{encoder_wrapper_forward.1} parent=11 // pred_region
          %s1080 = ssub.s32 32, 32
          %1081 = vsyncadd [#allocation17], %s1080
          %s1082 = sshll.u32 [#allocation16], 4
          %s1083 = int_to_ptr.vmem [resolvable:$true] %s1082
          %1088 = dma.hbm_to_vmem [thread:$0]  %s23, 32, %s1083, [#allocation17], 16, 16, 1
        $region52: #{encoder_wrapper_forward.1} parent=11 // pred_fallthru
          _
        // Predicated region
        $region53: #{encoder_wrapper_forward.1} parent=11 // pred_check
          %p1089 = pneg %p371
        $region54: #{encoder_wrapper_forward.1} parent=11 // pred_check_branch
          %1091 = sbr.rel (%p1089) target = $region56
        $region55: #{encoder_wrapper_forward.1} parent=11 // pred_region
          %s1093 = ssub.s32 32, 32
          %1094 = vsyncadd [#allocation17], %s1093
          %s1095 = sshll.u32 [#allocation18], 4
          %s1096 = int_to_ptr.vmem [resolvable:$true] %s1095
          %1101 = dma.hbm_to_vmem [thread:$0]  %s25, 32, %s1096, [#allocation17], 16, 16, 1
        $region56: #{encoder_wrapper_forward.1} parent=11 // pred_fallthru
          _
        // Predicated region
        $region57: #{encoder_wrapper_forward.1} parent=11 // pred_check
          %p1102 = pneg %p392
        $region58: #{encoder_wrapper_forward.1} parent=11 // pred_check_branch
          %1104 = sbr.rel (%p1102) target = $region60
        $region59: #{encoder_wrapper_forward.1} parent=11 // pred_region
          _
        $region60: #{encoder_wrapper_forward.1} parent=11 // pred_fallthru
          _
        // Predicated region
        $region61: #{encoder_wrapper_forward.1} parent=11 // pred_check
          %p1105 = pneg %p413
        $region62: #{encoder_wrapper_forward.1} parent=11 // pred_check_branch
          %1107 = sbr.rel (%p1105) target = $region64
        $region63: #{encoder_wrapper_forward.1} parent=11 // pred_region
          %s1109 = ssub.s32 64, 64
          %1110 = vsyncadd [#allocation20], %s1109
          %s1111 = sshll.u32 [#allocation19], 4
          %s1112 = int_to_ptr.vmem [resolvable:$true] %s1111
          %1117 = dma.hbm_to_vmem [thread:$0]  %s29, 64, %s1112, [#allocation20], 32, 32, 2
        $region64: #{encoder_wrapper_forward.1} parent=11 // pred_fallthru
          _
        // Predicated region
        $region65: #{encoder_wrapper_forward.1} parent=11 // pred_check
          %p1118 = pneg %p434
        $region66: #{encoder_wrapper_forward.1} parent=11 // pred_check_branch
          %1120 = sbr.rel (%p1118) target = $region68
        $region67: #{encoder_wrapper_forward.1} parent=11 // pred_region
          %s1122 = ssub.s32 4096, 4096
          %1123 = vsyncadd [#allocation20], %s1122
          %s1124 = sshll.u32 [#allocation21], 4
          %s1125 = int_to_ptr.vmem [resolvable:$true] %s1124
          %1130 = dma.hbm_to_vmem [thread:$0]  %s31, 4096, %s1125, [#allocation20], 128, 128, 8
        $region68: #{encoder_wrapper_forward.1} parent=11 // pred_fallthru
          _
        // Predicated region
        $region69: #{encoder_wrapper_forward.1} parent=11 // pred_check
          %p1131 = pneg %p455
        $region70: #{encoder_wrapper_forward.1} parent=11 // pred_check_branch
          %1133 = sbr.rel (%p1131) target = $region72
        $region71: #{encoder_wrapper_forward.1} parent=11 // pred_region
          %s1135 = ssub.s32 32, 32
          %1136 = vsyncadd [#allocation23], %s1135
          %s1137 = sshll.u32 [#allocation22], 4
          %s1138 = int_to_ptr.vmem [resolvable:$true] %s1137
          %1143 = dma.hbm_to_vmem [thread:$0]  %s33, 32, %s1138, [#allocation23], 16, 16, 1
        $region72: #{encoder_wrapper_forward.1} parent=11 // pred_fallthru
          _
        // Predicated region
        $region73: #{encoder_wrapper_forward.1} parent=11 // pred_check
          %p1144 = pneg %p476
        $region74: #{encoder_wrapper_forward.1} parent=11 // pred_check_branch
          %1146 = sbr.rel (%p1144) target = $region76
        $region75: #{encoder_wrapper_forward.1} parent=11 // pred_region
          %s1148 = ssub.s32 2048, 2048
          %1149 = vsyncadd [#allocation23], %s1148
          %s1150 = sshll.u32 [#allocation24], 4
          %s1151 = int_to_ptr.vmem [resolvable:$true] %s1150
          %1156 = dma.hbm_to_vmem [thread:$0]  %s35, 2048, %s1151, [#allocation23], 64, 64, 4
        $region76: #{encoder_wrapper_forward.1} parent=11 // pred_fallthru
          _
        // Predicated region
        $region77: #{encoder_wrapper_forward.1} parent=11 // pred_check
          %p1157 = pneg %p497
        $region78: #{encoder_wrapper_forward.1} parent=11 // pred_check_branch
          %1159 = sbr.rel (%p1157) target = $region80
        $region79: #{encoder_wrapper_forward.1} parent=11 // pred_region
          %s1161 = ssub.s32 64, 64
          %1162 = vsyncadd [#allocation26], %s1161
          %s1163 = sshll.u32 [#allocation25], 4
          %s1164 = int_to_ptr.vmem [resolvable:$true] %s1163
          %1169 = dma.hbm_to_vmem [thread:$0]  %s37, 64, %s1164, [#allocation26], 32, 32, 2
        $region80: #{encoder_wrapper_forward.1} parent=11 // pred_fallthru
          _
        // Predicated region
        $region81: #{encoder_wrapper_forward.1} parent=11 // pred_check
          %p1170 = pneg %p518
        $region82: #{encoder_wrapper_forward.1} parent=11 // pred_check_branch
          %1172 = sbr.rel (%p1170) target = $region84
        $region83: #{encoder_wrapper_forward.1} parent=11 // pred_region
          %s1174 = ssub.s32 32, 32
          %1175 = vsyncadd [#allocation26], %s1174
          %s1176 = sshll.u32 [#allocation27], 4
          %s1177 = int_to_ptr.vmem [resolvable:$true] %s1176
          %1182 = dma.hbm_to_vmem [thread:$0]  %s39, 32, %s1177, [#allocation26], 16, 16, 1
        $region84: #{encoder_wrapper_forward.1} parent=11 // pred_fallthru
          _
        // Predicated region
        $region85: #{encoder_wrapper_forward.1} parent=11 // pred_check
          %p1183 = pneg %p539
        $region86: #{encoder_wrapper_forward.1} parent=11 // pred_check_branch
          %1185 = sbr.rel (%p1183) target = $region88
        $region87: #{encoder_wrapper_forward.1} parent=11 // pred_region
          %s1187 = ssub.s32 4096, 4096
          %1188 = vsyncadd [#allocation29], %s1187
          %s1189 = sshll.u32 [#allocation28], 4
          %s1190 = int_to_ptr.vmem [resolvable:$true] %s1189
          %1195 = dma.hbm_to_vmem [thread:$0]  %s41, 4096, %s1190, [#allocation29], 128, 128, 8
        $region88: #{encoder_wrapper_forward.1} parent=11 // pred_fallthru
          _
        // Predicated region
        $region89: #{encoder_wrapper_forward.1} parent=11 // pred_check
          %p1196 = pneg %p560
        $region90: #{encoder_wrapper_forward.1} parent=11 // pred_check_branch
          %1198 = sbr.rel (%p1196) target = $region92
        $region91: #{encoder_wrapper_forward.1} parent=11 // pred_region
          %s1200 = ssub.s32 4096, 4096
          %1201 = vsyncadd [#allocation29], %s1200
          %s1202 = sshll.u32 [#allocation30], 4
          %s1203 = int_to_ptr.vmem [resolvable:$true] %s1202
          %1208 = dma.hbm_to_vmem [thread:$0]  %s43, 4096, %s1203, [#allocation29], 64, 64, 4
        $region92: #{encoder_wrapper_forward.1} parent=11 // pred_fallthru
          _
        // Predicated region
        $region93: #{encoder_wrapper_forward.1} parent=11 // pred_check
          %p1209 = pneg %p581
        $region94: #{encoder_wrapper_forward.1} parent=11 // pred_check_branch
          %1211 = sbr.rel (%p1209) target = $region96
        $region95: #{encoder_wrapper_forward.1} parent=11 // pred_region
          %s1213 = ssub.s32 64, 64
          %1214 = vsyncadd [#allocation32], %s1213
          %s1215 = sshll.u32 [#allocation31], 4
          %s1216 = int_to_ptr.vmem [resolvable:$true] %s1215
          %1221 = dma.hbm_to_vmem [thread:$0]  %s45, 64, %s1216, [#allocation32], 32, 32, 2
        $region96: #{encoder_wrapper_forward.1} parent=11 // pred_fallthru
          _
        // Predicated region
        $region97: #{encoder_wrapper_forward.1} parent=11 // pred_check
          %p1222 = pneg %p602
        $region98: #{encoder_wrapper_forward.1} parent=11 // pred_check_branch
          %1224 = sbr.rel (%p1222) target = $region100
        $region99: #{encoder_wrapper_forward.1} parent=11 // pred_region
          %s1226 = ssub.s32 32, 32
          %1227 = vsyncadd [#allocation32], %s1226
          %s1228 = sshll.u32 [#allocation33], 4
          %s1229 = int_to_ptr.vmem [resolvable:$true] %s1228
          %1234 = dma.hbm_to_vmem [thread:$0]  %s47, 32, %s1229, [#allocation32], 16, 16, 1
        $region100: #{encoder_wrapper_forward.1} parent=11 // pred_fallthru
          _
        // Predicated region
        $region101: #{encoder_wrapper_forward.1} parent=11 // pred_check
          %p1235 = pneg %p623
        $region102: #{encoder_wrapper_forward.1} parent=11 // pred_check_branch
          %1237 = sbr.rel (%p1235) target = $region104
        $region103: #{encoder_wrapper_forward.1} parent=11 // pred_region
          %s1239 = ssub.s32 4096, 4096
          %1240 = vsyncadd [#allocation35], %s1239
          %s1241 = sshll.u32 [#allocation34], 4
          %s1242 = int_to_ptr.vmem [resolvable:$true] %s1241
          %1247 = dma.hbm_to_vmem [thread:$0]  %s49, 4096, %s1242, [#allocation35], 128, 128, 8
        $region104: #{encoder_wrapper_forward.1} parent=11 // pred_fallthru
          _
        // Predicated region
        $region105: #{encoder_wrapper_forward.1} parent=11 // pred_check
          %p1248 = pneg %p644
        $region106: #{encoder_wrapper_forward.1} parent=11 // pred_check_branch
          %1250 = sbr.rel (%p1248) target = $region108
        $region107: #{encoder_wrapper_forward.1} parent=11 // pred_region
          %s1252 = ssub.s32 4096, 4096
          %1253 = vsyncadd [#allocation35], %s1252
          %s1254 = sshll.u32 [#allocation36], 4
          %s1255 = int_to_ptr.vmem [resolvable:$true] %s1254
          %1260 = dma.hbm_to_vmem [thread:$0]  %s51, 4096, %s1255, [#allocation35], 64, 64, 4
        $region108: #{encoder_wrapper_forward.1} parent=11 // pred_fallthru
          _
        // Predicated region
        $region109: #{encoder_wrapper_forward.1} parent=11 // pred_check
          %p1261 = pneg %p665
        $region110: #{encoder_wrapper_forward.1} parent=11 // pred_check_branch
          %1263 = sbr.rel (%p1261) target = $region112
        $region111: #{encoder_wrapper_forward.1} parent=11 // pred_region
          %s1265 = ssub.s32 32, 32
          %1266 = vsyncadd [#allocation38], %s1265
          %s1267 = sshll.u32 [#allocation37], 4
          %s1268 = int_to_ptr.vmem [resolvable:$true] %s1267
          %1273 = dma.hbm_to_vmem [thread:$0]  %s53, 32, %s1268, [#allocation38], 16, 16, 1
        $region112: #{encoder_wrapper_forward.1} parent=11 // pred_fallthru
          _
        // Predicated region
        $region113: #{encoder_wrapper_forward.1} parent=11 // pred_check
          %p1274 = pneg %p686
        $region114: #{encoder_wrapper_forward.1} parent=11 // pred_check_branch
          %1276 = sbr.rel (%p1274) target = $region116
        $region115: #{encoder_wrapper_forward.1} parent=11 // pred_region
          %s1278 = ssub.s32 32, 32
          %1279 = vsyncadd [#allocation38], %s1278
          %s1280 = sshll.u32 [#allocation39], 4
          %s1281 = int_to_ptr.vmem [resolvable:$true] %s1280
          %1286 = dma.hbm_to_vmem [thread:$0]  %s55, 32, %s1281, [#allocation38], 16, 16, 1
        $region116: #{encoder_wrapper_forward.1} parent=11 // pred_fallthru
          _
        // Predicated region
        $region117: #{encoder_wrapper_forward.1} parent=11 // pred_check
          %p1287 = pneg %p707
        $region118: #{encoder_wrapper_forward.1} parent=11 // pred_check_branch
          %1289 = sbr.rel (%p1287) target = $region120
        $region119: #{encoder_wrapper_forward.1} parent=11 // pred_region
          %s1291 = ssub.s32 32, 32
          %1292 = vsyncadd [#allocation41], %s1291
          %s1293 = sshll.u32 [#allocation40], 4
          %s1294 = int_to_ptr.vmem [resolvable:$true] %s1293
          %1299 = dma.hbm_to_vmem [thread:$0]  %s57, 32, %s1294, [#allocation41], 16, 16, 1
        $region120: #{encoder_wrapper_forward.1} parent=11 // pred_fallthru
          _
        // Predicated region
        $region121: #{encoder_wrapper_forward.1} parent=11 // pred_check
          %p1300 = pneg %p728
        $region122: #{encoder_wrapper_forward.1} parent=11 // pred_check_branch
          %1302 = sbr.rel (%p1300) target = $region124
        $region123: #{encoder_wrapper_forward.1} parent=11 // pred_region
          %s1304 = ssub.s32 32, 32
          %1305 = vsyncadd [#allocation41], %s1304
          %s1306 = sshll.u32 [#allocation42], 4
          %s1307 = int_to_ptr.vmem [resolvable:$true] %s1306
          %1312 = dma.hbm_to_vmem [thread:$0]  %s59, 32, %s1307, [#allocation41], 16, 16, 1
        $region124: #{encoder_wrapper_forward.1} parent=11 // pred_fallthru
          _
        // Predicated region
        $region125: #{encoder_wrapper_forward.1} parent=11 // pred_check
          %p1313 = pneg %p749
        $region126: #{encoder_wrapper_forward.1} parent=11 // pred_check_branch
          %1315 = sbr.rel (%p1313) target = $region128
        $region127: #{encoder_wrapper_forward.1} parent=11 // pred_region
          %s1317 = ssub.s32 32, 32
          %1318 = vsyncadd [#allocation44], %s1317
          %s1319 = sshll.u32 [#allocation43], 4
          %s1320 = int_to_ptr.vmem [resolvable:$true] %s1319
          %1325 = dma.hbm_to_vmem [thread:$0]  %s61, 32, %s1320, [#allocation44], 16, 16, 1
        $region128: #{encoder_wrapper_forward.1} parent=11 // pred_fallthru
          _
        // Predicated region
        $region129: #{encoder_wrapper_forward.1} parent=11 // pred_check
          %p1326 = pneg %p770
        $region130: #{encoder_wrapper_forward.1} parent=11 // pred_check_branch
          %1328 = sbr.rel (%p1326) target = $region132
        $region131: #{encoder_wrapper_forward.1} parent=11 // pred_region
          %s1330 = ssub.s32 32, 32
          %1331 = vsyncadd [#allocation44], %s1330
          %s1332 = sshll.u32 [#allocation45], 4
          %s1333 = int_to_ptr.vmem [resolvable:$true] %s1332
          %1338 = dma.hbm_to_vmem [thread:$0]  %s63, 32, %s1333, [#allocation44], 16, 16, 1
        $region132: #{encoder_wrapper_forward.1} parent=11 // pred_fallthru
          _
        // Predicated region
        $region133: #{encoder_wrapper_forward.1} parent=11 // pred_check
          %p1339 = pneg %p791
        $region134: #{encoder_wrapper_forward.1} parent=11 // pred_check_branch
          %1341 = sbr.rel (%p1339) target = $region136
        $region135: #{encoder_wrapper_forward.1} parent=11 // pred_region
          %s1343 = ssub.s32 32, 32
          %1344 = vsyncadd [#allocation47], %s1343
          %s1345 = sshll.u32 [#allocation46], 4
          %s1346 = int_to_ptr.vmem [resolvable:$true] %s1345
          %1351 = dma.hbm_to_vmem [thread:$0]  %s65, 32, %s1346, [#allocation47], 16, 16, 1
        $region136: #{encoder_wrapper_forward.1} parent=11 // pred_fallthru
          _
        // Predicated region
        $region137: #{encoder_wrapper_forward.1} parent=11 // pred_check
          %p1352 = pneg %p812
        $region138: #{encoder_wrapper_forward.1} parent=11 // pred_check_branch
          %1354 = sbr.rel (%p1352) target = $region140
        $region139: #{encoder_wrapper_forward.1} parent=11 // pred_region
          %s1356 = ssub.s32 32, 32
          %1357 = vsyncadd [#allocation47], %s1356
          %s1358 = sshll.u32 [#allocation48], 4
          %s1359 = int_to_ptr.vmem [resolvable:$true] %s1358
          %1364 = dma.hbm_to_vmem [thread:$0]  %s67, 32, %s1359, [#allocation47], 16, 16, 1
        $region140: #{encoder_wrapper_forward.1} parent=11 // pred_fallthru
          _
        // Predicated region
        $region141: #{encoder_wrapper_forward.1} parent=11 // pred_check
          %p1365 = pneg %p833
        $region142: #{encoder_wrapper_forward.1} parent=11 // pred_check_branch
          %1367 = sbr.rel (%p1365) target = $region144
        $region143: #{encoder_wrapper_forward.1} parent=11 // pred_region
          %s1369 = ssub.s32 32, 32
          %1370 = vsyncadd [#allocation50], %s1369
          %s1371 = sshll.u32 [#allocation49], 4
          %s1372 = int_to_ptr.vmem [resolvable:$true] %s1371
          %1377 = dma.hbm_to_vmem [thread:$0]  %s69, 32, %s1372, [#allocation50], 16, 16, 1
        $region144: #{encoder_wrapper_forward.1} parent=11 // pred_fallthru
          _
        // Predicated region
        $region145: #{encoder_wrapper_forward.1} parent=11 // pred_check
          %p1378 = pneg %p854
        $region146: #{encoder_wrapper_forward.1} parent=11 // pred_check_branch
          %1380 = sbr.rel (%p1378) target = $region148
        $region147: #{encoder_wrapper_forward.1} parent=11 // pred_region
          %s1382 = ssub.s32 32, 32
          %1383 = vsyncadd [#allocation50], %s1382
          %s1384 = sshll.u32 [#allocation51], 4
          %s1385 = int_to_ptr.vmem [resolvable:$true] %s1384
          %1390 = dma.hbm_to_vmem [thread:$0]  %s71, 32, %s1385, [#allocation50], 16, 16, 1
        $region148: #{encoder_wrapper_forward.1} parent=11 // pred_fallthru
          _
        // Predicated region
        $region149: #{encoder_wrapper_forward.1} parent=11 // pred_check
          %p1391 = pneg %p875
        $region150: #{encoder_wrapper_forward.1} parent=11 // pred_check_branch
          %1393 = sbr.rel (%p1391) target = $region152
        $region151: #{encoder_wrapper_forward.1} parent=11 // pred_region
          %s1395 = ssub.s32 16, 16
          %1396 = vsyncadd [#allocation53], %s1395
          %s1398 = sshll.u32 [#allocation52], 4
          %s1399 = int_to_ptr.vmem [resolvable:$true] %s1398
          %1401 = dma.hbm_to_vmem [thread:$0]  %s73, 16, %s1399, [#allocation53]
        $region152: #{encoder_wrapper_forward.1} parent=11 // pred_fallthru
          _
        // Predicated region
        $region153: #{encoder_wrapper_forward.1} parent=11 // pred_check
          %p1402 = pneg %p896
        $region154: #{encoder_wrapper_forward.1} parent=11 // pred_check_branch
          %1404 = sbr.rel (%p1402) target = $region156
        $region155: #{encoder_wrapper_forward.1} parent=11 // pred_region
          %s1406 = ssub.s32 1024, 1024
          %1407 = vsyncadd [#allocation53], %s1406
          %s1408 = sshll.u32 [#allocation54], 4
          %s1409 = int_to_ptr.vmem [resolvable:$true] %s1408
          %1414 = dma.hbm_to_vmem [thread:$0]  %s75, 1024, %s1409, [#allocation53], 64, 64, 4
        $region156: #{encoder_wrapper_forward.1} parent=11 // pred_fallthru
          _
        // Predicated region
        $region157: #{encoder_wrapper_forward.1} parent=11 // pred_check
          %p1415 = pneg %p917
        $region158: #{encoder_wrapper_forward.1} parent=11 // pred_check_branch
          %1417 = sbr.rel (%p1415) target = $region160
        $region159: #{encoder_wrapper_forward.1} parent=11 // pred_region
          %s1419 = ssub.s32 16, 16
          %1420 = vsyncadd [#allocation56], %s1419
          %s1422 = sshll.u32 [#allocation55], 4
          %s1423 = int_to_ptr.vmem [resolvable:$true] %s1422
          %1425 = dma.hbm_to_vmem [thread:$0]  %s77, 16, %s1423, [#allocation56]
        $region160: #{encoder_wrapper_forward.1} parent=11 // pred_fallthru
          _
        // Predicated region
        $region161: #{encoder_wrapper_forward.1} parent=11 // pred_check
          %p1426 = pneg %p938
        $region162: #{encoder_wrapper_forward.1} parent=11 // pred_check_branch
          %1428 = sbr.rel (%p1426) target = $region164
        $region163: #{encoder_wrapper_forward.1} parent=11 // pred_region
          %s1430 = ssub.s32 1024, 1024
          %1431 = vsyncadd [#allocation56], %s1430
          %s1432 = sshll.u32 [#allocation57], 4
          %s1433 = int_to_ptr.vmem [resolvable:$true] %s1432
          %1438 = dma.hbm_to_vmem [thread:$0]  %s79, 1024, %s1433, [#allocation56], 64, 64, 4
        $region164: #{encoder_wrapper_forward.1} parent=11 // pred_fallthru
          _
      $region12: #{encoder_wrapper_forward.1} parent=5 // pred_fallthru
        _
      %p1439 = scmp.lt.s32.totalorder %s114, 2
      // Predicated region
      $region165: #{encoder_wrapper_forward.1} parent=5 // pred_check
        %p1440 = pneg %p1439
      $region166: #{encoder_wrapper_forward.1} parent=5 // pred_check_branch
        %1442 = sbr.rel (%p1440) target = $region168
      $region167: #{encoder_wrapper_forward.1} parent=5 // pred_region
        // Predicated region
        $region169: #{encoder_wrapper_forward.1} parent=167 // pred_check
          %p1443 = pneg %p134
        $region170: #{encoder_wrapper_forward.1} parent=167 // pred_check_branch
          %1445 = sbr.rel (%p1443) target = $region172
        $region171: #{encoder_wrapper_forward.1} parent=167 // pred_region
          %p1446 = scmp.lt.s32.totalorder %s114, 1
          %s1447 = scalar_select %p1446, %s114, 1
          %s1448 = smul.addr %s1447, 8
          %s1449 = scalar_lea.vmem %s3, %s1448
        $region172: #{encoder_wrapper_forward.1} parent=167 // pred_fallthru
          _
      $region168: #{encoder_wrapper_forward.1} parent=5 // pred_fallthru
        _
      %p1450 = scmp.le.s32.totalorder 1, %s114
      %p1451 = scmp.lt.s32.totalorder %s114, 3
      %p1452 = pnand %p1450, %p1451
      %p1453 = pneg %p1452
      // Predicated region
      $region173: #{encoder_wrapper_forward.1} parent=5 // pred_check
        _
      $region174: #{encoder_wrapper_forward.1} parent=5 // pred_check_branch
        %1455 = sbr.rel (%p1452) target = $region176
      $region175: #{encoder_wrapper_forward.1} parent=5 // pred_region
        %s1456 = ssub.s32 %s114, 1
        // Predicated region
        $region177: #{encoder_wrapper_forward.1} parent=175 // pred_check
          %p1457 = pneg %p182
        $region178: #{encoder_wrapper_forward.1} parent=175 // pred_check_branch
          %1459 = sbr.rel (%p1457) target = $region180
        $region179: #{encoder_wrapper_forward.1} parent=175 // pred_region
          %1460 = dma.done [#allocation5], 32
        $region180: #{encoder_wrapper_forward.1} parent=175 // pred_fallthru
          _
        // Predicated region
        $region181: #{encoder_wrapper_forward.1} parent=175 // pred_check
          %p1461 = pneg %p203
        $region182: #{encoder_wrapper_forward.1} parent=175 // pred_check_branch
          %1463 = sbr.rel (%p1461) target = $region184
        $region183: #{encoder_wrapper_forward.1} parent=175 // pred_region
          %1464 = dma.done [#allocation8], 32
        $region184: #{encoder_wrapper_forward.1} parent=175 // pred_fallthru
          _
        // Predicated region
        $region185: #{encoder_wrapper_forward.1} parent=175 // pred_check
          %p1465 = pneg %p224
        $region186: #{encoder_wrapper_forward.1} parent=175 // pred_check_branch
          %1467 = sbr.rel (%p1465) target = $region188
        $region187: #{encoder_wrapper_forward.1} parent=175 // pred_region
          %1468 = dma.done [#allocation8], 32
        $region188: #{encoder_wrapper_forward.1} parent=175 // pred_fallthru
          _
        // Predicated region
        $region189: #{encoder_wrapper_forward.1} parent=175 // pred_check
          %p1469 = pneg %p266
        $region190: #{encoder_wrapper_forward.1} parent=175 // pred_check_branch
          %1471 = sbr.rel (%p1469) target = $region192
        $region191: #{encoder_wrapper_forward.1} parent=175 // pred_region
          %1472 = dma.done [#allocation11], 2048
        $region192: #{encoder_wrapper_forward.1} parent=175 // pred_fallthru
          _
        // Predicated region
        $region193: #{encoder_wrapper_forward.1} parent=175 // pred_check
          %p1473 = pneg %p287
        $region194: #{encoder_wrapper_forward.1} parent=175 // pred_check_branch
          %1475 = sbr.rel (%p1473) target = $region196
        $region195: #{encoder_wrapper_forward.1} parent=175 // pred_region
          %1476 = dma.done [#allocation11], 2048
        $region196: #{encoder_wrapper_forward.1} parent=175 // pred_fallthru
          _
        // Predicated region
        $region197: #{encoder_wrapper_forward.1} parent=175 // pred_check
          %p1477 = pneg %p308
        $region198: #{encoder_wrapper_forward.1} parent=175 // pred_check_branch
          %1479 = sbr.rel (%p1477) target = $region200
        $region199: #{encoder_wrapper_forward.1} parent=175 // pred_region
          %1480 = dma.done [#allocation14], 2048
        $region200: #{encoder_wrapper_forward.1} parent=175 // pred_fallthru
          _
        // Predicated region
        $region201: #{encoder_wrapper_forward.1} parent=175 // pred_check
          %p1481 = pneg %p329
        $region202: #{encoder_wrapper_forward.1} parent=175 // pred_check_branch
          %1483 = sbr.rel (%p1481) target = $region204
        $region203: #{encoder_wrapper_forward.1} parent=175 // pred_region
          %1484 = dma.done [#allocation14], 32
        $region204: #{encoder_wrapper_forward.1} parent=175 // pred_fallthru
          _
        // Predicated region
        $region205: #{encoder_wrapper_forward.1} parent=175 // pred_check
          %p1485 = pneg %p350
        $region206: #{encoder_wrapper_forward.1} parent=175 // pred_check_branch
          %1487 = sbr.rel (%p1485) target = $region208
        $region207: #{encoder_wrapper_forward.1} parent=175 // pred_region
          %1488 = dma.done [#allocation17], 32
        $region208: #{encoder_wrapper_forward.1} parent=175 // pred_fallthru
          _
        // Predicated region
        $region209: #{encoder_wrapper_forward.1} parent=175 // pred_check
          %p1489 = pneg %p371
        $region210: #{encoder_wrapper_forward.1} parent=175 // pred_check_branch
          %1491 = sbr.rel (%p1489) target = $region212
        $region211: #{encoder_wrapper_forward.1} parent=175 // pred_region
          %1492 = dma.done [#allocation17], 32
        $region212: #{encoder_wrapper_forward.1} parent=175 // pred_fallthru
          _
        // Predicated region
        $region213: #{encoder_wrapper_forward.1} parent=175 // pred_check
          %p1493 = pneg %p413
        $region214: #{encoder_wrapper_forward.1} parent=175 // pred_check_branch
          %1495 = sbr.rel (%p1493) target = $region216
        $region215: #{encoder_wrapper_forward.1} parent=175 // pred_region
          %1496 = dma.done [#allocation20], 64
        $region216: #{encoder_wrapper_forward.1} parent=175 // pred_fallthru
          _
        // Predicated region
        $region217: #{encoder_wrapper_forward.1} parent=175 // pred_check
          %p1497 = pneg %p434
        $region218: #{encoder_wrapper_forward.1} parent=175 // pred_check_branch
          %1499 = sbr.rel (%p1497) target = $region220
        $region219: #{encoder_wrapper_forward.1} parent=175 // pred_region
          %1500 = dma.done [#allocation20], 4096
        $region220: #{encoder_wrapper_forward.1} parent=175 // pred_fallthru
          _
        // Predicated region
        $region221: #{encoder_wrapper_forward.1} parent=175 // pred_check
          %p1501 = pneg %p455
        $region222: #{encoder_wrapper_forward.1} parent=175 // pred_check_branch
          %1503 = sbr.rel (%p1501) target = $region224
        $region223: #{encoder_wrapper_forward.1} parent=175 // pred_region
          %1504 = dma.done [#allocation23], 32
        $region224: #{encoder_wrapper_forward.1} parent=175 // pred_fallthru
          _
        // Predicated region
        $region225: #{encoder_wrapper_forward.1} parent=175 // pred_check
          %p1505 = pneg %p476
        $region226: #{encoder_wrapper_forward.1} parent=175 // pred_check_branch
          %1507 = sbr.rel (%p1505) target = $region228
        $region227: #{encoder_wrapper_forward.1} parent=175 // pred_region
          %1508 = dma.done [#allocation23], 2048
        $region228: #{encoder_wrapper_forward.1} parent=175 // pred_fallthru
          _
        // Predicated region
        $region229: #{encoder_wrapper_forward.1} parent=175 // pred_check
          %p1509 = pneg %p497
        $region230: #{encoder_wrapper_forward.1} parent=175 // pred_check_branch
          %1511 = sbr.rel (%p1509) target = $region232
        $region231: #{encoder_wrapper_forward.1} parent=175 // pred_region
          %1512 = dma.done [#allocation26], 64
        $region232: #{encoder_wrapper_forward.1} parent=175 // pred_fallthru
          _
        // Predicated region
        $region233: #{encoder_wrapper_forward.1} parent=175 // pred_check
          %p1513 = pneg %p518
        $region234: #{encoder_wrapper_forward.1} parent=175 // pred_check_branch
          %1515 = sbr.rel (%p1513) target = $region236
        $region235: #{encoder_wrapper_forward.1} parent=175 // pred_region
          %1516 = dma.done [#allocation26], 32
        $region236: #{encoder_wrapper_forward.1} parent=175 // pred_fallthru
          _
        // Predicated region
        $region237: #{encoder_wrapper_forward.1} parent=175 // pred_check
          %p1517 = pneg %p539
        $region238: #{encoder_wrapper_forward.1} parent=175 // pred_check_branch
          %1519 = sbr.rel (%p1517) target = $region240
        $region239: #{encoder_wrapper_forward.1} parent=175 // pred_region
          %1520 = dma.done [#allocation29], 4096
        $region240: #{encoder_wrapper_forward.1} parent=175 // pred_fallthru
          _
        // Predicated region
        $region241: #{encoder_wrapper_forward.1} parent=175 // pred_check
          %p1521 = pneg %p560
        $region242: #{encoder_wrapper_forward.1} parent=175 // pred_check_branch
          %1523 = sbr.rel (%p1521) target = $region244
        $region243: #{encoder_wrapper_forward.1} parent=175 // pred_region
          %1524 = dma.done [#allocation29], 4096
        $region244: #{encoder_wrapper_forward.1} parent=175 // pred_fallthru
          _
        // Predicated region
        $region245: #{encoder_wrapper_forward.1} parent=175 // pred_check
          %p1525 = pneg %p581
        $region246: #{encoder_wrapper_forward.1} parent=175 // pred_check_branch
          %1527 = sbr.rel (%p1525) target = $region248
        $region247: #{encoder_wrapper_forward.1} parent=175 // pred_region
          %1528 = dma.done [#allocation32], 64
        $region248: #{encoder_wrapper_forward.1} parent=175 // pred_fallthru
          _
        // Predicated region
        $region249: #{encoder_wrapper_forward.1} parent=175 // pred_check
          %p1529 = pneg %p602
        $region250: #{encoder_wrapper_forward.1} parent=175 // pred_check_branch
          %1531 = sbr.rel (%p1529) target = $region252
        $region251: #{encoder_wrapper_forward.1} parent=175 // pred_region
          %1532 = dma.done [#allocation32], 32
        $region252: #{encoder_wrapper_forward.1} parent=175 // pred_fallthru
          _
        // Predicated region
        $region253: #{encoder_wrapper_forward.1} parent=175 // pred_check
          %p1533 = pneg %p623
        $region254: #{encoder_wrapper_forward.1} parent=175 // pred_check_branch
          %1535 = sbr.rel (%p1533) target = $region256
        $region255: #{encoder_wrapper_forward.1} parent=175 // pred_region
          %1536 = dma.done [#allocation35], 4096
        $region256: #{encoder_wrapper_forward.1} parent=175 // pred_fallthru
          _
        // Predicated region
        $region257: #{encoder_wrapper_forward.1} parent=175 // pred_check
          %p1537 = pneg %p644
        $region258: #{encoder_wrapper_forward.1} parent=175 // pred_check_branch
          %1539 = sbr.rel (%p1537) target = $region260
        $region259: #{encoder_wrapper_forward.1} parent=175 // pred_region
          %1540 = dma.done [#allocation35], 4096
        $region260: #{encoder_wrapper_forward.1} parent=175 // pred_fallthru
          _
        // Predicated region
        $region261: #{encoder_wrapper_forward.1} parent=175 // pred_check
          %p1541 = pneg %p665
        $region262: #{encoder_wrapper_forward.1} parent=175 // pred_check_branch
          %1543 = sbr.rel (%p1541) target = $region264
        $region263: #{encoder_wrapper_forward.1} parent=175 // pred_region
          %1544 = dma.done [#allocation38], 32
        $region264: #{encoder_wrapper_forward.1} parent=175 // pred_fallthru
          _
        // Predicated region
        $region265: #{encoder_wrapper_forward.1} parent=175 // pred_check
          %p1545 = pneg %p686
        $region266: #{encoder_wrapper_forward.1} parent=175 // pred_check_branch
          %1547 = sbr.rel (%p1545) target = $region268
        $region267: #{encoder_wrapper_forward.1} parent=175 // pred_region
          %1548 = dma.done [#allocation38], 32
        $region268: #{encoder_wrapper_forward.1} parent=175 // pred_fallthru
          _
        // Predicated region
        $region269: #{encoder_wrapper_forward.1} parent=175 // pred_check
          %p1549 = pneg %p707
        $region270: #{encoder_wrapper_forward.1} parent=175 // pred_check_branch
          %1551 = sbr.rel (%p1549) target = $region272
        $region271: #{encoder_wrapper_forward.1} parent=175 // pred_region
          %1552 = dma.done [#allocation41], 32
        $region272: #{encoder_wrapper_forward.1} parent=175 // pred_fallthru
          _
        // Predicated region
        $region273: #{encoder_wrapper_forward.1} parent=175 // pred_check
          %p1553 = pneg %p728
        $region274: #{encoder_wrapper_forward.1} parent=175 // pred_check_branch
          %1555 = sbr.rel (%p1553) target = $region276
        $region275: #{encoder_wrapper_forward.1} parent=175 // pred_region
          %1556 = dma.done [#allocation41], 32
        $region276: #{encoder_wrapper_forward.1} parent=175 // pred_fallthru
          _
        // Predicated region
        $region277: #{encoder_wrapper_forward.1} parent=175 // pred_check
          %p1557 = pneg %p749
        $region278: #{encoder_wrapper_forward.1} parent=175 // pred_check_branch
          %1559 = sbr.rel (%p1557) target = $region280
        $region279: #{encoder_wrapper_forward.1} parent=175 // pred_region
          %1560 = dma.done [#allocation44], 32
        $region280: #{encoder_wrapper_forward.1} parent=175 // pred_fallthru
          _
        // Predicated region
        $region281: #{encoder_wrapper_forward.1} parent=175 // pred_check
          %p1561 = pneg %p770
        $region282: #{encoder_wrapper_forward.1} parent=175 // pred_check_branch
          %1563 = sbr.rel (%p1561) target = $region284
        $region283: #{encoder_wrapper_forward.1} parent=175 // pred_region
          %1564 = dma.done [#allocation44], 32
        $region284: #{encoder_wrapper_forward.1} parent=175 // pred_fallthru
          _
        // Predicated region
        $region285: #{encoder_wrapper_forward.1} parent=175 // pred_check
          %p1565 = pneg %p791
        $region286: #{encoder_wrapper_forward.1} parent=175 // pred_check_branch
          %1567 = sbr.rel (%p1565) target = $region288
        $region287: #{encoder_wrapper_forward.1} parent=175 // pred_region
          %1568 = dma.done [#allocation47], 32
        $region288: #{encoder_wrapper_forward.1} parent=175 // pred_fallthru
          _
        // Predicated region
        $region289: #{encoder_wrapper_forward.1} parent=175 // pred_check
          %p1569 = pneg %p812
        $region290: #{encoder_wrapper_forward.1} parent=175 // pred_check_branch
          %1571 = sbr.rel (%p1569) target = $region292
        $region291: #{encoder_wrapper_forward.1} parent=175 // pred_region
          %1572 = dma.done [#allocation47], 32
        $region292: #{encoder_wrapper_forward.1} parent=175 // pred_fallthru
          _
        // Predicated region
        $region293: #{encoder_wrapper_forward.1} parent=175 // pred_check
          %p1573 = pneg %p833
        $region294: #{encoder_wrapper_forward.1} parent=175 // pred_check_branch
          %1575 = sbr.rel (%p1573) target = $region296
        $region295: #{encoder_wrapper_forward.1} parent=175 // pred_region
          %1576 = dma.done [#allocation50], 32
        $region296: #{encoder_wrapper_forward.1} parent=175 // pred_fallthru
          _
        // Predicated region
        $region297: #{encoder_wrapper_forward.1} parent=175 // pred_check
          %p1577 = pneg %p854
        $region298: #{encoder_wrapper_forward.1} parent=175 // pred_check_branch
          %1579 = sbr.rel (%p1577) target = $region300
        $region299: #{encoder_wrapper_forward.1} parent=175 // pred_region
          %1580 = dma.done [#allocation50], 32
        $region300: #{encoder_wrapper_forward.1} parent=175 // pred_fallthru
          _
        // Predicated region
        $region301: #{encoder_wrapper_forward.1} parent=175 // pred_check
          %p1581 = pneg %p875
        $region302: #{encoder_wrapper_forward.1} parent=175 // pred_check_branch
          %1583 = sbr.rel (%p1581) target = $region304
        $region303: #{encoder_wrapper_forward.1} parent=175 // pred_region
          %1584 = dma.done [#allocation53], 16
        $region304: #{encoder_wrapper_forward.1} parent=175 // pred_fallthru
          _
        // Predicated region
        $region305: #{encoder_wrapper_forward.1} parent=175 // pred_check
          %p1585 = pneg %p896
        $region306: #{encoder_wrapper_forward.1} parent=175 // pred_check_branch
          %1587 = sbr.rel (%p1585) target = $region308
        $region307: #{encoder_wrapper_forward.1} parent=175 // pred_region
          %1588 = dma.done [#allocation53], 1024
        $region308: #{encoder_wrapper_forward.1} parent=175 // pred_fallthru
          _
        // Predicated region
        $region309: #{encoder_wrapper_forward.1} parent=175 // pred_check
          %p1589 = pneg %p917
        $region310: #{encoder_wrapper_forward.1} parent=175 // pred_check_branch
          %1591 = sbr.rel (%p1589) target = $region312
        $region311: #{encoder_wrapper_forward.1} parent=175 // pred_region
          %1592 = dma.done [#allocation56], 16
        $region312: #{encoder_wrapper_forward.1} parent=175 // pred_fallthru
          _
        // Predicated region
        $region313: #{encoder_wrapper_forward.1} parent=175 // pred_check
          %p1593 = pneg %p938
        $region314: #{encoder_wrapper_forward.1} parent=175 // pred_check_branch
          %1595 = sbr.rel (%p1593) target = $region316
        $region315: #{encoder_wrapper_forward.1} parent=175 // pred_region
          %1596 = dma.done [#allocation56], 1024
        $region316: #{encoder_wrapper_forward.1} parent=175 // pred_fallthru
          _
        %p1597 = scmp.lt.s32.totalorder %s119, 1
        %s1598 = scalar_select %p1597, %s119, 1
        %s1599 = smul.addr %s1598, 8
        %s1600 = scalar_lea.vmem %s3, %s1599
        %p1601 = pneg %p140
        %p1602 = pneg %p137
        %p1603 = pneg %p161
        %p1604 = pneg %p158
        %p1605 = pneg %p182
        %p1606 = pneg %p179
        %p1607 = pneg %p203
        %p1608 = pneg %p200
        %p1609 = pneg %p224
        %p1610 = pneg %p221
        %p1611 = pneg %p245
        %p1612 = pneg %p242
        %p1613 = pneg %p266
        %p1614 = pneg %p263
        %p1615 = pneg %p287
        %p1616 = pneg %p284
        %p1617 = pneg %p308
        %p1618 = pneg %p305
        %p1619 = pneg %p329
        %p1620 = pneg %p326
        %p1621 = pneg %p350
        %p1622 = pneg %p347
        %p1623 = pneg %p371
        %p1624 = pneg %p368
        %p1625 = pneg %p392
        %p1626 = pneg %p389
        %p1627 = pneg %p413
        %p1628 = pneg %p410
        %p1629 = pneg %p434
        %p1630 = pneg %p431
        %p1631 = pneg %p455
        %p1632 = pneg %p452
        %p1633 = pneg %p476
        %p1634 = pneg %p473
        %p1635 = pneg %p497
        %p1636 = pneg %p494
        %p1637 = pneg %p518
        %p1638 = pneg %p515
        %p1639 = pneg %p539
        %p1640 = pneg %p536
        %p1641 = pneg %p560
        %p1642 = pneg %p557
        %p1643 = pneg %p581
        %p1644 = pneg %p578
        %p1645 = pneg %p602
        %p1646 = pneg %p599
        %p1647 = pneg %p623
        %p1648 = pneg %p620
        %p1649 = pneg %p644
        %p1650 = pneg %p641
        %p1651 = pneg %p665
        %p1652 = pneg %p662
        %p1653 = pneg %p686
        %p1654 = pneg %p683
        %p1655 = pneg %p707
        %p1656 = pneg %p704
        %p1657 = pneg %p728
        %p1658 = pneg %p725
        %p1659 = pneg %p749
        %p1660 = pneg %p746
        %p1661 = pneg %p770
        %p1662 = pneg %p767
        %p1663 = pneg %p791
        %p1664 = pneg %p788
        %p1665 = pneg %p812
        %p1666 = pneg %p809
        %p1667 = pneg %p833
        %p1668 = pneg %p830
        %p1669 = pneg %p854
        %p1670 = pneg %p851
        %p1671 = pneg %p875
        %p1672 = pneg %p872
        %p1673 = pneg %p896
        %p1674 = pneg %p893
        %p1675 = pneg %p917
        %p1676 = pneg %p914
        %p1677 = pneg %p938
        %p1678 = pneg %p935
        %p1679 = pneg %p964
        %p1680 = pneg %p961
        %s1681 = sand.u32 %s951, 1
        %s1682 = scalar_lea.sflag [#allocation6], %s1681
        %s1683 = sand.u32 %s951, 1
        %s1684 = smul.addr %s1683, 8
        %s1685 = scalar_lea.vmem [#allocation58], %s1684
        %p1686 = scmp.lt.s32.totalorder %s119, 1
        %s1687 = scalar_select %p1686, %s119, 1
        %s1688 = smul.addr %s1687, 8
        %s1689 = scalar_lea.vmem %s3, %s1688
        %s1691 = sld [smem:[#allocation3 + %s119]]
        %v1692 = vld [vmem:[%s1689] sm:$0xff]
        %v1693 = vlaneseq
        %v1694 = vshrl.u32 %v1693, 7
        %v1695 = vstv %s1691
        %vm1696 = vcmp.lt.s32.totalorder %v1694, %v1695
        %v1697 = vlaneseq
        %v1698 = vand.u32 %v1697, 127
        %vm1699 = vcmp.lt.s32.totalorder %v1698, %v1695
        %v1700 = vsel %vm1699, 0.0, -1e+09
        %v1701 = vld [vmem:[#allocation54] sm:$0xf]
        %v1702 = vld [vmem:[#allocation54 + $0x4] sm:$0xf]
        %v1703 = vld [vmem:[#allocation54 + $0x8] sm:$0xf]
        %v1704 = vld [vmem:[#allocation54 + $0xc] sm:$0xf]
        %v1705 = vld [vmem:[#allocation54 + $0x10] sm:$0xf]
        %v1706 = vld [vmem:[#allocation54 + $0x14] sm:$0xf]
        %v1707 = vld [vmem:[#allocation54 + $0x18] sm:$0xf]
        %v1708 = vld [vmem:[#allocation54 + $0x1c] sm:$0xf]
        %v1709 = vld [vmem:[#allocation54 + $0x20] sm:$0xf]
        %v1710 = vld [vmem:[#allocation54 + $0x24] sm:$0xf]
        %v1711 = vld [vmem:[#allocation54 + $0x28] sm:$0xf]
        %v1712 = vld [vmem:[#allocation54 + $0x2c] sm:$0xf]
        %v1713 = vld [vmem:[#allocation54 + $0x30] sm:$0xf]
        %v1714 = vld [vmem:[#allocation54 + $0x34] sm:$0xf]
        %v1715 = vld [vmem:[#allocation54 + $0x38] sm:$0xf]
        %v1716 = vld [vmem:[#allocation54 + $0x3c] sm:$0xf]
        %v1717 = vld [vmem:[#allocation52] sm:$0x1]
        %v1718 = vpack.c.bf16 %v1692, %v1692
        %v1720 = vlaneseq
        %v1721 = vshrl.u32 %v1720, 7
        %v1722 = vsub.s32 0, %v1721
        %v1723 = vrot.slane %v1717, %v1722
        %v1741 = vunpack.c.l.b16 %v1701
        %v1742 = vunpack.c.l.b16 %v1702
        %v1743 = vunpack.c.l.b16 %v1703
        %v1744 = vunpack.c.l.b16 %v1704
        %v1745 = vunpack.c.l.b16 %v1705
        %v1746 = vunpack.c.l.b16 %v1706
        %v1747 = vunpack.c.l.b16 %v1707
        %v1748 = vunpack.c.l.b16 %v1708
        %v1749 = vunpack.c.l.b16 %v1709
        %v1750 = vunpack.c.l.b16 %v1710
        %v1751 = vunpack.c.l.b16 %v1711
        %v1752 = vunpack.c.l.b16 %v1712
        %v1753 = vunpack.c.l.b16 %v1713
        %v1754 = vunpack.c.l.b16 %v1714
        %v1755 = vunpack.c.l.b16 %v1715
        %v1756 = vunpack.c.l.b16 %v1716
        %v1757 = vpack.c.b16 %v1742, %v1741
        %v1758 = vpack.c.b16 %v1744, %v1743
        %v1759 = vpack.c.b16 %v1746, %v1745
        %v1760 = vpack.c.b16 %v1748, %v1747
        %v1761 = vpack.c.b16 %v1750, %v1749
        %v1762 = vpack.c.b16 %v1752, %v1751
        %v1763 = vpack.c.b16 %v1754, %v1753
        %v1764 = vpack.c.b16 %v1756, %v1755
        %1773 = vmatprep.subr.bf16.mxu0 0
        %1774 = vmatpush1.bf16.msra.mxu0 %v1764
        %1775 = vmatprep.subr.bf16.mxu0 0
        %1776 = vmatpush1.bf16.msra.mxu0 %v1763
        %1777 = vmatprep.subr.bf16.mxu0 0
        %1778 = vmatpush1.bf16.msra.mxu0 %v1762
        %1779 = vmatprep.subr.bf16.mxu0 0
        %1780 = vmatpush1.bf16.msra.mxu0 %v1761
        %1781 = vmatprep.subr.bf16.mxu0 0
        %1782 = vmatpush1.bf16.msra.mxu0 %v1760
        %1783 = vmatprep.subr.bf16.mxu0 0
        %1784 = vmatpush1.bf16.msra.mxu0 %v1759
        %1785 = vmatprep.subr.bf16.mxu0 0
        %1786 = vmatpush1.bf16.msra.mxu0 %v1758
        %1787 = vmatprep.subr.bf16.mxu0 0
        %1788 = vmatpush1.bf16.msra.mxu0 %v1757
        %1789 = vmatprep.subr.bf16.mxu0 0
        %1790 = vmatpush2.bf16.msra.mxu0 0
        %1791 = vmatprep.subr.bf16.mxu0 0
        %1792 = vmatpush2.bf16.msra.mxu0 0
        %1793 = vmatprep.subr.bf16.mxu0 0
        %1794 = vmatpush2.bf16.msra.mxu0 0
        %1795 = vmatprep.subr.bf16.mxu0 0
        %1796 = vmatpush2.bf16.msra.mxu0 0
        %1797 = vmatprep.subr.bf16.mxu0 0
        %1798 = vmatpush2.bf16.msra.mxu0 0
        %1799 = vmatprep.subr.bf16.mxu0 0
        %1800 = vmatpush2.bf16.msra.mxu0 0
        %1801 = vmatprep.subr.bf16.mxu0 0
        %1802 = vmatpush2.bf16.msra.mxu0 0
        %1803 = vmatprep.subr.bf16.mxu0 0
        %1804 = vmatpush2.bf16.msra.mxu0 0
        %1805 = vmatprep.mubr.bf16.mxu0 0
        %1806 = vmatmul.mubr.bf16.gmra.mxu0 %v1718
        %v1807 = vpop.f32.mrf.mxu0
        %v1808 = vadd.f32 %v1723, %v1807
        %v1809 = vpop.f32.mrf.mxu0
        %v1810 = vpop.f32.mrf.mxu0
        %v1811 = vpop.f32.mrf.mxu0
        %1812 = vdwg.mxu0
        %v1813 = vld [vmem:[#allocation45] sm:$0x1]
        %v1814 = vld [vmem:[#allocation43] sm:$0x1]
        %1815 = vadd.xlane.f32.xlu0 %v1808
        %v1816 = vpop.xlane.xlu0 %1815
        %v1817 = vrcp.pop 128.0
        %v1818 = vmul.f32 %v1816, %v1817
        %v1819 = vsub.f32 %v1808, %v1818
        %v1820 = vmul.f32 %v1819, %v1819
        %1821 = vadd.xlane.f32.xlu0 %v1820
        %v1822 = vpop.xlane.xlu0 %1821
        %v1823 = vmul.f32 %v1822, %v1817
        %v1824 = vadd.f32 %v1823, 1e-05
        %v1825 = vrsqrt.pop %v1824
        %v1826 = vmul.f32 %v1819, %v1825
        %v1828 = vlaneseq
        %v1829 = vshrl.u32 %v1828, 7
        %v1830 = vsub.s32 0, %v1829
        %v1831 = vrot.slane %v1813, %v1830
        %v1833 = vmul.f32 %v1826, %v1831
        %v1835 = vlaneseq
        %v1836 = vshrl.u32 %v1835, 7
        %v1837 = vsub.s32 0, %v1836
        %v1838 = vrot.slane %v1814, %v1837
        %v1840 = vadd.f32 %v1833, %v1838
        %v1841 = vld [vmem:[#allocation28] sm:$0xff]
        %v1842 = vld [vmem:[#allocation28 + $0x8] sm:$0xff]
        %v1843 = vld [vmem:[#allocation28 + $0x10] sm:$0xff]
        %v1844 = vld [vmem:[#allocation28 + $0x18] sm:$0xff]
        %v1845 = vld [vmem:[#allocation28 + $0x20] sm:$0xff]
        %v1846 = vld [vmem:[#allocation28 + $0x28] sm:$0xff]
        %v1847 = vld [vmem:[#allocation28 + $0x30] sm:$0xff]
        %v1848 = vld [vmem:[#allocation28 + $0x38] sm:$0xff]
        %v1849 = vld [vmem:[#allocation28 + $0x40] sm:$0xff]
        %v1850 = vld [vmem:[#allocation28 + $0x48] sm:$0xff]
        %v1851 = vld [vmem:[#allocation28 + $0x50] sm:$0xff]
        %v1852 = vld [vmem:[#allocation28 + $0x58] sm:$0xff]
        %v1853 = vld [vmem:[#allocation28 + $0x60] sm:$0xff]
        %v1854 = vld [vmem:[#allocation28 + $0x68] sm:$0xff]
        %v1855 = vld [vmem:[#allocation28 + $0x70] sm:$0xff]
        %v1856 = vld [vmem:[#allocation28 + $0x78] sm:$0xff]
        %v1857 = vld [vmem:[#allocation25] sm:$0x3]
        %v1858 = vld [vmem:[#allocation30] sm:$0xf]
        %v1859 = vld [vmem:[#allocation30 + $0x4] sm:$0xf]
        %v1860 = vld [vmem:[#allocation30 + $0x8] sm:$0xf]
        %v1861 = vld [vmem:[#allocation30 + $0xc] sm:$0xf]
        %v1862 = vld [vmem:[#allocation30 + $0x10] sm:$0xf]
        %v1863 = vld [vmem:[#allocation30 + $0x14] sm:$0xf]
        %v1864 = vld [vmem:[#allocation30 + $0x18] sm:$0xf]
        %v1865 = vld [vmem:[#allocation30 + $0x1c] sm:$0xf]
        %v1866 = vld [vmem:[#allocation30 + $0x20] sm:$0xf]
        %v1867 = vld [vmem:[#allocation30 + $0x24] sm:$0xf]
        %v1868 = vld [vmem:[#allocation30 + $0x28] sm:$0xf]
        %v1869 = vld [vmem:[#allocation30 + $0x2c] sm:$0xf]
        %v1870 = vld [vmem:[#allocation30 + $0x30] sm:$0xf]
        %v1871 = vld [vmem:[#allocation30 + $0x34] sm:$0xf]
        %v1872 = vld [vmem:[#allocation30 + $0x38] sm:$0xf]
        %v1873 = vld [vmem:[#allocation30 + $0x3c] sm:$0xf]
        %v1874 = vld [vmem:[#allocation30 + $0x40] sm:$0xf]
        %v1875 = vld [vmem:[#allocation30 + $0x44] sm:$0xf]
        %v1876 = vld [vmem:[#allocation30 + $0x48] sm:$0xf]
        %v1877 = vld [vmem:[#allocation30 + $0x4c] sm:$0xf]
        %v1878 = vld [vmem:[#allocation30 + $0x50] sm:$0xf]
        %v1879 = vld [vmem:[#allocation30 + $0x54] sm:$0xf]
        %v1880 = vld [vmem:[#allocation30 + $0x58] sm:$0xf]
        %v1881 = vld [vmem:[#allocation30 + $0x5c] sm:$0xf]
        %v1882 = vld [vmem:[#allocation30 + $0x60] sm:$0xf]
        %v1883 = vld [vmem:[#allocation30 + $0x64] sm:$0xf]
        %v1884 = vld [vmem:[#allocation30 + $0x68] sm:$0xf]
        %v1885 = vld [vmem:[#allocation30 + $0x6c] sm:$0xf]
        %v1886 = vld [vmem:[#allocation30 + $0x70] sm:$0xf]
        %v1887 = vld [vmem:[#allocation30 + $0x74] sm:$0xf]
        %v1888 = vld [vmem:[#allocation30 + $0x78] sm:$0xf]
        %v1889 = vld [vmem:[#allocation30 + $0x7c] sm:$0xf]
        %v1890 = vld [vmem:[#allocation27] sm:$0x1]
        %v1891 = vpack.c.bf16 %v1840, %v1840
        %v1893 = vlaneseq
        %v1894 = vshrl.u32 %v1893, 7
        %v1895 = vsub.s32 0, %v1894
        %v1896 = vrot.slane %v1857, %v1895
        %v1897 = vlaneseq
        %v1898 = vshrl.u32 %v1897, 7
        %v1899 = vsub.s32 1, %v1898
        %v1900 = vrot.slane %v1857, %v1899
        %v1919 = vunpack.c.l.b16 %v1841
        %v1920 = vunpack.c.h.b16 %v1841
        %v1921 = vunpack.c.l.b16 %v1842
        %v1922 = vunpack.c.h.b16 %v1842
        %v1923 = vunpack.c.l.b16 %v1843
        %v1924 = vunpack.c.h.b16 %v1843
        %v1925 = vunpack.c.l.b16 %v1844
        %v1926 = vunpack.c.h.b16 %v1844
        %v1927 = vunpack.c.l.b16 %v1845
        %v1928 = vunpack.c.h.b16 %v1845
        %v1929 = vunpack.c.l.b16 %v1846
        %v1930 = vunpack.c.h.b16 %v1846
        %v1931 = vunpack.c.l.b16 %v1847
        %v1932 = vunpack.c.h.b16 %v1847
        %v1933 = vunpack.c.l.b16 %v1848
        %v1934 = vunpack.c.h.b16 %v1848
        %v1935 = vunpack.c.l.b16 %v1849
        %v1936 = vunpack.c.h.b16 %v1849
        %v1937 = vunpack.c.l.b16 %v1850
        %v1938 = vunpack.c.h.b16 %v1850
        %v1939 = vunpack.c.l.b16 %v1851
        %v1940 = vunpack.c.h.b16 %v1851
        %v1941 = vunpack.c.l.b16 %v1852
        %v1942 = vunpack.c.h.b16 %v1852
        %v1943 = vunpack.c.l.b16 %v1853
        %v1944 = vunpack.c.h.b16 %v1853
        %v1945 = vunpack.c.l.b16 %v1854
        %v1946 = vunpack.c.h.b16 %v1854
        %v1947 = vunpack.c.l.b16 %v1855
        %v1948 = vunpack.c.h.b16 %v1855
        %v1949 = vunpack.c.l.b16 %v1856
        %v1950 = vunpack.c.h.b16 %v1856
        %v1951 = vpack.c.b16 %v1921, %v1919
        %v1952 = vpack.c.b16 %v1922, %v1920
        %v1953 = vpack.c.b16 %v1925, %v1923
        %v1954 = vpack.c.b16 %v1926, %v1924
        %v1955 = vpack.c.b16 %v1929, %v1927
        %v1956 = vpack.c.b16 %v1930, %v1928
        %v1957 = vpack.c.b16 %v1933, %v1931
        %v1958 = vpack.c.b16 %v1934, %v1932
        %v1959 = vpack.c.b16 %v1937, %v1935
        %v1960 = vpack.c.b16 %v1938, %v1936
        %v1961 = vpack.c.b16 %v1941, %v1939
        %v1962 = vpack.c.b16 %v1942, %v1940
        %v1963 = vpack.c.b16 %v1945, %v1943
        %v1964 = vpack.c.b16 %v1946, %v1944
        %v1965 = vpack.c.b16 %v1949, %v1947
        %v1966 = vpack.c.b16 %v1950, %v1948
        %1983 = vmatprep.subr.bf16.mxu0 %v1966
        %1984 = vmatpush1.bf16.msra.mxu0 %v1965
        %1985 = vmatprep.subr.bf16.mxu0 %v1964
        %1986 = vmatpush1.bf16.msra.mxu0 %v1963
        %1987 = vmatprep.subr.bf16.mxu0 %v1962
        %1988 = vmatpush1.bf16.msra.mxu0 %v1961
        %1989 = vmatprep.subr.bf16.mxu0 %v1960
        %1990 = vmatpush1.bf16.msra.mxu0 %v1959
        %1991 = vmatprep.subr.bf16.mxu0 %v1958
        %1992 = vmatpush1.bf16.msra.mxu0 %v1957
        %1993 = vmatprep.subr.bf16.mxu0 %v1956
        %1994 = vmatpush1.bf16.msra.mxu0 %v1955
        %1995 = vmatprep.subr.bf16.mxu0 %v1954
        %1996 = vmatpush1.bf16.msra.mxu0 %v1953
        %1997 = vmatprep.subr.bf16.mxu0 %v1952
        %1998 = vmatpush1.bf16.msra.mxu0 %v1951
        %1999 = vmatprep.subr.bf16.mxu0 0
        %2000 = vmatpush2.bf16.msra.mxu0 0
        %2001 = vmatprep.subr.bf16.mxu0 0
        %2002 = vmatpush2.bf16.msra.mxu0 0
        %2003 = vmatprep.subr.bf16.mxu0 0
        %2004 = vmatpush2.bf16.msra.mxu0 0
        %2005 = vmatprep.subr.bf16.mxu0 0
        %2006 = vmatpush2.bf16.msra.mxu0 0
        %2007 = vmatprep.subr.bf16.mxu0 0
        %2008 = vmatpush2.bf16.msra.mxu0 0
        %2009 = vmatprep.subr.bf16.mxu0 0
        %2010 = vmatpush2.bf16.msra.mxu0 0
        %2011 = vmatprep.subr.bf16.mxu0 0
        %2012 = vmatpush2.bf16.msra.mxu0 0
        %2013 = vmatprep.subr.bf16.mxu0 0
        %2014 = vmatpush2.bf16.msra.mxu0 0
        %2015 = vmatprep.mubr.bf16.mxu0 0
        %2016 = vmatmul.mubr.bf16.gmra.mxu0 %v1891
        %v2017 = vpop.f32.mrf.mxu0
        %v2018 = vadd.f32 %v1896, %v2017
        %v2019 = vpop.f32.mrf.mxu0
        %v2020 = vadd.f32 %v1900, %v2019
        %v2021 = vpop.f32.mrf.mxu0
        %v2022 = vpop.f32.mrf.mxu0
        %2023 = vdwg.mxu0
        %v2024 = vsub.f32 0.0, %v2018
        %v2025 = vsub.f32 0.0, %v2020
        %v2026 = vmul.f32 %v2024, 1.442695
        %v2027 = vpow.pop %v2026
        %v2028 = vmul.f32 %v2025, 1.442695
        %v2029 = vpow.pop %v2028
        %v2030 = vadd.f32 %v2027, 1.0
        %v2031 = vadd.f32 %v2029, 1.0
        %v2032 = vrcp.pop %v2030
        %v2033 = vmul.f32 1.0, %v2032
        %v2034 = vrcp.pop %v2031
        %v2035 = vmul.f32 1.0, %v2034
        %v2036 = vmul.f32 %v2018, %v2033
        %v2037 = vmul.f32 %v2020, %v2035
        %v2038 = vpack.c.bf16 %v2036, %v2036
        %v2039 = vpack.c.bf16 %v2037, %v2037
        %v2041 = vlaneseq
        %v2042 = vshrl.u32 %v2041, 7
        %v2043 = vsub.s32 0, %v2042
        %v2044 = vrot.slane %v1890, %v2043
        %v2078 = vunpack.c.l.b16 %v1858
        %v2079 = vunpack.c.l.b16 %v1859
        %v2080 = vunpack.c.l.b16 %v1860
        %v2081 = vunpack.c.l.b16 %v1861
        %v2082 = vunpack.c.l.b16 %v1862
        %v2083 = vunpack.c.l.b16 %v1863
        %v2084 = vunpack.c.l.b16 %v1864
        %v2085 = vunpack.c.l.b16 %v1865
        %v2086 = vunpack.c.l.b16 %v1866
        %v2087 = vunpack.c.l.b16 %v1867
        %v2088 = vunpack.c.l.b16 %v1868
        %v2089 = vunpack.c.l.b16 %v1869
        %v2090 = vunpack.c.l.b16 %v1870
        %v2091 = vunpack.c.l.b16 %v1871
        %v2092 = vunpack.c.l.b16 %v1872
        %v2093 = vunpack.c.l.b16 %v1873
        %v2094 = vunpack.c.l.b16 %v1874
        %v2095 = vunpack.c.l.b16 %v1875
        %v2096 = vunpack.c.l.b16 %v1876
        %v2097 = vunpack.c.l.b16 %v1877
        %v2098 = vunpack.c.l.b16 %v1878
        %v2099 = vunpack.c.l.b16 %v1879
        %v2100 = vunpack.c.l.b16 %v1880
        %v2101 = vunpack.c.l.b16 %v1881
        %v2102 = vunpack.c.l.b16 %v1882
        %v2103 = vunpack.c.l.b16 %v1883
        %v2104 = vunpack.c.l.b16 %v1884
        %v2105 = vunpack.c.l.b16 %v1885
        %v2106 = vunpack.c.l.b16 %v1886
        %v2107 = vunpack.c.l.b16 %v1887
        %v2108 = vunpack.c.l.b16 %v1888
        %v2109 = vunpack.c.l.b16 %v1889
        %v2110 = vpack.c.b16 %v2079, %v2078
        %v2111 = vpack.c.b16 %v2081, %v2080
        %v2112 = vpack.c.b16 %v2083, %v2082
        %v2113 = vpack.c.b16 %v2085, %v2084
        %v2114 = vpack.c.b16 %v2087, %v2086
        %v2115 = vpack.c.b16 %v2089, %v2088
        %v2116 = vpack.c.b16 %v2091, %v2090
        %v2117 = vpack.c.b16 %v2093, %v2092
        %v2118 = vpack.c.b16 %v2095, %v2094
        %v2119 = vpack.c.b16 %v2097, %v2096
        %v2120 = vpack.c.b16 %v2099, %v2098
        %v2121 = vpack.c.b16 %v2101, %v2100
        %v2122 = vpack.c.b16 %v2103, %v2102
        %v2123 = vpack.c.b16 %v2105, %v2104
        %v2124 = vpack.c.b16 %v2107, %v2106
        %v2125 = vpack.c.b16 %v2109, %v2108
        %2142 = vmatprep.subr.bf16.mxu0 0
        %2143 = vmatpush1.bf16.msra.mxu0 %v2117
        %2144 = vmatprep.subr.bf16.mxu0 0
        %2145 = vmatpush1.bf16.msra.mxu0 %v2116
        %2146 = vmatprep.subr.bf16.mxu0 0
        %2147 = vmatpush1.bf16.msra.mxu0 %v2115
        %2148 = vmatprep.subr.bf16.mxu0 0
        %2149 = vmatpush1.bf16.msra.mxu0 %v2114
        %2150 = vmatprep.subr.bf16.mxu0 0
        %2151 = vmatpush1.bf16.msra.mxu0 %v2113
        %2152 = vmatprep.subr.bf16.mxu0 0
        %2153 = vmatpush1.bf16.msra.mxu0 %v2112
        %2154 = vmatprep.subr.bf16.mxu0 0
        %2155 = vmatpush1.bf16.msra.mxu0 %v2111
        %2156 = vmatprep.subr.bf16.mxu0 0
        %2157 = vmatpush1.bf16.msra.mxu0 %v2110
        %2158 = vmatprep.subr.bf16.mxu0 0
        %2159 = vmatpush2.bf16.msra.mxu0 %v2125
        %2160 = vmatprep.subr.bf16.mxu0 0
        %2161 = vmatpush2.bf16.msra.mxu0 %v2124
        %2162 = vmatprep.subr.bf16.mxu0 0
        %2163 = vmatpush2.bf16.msra.mxu0 %v2123
        %2164 = vmatprep.subr.bf16.mxu0 0
        %2165 = vmatpush2.bf16.msra.mxu0 %v2122
        %2166 = vmatprep.subr.bf16.mxu0 0
        %2167 = vmatpush2.bf16.msra.mxu0 %v2121
        %2168 = vmatprep.subr.bf16.mxu0 0
        %2169 = vmatpush2.bf16.msra.mxu0 %v2120
        %2170 = vmatprep.subr.bf16.mxu0 0
        %2171 = vmatpush2.bf16.msra.mxu0 %v2119
        %2172 = vmatprep.subr.bf16.mxu0 0
        %2173 = vmatpush2.bf16.msra.mxu0 %v2118
        %2174 = vmatprep.mubr.bf16.mxu0 %v2039
        %2175 = vmatmul.mubr.bf16.gmra.mxu0 %v2038
        %v2176 = vpop.f32.mrf.mxu0
        %v2177 = vadd.f32 %v2044, %v2176
        %v2178 = vpop.f32.mrf.mxu0
        %v2179 = vpop.f32.mrf.mxu0
        %v2180 = vpop.f32.mrf.mxu0
        %2181 = vdwg.mxu0
        %v2182 = vmul.f32 %v2177, 0.5
        %v2183 = vadd.f32 %v1808, %v2182
        %v2184 = vld [vmem:[#allocation39] sm:$0x1]
        %v2185 = vld [vmem:[#allocation37] sm:$0x1]
        %2186 = vadd.xlane.f32.xlu0 %v2183
        %v2187 = vpop.xlane.xlu0 %2186
        %v2188 = vmul.f32 %v2187, %v1817
        %v2189 = vsub.f32 %v2183, %v2188
        %v2190 = vmul.f32 %v2189, %v2189
        %2191 = vadd.xlane.f32.xlu0 %v2190
        %v2192 = vpop.xlane.xlu0 %2191
        %v2193 = vmul.f32 %v2192, %v1817
        %v2194 = vadd.f32 %v2193, 1e-05
        %v2195 = vrsqrt.pop %v2194
        %v2196 = vmul.f32 %v2189, %v2195
        %v2198 = vlaneseq
        %v2199 = vshrl.u32 %v2198, 7
        %v2200 = vsub.s32 0, %v2199
        %v2201 = vrot.slane %v2184, %v2200
        %v2203 = vmul.f32 %v2196, %v2201
        %v2205 = vlaneseq
        %v2206 = vshrl.u32 %v2205, 7
        %v2207 = vsub.s32 0, %v2206
        %v2208 = vrot.slane %v2185, %v2207
        %v2210 = vadd.f32 %v2203, %v2208
        %v2211 = vld [vmem:[#allocation12] sm:$0xf]
        %v2212 = vld [vmem:[#allocation12 + $0x4] sm:$0xf]
        %v2213 = vld [vmem:[#allocation12 + $0x8] sm:$0xf]
        %v2214 = vld [vmem:[#allocation12 + $0xc] sm:$0xf]
        %v2215 = vld [vmem:[#allocation12 + $0x10] sm:$0xf]
        %v2216 = vld [vmem:[#allocation12 + $0x14] sm:$0xf]
        %v2217 = vld [vmem:[#allocation12 + $0x18] sm:$0xf]
        %v2218 = vld [vmem:[#allocation12 + $0x1c] sm:$0xf]
        %v2219 = vld [vmem:[#allocation12 + $0x20] sm:$0xf]
        %v2220 = vld [vmem:[#allocation12 + $0x24] sm:$0xf]
        %v2221 = vld [vmem:[#allocation12 + $0x28] sm:$0xf]
        %v2222 = vld [vmem:[#allocation12 + $0x2c] sm:$0xf]
        %v2223 = vld [vmem:[#allocation12 + $0x30] sm:$0xf]
        %v2224 = vld [vmem:[#allocation12 + $0x34] sm:$0xf]
        %v2225 = vld [vmem:[#allocation12 + $0x38] sm:$0xf]
        %v2226 = vld [vmem:[#allocation12 + $0x3c] sm:$0xf]
        %v2227 = vld [vmem:[#allocation7] sm:$0x1]
        %v2228 = vld [vmem:[%s13] sm:$0xf]
        %v2229 = vld [vmem:[%s13 + $0x4] sm:$0xf]
        %v2230 = vld [vmem:[%s13 + $0x8] sm:$0xf]
        %v2231 = vld [vmem:[%s13 + $0xc] sm:$0xf]
        %v2232 = vld [vmem:[%s13 + $0x10] sm:$0xf]
        %v2233 = vld [vmem:[%s13 + $0x14] sm:$0xf]
        %v2234 = vld [vmem:[%s13 + $0x18] sm:$0xf]
        %v2235 = vld [vmem:[%s13 + $0x1c] sm:$0xf]
        %v2236 = vld [vmem:[%s13 + $0x20] sm:$0xf]
        %v2237 = vld [vmem:[%s13 + $0x24] sm:$0xf]
        %v2238 = vld [vmem:[%s13 + $0x28] sm:$0xf]
        %v2239 = vld [vmem:[%s13 + $0x2c] sm:$0xf]
        %v2240 = vld [vmem:[%s13 + $0x30] sm:$0xf]
        %v2241 = vld [vmem:[%s13 + $0x34] sm:$0xf]
        %v2242 = vld [vmem:[%s13 + $0x38] sm:$0xf]
        %v2243 = vld [vmem:[%s13 + $0x3c] sm:$0xf]
        %v2244 = vld [vmem:[%s5] sm:$0x1]
        %v2245 = vld [vmem:[#allocation13] sm:$0xf]
        %v2246 = vld [vmem:[#allocation13 + $0x4] sm:$0xf]
        %v2247 = vld [vmem:[#allocation13 + $0x8] sm:$0xf]
        %v2248 = vld [vmem:[#allocation13 + $0xc] sm:$0xf]
        %v2249 = vld [vmem:[#allocation13 + $0x10] sm:$0xf]
        %v2250 = vld [vmem:[#allocation13 + $0x14] sm:$0xf]
        %v2251 = vld [vmem:[#allocation13 + $0x18] sm:$0xf]
        %v2252 = vld [vmem:[#allocation13 + $0x1c] sm:$0xf]
        %v2253 = vld [vmem:[#allocation13 + $0x20] sm:$0xf]
        %v2254 = vld [vmem:[#allocation13 + $0x24] sm:$0xf]
        %v2255 = vld [vmem:[#allocation13 + $0x28] sm:$0xf]
        %v2256 = vld [vmem:[#allocation13 + $0x2c] sm:$0xf]
        %v2257 = vld [vmem:[#allocation13 + $0x30] sm:$0xf]
        %v2258 = vld [vmem:[#allocation13 + $0x34] sm:$0xf]
        %v2259 = vld [vmem:[#allocation13 + $0x38] sm:$0xf]
        %v2260 = vld [vmem:[#allocation13 + $0x3c] sm:$0xf]
        %v2261 = vld [vmem:[#allocation9] sm:$0x1]
        %v2262 = vld [vmem:[#allocation10] sm:$0xf]
        %v2263 = vld [vmem:[#allocation10 + $0x4] sm:$0xf]
        %v2264 = vld [vmem:[#allocation10 + $0x8] sm:$0xf]
        %v2265 = vld [vmem:[#allocation10 + $0xc] sm:$0xf]
        %v2266 = vld [vmem:[#allocation10 + $0x10] sm:$0xf]
        %v2267 = vld [vmem:[#allocation10 + $0x14] sm:$0xf]
        %v2268 = vld [vmem:[#allocation10 + $0x18] sm:$0xf]
        %v2269 = vld [vmem:[#allocation10 + $0x1c] sm:$0xf]
        %v2270 = vld [vmem:[#allocation10 + $0x20] sm:$0xf]
        %v2271 = vld [vmem:[#allocation10 + $0x24] sm:$0xf]
        %v2272 = vld [vmem:[#allocation10 + $0x28] sm:$0xf]
        %v2273 = vld [vmem:[#allocation10 + $0x2c] sm:$0xf]
        %v2274 = vld [vmem:[#allocation10 + $0x30] sm:$0xf]
        %v2275 = vld [vmem:[#allocation10 + $0x34] sm:$0xf]
        %v2276 = vld [vmem:[#allocation10 + $0x38] sm:$0xf]
        %v2277 = vld [vmem:[#allocation10 + $0x3c] sm:$0xf]
        %v2278 = vld [vmem:[#allocation4] sm:$0x1]
        %v2279 = vpack.c.bf16 %v2210, %v2210
        %v2281 = vlaneseq
        %v2282 = vshrl.u32 %v2281, 7
        %v2283 = vsub.s32 0, %v2282
        %v2284 = vrot.slane %v2227, %v2283
        %v2302 = vunpack.c.l.b16 %v2211
        %v2303 = vunpack.c.l.b16 %v2212
        %v2304 = vunpack.c.l.b16 %v2213
        %v2305 = vunpack.c.l.b16 %v2214
        %v2306 = vunpack.c.l.b16 %v2215
        %v2307 = vunpack.c.l.b16 %v2216
        %v2308 = vunpack.c.l.b16 %v2217
        %v2309 = vunpack.c.l.b16 %v2218
        %v2310 = vunpack.c.l.b16 %v2219
        %v2311 = vunpack.c.l.b16 %v2220
        %v2312 = vunpack.c.l.b16 %v2221
        %v2313 = vunpack.c.l.b16 %v2222
        %v2314 = vunpack.c.l.b16 %v2223
        %v2315 = vunpack.c.l.b16 %v2224
        %v2316 = vunpack.c.l.b16 %v2225
        %v2317 = vunpack.c.l.b16 %v2226
        %v2318 = vpack.c.b16 %v2303, %v2302
        %v2319 = vpack.c.b16 %v2305, %v2304
        %v2320 = vpack.c.b16 %v2307, %v2306
        %v2321 = vpack.c.b16 %v2309, %v2308
        %v2322 = vpack.c.b16 %v2311, %v2310
        %v2323 = vpack.c.b16 %v2313, %v2312
        %v2324 = vpack.c.b16 %v2315, %v2314
        %v2325 = vpack.c.b16 %v2317, %v2316
        %2334 = vmatprep.subr.bf16.mxu0 0
        %2335 = vmatpush1.bf16.msra.mxu0 %v2325
        %2336 = vmatprep.subr.bf16.mxu0 0
        %2337 = vmatpush1.bf16.msra.mxu0 %v2324
        %2338 = vmatprep.subr.bf16.mxu0 0
        %2339 = vmatpush1.bf16.msra.mxu0 %v2323
        %2340 = vmatprep.subr.bf16.mxu0 0
        %2341 = vmatpush1.bf16.msra.mxu0 %v2322
        %2342 = vmatprep.subr.bf16.mxu0 0
        %2343 = vmatpush1.bf16.msra.mxu0 %v2321
        %2344 = vmatprep.subr.bf16.mxu0 0
        %2345 = vmatpush1.bf16.msra.mxu0 %v2320
        %2346 = vmatprep.subr.bf16.mxu0 0
        %2347 = vmatpush1.bf16.msra.mxu0 %v2319
        %2348 = vmatprep.subr.bf16.mxu0 0
        %2349 = vmatpush1.bf16.msra.mxu0 %v2318
        %2350 = vmatprep.subr.bf16.mxu0 0
        %2351 = vmatpush2.bf16.msra.mxu0 0
        %2352 = vmatprep.subr.bf16.mxu0 0
        %2353 = vmatpush2.bf16.msra.mxu0 0
        %2354 = vmatprep.subr.bf16.mxu0 0
        %2355 = vmatpush2.bf16.msra.mxu0 0
        %2356 = vmatprep.subr.bf16.mxu0 0
        %2357 = vmatpush2.bf16.msra.mxu0 0
        %2358 = vmatprep.subr.bf16.mxu0 0
        %2359 = vmatpush2.bf16.msra.mxu0 0
        %2360 = vmatprep.subr.bf16.mxu0 0
        %2361 = vmatpush2.bf16.msra.mxu0 0
        %2362 = vmatprep.subr.bf16.mxu0 0
        %2363 = vmatpush2.bf16.msra.mxu0 0
        %2364 = vmatprep.subr.bf16.mxu0 0
        %2365 = vmatpush2.bf16.msra.mxu0 0
        %2366 = vmatprep.mubr.bf16.mxu0 0
        %2367 = vmatmul.mubr.bf16.gmra.mxu0 %v2279
        %v2368 = vpop.f32.mrf.mxu0
        %v2369 = vadd.f32 %v2284, %v2368
        %v2370 = vpop.f32.mrf.mxu0
        %v2371 = vpop.f32.mrf.mxu0
        %v2372 = vpop.f32.mrf.mxu0
        %2373 = vdwg.mxu0
        %v2375 = vlaneseq
        %v2376 = vshrl.u32 %v2375, 7
        %v2377 = vsub.s32 0, %v2376
        %v2378 = vrot.slane %v2244, %v2377
        %v2396 = vunpack.c.l.b16 %v2228
        %v2397 = vunpack.c.l.b16 %v2229
        %v2398 = vunpack.c.l.b16 %v2230
        %v2399 = vunpack.c.l.b16 %v2231
        %v2400 = vunpack.c.l.b16 %v2232
        %v2401 = vunpack.c.l.b16 %v2233
        %v2402 = vunpack.c.l.b16 %v2234
        %v2403 = vunpack.c.l.b16 %v2235
        %v2404 = vunpack.c.l.b16 %v2236
        %v2405 = vunpack.c.l.b16 %v2237
        %v2406 = vunpack.c.l.b16 %v2238
        %v2407 = vunpack.c.l.b16 %v2239
        %v2408 = vunpack.c.l.b16 %v2240
        %v2409 = vunpack.c.l.b16 %v2241
        %v2410 = vunpack.c.l.b16 %v2242
        %v2411 = vunpack.c.l.b16 %v2243
        %v2412 = vpack.c.b16 %v2397, %v2396
        %v2413 = vpack.c.b16 %v2399, %v2398
        %v2414 = vpack.c.b16 %v2401, %v2400
        %v2415 = vpack.c.b16 %v2403, %v2402
        %v2416 = vpack.c.b16 %v2405, %v2404
        %v2417 = vpack.c.b16 %v2407, %v2406
        %v2418 = vpack.c.b16 %v2409, %v2408
        %v2419 = vpack.c.b16 %v2411, %v2410
        %2428 = vmatprep.subr.bf16.mxu0 0
        %2429 = vmatpush1.bf16.msra.mxu0 %v2419
        %2430 = vmatprep.subr.bf16.mxu0 0
        %2431 = vmatpush1.bf16.msra.mxu0 %v2418
        %2432 = vmatprep.subr.bf16.mxu0 0
        %2433 = vmatpush1.bf16.msra.mxu0 %v2417
        %2434 = vmatprep.subr.bf16.mxu0 0
        %2435 = vmatpush1.bf16.msra.mxu0 %v2416
        %2436 = vmatprep.subr.bf16.mxu0 0
        %2437 = vmatpush1.bf16.msra.mxu0 %v2415
        %2438 = vmatprep.subr.bf16.mxu0 0
        %2439 = vmatpush1.bf16.msra.mxu0 %v2414
        %2440 = vmatprep.subr.bf16.mxu0 0
        %2441 = vmatpush1.bf16.msra.mxu0 %v2413
        %2442 = vmatprep.subr.bf16.mxu0 0
        %2443 = vmatpush1.bf16.msra.mxu0 %v2412
        %2444 = vmatprep.subr.bf16.mxu0 0
        %2445 = vmatpush2.bf16.msra.mxu0 0
        %2446 = vmatprep.subr.bf16.mxu0 0
        %2447 = vmatpush2.bf16.msra.mxu0 0
        %2448 = vmatprep.subr.bf16.mxu0 0
        %2449 = vmatpush2.bf16.msra.mxu0 0
        %2450 = vmatprep.subr.bf16.mxu0 0
        %2451 = vmatpush2.bf16.msra.mxu0 0
        %2452 = vmatprep.subr.bf16.mxu0 0
        %2453 = vmatpush2.bf16.msra.mxu0 0
        %2454 = vmatprep.subr.bf16.mxu0 0
        %2455 = vmatpush2.bf16.msra.mxu0 0
        %2456 = vmatprep.subr.bf16.mxu0 0
        %2457 = vmatpush2.bf16.msra.mxu0 0
        %2458 = vmatprep.subr.bf16.mxu0 0
        %2459 = vmatpush2.bf16.msra.mxu0 0
        %2460 = vmatprep.mubr.bf16.mxu0 0
        %2461 = vmatmul.mubr.bf16.gmra.mxu0 %v2279
        %v2462 = vpop.f32.mrf.mxu0
        %v2463 = vadd.f32 %v2378, %v2462
        %v2464 = vpop.f32.mrf.mxu0
        %v2465 = vpop.f32.mrf.mxu0
        %v2466 = vpop.f32.mrf.mxu0
        %2467 = vdwg.mxu0
        %v2469 = vlaneseq
        %v2470 = vshrl.u32 %v2469, 7
        %v2471 = vsub.s32 0, %v2470
        %v2472 = vrot.slane %v2261, %v2471
        %v2490 = vunpack.c.l.b16 %v2245
        %v2491 = vunpack.c.l.b16 %v2246
        %v2492 = vunpack.c.l.b16 %v2247
        %v2493 = vunpack.c.l.b16 %v2248
        %v2494 = vunpack.c.l.b16 %v2249
        %v2495 = vunpack.c.l.b16 %v2250
        %v2496 = vunpack.c.l.b16 %v2251
        %v2497 = vunpack.c.l.b16 %v2252
        %v2498 = vunpack.c.l.b16 %v2253
        %v2499 = vunpack.c.l.b16 %v2254
        %v2500 = vunpack.c.l.b16 %v2255
        %v2501 = vunpack.c.l.b16 %v2256
        %v2502 = vunpack.c.l.b16 %v2257
        %v2503 = vunpack.c.l.b16 %v2258
        %v2504 = vunpack.c.l.b16 %v2259
        %v2505 = vunpack.c.l.b16 %v2260
        %v2506 = vpack.c.b16 %v2491, %v2490
        %v2507 = vpack.c.b16 %v2493, %v2492
        %v2508 = vpack.c.b16 %v2495, %v2494
        %v2509 = vpack.c.b16 %v2497, %v2496
        %v2510 = vpack.c.b16 %v2499, %v2498
        %v2511 = vpack.c.b16 %v2501, %v2500
        %v2512 = vpack.c.b16 %v2503, %v2502
        %v2513 = vpack.c.b16 %v2505, %v2504
        %2522 = vmatprep.subr.bf16.mxu0 0
        %2523 = vmatpush1.bf16.msra.mxu0 %v2513
        %2524 = vmatprep.subr.bf16.mxu0 0
        %2525 = vmatpush1.bf16.msra.mxu0 %v2512
        %2526 = vmatprep.subr.bf16.mxu0 0
        %2527 = vmatpush1.bf16.msra.mxu0 %v2511
        %2528 = vmatprep.subr.bf16.mxu0 0
        %2529 = vmatpush1.bf16.msra.mxu0 %v2510
        %2530 = vmatprep.subr.bf16.mxu0 0
        %2531 = vmatpush1.bf16.msra.mxu0 %v2509
        %2532 = vmatprep.subr.bf16.mxu0 0
        %2533 = vmatpush1.bf16.msra.mxu0 %v2508
        %2534 = vmatprep.subr.bf16.mxu0 0
        %2535 = vmatpush1.bf16.msra.mxu0 %v2507
        %2536 = vmatprep.subr.bf16.mxu0 0
        %2537 = vmatpush1.bf16.msra.mxu0 %v2506
        %2538 = vmatprep.subr.bf16.mxu0 0
        %2539 = vmatpush2.bf16.msra.mxu0 0
        %2540 = vmatprep.subr.bf16.mxu0 0
        %2541 = vmatpush2.bf16.msra.mxu0 0
        %2542 = vmatprep.subr.bf16.mxu0 0
        %2543 = vmatpush2.bf16.msra.mxu0 0
        %2544 = vmatprep.subr.bf16.mxu0 0
        %2545 = vmatpush2.bf16.msra.mxu0 0
        %2546 = vmatprep.subr.bf16.mxu0 0
        %2547 = vmatpush2.bf16.msra.mxu0 0
        %2548 = vmatprep.subr.bf16.mxu0 0
        %2549 = vmatpush2.bf16.msra.mxu0 0
        %2550 = vmatprep.subr.bf16.mxu0 0
        %2551 = vmatpush2.bf16.msra.mxu0 0
        %2552 = vmatprep.subr.bf16.mxu0 0
        %2553 = vmatpush2.bf16.msra.mxu0 0
        %2554 = vmatprep.mubr.bf16.mxu0 0
        %2555 = vmatmul.mubr.bf16.gmra.mxu0 %v2279
        %v2556 = vpop.f32.mrf.mxu0
        %v2557 = vadd.f32 %v2472, %v2556
        %v2558 = vpop.f32.mrf.mxu0
        %v2559 = vpop.f32.mrf.mxu0
        %v2560 = vpop.f32.mrf.mxu0
        %2561 = vdwg.mxu0
        %v2562 = vpack.c.bf16 %v2369, %v2369
        %v2563 = vpack.c.bf16 %v2463, %v2463
        %vm2564 = vcmask 261120
        %v2566 = vsel %vm2564, %v2562, 0
        %v2569 = vsel %vm2564, %v2563, 0
        %2571 = vmatprep.subr.bf16.mxu0 0
        %2572 = vmatpush1.bf16.xpose.msra.mxu0 0
        %2573 = vmatprep.subr.bf16.mxu0 0
        %2574 = vmatpush1.bf16.xpose.msra.mxu0 0
        %2575 = vmatprep.subr.bf16.mxu0 0
        %2576 = vmatpush1.bf16.xpose.msra.mxu0 0
        %2577 = vmatprep.subr.bf16.mxu0 0
        %2578 = vmatpush1.bf16.xpose.msra.mxu0 0
        %2579 = vmatprep.subr.bf16.mxu0 0
        %2580 = vmatpush1.bf16.xpose.msra.mxu0 0
        %2581 = vmatprep.subr.bf16.mxu0 0
        %2582 = vmatpush1.bf16.xpose.msra.mxu0 0
        %2583 = vmatprep.subr.bf16.mxu0 0
        %2584 = vmatpush1.bf16.xpose.msra.mxu0 0
        %2585 = vmatprep.subr.bf16.mxu0 0
        %2586 = vmatpush1.bf16.xpose.msra.mxu0 %v2569
        %2587 = vmatprep.subr.bf16.mxu0 0
        %2588 = vmatpush2.bf16.xpose.msra.mxu0 0
        %2589 = vmatprep.subr.bf16.mxu0 0
        %2590 = vmatpush2.bf16.xpose.msra.mxu0 0
        %2591 = vmatprep.subr.bf16.mxu0 0
        %2592 = vmatpush2.bf16.xpose.msra.mxu0 0
        %2593 = vmatprep.subr.bf16.mxu0 0
        %2594 = vmatpush2.bf16.xpose.msra.mxu0 0
        %2595 = vmatprep.subr.bf16.mxu0 0
        %2596 = vmatpush2.bf16.xpose.msra.mxu0 0
        %2597 = vmatprep.subr.bf16.mxu0 0
        %2598 = vmatpush2.bf16.xpose.msra.mxu0 0
        %2599 = vmatprep.subr.bf16.mxu0 0
        %2600 = vmatpush2.bf16.xpose.msra.mxu0 0
        %2601 = vmatprep.subr.bf16.mxu0 0
        %2602 = vmatpush2.bf16.xpose.msra.mxu0 0
        %2603 = vmatprep.mubr.bf16.mxu0 0
        %2604 = vmatmul.mubr.bf16.gmra.mxu0 %v2566
        %v2605 = vpop.f32.mrf.mxu0
        %v2606 = vadd.f32 0.0, %v2605
        %v2607 = vpop.f32.mrf.mxu0
        %v2608 = vpop.f32.mrf.mxu0
        %v2609 = vpop.f32.mrf.mxu0
        %2610 = vdwg.mxu0
        %v2611 = vmul.f32 %v2606, 0.17677669
        %v2612 = vadd.f32 %v2611, %v1700
        %vm2613 = vcmask 64512
        %v2614 = vsel %vm2613, %v2612, -inf
        %2615 = vmax.xlane.f32.xlu0 %v2614
        %v2616 = vpop.xlane.xlu0 %2615
        %v2617 = vsub.f32 %v2612, %v2616
        %v2618 = vmul.f32 %v2617, 1.442695
        %v2619 = vpow.pop %v2618
        %v2620 = vsel %vm2613, %v2619, 0.0
        %2621 = vadd.xlane.f32.xlu0 %v2620
        %v2622 = vpop.xlane.xlu0 %2621
        %v2623 = vrcp.pop %v2622
        %v2624 = vmul.f32 %v2619, %v2623
        %v2625 = vpack.c.bf16 %v2624, %v2624
        %v2626 = vpack.c.bf16 %v2557, %v2557
        %v2628 = vsel %vm2613, %v2625, 0
        %vm2630 = vcmask 1043456
        %v2632 = vsel %vm2630, %v2626, 0
        %2634 = vmatprep.subr.bf16.mxu0 0
        %2635 = vmatpush1.bf16.msra.mxu0 0
        %2636 = vmatprep.subr.bf16.mxu0 0
        %2637 = vmatpush1.bf16.msra.mxu0 0
        %2638 = vmatprep.subr.bf16.mxu0 0
        %2639 = vmatpush1.bf16.msra.mxu0 0
        %2640 = vmatprep.subr.bf16.mxu0 0
        %2641 = vmatpush1.bf16.msra.mxu0 0
        %2642 = vmatprep.subr.bf16.mxu0 0
        %2643 = vmatpush1.bf16.msra.mxu0 0
        %2644 = vmatprep.subr.bf16.mxu0 0
        %2645 = vmatpush1.bf16.msra.mxu0 0
        %2646 = vmatprep.subr.bf16.mxu0 0
        %2647 = vmatpush1.bf16.msra.mxu0 0
        %2648 = vmatprep.subr.bf16.mxu0 0
        %2649 = vmatpush1.bf16.msra.mxu0 %v2632
        %2650 = vmatprep.subr.bf16.mxu0 0
        %2651 = vmatpush2.bf16.msra.mxu0 0
        %2652 = vmatprep.subr.bf16.mxu0 0
        %2653 = vmatpush2.bf16.msra.mxu0 0
        %2654 = vmatprep.subr.bf16.mxu0 0
        %2655 = vmatpush2.bf16.msra.mxu0 0
        %2656 = vmatprep.subr.bf16.mxu0 0
        %2657 = vmatpush2.bf16.msra.mxu0 0
        %2658 = vmatprep.subr.bf16.mxu0 0
        %2659 = vmatpush2.bf16.msra.mxu0 0
        %2660 = vmatprep.subr.bf16.mxu0 0
        %2661 = vmatpush2.bf16.msra.mxu0 0
        %2662 = vmatprep.subr.bf16.mxu0 0
        %2663 = vmatpush2.bf16.msra.mxu0 0
        %2664 = vmatprep.subr.bf16.mxu0 0
        %2665 = vmatpush2.bf16.msra.mxu0 0
        %2666 = vmatprep.mubr.bf16.mxu0 0
        %2667 = vmatmul.mubr.bf16.gmra.mxu0 %v2628
        %v2668 = vpop.f32.mrf.mxu0
        %v2669 = vadd.f32 0.0, %v2668
        %v2670 = vpop.f32.mrf.mxu0
        %v2671 = vpop.f32.mrf.mxu0
        %v2672 = vpop.f32.mrf.mxu0
        %2673 = vdwg.mxu0
        %v2674 = vpack.c.bf16 %v2669, %v2669
        %2676 = vrot.lane.b32.xlu0 %v2562, 96
        %v2677 = vpop.permute.xlu0 %2676
        %2679 = vrot.lane.b32.xlu0 %v2563, 96
        %v2680 = vpop.permute.xlu0 %2679
        %v2682 = vsel %vm2564, %v2677, 0
        %v2685 = vsel %vm2564, %v2680, 0
        %2687 = vmatprep.subr.bf16.mxu0 0
        %2688 = vmatpush1.bf16.xpose.msra.mxu0 0
        %2689 = vmatprep.subr.bf16.mxu0 0
        %2690 = vmatpush1.bf16.xpose.msra.mxu0 0
        %2691 = vmatprep.subr.bf16.mxu0 0
        %2692 = vmatpush1.bf16.xpose.msra.mxu0 0
        %2693 = vmatprep.subr.bf16.mxu0 0
        %2694 = vmatpush1.bf16.xpose.msra.mxu0 0
        %2695 = vmatprep.subr.bf16.mxu0 0
        %2696 = vmatpush1.bf16.xpose.msra.mxu0 0
        %2697 = vmatprep.subr.bf16.mxu0 0
        %2698 = vmatpush1.bf16.xpose.msra.mxu0 0
        %2699 = vmatprep.subr.bf16.mxu0 0
        %2700 = vmatpush1.bf16.xpose.msra.mxu0 0
        %2701 = vmatprep.subr.bf16.mxu0 0
        %2702 = vmatpush1.bf16.xpose.msra.mxu0 %v2685
        %2703 = vmatprep.subr.bf16.mxu0 0
        %2704 = vmatpush2.bf16.xpose.msra.mxu0 0
        %2705 = vmatprep.subr.bf16.mxu0 0
        %2706 = vmatpush2.bf16.xpose.msra.mxu0 0
        %2707 = vmatprep.subr.bf16.mxu0 0
        %2708 = vmatpush2.bf16.xpose.msra.mxu0 0
        %2709 = vmatprep.subr.bf16.mxu0 0
        %2710 = vmatpush2.bf16.xpose.msra.mxu0 0
        %2711 = vmatprep.subr.bf16.mxu0 0
        %2712 = vmatpush2.bf16.xpose.msra.mxu0 0
        %2713 = vmatprep.subr.bf16.mxu0 0
        %2714 = vmatpush2.bf16.xpose.msra.mxu0 0
        %2715 = vmatprep.subr.bf16.mxu0 0
        %2716 = vmatpush2.bf16.xpose.msra.mxu0 0
        %2717 = vmatprep.subr.bf16.mxu0 0
        %2718 = vmatpush2.bf16.xpose.msra.mxu0 0
        %2719 = vmatprep.mubr.bf16.mxu0 0
        %2720 = vmatmul.mubr.bf16.gmra.mxu0 %v2682
        %v2721 = vpop.f32.mrf.mxu0
        %v2722 = vadd.f32 0.0, %v2721
        %v2723 = vpop.f32.mrf.mxu0
        %v2724 = vpop.f32.mrf.mxu0
        %v2725 = vpop.f32.mrf.mxu0
        %2726 = vdwg.mxu0
        %v2727 = vmul.f32 %v2722, 0.17677669
        %v2728 = vadd.f32 %v2727, %v1700
        %v2729 = vsel %vm2613, %v2728, -inf
        %2730 = vmax.xlane.f32.xlu0 %v2729
        %v2731 = vpop.xlane.xlu0 %2730
        %v2732 = vsub.f32 %v2728, %v2731
        %v2733 = vmul.f32 %v2732, 1.442695
        %v2734 = vpow.pop %v2733
        %v2735 = vsel %vm2613, %v2734, 0.0
        %2736 = vadd.xlane.f32.xlu0 %v2735
        %v2737 = vpop.xlane.xlu0 %2736
        %v2738 = vrcp.pop %v2737
        %v2739 = vmul.f32 %v2734, %v2738
        %v2740 = vpack.c.bf16 %v2739, %v2739
        %2742 = vrot.lane.b32.xlu0 %v2626, 96
        %v2743 = vpop.permute.xlu0 %2742
        %v2745 = vsel %vm2613, %v2740, 0
        %v2748 = vsel %vm2630, %v2743, 0
        %2750 = vmatprep.subr.bf16.mxu0 0
        %2751 = vmatpush1.bf16.msra.mxu0 0
        %2752 = vmatprep.subr.bf16.mxu0 0
        %2753 = vmatpush1.bf16.msra.mxu0 0
        %2754 = vmatprep.subr.bf16.mxu0 0
        %2755 = vmatpush1.bf16.msra.mxu0 0
        %2756 = vmatprep.subr.bf16.mxu0 0
        %2757 = vmatpush1.bf16.msra.mxu0 0
        %2758 = vmatprep.subr.bf16.mxu0 0
        %2759 = vmatpush1.bf16.msra.mxu0 0
        %2760 = vmatprep.subr.bf16.mxu0 0
        %2761 = vmatpush1.bf16.msra.mxu0 0
        %2762 = vmatprep.subr.bf16.mxu0 0
        %2763 = vmatpush1.bf16.msra.mxu0 0
        %2764 = vmatprep.subr.bf16.mxu0 0
        %2765 = vmatpush1.bf16.msra.mxu0 %v2748
        %2766 = vmatprep.subr.bf16.mxu0 0
        %2767 = vmatpush2.bf16.msra.mxu0 0
        %2768 = vmatprep.subr.bf16.mxu0 0
        %2769 = vmatpush2.bf16.msra.mxu0 0
        %2770 = vmatprep.subr.bf16.mxu0 0
        %2771 = vmatpush2.bf16.msra.mxu0 0
        %2772 = vmatprep.subr.bf16.mxu0 0
        %2773 = vmatpush2.bf16.msra.mxu0 0
        %2774 = vmatprep.subr.bf16.mxu0 0
        %2775 = vmatpush2.bf16.msra.mxu0 0
        %2776 = vmatprep.subr.bf16.mxu0 0
        %2777 = vmatpush2.bf16.msra.mxu0 0
        %2778 = vmatprep.subr.bf16.mxu0 0
        %2779 = vmatpush2.bf16.msra.mxu0 0
        %2780 = vmatprep.subr.bf16.mxu0 0
        %2781 = vmatpush2.bf16.msra.mxu0 0
        %2782 = vmatprep.mubr.bf16.mxu0 0
        %2783 = vmatmul.mubr.bf16.gmra.mxu0 %v2745
        %v2784 = vpop.f32.mrf.mxu0
        %v2785 = vadd.f32 0.0, %v2784
        %v2786 = vpop.f32.mrf.mxu0
        %v2787 = vpop.f32.mrf.mxu0
        %v2788 = vpop.f32.mrf.mxu0
        %2789 = vdwg.mxu0
        %v2790 = vpack.c.bf16 %v2785, %v2785
        %v2795 = vunpack.c.l.b16 %v2266
        %v2796 = vunpack.c.l.b16 %v2267
        %v2797 = vunpack.c.l.b16 %v2268
        %v2798 = vunpack.c.l.b16 %v2269
        %v2799 = vpack.c.b16 %v2796, %v2795
        %v2800 = vpack.c.b16 %v2798, %v2797
        %v2804 = vsel %vm2564, %v2790, 0
        %2806 = vmatprep.subr.bf16.mxu0 0
        %2807 = vmatpush1.bf16.msra.mxu0 0
        %2808 = vmatprep.subr.bf16.mxu0 0
        %2809 = vmatpush1.bf16.msra.mxu0 0
        %2810 = vmatprep.subr.bf16.mxu0 0
        %2811 = vmatpush1.bf16.msra.mxu0 0
        %2812 = vmatprep.subr.bf16.mxu0 0
        %2813 = vmatpush1.bf16.msra.mxu0 0
        %2814 = vmatprep.subr.bf16.mxu0 0
        %2815 = vmatpush1.bf16.msra.mxu0 0
        %2816 = vmatprep.subr.bf16.mxu0 0
        %2817 = vmatpush1.bf16.msra.mxu0 0
        %2818 = vmatprep.subr.bf16.mxu0 0
        %2819 = vmatpush1.bf16.msra.mxu0 %v2800
        %2820 = vmatprep.subr.bf16.mxu0 0
        %2821 = vmatpush1.bf16.msra.mxu0 %v2799
        %2822 = vmatprep.subr.bf16.mxu0 0
        %2823 = vmatpush2.bf16.msra.mxu0 0
        %2824 = vmatprep.subr.bf16.mxu0 0
        %2825 = vmatpush2.bf16.msra.mxu0 0
        %2826 = vmatprep.subr.bf16.mxu0 0
        %2827 = vmatpush2.bf16.msra.mxu0 0
        %2828 = vmatprep.subr.bf16.mxu0 0
        %2829 = vmatpush2.bf16.msra.mxu0 0
        %2830 = vmatprep.subr.bf16.mxu0 0
        %2831 = vmatpush2.bf16.msra.mxu0 0
        %2832 = vmatprep.subr.bf16.mxu0 0
        %2833 = vmatpush2.bf16.msra.mxu0 0
        %2834 = vmatprep.subr.bf16.mxu0 0
        %2835 = vmatpush2.bf16.msra.mxu0 0
        %2836 = vmatprep.subr.bf16.mxu0 0
        %2837 = vmatpush2.bf16.msra.mxu0 0
        %2838 = vmatprep.mubr.bf16.mxu0 0
        %2839 = vmatmul.mubr.bf16.gmra.mxu0 %v2804
        %v2840 = vpop.f32.mrf.mxu0
        %v2841 = vadd.f32 0.0, %v2840
        %v2842 = vpop.f32.mrf.mxu0
        %v2843 = vpop.f32.mrf.mxu0
        %v2844 = vpop.f32.mrf.mxu0
        %2845 = vdwg.mxu0
        %v2850 = vunpack.c.l.b16 %v2262
        %v2851 = vunpack.c.l.b16 %v2263
        %v2852 = vunpack.c.l.b16 %v2264
        %v2853 = vunpack.c.l.b16 %v2265
        %v2854 = vpack.c.b16 %v2851, %v2850
        %v2855 = vpack.c.b16 %v2853, %v2852
        %v2859 = vsel %vm2564, %v2674, 0
        %2861 = vmatprep.subr.bf16.mxu0 0
        %2862 = vmatpush1.bf16.msra.mxu0 0
        %2863 = vmatprep.subr.bf16.mxu0 0
        %2864 = vmatpush1.bf16.msra.mxu0 0
        %2865 = vmatprep.subr.bf16.mxu0 0
        %2866 = vmatpush1.bf16.msra.mxu0 0
        %2867 = vmatprep.subr.bf16.mxu0 0
        %2868 = vmatpush1.bf16.msra.mxu0 0
        %2869 = vmatprep.subr.bf16.mxu0 0
        %2870 = vmatpush1.bf16.msra.mxu0 0
        %2871 = vmatprep.subr.bf16.mxu0 0
        %2872 = vmatpush1.bf16.msra.mxu0 0
        %2873 = vmatprep.subr.bf16.mxu0 0
        %2874 = vmatpush1.bf16.msra.mxu0 %v2855
        %2875 = vmatprep.subr.bf16.mxu0 0
        %2876 = vmatpush1.bf16.msra.mxu0 %v2854
        %2877 = vmatprep.subr.bf16.mxu0 0
        %2878 = vmatpush2.bf16.msra.mxu0 0
        %2879 = vmatprep.subr.bf16.mxu0 0
        %2880 = vmatpush2.bf16.msra.mxu0 0
        %2881 = vmatprep.subr.bf16.mxu0 0
        %2882 = vmatpush2.bf16.msra.mxu0 0
        %2883 = vmatprep.subr.bf16.mxu0 0
        %2884 = vmatpush2.bf16.msra.mxu0 0
        %2885 = vmatprep.subr.bf16.mxu0 0
        %2886 = vmatpush2.bf16.msra.mxu0 0
        %2887 = vmatprep.subr.bf16.mxu0 0
        %2888 = vmatpush2.bf16.msra.mxu0 0
        %2889 = vmatprep.subr.bf16.mxu0 0
        %2890 = vmatpush2.bf16.msra.mxu0 0
        %2891 = vmatprep.subr.bf16.mxu0 0
        %2892 = vmatpush2.bf16.msra.mxu0 0
        %2893 = vmatprep.mubr.bf16.mxu0 0
        %2894 = vmatmul.mubr.bf16.gmra.mxu0 %v2859
        %v2895 = vpop.f32.mrf.mxu0
        %v2896 = vadd.f32 %v2841, %v2895
        %v2897 = vpop.f32.mrf.mxu0
        %v2898 = vpop.f32.mrf.mxu0
        %v2899 = vpop.f32.mrf.mxu0
        %2900 = vdwg.mxu0
        %2901 = vrot.lane.b32.xlu0 %v2562, 64
        %v2902 = vpop.permute.xlu0 %2901
        %2903 = vrot.lane.b32.xlu0 %v2563, 64
        %v2904 = vpop.permute.xlu0 %2903
        %v2906 = vsel %vm2564, %v2902, 0
        %v2909 = vsel %vm2564, %v2904, 0
        %2911 = vmatprep.subr.bf16.mxu0 0
        %2912 = vmatpush1.bf16.xpose.msra.mxu0 0
        %2913 = vmatprep.subr.bf16.mxu0 0
        %2914 = vmatpush1.bf16.xpose.msra.mxu0 0
        %2915 = vmatprep.subr.bf16.mxu0 0
        %2916 = vmatpush1.bf16.xpose.msra.mxu0 0
        %2917 = vmatprep.subr.bf16.mxu0 0
        %2918 = vmatpush1.bf16.xpose.msra.mxu0 0
        %2919 = vmatprep.subr.bf16.mxu0 0
        %2920 = vmatpush1.bf16.xpose.msra.mxu0 0
        %2921 = vmatprep.subr.bf16.mxu0 0
        %2922 = vmatpush1.bf16.xpose.msra.mxu0 0
        %2923 = vmatprep.subr.bf16.mxu0 0
        %2924 = vmatpush1.bf16.xpose.msra.mxu0 0
        %2925 = vmatprep.subr.bf16.mxu0 0
        %2926 = vmatpush1.bf16.xpose.msra.mxu0 %v2909
        %2927 = vmatprep.subr.bf16.mxu0 0
        %2928 = vmatpush2.bf16.xpose.msra.mxu0 0
        %2929 = vmatprep.subr.bf16.mxu0 0
        %2930 = vmatpush2.bf16.xpose.msra.mxu0 0
        %2931 = vmatprep.subr.bf16.mxu0 0
        %2932 = vmatpush2.bf16.xpose.msra.mxu0 0
        %2933 = vmatprep.subr.bf16.mxu0 0
        %2934 = vmatpush2.bf16.xpose.msra.mxu0 0
        %2935 = vmatprep.subr.bf16.mxu0 0
        %2936 = vmatpush2.bf16.xpose.msra.mxu0 0
        %2937 = vmatprep.subr.bf16.mxu0 0
        %2938 = vmatpush2.bf16.xpose.msra.mxu0 0
        %2939 = vmatprep.subr.bf16.mxu0 0
        %2940 = vmatpush2.bf16.xpose.msra.mxu0 0
        %2941 = vmatprep.subr.bf16.mxu0 0
        %2942 = vmatpush2.bf16.xpose.msra.mxu0 0
        %2943 = vmatprep.mubr.bf16.mxu0 0
        %2944 = vmatmul.mubr.bf16.gmra.mxu0 %v2906
        %v2945 = vpop.f32.mrf.mxu0
        %v2946 = vadd.f32 0.0, %v2945
        %v2947 = vpop.f32.mrf.mxu0
        %v2948 = vpop.f32.mrf.mxu0
        %v2949 = vpop.f32.mrf.mxu0
        %2950 = vdwg.mxu0
        %v2951 = vmul.f32 %v2946, 0.17677669
        %v2952 = vadd.f32 %v2951, %v1700
        %v2953 = vsel %vm2613, %v2952, -inf
        %2954 = vmax.xlane.f32.xlu0 %v2953
        %v2955 = vpop.xlane.xlu0 %2954
        %v2956 = vsub.f32 %v2952, %v2955
        %v2957 = vmul.f32 %v2956, 1.442695
        %v2958 = vpow.pop %v2957
        %v2959 = vsel %vm2613, %v2958, 0.0
        %2960 = vadd.xlane.f32.xlu0 %v2959
        %v2961 = vpop.xlane.xlu0 %2960
        %v2962 = vrcp.pop %v2961
        %v2963 = vmul.f32 %v2958, %v2962
        %v2964 = vpack.c.bf16 %v2963, %v2963
        %2965 = vrot.lane.b32.xlu0 %v2626, 64
        %v2966 = vpop.permute.xlu0 %2965
        %v2968 = vsel %vm2613, %v2964, 0
        %v2971 = vsel %vm2630, %v2966, 0
        %2973 = vmatprep.subr.bf16.mxu0 0
        %2974 = vmatpush1.bf16.msra.mxu0 0
        %2975 = vmatprep.subr.bf16.mxu0 0
        %2976 = vmatpush1.bf16.msra.mxu0 0
        %2977 = vmatprep.subr.bf16.mxu0 0
        %2978 = vmatpush1.bf16.msra.mxu0 0
        %2979 = vmatprep.subr.bf16.mxu0 0
        %2980 = vmatpush1.bf16.msra.mxu0 0
        %2981 = vmatprep.subr.bf16.mxu0 0
        %2982 = vmatpush1.bf16.msra.mxu0 0
        %2983 = vmatprep.subr.bf16.mxu0 0
        %2984 = vmatpush1.bf16.msra.mxu0 0
        %2985 = vmatprep.subr.bf16.mxu0 0
        %2986 = vmatpush1.bf16.msra.mxu0 0
        %2987 = vmatprep.subr.bf16.mxu0 0
        %2988 = vmatpush1.bf16.msra.mxu0 %v2971
        %2989 = vmatprep.subr.bf16.mxu0 0
        %2990 = vmatpush2.bf16.msra.mxu0 0
        %2991 = vmatprep.subr.bf16.mxu0 0
        %2992 = vmatpush2.bf16.msra.mxu0 0
        %2993 = vmatprep.subr.bf16.mxu0 0
        %2994 = vmatpush2.bf16.msra.mxu0 0
        %2995 = vmatprep.subr.bf16.mxu0 0
        %2996 = vmatpush2.bf16.msra.mxu0 0
        %2997 = vmatprep.subr.bf16.mxu0 0
        %2998 = vmatpush2.bf16.msra.mxu0 0
        %2999 = vmatprep.subr.bf16.mxu0 0
        %3000 = vmatpush2.bf16.msra.mxu0 0
        %3001 = vmatprep.subr.bf16.mxu0 0
        %3002 = vmatpush2.bf16.msra.mxu0 0
        %3003 = vmatprep.subr.bf16.mxu0 0
        %3004 = vmatpush2.bf16.msra.mxu0 0
        %3005 = vmatprep.mubr.bf16.mxu0 0
        %3006 = vmatmul.mubr.bf16.gmra.mxu0 %v2968
        %v3007 = vpop.f32.mrf.mxu0
        %v3008 = vadd.f32 0.0, %v3007
        %v3009 = vpop.f32.mrf.mxu0
        %v3010 = vpop.f32.mrf.mxu0
        %v3011 = vpop.f32.mrf.mxu0
        %3012 = vdwg.mxu0
        %v3013 = vpack.c.bf16 %v3008, %v3008
        %v3018 = vunpack.c.l.b16 %v2270
        %v3019 = vunpack.c.l.b16 %v2271
        %v3020 = vunpack.c.l.b16 %v2272
        %v3021 = vunpack.c.l.b16 %v2273
        %v3022 = vpack.c.b16 %v3019, %v3018
        %v3023 = vpack.c.b16 %v3021, %v3020
        %v3027 = vsel %vm2564, %v3013, 0
        %3029 = vmatprep.subr.bf16.mxu0 0
        %3030 = vmatpush1.bf16.msra.mxu0 0
        %3031 = vmatprep.subr.bf16.mxu0 0
        %3032 = vmatpush1.bf16.msra.mxu0 0
        %3033 = vmatprep.subr.bf16.mxu0 0
        %3034 = vmatpush1.bf16.msra.mxu0 0
        %3035 = vmatprep.subr.bf16.mxu0 0
        %3036 = vmatpush1.bf16.msra.mxu0 0
        %3037 = vmatprep.subr.bf16.mxu0 0
        %3038 = vmatpush1.bf16.msra.mxu0 0
        %3039 = vmatprep.subr.bf16.mxu0 0
        %3040 = vmatpush1.bf16.msra.mxu0 0
        %3041 = vmatprep.subr.bf16.mxu0 0
        %3042 = vmatpush1.bf16.msra.mxu0 %v3023
        %3043 = vmatprep.subr.bf16.mxu0 0
        %3044 = vmatpush1.bf16.msra.mxu0 %v3022
        %3045 = vmatprep.subr.bf16.mxu0 0
        %3046 = vmatpush2.bf16.msra.mxu0 0
        %3047 = vmatprep.subr.bf16.mxu0 0
        %3048 = vmatpush2.bf16.msra.mxu0 0
        %3049 = vmatprep.subr.bf16.mxu0 0
        %3050 = vmatpush2.bf16.msra.mxu0 0
        %3051 = vmatprep.subr.bf16.mxu0 0
        %3052 = vmatpush2.bf16.msra.mxu0 0
        %3053 = vmatprep.subr.bf16.mxu0 0
        %3054 = vmatpush2.bf16.msra.mxu0 0
        %3055 = vmatprep.subr.bf16.mxu0 0
        %3056 = vmatpush2.bf16.msra.mxu0 0
        %3057 = vmatprep.subr.bf16.mxu0 0
        %3058 = vmatpush2.bf16.msra.mxu0 0
        %3059 = vmatprep.subr.bf16.mxu0 0
        %3060 = vmatpush2.bf16.msra.mxu0 0
        %3061 = vmatprep.mubr.bf16.mxu0 0
        %3062 = vmatmul.mubr.bf16.gmra.mxu0 %v3027
        %v3063 = vpop.f32.mrf.mxu0
        %v3064 = vadd.f32 0.0, %v3063
        %v3065 = vpop.f32.mrf.mxu0
        %v3066 = vpop.f32.mrf.mxu0
        %v3067 = vpop.f32.mrf.mxu0
        %3068 = vdwg.mxu0
        %v3069 = vadd.f32 %v2896, %v3064
        %3070 = vrot.lane.b32.xlu0 %v2562, 32
        %v3071 = vpop.permute.xlu0 %3070
        %3072 = vrot.lane.b32.xlu0 %v2563, 32
        %v3073 = vpop.permute.xlu0 %3072
        %v3075 = vsel %vm2564, %v3071, 0
        %v3078 = vsel %vm2564, %v3073, 0
        %3080 = vmatprep.subr.bf16.mxu0 0
        %3081 = vmatpush1.bf16.xpose.msra.mxu0 0
        %3082 = vmatprep.subr.bf16.mxu0 0
        %3083 = vmatpush1.bf16.xpose.msra.mxu0 0
        %3084 = vmatprep.subr.bf16.mxu0 0
        %3085 = vmatpush1.bf16.xpose.msra.mxu0 0
        %3086 = vmatprep.subr.bf16.mxu0 0
        %3087 = vmatpush1.bf16.xpose.msra.mxu0 0
        %3088 = vmatprep.subr.bf16.mxu0 0
        %3089 = vmatpush1.bf16.xpose.msra.mxu0 0
        %3090 = vmatprep.subr.bf16.mxu0 0
        %3091 = vmatpush1.bf16.xpose.msra.mxu0 0
        %3092 = vmatprep.subr.bf16.mxu0 0
        %3093 = vmatpush1.bf16.xpose.msra.mxu0 0
        %3094 = vmatprep.subr.bf16.mxu0 0
        %3095 = vmatpush1.bf16.xpose.msra.mxu0 %v3078
        %3096 = vmatprep.subr.bf16.mxu0 0
        %3097 = vmatpush2.bf16.xpose.msra.mxu0 0
        %3098 = vmatprep.subr.bf16.mxu0 0
        %3099 = vmatpush2.bf16.xpose.msra.mxu0 0
        %3100 = vmatprep.subr.bf16.mxu0 0
        %3101 = vmatpush2.bf16.xpose.msra.mxu0 0
        %3102 = vmatprep.subr.bf16.mxu0 0
        %3103 = vmatpush2.bf16.xpose.msra.mxu0 0
        %3104 = vmatprep.subr.bf16.mxu0 0
        %3105 = vmatpush2.bf16.xpose.msra.mxu0 0
        %3106 = vmatprep.subr.bf16.mxu0 0
        %3107 = vmatpush2.bf16.xpose.msra.mxu0 0
        %3108 = vmatprep.subr.bf16.mxu0 0
        %3109 = vmatpush2.bf16.xpose.msra.mxu0 0
        %3110 = vmatprep.subr.bf16.mxu0 0
        %3111 = vmatpush2.bf16.xpose.msra.mxu0 0
        %3112 = vmatprep.mubr.bf16.mxu0 0
        %3113 = vmatmul.mubr.bf16.gmra.mxu0 %v3075
        %v3114 = vpop.f32.mrf.mxu0
        %v3115 = vadd.f32 0.0, %v3114
        %v3116 = vpop.f32.mrf.mxu0
        %v3117 = vpop.f32.mrf.mxu0
        %v3118 = vpop.f32.mrf.mxu0
        %3119 = vdwg.mxu0
        %v3120 = vmul.f32 %v3115, 0.17677669
        %v3121 = vadd.f32 %v3120, %v1700
        %v3122 = vsel %vm2613, %v3121, -inf
        %3123 = vmax.xlane.f32.xlu0 %v3122
        %v3124 = vpop.xlane.xlu0 %3123
        %v3125 = vsub.f32 %v3121, %v3124
        %v3126 = vmul.f32 %v3125, 1.442695
        %v3127 = vpow.pop %v3126
        %v3128 = vsel %vm2613, %v3127, 0.0
        %3129 = vadd.xlane.f32.xlu0 %v3128
        %v3130 = vpop.xlane.xlu0 %3129
        %v3131 = vrcp.pop %v3130
        %v3132 = vmul.f32 %v3127, %v3131
        %v3133 = vpack.c.bf16 %v3132, %v3132
        %3134 = vrot.lane.b32.xlu0 %v2626, 32
        %v3135 = vpop.permute.xlu0 %3134
        %v3137 = vsel %vm2613, %v3133, 0
        %v3140 = vsel %vm2630, %v3135, 0
        %3142 = vmatprep.subr.bf16.mxu0 0
        %3143 = vmatpush1.bf16.msra.mxu0 0
        %3144 = vmatprep.subr.bf16.mxu0 0
        %3145 = vmatpush1.bf16.msra.mxu0 0
        %3146 = vmatprep.subr.bf16.mxu0 0
        %3147 = vmatpush1.bf16.msra.mxu0 0
        %3148 = vmatprep.subr.bf16.mxu0 0
        %3149 = vmatpush1.bf16.msra.mxu0 0
        %3150 = vmatprep.subr.bf16.mxu0 0
        %3151 = vmatpush1.bf16.msra.mxu0 0
        %3152 = vmatprep.subr.bf16.mxu0 0
        %3153 = vmatpush1.bf16.msra.mxu0 0
        %3154 = vmatprep.subr.bf16.mxu0 0
        %3155 = vmatpush1.bf16.msra.mxu0 0
        %3156 = vmatprep.subr.bf16.mxu0 0
        %3157 = vmatpush1.bf16.msra.mxu0 %v3140
        %3158 = vmatprep.subr.bf16.mxu0 0
        %3159 = vmatpush2.bf16.msra.mxu0 0
        %3160 = vmatprep.subr.bf16.mxu0 0
        %3161 = vmatpush2.bf16.msra.mxu0 0
        %3162 = vmatprep.subr.bf16.mxu0 0
        %3163 = vmatpush2.bf16.msra.mxu0 0
        %3164 = vmatprep.subr.bf16.mxu0 0
        %3165 = vmatpush2.bf16.msra.mxu0 0
        %3166 = vmatprep.subr.bf16.mxu0 0
        %3167 = vmatpush2.bf16.msra.mxu0 0
        %3168 = vmatprep.subr.bf16.mxu0 0
        %3169 = vmatpush2.bf16.msra.mxu0 0
        %3170 = vmatprep.subr.bf16.mxu0 0
        %3171 = vmatpush2.bf16.msra.mxu0 0
        %3172 = vmatprep.subr.bf16.mxu0 0
        %3173 = vmatpush2.bf16.msra.mxu0 0
        %3174 = vmatprep.mubr.bf16.mxu0 0
        %3175 = vmatmul.mubr.bf16.gmra.mxu0 %v3137
        %v3176 = vpop.f32.mrf.mxu0
        %v3177 = vadd.f32 0.0, %v3176
        %v3178 = vpop.f32.mrf.mxu0
        %v3179 = vpop.f32.mrf.mxu0
        %v3180 = vpop.f32.mrf.mxu0
        %3181 = vdwg.mxu0
        %v3182 = vpack.c.bf16 %v3177, %v3177
        %v3187 = vunpack.c.l.b16 %v2274
        %v3188 = vunpack.c.l.b16 %v2275
        %v3189 = vunpack.c.l.b16 %v2276
        %v3190 = vunpack.c.l.b16 %v2277
        %v3191 = vpack.c.b16 %v3188, %v3187
        %v3192 = vpack.c.b16 %v3190, %v3189
        %v3196 = vsel %vm2564, %v3182, 0
        %3198 = vmatprep.subr.bf16.mxu0 0
        %3199 = vmatpush1.bf16.msra.mxu0 0
        %3200 = vmatprep.subr.bf16.mxu0 0
        %3201 = vmatpush1.bf16.msra.mxu0 0
        %3202 = vmatprep.subr.bf16.mxu0 0
        %3203 = vmatpush1.bf16.msra.mxu0 0
        %3204 = vmatprep.subr.bf16.mxu0 0
        %3205 = vmatpush1.bf16.msra.mxu0 0
        %3206 = vmatprep.subr.bf16.mxu0 0
        %3207 = vmatpush1.bf16.msra.mxu0 0
        %3208 = vmatprep.subr.bf16.mxu0 0
        %3209 = vmatpush1.bf16.msra.mxu0 0
        %3210 = vmatprep.subr.bf16.mxu0 0
        %3211 = vmatpush1.bf16.msra.mxu0 %v3192
        %3212 = vmatprep.subr.bf16.mxu0 0
        %3213 = vmatpush1.bf16.msra.mxu0 %v3191
        %3214 = vmatprep.subr.bf16.mxu0 0
        %3215 = vmatpush2.bf16.msra.mxu0 0
        %3216 = vmatprep.subr.bf16.mxu0 0
        %3217 = vmatpush2.bf16.msra.mxu0 0
        %3218 = vmatprep.subr.bf16.mxu0 0
        %3219 = vmatpush2.bf16.msra.mxu0 0
        %3220 = vmatprep.subr.bf16.mxu0 0
        %3221 = vmatpush2.bf16.msra.mxu0 0
        %3222 = vmatprep.subr.bf16.mxu0 0
        %3223 = vmatpush2.bf16.msra.mxu0 0
        %3224 = vmatprep.subr.bf16.mxu0 0
        %3225 = vmatpush2.bf16.msra.mxu0 0
        %3226 = vmatprep.subr.bf16.mxu0 0
        %3227 = vmatpush2.bf16.msra.mxu0 0
        %3228 = vmatprep.subr.bf16.mxu0 0
        %3229 = vmatpush2.bf16.msra.mxu0 0
        %3230 = vmatprep.mubr.bf16.mxu0 0
        %3231 = vmatmul.mubr.bf16.gmra.mxu0 %v3196
        %v3232 = vpop.f32.mrf.mxu0
        %v3233 = vadd.f32 0.0, %v3232
        %v3234 = vpop.f32.mrf.mxu0
        %v3235 = vpop.f32.mrf.mxu0
        %v3236 = vpop.f32.mrf.mxu0
        %3237 = vdwg.mxu0
        %v3238 = vadd.f32 %v3069, %v3233
        %v3240 = vlaneseq
        %v3241 = vshrl.u32 %v3240, 7
        %v3242 = vsub.s32 0, %v3241
        %v3243 = vrot.slane %v2278, %v3242
        %v3245 = vadd.f32 %v3238, %v3243
        %v3246 = vadd.f32 %v2183, %v3245
        %v3247 = vld [vmem:[#allocation42] sm:$0x1]
        %v3248 = vld [vmem:[#allocation40] sm:$0x1]
        %3249 = vadd.xlane.f32.xlu0 %v3246
        %v3250 = vpop.xlane.xlu0 %3249
        %v3251 = vmul.f32 %v3250, %v1817
        %v3252 = vsub.f32 %v3246, %v3251
        %v3253 = vmul.f32 %v3252, %v3252
        %3254 = vadd.xlane.f32.xlu0 %v3253
        %v3255 = vpop.xlane.xlu0 %3254
        %v3256 = vmul.f32 %v3255, %v1817
        %v3257 = vadd.f32 %v3256, 1e-05
        %v3258 = vrsqrt.pop %v3257
        %v3259 = vmul.f32 %v3252, %v3258
        %v3261 = vlaneseq
        %v3262 = vshrl.u32 %v3261, 7
        %v3263 = vsub.s32 0, %v3262
        %v3264 = vrot.slane %v3247, %v3263
        %v3266 = vmul.f32 %v3259, %v3264
        %v3268 = vlaneseq
        %v3269 = vshrl.u32 %v3268, 7
        %v3270 = vsub.s32 0, %v3269
        %v3271 = vrot.slane %v3248, %v3270
        %v3273 = vadd.f32 %v3266, %v3271
        %v3274 = vld [vmem:[#allocation21] sm:$0xff]
        %v3275 = vld [vmem:[#allocation21 + $0x8] sm:$0xff]
        %v3276 = vld [vmem:[#allocation21 + $0x10] sm:$0xff]
        %v3277 = vld [vmem:[#allocation21 + $0x18] sm:$0xff]
        %v3278 = vld [vmem:[#allocation21 + $0x20] sm:$0xff]
        %v3279 = vld [vmem:[#allocation21 + $0x28] sm:$0xff]
        %v3280 = vld [vmem:[#allocation21 + $0x30] sm:$0xff]
        %v3281 = vld [vmem:[#allocation21 + $0x38] sm:$0xff]
        %v3282 = vld [vmem:[#allocation21 + $0x40] sm:$0xff]
        %v3283 = vld [vmem:[#allocation21 + $0x48] sm:$0xff]
        %v3284 = vld [vmem:[#allocation21 + $0x50] sm:$0xff]
        %v3285 = vld [vmem:[#allocation21 + $0x58] sm:$0xff]
        %v3286 = vld [vmem:[#allocation21 + $0x60] sm:$0xff]
        %v3287 = vld [vmem:[#allocation21 + $0x68] sm:$0xff]
        %v3288 = vld [vmem:[#allocation21 + $0x70] sm:$0xff]
        %v3289 = vld [vmem:[#allocation21 + $0x78] sm:$0xff]
        %v3290 = vld [vmem:[#allocation19] sm:$0x3]
        %v3291 = vld [vmem:[%s27] sm:$0x1f]
        %v3292 = vld [vmem:[#allocation18] sm:$0x1]
        %v3293 = vld [vmem:[#allocation16] sm:$0x1]
        %v3294 = vld [vmem:[#allocation15] sm:$0x1]
        %v3295 = vld [vmem:[#allocation24] sm:$0xf]
        %v3296 = vld [vmem:[#allocation24 + $0x4] sm:$0xf]
        %v3297 = vld [vmem:[#allocation24 + $0x8] sm:$0xf]
        %v3298 = vld [vmem:[#allocation24 + $0xc] sm:$0xf]
        %v3299 = vld [vmem:[#allocation24 + $0x10] sm:$0xf]
        %v3300 = vld [vmem:[#allocation24 + $0x14] sm:$0xf]
        %v3301 = vld [vmem:[#allocation24 + $0x18] sm:$0xf]
        %v3302 = vld [vmem:[#allocation24 + $0x1c] sm:$0xf]
        %v3303 = vld [vmem:[#allocation24 + $0x20] sm:$0xf]
        %v3304 = vld [vmem:[#allocation24 + $0x24] sm:$0xf]
        %v3305 = vld [vmem:[#allocation24 + $0x28] sm:$0xf]
        %v3306 = vld [vmem:[#allocation24 + $0x2c] sm:$0xf]
        %v3307 = vld [vmem:[#allocation24 + $0x30] sm:$0xf]
        %v3308 = vld [vmem:[#allocation24 + $0x34] sm:$0xf]
        %v3309 = vld [vmem:[#allocation24 + $0x38] sm:$0xf]
        %v3310 = vld [vmem:[#allocation24 + $0x3c] sm:$0xf]
        %v3311 = vld [vmem:[#allocation22] sm:$0x1]
        %v3312 = vpack.c.bf16 %v3273, %v3273
        %v3314 = vlaneseq
        %v3315 = vshrl.u32 %v3314, 7
        %v3316 = vsub.s32 0, %v3315
        %v3317 = vrot.slane %v3290, %v3316
        %v3318 = vlaneseq
        %v3319 = vshrl.u32 %v3318, 7
        %v3320 = vsub.s32 1, %v3319
        %v3321 = vrot.slane %v3290, %v3320
        %v3340 = vunpack.c.l.b16 %v3274
        %v3341 = vunpack.c.h.b16 %v3274
        %v3342 = vunpack.c.l.b16 %v3275
        %v3343 = vunpack.c.h.b16 %v3275
        %v3344 = vunpack.c.l.b16 %v3276
        %v3345 = vunpack.c.h.b16 %v3276
        %v3346 = vunpack.c.l.b16 %v3277
        %v3347 = vunpack.c.h.b16 %v3277
        %v3348 = vunpack.c.l.b16 %v3278
        %v3349 = vunpack.c.h.b16 %v3278
        %v3350 = vunpack.c.l.b16 %v3279
        %v3351 = vunpack.c.h.b16 %v3279
        %v3352 = vunpack.c.l.b16 %v3280
        %v3353 = vunpack.c.h.b16 %v3280
        %v3354 = vunpack.c.l.b16 %v3281
        %v3355 = vunpack.c.h.b16 %v3281
        %v3356 = vunpack.c.l.b16 %v3282
        %v3357 = vunpack.c.h.b16 %v3282
        %v3358 = vunpack.c.l.b16 %v3283
        %v3359 = vunpack.c.h.b16 %v3283
        %v3360 = vunpack.c.l.b16 %v3284
        %v3361 = vunpack.c.h.b16 %v3284
        %v3362 = vunpack.c.l.b16 %v3285
        %v3363 = vunpack.c.h.b16 %v3285
        %v3364 = vunpack.c.l.b16 %v3286
        %v3365 = vunpack.c.h.b16 %v3286
        %v3366 = vunpack.c.l.b16 %v3287
        %v3367 = vunpack.c.h.b16 %v3287
        %v3368 = vunpack.c.l.b16 %v3288
        %v3369 = vunpack.c.h.b16 %v3288
        %v3370 = vunpack.c.l.b16 %v3289
        %v3371 = vunpack.c.h.b16 %v3289
        %v3372 = vpack.c.b16 %v3342, %v3340
        %v3373 = vpack.c.b16 %v3343, %v3341
        %v3374 = vpack.c.b16 %v3346, %v3344
        %v3375 = vpack.c.b16 %v3347, %v3345
        %v3376 = vpack.c.b16 %v3350, %v3348
        %v3377 = vpack.c.b16 %v3351, %v3349
        %v3378 = vpack.c.b16 %v3354, %v3352
        %v3379 = vpack.c.b16 %v3355, %v3353
        %v3380 = vpack.c.b16 %v3358, %v3356
        %v3381 = vpack.c.b16 %v3359, %v3357
        %v3382 = vpack.c.b16 %v3362, %v3360
        %v3383 = vpack.c.b16 %v3363, %v3361
        %v3384 = vpack.c.b16 %v3366, %v3364
        %v3385 = vpack.c.b16 %v3367, %v3365
        %v3386 = vpack.c.b16 %v3370, %v3368
        %v3387 = vpack.c.b16 %v3371, %v3369
        %3404 = vmatprep.subr.bf16.mxu0 %v3387
        %3405 = vmatpush1.bf16.msra.mxu0 %v3386
        %3406 = vmatprep.subr.bf16.mxu0 %v3385
        %3407 = vmatpush1.bf16.msra.mxu0 %v3384
        %3408 = vmatprep.subr.bf16.mxu0 %v3383
        %3409 = vmatpush1.bf16.msra.mxu0 %v3382
        %3410 = vmatprep.subr.bf16.mxu0 %v3381
        %3411 = vmatpush1.bf16.msra.mxu0 %v3380
        %3412 = vmatprep.subr.bf16.mxu0 %v3379
        %3413 = vmatpush1.bf16.msra.mxu0 %v3378
        %3414 = vmatprep.subr.bf16.mxu0 %v3377
        %3415 = vmatpush1.bf16.msra.mxu0 %v3376
        %3416 = vmatprep.subr.bf16.mxu0 %v3375
        %3417 = vmatpush1.bf16.msra.mxu0 %v3374
        %3418 = vmatprep.subr.bf16.mxu0 %v3373
        %3419 = vmatpush1.bf16.msra.mxu0 %v3372
        %3420 = vmatprep.subr.bf16.mxu0 0
        %3421 = vmatpush2.bf16.msra.mxu0 0
        %3422 = vmatprep.subr.bf16.mxu0 0
        %3423 = vmatpush2.bf16.msra.mxu0 0
        %3424 = vmatprep.subr.bf16.mxu0 0
        %3425 = vmatpush2.bf16.msra.mxu0 0
        %3426 = vmatprep.subr.bf16.mxu0 0
        %3427 = vmatpush2.bf16.msra.mxu0 0
        %3428 = vmatprep.subr.bf16.mxu0 0
        %3429 = vmatpush2.bf16.msra.mxu0 0
        %3430 = vmatprep.subr.bf16.mxu0 0
        %3431 = vmatpush2.bf16.msra.mxu0 0
        %3432 = vmatprep.subr.bf16.mxu0 0
        %3433 = vmatpush2.bf16.msra.mxu0 0
        %3434 = vmatprep.subr.bf16.mxu0 0
        %3435 = vmatpush2.bf16.msra.mxu0 0
        %3436 = vmatprep.mubr.bf16.mxu0 0
        %3437 = vmatmul.mubr.bf16.gmra.mxu0 %v3312
        %v3438 = vpop.f32.mrf.mxu0
        %v3439 = vadd.f32 %v3317, %v3438
        %v3440 = vpop.f32.mrf.mxu0
        %v3441 = vadd.f32 %v3321, %v3440
        %v3442 = vpop.f32.mrf.mxu0
        %v3443 = vpop.f32.mrf.mxu0
        %3444 = vdwg.mxu0
        %v3445 = vsub.f32 0.0, %v3441
        %v3446 = vmul.f32 %v3445, 1.442695
        %v3447 = vpow.pop %v3446
        %v3448 = vadd.f32 %v3447, 1.0
        %v3449 = vrcp.pop %v3448
        %v3450 = vmul.f32 1.0, %v3449
        %v3451 = vmul.f32 %v3439, %v3450
        %v3452 = vsel %vm1696, 1, 0
        %vm3453 = vcmp.eq.s32.totalorder %v3452, 1
        %v3454 = vsel %vm3453, %v3451, 0.0
        %v3455 = vlaneseq
        %v3456 = vshrl.u32 %v3455, 7
        %v3457 = vsub.s32 2, %v3456
        %v3458 = vrot.slane %v3291, %v3457
        %v3459 = vmul.f32 %v3454, %v3458
        %v3460 = vrot.slane %v3454, 6
        %v3461 = vadd.s32 %v1694, 4294967294
        %vm3462 = vcmp.ge.s32.totalorder %v3461, 0
        %vm3463 = vcmp.lt.s32.totalorder %v3461, 8
        %vm3464 = vmand %vm3462, %vm3463
        %v3465 = vsel %vm3464, 1, 0
        %vm3466 = vcmp.eq.s32.totalorder %v3465, 1
        %v3467 = vsel %vm3466, %v3460, 0.0
        %v3468 = vlaneseq
        %v3469 = vshrl.u32 %v3468, 7
        %v3470 = vsub.s32 0, %v3469
        %v3471 = vrot.slane %v3291, %v3470
        %v3472 = vmul.f32 %v3467, %v3471
        %v3473 = vadd.f32 %v3459, %v3472
        %v3474 = vrot.slane %v3454, 7
        %v3475 = vadd.s32 %v1694, 4294967295
        %vm3476 = vcmp.ge.s32.totalorder %v3475, 0
        %vm3477 = vcmp.lt.s32.totalorder %v3475, 8
        %vm3478 = vmand %vm3476, %vm3477
        %v3479 = vsel %vm3478, 1, 0
        %vm3480 = vcmp.eq.s32.totalorder %v3479, 1
        %v3481 = vsel %vm3480, %v3474, 0.0
        %v3482 = vlaneseq
        %v3483 = vshrl.u32 %v3482, 7
        %v3484 = vsub.s32 1, %v3483
        %v3485 = vrot.slane %v3291, %v3484
        %v3486 = vmul.f32 %v3481, %v3485
        %v3487 = vadd.f32 %v3473, %v3486
        %v3488 = vrot.slane %v3454, 1
        %v3489 = vadd.s32 %v1694, 1
        %vm3490 = vcmp.ge.s32.totalorder %v3489, 0
        %vm3491 = vcmp.lt.s32.totalorder %v3489, 8
        %vm3492 = vmand %vm3490, %vm3491
        %v3493 = vsel %vm3492, 1, 0
        %vm3494 = vcmp.eq.s32.totalorder %v3493, 1
        %v3495 = vsel %vm3494, %v3488, 0.0
        %v3496 = vlaneseq
        %v3497 = vshrl.u32 %v3496, 7
        %v3498 = vsub.s32 3, %v3497
        %v3499 = vrot.slane %v3291, %v3498
        %v3500 = vmul.f32 %v3495, %v3499
        %v3501 = vadd.f32 %v3487, %v3500
        %v3502 = vrot.slane %v3454, 2
        %v3503 = vadd.s32 %v1694, 2
        %vm3504 = vcmp.ge.s32.totalorder %v3503, 0
        %vm3505 = vcmp.lt.s32.totalorder %v3503, 8
        %vm3506 = vmand %vm3504, %vm3505
        %v3507 = vsel %vm3506, 1, 0
        %vm3508 = vcmp.eq.s32.totalorder %v3507, 1
        %v3509 = vsel %vm3508, %v3502, 0.0
        %v3510 = vlaneseq
        %v3511 = vshrl.u32 %v3510, 7
        %v3512 = vsub.s32 4, %v3511
        %v3513 = vrot.slane %v3291, %v3512
        %v3514 = vmul.f32 %v3509, %v3513
        %v3515 = vadd.f32 %v3501, %v3514
        %v3517 = vlaneseq
        %v3518 = vshrl.u32 %v3517, 7
        %v3519 = vsub.s32 0, %v3518
        %v3520 = vrot.slane %v3292, %v3519
        %v3522 = vadd.f32 %v3515, %v3520
        %v3524 = vlaneseq
        %v3525 = vshrl.u32 %v3524, 7
        %v3526 = vsub.s32 0, %v3525
        %v3527 = vrot.slane %v3293, %v3526
        %v3529 = vmul.f32 %v3522, %v3527
        %v3531 = vlaneseq
        %v3532 = vshrl.u32 %v3531, 7
        %v3533 = vsub.s32 0, %v3532
        %v3534 = vrot.slane %v3294, %v3533
        %v3536 = vadd.f32 %v3529, %v3534
        %v3537 = vsub.f32 0.0, %v3536
        %v3538 = vmul.f32 %v3537, 1.442695
        %v3539 = vpow.pop %v3538
        %v3540 = vadd.f32 %v3539, 1.0
        %v3541 = vrcp.pop %v3540
        %v3542 = vmul.f32 1.0, %v3541
        %v3543 = vmul.f32 %v3536, %v3542
        %v3544 = vpack.c.bf16 %v3543, %v3543
        %v3546 = vlaneseq
        %v3547 = vshrl.u32 %v3546, 7
        %v3548 = vsub.s32 0, %v3547
        %v3549 = vrot.slane %v3311, %v3548
        %v3567 = vunpack.c.l.b16 %v3295
        %v3568 = vunpack.c.l.b16 %v3296
        %v3569 = vunpack.c.l.b16 %v3297
        %v3570 = vunpack.c.l.b16 %v3298
        %v3571 = vunpack.c.l.b16 %v3299
        %v3572 = vunpack.c.l.b16 %v3300
        %v3573 = vunpack.c.l.b16 %v3301
        %v3574 = vunpack.c.l.b16 %v3302
        %v3575 = vunpack.c.l.b16 %v3303
        %v3576 = vunpack.c.l.b16 %v3304
        %v3577 = vunpack.c.l.b16 %v3305
        %v3578 = vunpack.c.l.b16 %v3306
        %v3579 = vunpack.c.l.b16 %v3307
        %v3580 = vunpack.c.l.b16 %v3308
        %v3581 = vunpack.c.l.b16 %v3309
        %v3582 = vunpack.c.l.b16 %v3310
        %v3583 = vpack.c.b16 %v3568, %v3567
        %v3584 = vpack.c.b16 %v3570, %v3569
        %v3585 = vpack.c.b16 %v3572, %v3571
        %v3586 = vpack.c.b16 %v3574, %v3573
        %v3587 = vpack.c.b16 %v3576, %v3575
        %v3588 = vpack.c.b16 %v3578, %v3577
        %v3589 = vpack.c.b16 %v3580, %v3579
        %v3590 = vpack.c.b16 %v3582, %v3581
        %3599 = vmatprep.subr.bf16.mxu0 0
        %3600 = vmatpush1.bf16.msra.mxu0 %v3590
        %3601 = vmatprep.subr.bf16.mxu0 0
        %3602 = vmatpush1.bf16.msra.mxu0 %v3589
        %3603 = vmatprep.subr.bf16.mxu0 0
        %3604 = vmatpush1.bf16.msra.mxu0 %v3588
        %3605 = vmatprep.subr.bf16.mxu0 0
        %3606 = vmatpush1.bf16.msra.mxu0 %v3587
        %3607 = vmatprep.subr.bf16.mxu0 0
        %3608 = vmatpush1.bf16.msra.mxu0 %v3586
        %3609 = vmatprep.subr.bf16.mxu0 0
        %3610 = vmatpush1.bf16.msra.mxu0 %v3585
        %3611 = vmatprep.subr.bf16.mxu0 0
        %3612 = vmatpush1.bf16.msra.mxu0 %v3584
        %3613 = vmatprep.subr.bf16.mxu0 0
        %3614 = vmatpush1.bf16.msra.mxu0 %v3583
        %3615 = vmatprep.subr.bf16.mxu0 0
        %3616 = vmatpush2.bf16.msra.mxu0 0
        %3617 = vmatprep.subr.bf16.mxu0 0
        %3618 = vmatpush2.bf16.msra.mxu0 0
        %3619 = vmatprep.subr.bf16.mxu0 0
        %3620 = vmatpush2.bf16.msra.mxu0 0
        %3621 = vmatprep.subr.bf16.mxu0 0
        %3622 = vmatpush2.bf16.msra.mxu0 0
        %3623 = vmatprep.subr.bf16.mxu0 0
        %3624 = vmatpush2.bf16.msra.mxu0 0
        %3625 = vmatprep.subr.bf16.mxu0 0
        %3626 = vmatpush2.bf16.msra.mxu0 0
        %3627 = vmatprep.subr.bf16.mxu0 0
        %3628 = vmatpush2.bf16.msra.mxu0 0
        %3629 = vmatprep.subr.bf16.mxu0 0
        %3630 = vmatpush2.bf16.msra.mxu0 0
        %3631 = vmatprep.mubr.bf16.mxu0 0
        %3632 = vmatmul.mubr.bf16.gmra.mxu0 %v3544
        %v3633 = vpop.f32.mrf.mxu0
        %v3634 = vadd.f32 %v3549, %v3633
        %v3635 = vpop.f32.mrf.mxu0
        %v3636 = vpop.f32.mrf.mxu0
        %v3637 = vpop.f32.mrf.mxu0
        %3638 = vdwg.mxu0
        %v3639 = vadd.f32 %v3246, %v3634
        %v3640 = vld [vmem:[#allocation48] sm:$0x1]
        %v3641 = vld [vmem:[#allocation46] sm:$0x1]
        %3642 = vadd.xlane.f32.xlu0 %v3639
        %v3643 = vpop.xlane.xlu0 %3642
        %v3644 = vmul.f32 %v3643, %v1817
        %v3645 = vsub.f32 %v3639, %v3644
        %v3646 = vmul.f32 %v3645, %v3645
        %3647 = vadd.xlane.f32.xlu0 %v3646
        %v3648 = vpop.xlane.xlu0 %3647
        %v3649 = vmul.f32 %v3648, %v1817
        %v3650 = vadd.f32 %v3649, 1e-05
        %v3651 = vrsqrt.pop %v3650
        %v3652 = vmul.f32 %v3645, %v3651
        %v3654 = vlaneseq
        %v3655 = vshrl.u32 %v3654, 7
        %v3656 = vsub.s32 0, %v3655
        %v3657 = vrot.slane %v3640, %v3656
        %v3659 = vmul.f32 %v3652, %v3657
        %v3661 = vlaneseq
        %v3662 = vshrl.u32 %v3661, 7
        %v3663 = vsub.s32 0, %v3662
        %v3664 = vrot.slane %v3641, %v3663
        %v3666 = vadd.f32 %v3659, %v3664
        %v3667 = vld [vmem:[#allocation34] sm:$0xff]
        %v3668 = vld [vmem:[#allocation34 + $0x8] sm:$0xff]
        %v3669 = vld [vmem:[#allocation34 + $0x10] sm:$0xff]
        %v3670 = vld [vmem:[#allocation34 + $0x18] sm:$0xff]
        %v3671 = vld [vmem:[#allocation34 + $0x20] sm:$0xff]
        %v3672 = vld [vmem:[#allocation34 + $0x28] sm:$0xff]
        %v3673 = vld [vmem:[#allocation34 + $0x30] sm:$0xff]
        %v3674 = vld [vmem:[#allocation34 + $0x38] sm:$0xff]
        %v3675 = vld [vmem:[#allocation34 + $0x40] sm:$0xff]
        %v3676 = vld [vmem:[#allocation34 + $0x48] sm:$0xff]
        %v3677 = vld [vmem:[#allocation34 + $0x50] sm:$0xff]
        %v3678 = vld [vmem:[#allocation34 + $0x58] sm:$0xff]
        %v3679 = vld [vmem:[#allocation34 + $0x60] sm:$0xff]
        %v3680 = vld [vmem:[#allocation34 + $0x68] sm:$0xff]
        %v3681 = vld [vmem:[#allocation34 + $0x70] sm:$0xff]
        %v3682 = vld [vmem:[#allocation34 + $0x78] sm:$0xff]
        %v3683 = vld [vmem:[#allocation31] sm:$0x3]
        %v3684 = vld [vmem:[#allocation36] sm:$0xf]
        %v3685 = vld [vmem:[#allocation36 + $0x4] sm:$0xf]
        %v3686 = vld [vmem:[#allocation36 + $0x8] sm:$0xf]
        %v3687 = vld [vmem:[#allocation36 + $0xc] sm:$0xf]
        %v3688 = vld [vmem:[#allocation36 + $0x10] sm:$0xf]
        %v3689 = vld [vmem:[#allocation36 + $0x14] sm:$0xf]
        %v3690 = vld [vmem:[#allocation36 + $0x18] sm:$0xf]
        %v3691 = vld [vmem:[#allocation36 + $0x1c] sm:$0xf]
        %v3692 = vld [vmem:[#allocation36 + $0x20] sm:$0xf]
        %v3693 = vld [vmem:[#allocation36 + $0x24] sm:$0xf]
        %v3694 = vld [vmem:[#allocation36 + $0x28] sm:$0xf]
        %v3695 = vld [vmem:[#allocation36 + $0x2c] sm:$0xf]
        %v3696 = vld [vmem:[#allocation36 + $0x30] sm:$0xf]
        %v3697 = vld [vmem:[#allocation36 + $0x34] sm:$0xf]
        %v3698 = vld [vmem:[#allocation36 + $0x38] sm:$0xf]
        %v3699 = vld [vmem:[#allocation36 + $0x3c] sm:$0xf]
        %v3700 = vld [vmem:[#allocation36 + $0x40] sm:$0xf]
        %v3701 = vld [vmem:[#allocation36 + $0x44] sm:$0xf]
        %v3702 = vld [vmem:[#allocation36 + $0x48] sm:$0xf]
        %v3703 = vld [vmem:[#allocation36 + $0x4c] sm:$0xf]
        %v3704 = vld [vmem:[#allocation36 + $0x50] sm:$0xf]
        %v3705 = vld [vmem:[#allocation36 + $0x54] sm:$0xf]
        %v3706 = vld [vmem:[#allocation36 + $0x58] sm:$0xf]
        %v3707 = vld [vmem:[#allocation36 + $0x5c] sm:$0xf]
        %v3708 = vld [vmem:[#allocation36 + $0x60] sm:$0xf]
        %v3709 = vld [vmem:[#allocation36 + $0x64] sm:$0xf]
        %v3710 = vld [vmem:[#allocation36 + $0x68] sm:$0xf]
        %v3711 = vld [vmem:[#allocation36 + $0x6c] sm:$0xf]
        %v3712 = vld [vmem:[#allocation36 + $0x70] sm:$0xf]
        %v3713 = vld [vmem:[#allocation36 + $0x74] sm:$0xf]
        %v3714 = vld [vmem:[#allocation36 + $0x78] sm:$0xf]
        %v3715 = vld [vmem:[#allocation36 + $0x7c] sm:$0xf]
        %v3716 = vld [vmem:[#allocation33] sm:$0x1]
        %v3717 = vpack.c.bf16 %v3666, %v3666
        %v3719 = vlaneseq
        %v3720 = vshrl.u32 %v3719, 7
        %v3721 = vsub.s32 0, %v3720
        %v3722 = vrot.slane %v3683, %v3721
        %v3723 = vlaneseq
        %v3724 = vshrl.u32 %v3723, 7
        %v3725 = vsub.s32 1, %v3724
        %v3726 = vrot.slane %v3683, %v3725
        %v3745 = vunpack.c.l.b16 %v3667
        %v3746 = vunpack.c.h.b16 %v3667
        %v3747 = vunpack.c.l.b16 %v3668
        %v3748 = vunpack.c.h.b16 %v3668
        %v3749 = vunpack.c.l.b16 %v3669
        %v3750 = vunpack.c.h.b16 %v3669
        %v3751 = vunpack.c.l.b16 %v3670
        %v3752 = vunpack.c.h.b16 %v3670
        %v3753 = vunpack.c.l.b16 %v3671
        %v3754 = vunpack.c.h.b16 %v3671
        %v3755 = vunpack.c.l.b16 %v3672
        %v3756 = vunpack.c.h.b16 %v3672
        %v3757 = vunpack.c.l.b16 %v3673
        %v3758 = vunpack.c.h.b16 %v3673
        %v3759 = vunpack.c.l.b16 %v3674
        %v3760 = vunpack.c.h.b16 %v3674
        %v3761 = vunpack.c.l.b16 %v3675
        %v3762 = vunpack.c.h.b16 %v3675
        %v3763 = vunpack.c.l.b16 %v3676
        %v3764 = vunpack.c.h.b16 %v3676
        %v3765 = vunpack.c.l.b16 %v3677
        %v3766 = vunpack.c.h.b16 %v3677
        %v3767 = vunpack.c.l.b16 %v3678
        %v3768 = vunpack.c.h.b16 %v3678
        %v3769 = vunpack.c.l.b16 %v3679
        %v3770 = vunpack.c.h.b16 %v3679
        %v3771 = vunpack.c.l.b16 %v3680
        %v3772 = vunpack.c.h.b16 %v3680
        %v3773 = vunpack.c.l.b16 %v3681
        %v3774 = vunpack.c.h.b16 %v3681
        %v3775 = vunpack.c.l.b16 %v3682
        %v3776 = vunpack.c.h.b16 %v3682
        %v3777 = vpack.c.b16 %v3747, %v3745
        %v3778 = vpack.c.b16 %v3748, %v3746
        %v3779 = vpack.c.b16 %v3751, %v3749
        %v3780 = vpack.c.b16 %v3752, %v3750
        %v3781 = vpack.c.b16 %v3755, %v3753
        %v3782 = vpack.c.b16 %v3756, %v3754
        %v3783 = vpack.c.b16 %v3759, %v3757
        %v3784 = vpack.c.b16 %v3760, %v3758
        %v3785 = vpack.c.b16 %v3763, %v3761
        %v3786 = vpack.c.b16 %v3764, %v3762
        %v3787 = vpack.c.b16 %v3767, %v3765
        %v3788 = vpack.c.b16 %v3768, %v3766
        %v3789 = vpack.c.b16 %v3771, %v3769
        %v3790 = vpack.c.b16 %v3772, %v3770
        %v3791 = vpack.c.b16 %v3775, %v3773
        %v3792 = vpack.c.b16 %v3776, %v3774
        %3809 = vmatprep.subr.bf16.mxu0 %v3792
        %3810 = vmatpush1.bf16.msra.mxu0 %v3791
        %3811 = vmatprep.subr.bf16.mxu0 %v3790
        %3812 = vmatpush1.bf16.msra.mxu0 %v3789
        %3813 = vmatprep.subr.bf16.mxu0 %v3788
        %3814 = vmatpush1.bf16.msra.mxu0 %v3787
        %3815 = vmatprep.subr.bf16.mxu0 %v3786
        %3816 = vmatpush1.bf16.msra.mxu0 %v3785
        %3817 = vmatprep.subr.bf16.mxu0 %v3784
        %3818 = vmatpush1.bf16.msra.mxu0 %v3783
        %3819 = vmatprep.subr.bf16.mxu0 %v3782
        %3820 = vmatpush1.bf16.msra.mxu0 %v3781
        %3821 = vmatprep.subr.bf16.mxu0 %v3780
        %3822 = vmatpush1.bf16.msra.mxu0 %v3779
        %3823 = vmatprep.subr.bf16.mxu0 %v3778
        %3824 = vmatpush1.bf16.msra.mxu0 %v3777
        %3825 = vmatprep.subr.bf16.mxu0 0
        %3826 = vmatpush2.bf16.msra.mxu0 0
        %3827 = vmatprep.subr.bf16.mxu0 0
        %3828 = vmatpush2.bf16.msra.mxu0 0
        %3829 = vmatprep.subr.bf16.mxu0 0
        %3830 = vmatpush2.bf16.msra.mxu0 0
        %3831 = vmatprep.subr.bf16.mxu0 0
        %3832 = vmatpush2.bf16.msra.mxu0 0
        %3833 = vmatprep.subr.bf16.mxu0 0
        %3834 = vmatpush2.bf16.msra.mxu0 0
        %3835 = vmatprep.subr.bf16.mxu0 0
        %3836 = vmatpush2.bf16.msra.mxu0 0
        %3837 = vmatprep.subr.bf16.mxu0 0
        %3838 = vmatpush2.bf16.msra.mxu0 0
        %3839 = vmatprep.subr.bf16.mxu0 0
        %3840 = vmatpush2.bf16.msra.mxu0 0
        %3841 = vmatprep.mubr.bf16.mxu0 0
        %3842 = vmatmul.mubr.bf16.gmra.mxu0 %v3717
        %v3843 = vpop.f32.mrf.mxu0
        %v3844 = vadd.f32 %v3722, %v3843
        %v3845 = vpop.f32.mrf.mxu0
        %v3846 = vadd.f32 %v3726, %v3845
        %v3847 = vpop.f32.mrf.mxu0
        %v3848 = vpop.f32.mrf.mxu0
        %3849 = vdwg.mxu0
        %v3850 = vsub.f32 0.0, %v3844
        %v3851 = vsub.f32 0.0, %v3846
        %v3852 = vmul.f32 %v3850, 1.442695
        %v3853 = vpow.pop %v3852
        %v3854 = vmul.f32 %v3851, 1.442695
        %v3855 = vpow.pop %v3854
        %v3856 = vadd.f32 %v3853, 1.0
        %v3857 = vadd.f32 %v3855, 1.0
        %v3858 = vrcp.pop %v3856
        %v3859 = vmul.f32 1.0, %v3858
        %v3860 = vrcp.pop %v3857
        %v3861 = vmul.f32 1.0, %v3860
        %v3862 = vmul.f32 %v3844, %v3859
        %v3863 = vmul.f32 %v3846, %v3861
        %v3864 = vpack.c.bf16 %v3862, %v3862
        %v3865 = vpack.c.bf16 %v3863, %v3863
        %v3867 = vlaneseq
        %v3868 = vshrl.u32 %v3867, 7
        %v3869 = vsub.s32 0, %v3868
        %v3870 = vrot.slane %v3716, %v3869
        %v3904 = vunpack.c.l.b16 %v3684
        %v3905 = vunpack.c.l.b16 %v3685
        %v3906 = vunpack.c.l.b16 %v3686
        %v3907 = vunpack.c.l.b16 %v3687
        %v3908 = vunpack.c.l.b16 %v3688
        %v3909 = vunpack.c.l.b16 %v3689
        %v3910 = vunpack.c.l.b16 %v3690
        %v3911 = vunpack.c.l.b16 %v3691
        %v3912 = vunpack.c.l.b16 %v3692
        %v3913 = vunpack.c.l.b16 %v3693
        %v3914 = vunpack.c.l.b16 %v3694
        %v3915 = vunpack.c.l.b16 %v3695
        %v3916 = vunpack.c.l.b16 %v3696
        %v3917 = vunpack.c.l.b16 %v3697
        %v3918 = vunpack.c.l.b16 %v3698
        %v3919 = vunpack.c.l.b16 %v3699
        %v3920 = vunpack.c.l.b16 %v3700
        %v3921 = vunpack.c.l.b16 %v3701
        %v3922 = vunpack.c.l.b16 %v3702
        %v3923 = vunpack.c.l.b16 %v3703
        %v3924 = vunpack.c.l.b16 %v3704
        %v3925 = vunpack.c.l.b16 %v3705
        %v3926 = vunpack.c.l.b16 %v3706
        %v3927 = vunpack.c.l.b16 %v3707
        %v3928 = vunpack.c.l.b16 %v3708
        %v3929 = vunpack.c.l.b16 %v3709
        %v3930 = vunpack.c.l.b16 %v3710
        %v3931 = vunpack.c.l.b16 %v3711
        %v3932 = vunpack.c.l.b16 %v3712
        %v3933 = vunpack.c.l.b16 %v3713
        %v3934 = vunpack.c.l.b16 %v3714
        %v3935 = vunpack.c.l.b16 %v3715
        %v3936 = vpack.c.b16 %v3905, %v3904
        %v3937 = vpack.c.b16 %v3907, %v3906
        %v3938 = vpack.c.b16 %v3909, %v3908
        %v3939 = vpack.c.b16 %v3911, %v3910
        %v3940 = vpack.c.b16 %v3913, %v3912
        %v3941 = vpack.c.b16 %v3915, %v3914
        %v3942 = vpack.c.b16 %v3917, %v3916
        %v3943 = vpack.c.b16 %v3919, %v3918
        %v3944 = vpack.c.b16 %v3921, %v3920
        %v3945 = vpack.c.b16 %v3923, %v3922
        %v3946 = vpack.c.b16 %v3925, %v3924
        %v3947 = vpack.c.b16 %v3927, %v3926
        %v3948 = vpack.c.b16 %v3929, %v3928
        %v3949 = vpack.c.b16 %v3931, %v3930
        %v3950 = vpack.c.b16 %v3933, %v3932
        %v3951 = vpack.c.b16 %v3935, %v3934
        %3968 = vmatprep.subr.bf16.mxu0 0
        %3969 = vmatpush1.bf16.msra.mxu0 %v3943
        %3970 = vmatprep.subr.bf16.mxu0 0
        %3971 = vmatpush1.bf16.msra.mxu0 %v3942
        %3972 = vmatprep.subr.bf16.mxu0 0
        %3973 = vmatpush1.bf16.msra.mxu0 %v3941
        %3974 = vmatprep.subr.bf16.mxu0 0
        %3975 = vmatpush1.bf16.msra.mxu0 %v3940
        %3976 = vmatprep.subr.bf16.mxu0 0
        %3977 = vmatpush1.bf16.msra.mxu0 %v3939
        %3978 = vmatprep.subr.bf16.mxu0 0
        %3979 = vmatpush1.bf16.msra.mxu0 %v3938
        %3980 = vmatprep.subr.bf16.mxu0 0
        %3981 = vmatpush1.bf16.msra.mxu0 %v3937
        %3982 = vmatprep.subr.bf16.mxu0 0
        %3983 = vmatpush1.bf16.msra.mxu0 %v3936
        %3984 = vmatprep.subr.bf16.mxu0 0
        %3985 = vmatpush2.bf16.msra.mxu0 %v3951
        %3986 = vmatprep.subr.bf16.mxu0 0
        %3987 = vmatpush2.bf16.msra.mxu0 %v3950
        %3988 = vmatprep.subr.bf16.mxu0 0
        %3989 = vmatpush2.bf16.msra.mxu0 %v3949
        %3990 = vmatprep.subr.bf16.mxu0 0
        %3991 = vmatpush2.bf16.msra.mxu0 %v3948
        %3992 = vmatprep.subr.bf16.mxu0 0
        %3993 = vmatpush2.bf16.msra.mxu0 %v3947
        %3994 = vmatprep.subr.bf16.mxu0 0
        %3995 = vmatpush2.bf16.msra.mxu0 %v3946
        %3996 = vmatprep.subr.bf16.mxu0 0
        %3997 = vmatpush2.bf16.msra.mxu0 %v3945
        %3998 = vmatprep.subr.bf16.mxu0 0
        %3999 = vmatpush2.bf16.msra.mxu0 %v3944
        %4000 = vmatprep.mubr.bf16.mxu0 %v3865
        %4001 = vmatmul.mubr.bf16.gmra.mxu0 %v3864
        %v4002 = vpop.f32.mrf.mxu0
        %v4003 = vadd.f32 %v3870, %v4002
        %v4004 = vpop.f32.mrf.mxu0
        %v4005 = vpop.f32.mrf.mxu0
        %v4006 = vpop.f32.mrf.mxu0
        %4007 = vdwg.mxu0
        %v4008 = vmul.f32 %v4003, 0.5
        %v4009 = vadd.f32 %v3639, %v4008
        %v4010 = vld [vmem:[#allocation51] sm:$0x1]
        %v4011 = vld [vmem:[#allocation49] sm:$0x1]
        %4012 = vadd.xlane.f32.xlu0 %v4009
        %v4013 = vpop.xlane.xlu0 %4012
        %v4014 = vmul.f32 %v4013, %v1817
        %v4015 = vsub.f32 %v4009, %v4014
        %v4016 = vmul.f32 %v4015, %v4015
        %4017 = vadd.xlane.f32.xlu0 %v4016
        %v4018 = vpop.xlane.xlu0 %4017
        %v4019 = vmul.f32 %v4018, %v1817
        %v4020 = vadd.f32 %v4019, 1e-05
        %v4021 = vrsqrt.pop %v4020
        %v4022 = vmul.f32 %v4015, %v4021
        %v4024 = vlaneseq
        %v4025 = vshrl.u32 %v4024, 7
        %v4026 = vsub.s32 0, %v4025
        %v4027 = vrot.slane %v4010, %v4026
        %v4029 = vmul.f32 %v4022, %v4027
        %v4031 = vlaneseq
        %v4032 = vshrl.u32 %v4031, 7
        %v4033 = vsub.s32 0, %v4032
        %v4034 = vrot.slane %v4011, %v4033
        %v4036 = vadd.f32 %v4029, %v4034
        %s4037 = scalar_lea.vmem [#allocation45], 1
        %v4038 = vld [vmem:[%s4037] sm:$0x1]
        %s4039 = scalar_lea.vmem [#allocation43], 1
        %v4040 = vld [vmem:[%s4039] sm:$0x1]
        %4041 = vadd.xlane.f32.xlu0 %v4036
        %v4042 = vpop.xlane.xlu0 %4041
        %v4043 = vmul.f32 %v4042, %v1817
        %v4044 = vsub.f32 %v4036, %v4043
        %v4045 = vmul.f32 %v4044, %v4044
        %4046 = vadd.xlane.f32.xlu0 %v4045
        %v4047 = vpop.xlane.xlu0 %4046
        %v4048 = vmul.f32 %v4047, %v1817
        %v4049 = vadd.f32 %v4048, 1e-05
        %v4050 = vrsqrt.pop %v4049
        %v4051 = vmul.f32 %v4044, %v4050
        %v4053 = vlaneseq
        %v4054 = vshrl.u32 %v4053, 7
        %v4055 = vsub.s32 0, %v4054
        %v4056 = vrot.slane %v4038, %v4055
        %v4058 = vmul.f32 %v4051, %v4056
        %v4060 = vlaneseq
        %v4061 = vshrl.u32 %v4060, 7
        %v4062 = vsub.s32 0, %v4061
        %v4063 = vrot.slane %v4040, %v4062
        %v4065 = vadd.f32 %v4058, %v4063
        %s4066 = scalar_lea.vmem [#allocation28], 128
        %v4067 = vld [vmem:[%s4066] sm:$0xff]
        %v4068 = vld [vmem:[%s4066 + $0x8] sm:$0xff]
        %v4069 = vld [vmem:[%s4066 + $0x10] sm:$0xff]
        %v4070 = vld [vmem:[%s4066 + $0x18] sm:$0xff]
        %v4071 = vld [vmem:[%s4066 + $0x20] sm:$0xff]
        %v4072 = vld [vmem:[%s4066 + $0x28] sm:$0xff]
        %v4073 = vld [vmem:[%s4066 + $0x30] sm:$0xff]
        %v4074 = vld [vmem:[%s4066 + $0x38] sm:$0xff]
        %v4075 = vld [vmem:[%s4066 + $0x40] sm:$0xff]
        %v4076 = vld [vmem:[%s4066 + $0x48] sm:$0xff]
        %v4077 = vld [vmem:[%s4066 + $0x50] sm:$0xff]
        %v4078 = vld [vmem:[%s4066 + $0x58] sm:$0xff]
        %v4079 = vld [vmem:[%s4066 + $0x60] sm:$0xff]
        %v4080 = vld [vmem:[%s4066 + $0x68] sm:$0xff]
        %v4081 = vld [vmem:[%s4066 + $0x70] sm:$0xff]
        %v4082 = vld [vmem:[%s4066 + $0x78] sm:$0xff]
        %s4083 = scalar_lea.vmem [#allocation25], 2
        %v4084 = vld [vmem:[%s4083] sm:$0x3]
        %s4085 = scalar_lea.vmem [#allocation30], 128
        %v4086 = vld [vmem:[%s4085] sm:$0xf]
        %v4087 = vld [vmem:[%s4085 + $0x4] sm:$0xf]
        %v4088 = vld [vmem:[%s4085 + $0x8] sm:$0xf]
        %v4089 = vld [vmem:[%s4085 + $0xc] sm:$0xf]
        %v4090 = vld [vmem:[%s4085 + $0x10] sm:$0xf]
        %v4091 = vld [vmem:[%s4085 + $0x14] sm:$0xf]
        %v4092 = vld [vmem:[%s4085 + $0x18] sm:$0xf]
        %v4093 = vld [vmem:[%s4085 + $0x1c] sm:$0xf]
        %v4094 = vld [vmem:[%s4085 + $0x20] sm:$0xf]
        %v4095 = vld [vmem:[%s4085 + $0x24] sm:$0xf]
        %v4096 = vld [vmem:[%s4085 + $0x28] sm:$0xf]
        %v4097 = vld [vmem:[%s4085 + $0x2c] sm:$0xf]
        %v4098 = vld [vmem:[%s4085 + $0x30] sm:$0xf]
        %v4099 = vld [vmem:[%s4085 + $0x34] sm:$0xf]
        %v4100 = vld [vmem:[%s4085 + $0x38] sm:$0xf]
        %v4101 = vld [vmem:[%s4085 + $0x3c] sm:$0xf]
        %v4102 = vld [vmem:[%s4085 + $0x40] sm:$0xf]
        %v4103 = vld [vmem:[%s4085 + $0x44] sm:$0xf]
        %v4104 = vld [vmem:[%s4085 + $0x48] sm:$0xf]
        %v4105 = vld [vmem:[%s4085 + $0x4c] sm:$0xf]
        %v4106 = vld [vmem:[%s4085 + $0x50] sm:$0xf]
        %v4107 = vld [vmem:[%s4085 + $0x54] sm:$0xf]
        %v4108 = vld [vmem:[%s4085 + $0x58] sm:$0xf]
        %v4109 = vld [vmem:[%s4085 + $0x5c] sm:$0xf]
        %v4110 = vld [vmem:[%s4085 + $0x60] sm:$0xf]
        %v4111 = vld [vmem:[%s4085 + $0x64] sm:$0xf]
        %v4112 = vld [vmem:[%s4085 + $0x68] sm:$0xf]
        %v4113 = vld [vmem:[%s4085 + $0x6c] sm:$0xf]
        %v4114 = vld [vmem:[%s4085 + $0x70] sm:$0xf]
        %v4115 = vld [vmem:[%s4085 + $0x74] sm:$0xf]
        %v4116 = vld [vmem:[%s4085 + $0x78] sm:$0xf]
        %v4117 = vld [vmem:[%s4085 + $0x7c] sm:$0xf]
        %s4118 = scalar_lea.vmem [#allocation27], 1
        %v4119 = vld [vmem:[%s4118] sm:$0x1]
        %v4120 = vpack.c.bf16 %v4065, %v4065
        %v4122 = vlaneseq
        %v4123 = vshrl.u32 %v4122, 7
        %v4124 = vsub.s32 0, %v4123
        %v4125 = vrot.slane %v4084, %v4124
        %v4126 = vlaneseq
        %v4127 = vshrl.u32 %v4126, 7
        %v4128 = vsub.s32 1, %v4127
        %v4129 = vrot.slane %v4084, %v4128
        %v4148 = vunpack.c.l.b16 %v4067
        %v4149 = vunpack.c.h.b16 %v4067
        %v4150 = vunpack.c.l.b16 %v4068
        %v4151 = vunpack.c.h.b16 %v4068
        %v4152 = vunpack.c.l.b16 %v4069
        %v4153 = vunpack.c.h.b16 %v4069
        %v4154 = vunpack.c.l.b16 %v4070
        %v4155 = vunpack.c.h.b16 %v4070
        %v4156 = vunpack.c.l.b16 %v4071
        %v4157 = vunpack.c.h.b16 %v4071
        %v4158 = vunpack.c.l.b16 %v4072
        %v4159 = vunpack.c.h.b16 %v4072
        %v4160 = vunpack.c.l.b16 %v4073
        %v4161 = vunpack.c.h.b16 %v4073
        %v4162 = vunpack.c.l.b16 %v4074
        %v4163 = vunpack.c.h.b16 %v4074
        %v4164 = vunpack.c.l.b16 %v4075
        %v4165 = vunpack.c.h.b16 %v4075
        %v4166 = vunpack.c.l.b16 %v4076
        %v4167 = vunpack.c.h.b16 %v4076
        %v4168 = vunpack.c.l.b16 %v4077
        %v4169 = vunpack.c.h.b16 %v4077
        %v4170 = vunpack.c.l.b16 %v4078
        %v4171 = vunpack.c.h.b16 %v4078
        %v4172 = vunpack.c.l.b16 %v4079
        %v4173 = vunpack.c.h.b16 %v4079
        %v4174 = vunpack.c.l.b16 %v4080
        %v4175 = vunpack.c.h.b16 %v4080
        %v4176 = vunpack.c.l.b16 %v4081
        %v4177 = vunpack.c.h.b16 %v4081
        %v4178 = vunpack.c.l.b16 %v4082
        %v4179 = vunpack.c.h.b16 %v4082
        %v4180 = vpack.c.b16 %v4150, %v4148
        %v4181 = vpack.c.b16 %v4151, %v4149
        %v4182 = vpack.c.b16 %v4154, %v4152
        %v4183 = vpack.c.b16 %v4155, %v4153
        %v4184 = vpack.c.b16 %v4158, %v4156
        %v4185 = vpack.c.b16 %v4159, %v4157
        %v4186 = vpack.c.b16 %v4162, %v4160
        %v4187 = vpack.c.b16 %v4163, %v4161
        %v4188 = vpack.c.b16 %v4166, %v4164
        %v4189 = vpack.c.b16 %v4167, %v4165
        %v4190 = vpack.c.b16 %v4170, %v4168
        %v4191 = vpack.c.b16 %v4171, %v4169
        %v4192 = vpack.c.b16 %v4174, %v4172
        %v4193 = vpack.c.b16 %v4175, %v4173
        %v4194 = vpack.c.b16 %v4178, %v4176
        %v4195 = vpack.c.b16 %v4179, %v4177
        %4212 = vmatprep.subr.bf16.mxu0 %v4195
        %4213 = vmatpush1.bf16.msra.mxu0 %v4194
        %4214 = vmatprep.subr.bf16.mxu0 %v4193
        %4215 = vmatpush1.bf16.msra.mxu0 %v4192
        %4216 = vmatprep.subr.bf16.mxu0 %v4191
        %4217 = vmatpush1.bf16.msra.mxu0 %v4190
        %4218 = vmatprep.subr.bf16.mxu0 %v4189
        %4219 = vmatpush1.bf16.msra.mxu0 %v4188
        %4220 = vmatprep.subr.bf16.mxu0 %v4187
        %4221 = vmatpush1.bf16.msra.mxu0 %v4186
        %4222 = vmatprep.subr.bf16.mxu0 %v4185
        %4223 = vmatpush1.bf16.msra.mxu0 %v4184
        %4224 = vmatprep.subr.bf16.mxu0 %v4183
        %4225 = vmatpush1.bf16.msra.mxu0 %v4182
        %4226 = vmatprep.subr.bf16.mxu0 %v4181
        %4227 = vmatpush1.bf16.msra.mxu0 %v4180
        %4228 = vmatprep.subr.bf16.mxu0 0
        %4229 = vmatpush2.bf16.msra.mxu0 0
        %4230 = vmatprep.subr.bf16.mxu0 0
        %4231 = vmatpush2.bf16.msra.mxu0 0
        %4232 = vmatprep.subr.bf16.mxu0 0
        %4233 = vmatpush2.bf16.msra.mxu0 0
        %4234 = vmatprep.subr.bf16.mxu0 0
        %4235 = vmatpush2.bf16.msra.mxu0 0
        %4236 = vmatprep.subr.bf16.mxu0 0
        %4237 = vmatpush2.bf16.msra.mxu0 0
        %4238 = vmatprep.subr.bf16.mxu0 0
        %4239 = vmatpush2.bf16.msra.mxu0 0
        %4240 = vmatprep.subr.bf16.mxu0 0
        %4241 = vmatpush2.bf16.msra.mxu0 0
        %4242 = vmatprep.subr.bf16.mxu0 0
        %4243 = vmatpush2.bf16.msra.mxu0 0
        %4244 = vmatprep.mubr.bf16.mxu0 0
        %4245 = vmatmul.mubr.bf16.gmra.mxu0 %v4120
        %v4246 = vpop.f32.mrf.mxu0
        %v4247 = vadd.f32 %v4125, %v4246
        %v4248 = vpop.f32.mrf.mxu0
        %v4249 = vadd.f32 %v4129, %v4248
        %v4250 = vpop.f32.mrf.mxu0
        %v4251 = vpop.f32.mrf.mxu0
        %4252 = vdwg.mxu0
        %v4253 = vsub.f32 0.0, %v4247
        %v4254 = vsub.f32 0.0, %v4249
        %v4255 = vmul.f32 %v4253, 1.442695
        %v4256 = vpow.pop %v4255
        %v4257 = vmul.f32 %v4254, 1.442695
        %v4258 = vpow.pop %v4257
        %v4259 = vadd.f32 %v4256, 1.0
        %v4260 = vadd.f32 %v4258, 1.0
        %v4261 = vrcp.pop %v4259
        %v4262 = vmul.f32 1.0, %v4261
        %v4263 = vrcp.pop %v4260
        %v4264 = vmul.f32 1.0, %v4263
        %v4265 = vmul.f32 %v4247, %v4262
        %v4266 = vmul.f32 %v4249, %v4264
        %v4267 = vpack.c.bf16 %v4265, %v4265
        %v4268 = vpack.c.bf16 %v4266, %v4266
        %v4270 = vlaneseq
        %v4271 = vshrl.u32 %v4270, 7
        %v4272 = vsub.s32 0, %v4271
        %v4273 = vrot.slane %v4119, %v4272
        %v4307 = vunpack.c.l.b16 %v4086
        %v4308 = vunpack.c.l.b16 %v4087
        %v4309 = vunpack.c.l.b16 %v4088
        %v4310 = vunpack.c.l.b16 %v4089
        %v4311 = vunpack.c.l.b16 %v4090
        %v4312 = vunpack.c.l.b16 %v4091
        %v4313 = vunpack.c.l.b16 %v4092
        %v4314 = vunpack.c.l.b16 %v4093
        %v4315 = vunpack.c.l.b16 %v4094
        %v4316 = vunpack.c.l.b16 %v4095
        %v4317 = vunpack.c.l.b16 %v4096
        %v4318 = vunpack.c.l.b16 %v4097
        %v4319 = vunpack.c.l.b16 %v4098
        %v4320 = vunpack.c.l.b16 %v4099
        %v4321 = vunpack.c.l.b16 %v4100
        %v4322 = vunpack.c.l.b16 %v4101
        %v4323 = vunpack.c.l.b16 %v4102
        %v4324 = vunpack.c.l.b16 %v4103
        %v4325 = vunpack.c.l.b16 %v4104
        %v4326 = vunpack.c.l.b16 %v4105
        %v4327 = vunpack.c.l.b16 %v4106
        %v4328 = vunpack.c.l.b16 %v4107
        %v4329 = vunpack.c.l.b16 %v4108
        %v4330 = vunpack.c.l.b16 %v4109
        %v4331 = vunpack.c.l.b16 %v4110
        %v4332 = vunpack.c.l.b16 %v4111
        %v4333 = vunpack.c.l.b16 %v4112
        %v4334 = vunpack.c.l.b16 %v4113
        %v4335 = vunpack.c.l.b16 %v4114
        %v4336 = vunpack.c.l.b16 %v4115
        %v4337 = vunpack.c.l.b16 %v4116
        %v4338 = vunpack.c.l.b16 %v4117
        %v4339 = vpack.c.b16 %v4308, %v4307
        %v4340 = vpack.c.b16 %v4310, %v4309
        %v4341 = vpack.c.b16 %v4312, %v4311
        %v4342 = vpack.c.b16 %v4314, %v4313
        %v4343 = vpack.c.b16 %v4316, %v4315
        %v4344 = vpack.c.b16 %v4318, %v4317
        %v4345 = vpack.c.b16 %v4320, %v4319
        %v4346 = vpack.c.b16 %v4322, %v4321
        %v4347 = vpack.c.b16 %v4324, %v4323
        %v4348 = vpack.c.b16 %v4326, %v4325
        %v4349 = vpack.c.b16 %v4328, %v4327
        %v4350 = vpack.c.b16 %v4330, %v4329
        %v4351 = vpack.c.b16 %v4332, %v4331
        %v4352 = vpack.c.b16 %v4334, %v4333
        %v4353 = vpack.c.b16 %v4336, %v4335
        %v4354 = vpack.c.b16 %v4338, %v4337
        %4371 = vmatprep.subr.bf16.mxu0 0
        %4372 = vmatpush1.bf16.msra.mxu0 %v4346
        %4373 = vmatprep.subr.bf16.mxu0 0
        %4374 = vmatpush1.bf16.msra.mxu0 %v4345
        %4375 = vmatprep.subr.bf16.mxu0 0
        %4376 = vmatpush1.bf16.msra.mxu0 %v4344
        %4377 = vmatprep.subr.bf16.mxu0 0
        %4378 = vmatpush1.bf16.msra.mxu0 %v4343
        %4379 = vmatprep.subr.bf16.mxu0 0
        %4380 = vmatpush1.bf16.msra.mxu0 %v4342
        %4381 = vmatprep.subr.bf16.mxu0 0
        %4382 = vmatpush1.bf16.msra.mxu0 %v4341
        %4383 = vmatprep.subr.bf16.mxu0 0
        %4384 = vmatpush1.bf16.msra.mxu0 %v4340
        %4385 = vmatprep.subr.bf16.mxu0 0
        %4386 = vmatpush1.bf16.msra.mxu0 %v4339
        %4387 = vmatprep.subr.bf16.mxu0 0
        %4388 = vmatpush2.bf16.msra.mxu0 %v4354
        %4389 = vmatprep.subr.bf16.mxu0 0
        %4390 = vmatpush2.bf16.msra.mxu0 %v4353
        %4391 = vmatprep.subr.bf16.mxu0 0
        %4392 = vmatpush2.bf16.msra.mxu0 %v4352
        %4393 = vmatprep.subr.bf16.mxu0 0
        %4394 = vmatpush2.bf16.msra.mxu0 %v4351
        %4395 = vmatprep.subr.bf16.mxu0 0
        %4396 = vmatpush2.bf16.msra.mxu0 %v4350
        %4397 = vmatprep.subr.bf16.mxu0 0
        %4398 = vmatpush2.bf16.msra.mxu0 %v4349
        %4399 = vmatprep.subr.bf16.mxu0 0
        %4400 = vmatpush2.bf16.msra.mxu0 %v4348
        %4401 = vmatprep.subr.bf16.mxu0 0
        %4402 = vmatpush2.bf16.msra.mxu0 %v4347
        %4403 = vmatprep.mubr.bf16.mxu0 %v4268
        %4404 = vmatmul.mubr.bf16.gmra.mxu0 %v4267
        %v4405 = vpop.f32.mrf.mxu0
        %v4406 = vadd.f32 %v4273, %v4405
        %v4407 = vpop.f32.mrf.mxu0
        %v4408 = vpop.f32.mrf.mxu0
        %v4409 = vpop.f32.mrf.mxu0
        %4410 = vdwg.mxu0
        %v4411 = vmul.f32 %v4406, 0.5
        %v4412 = vadd.f32 %v4036, %v4411
        %s4413 = scalar_lea.vmem [#allocation39], 1
        %v4414 = vld [vmem:[%s4413] sm:$0x1]
        %s4415 = scalar_lea.vmem [#allocation37], 1
        %v4416 = vld [vmem:[%s4415] sm:$0x1]
        %4417 = vadd.xlane.f32.xlu0 %v4412
        %v4418 = vpop.xlane.xlu0 %4417
        %v4419 = vmul.f32 %v4418, %v1817
        %v4420 = vsub.f32 %v4412, %v4419
        %v4421 = vmul.f32 %v4420, %v4420
        %4422 = vadd.xlane.f32.xlu0 %v4421
        %v4423 = vpop.xlane.xlu0 %4422
        %v4424 = vmul.f32 %v4423, %v1817
        %v4425 = vadd.f32 %v4424, 1e-05
        %v4426 = vrsqrt.pop %v4425
        %v4427 = vmul.f32 %v4420, %v4426
        %v4429 = vlaneseq
        %v4430 = vshrl.u32 %v4429, 7
        %v4431 = vsub.s32 0, %v4430
        %v4432 = vrot.slane %v4414, %v4431
        %v4434 = vmul.f32 %v4427, %v4432
        %v4436 = vlaneseq
        %v4437 = vshrl.u32 %v4436, 7
        %v4438 = vsub.s32 0, %v4437
        %v4439 = vrot.slane %v4416, %v4438
        %v4441 = vadd.f32 %v4434, %v4439
        %s4442 = scalar_lea.vmem [#allocation12], 64
        %v4443 = vld [vmem:[%s4442] sm:$0xf]
        %v4444 = vld [vmem:[%s4442 + $0x4] sm:$0xf]
        %v4445 = vld [vmem:[%s4442 + $0x8] sm:$0xf]
        %v4446 = vld [vmem:[%s4442 + $0xc] sm:$0xf]
        %v4447 = vld [vmem:[%s4442 + $0x10] sm:$0xf]
        %v4448 = vld [vmem:[%s4442 + $0x14] sm:$0xf]
        %v4449 = vld [vmem:[%s4442 + $0x18] sm:$0xf]
        %v4450 = vld [vmem:[%s4442 + $0x1c] sm:$0xf]
        %v4451 = vld [vmem:[%s4442 + $0x20] sm:$0xf]
        %v4452 = vld [vmem:[%s4442 + $0x24] sm:$0xf]
        %v4453 = vld [vmem:[%s4442 + $0x28] sm:$0xf]
        %v4454 = vld [vmem:[%s4442 + $0x2c] sm:$0xf]
        %v4455 = vld [vmem:[%s4442 + $0x30] sm:$0xf]
        %v4456 = vld [vmem:[%s4442 + $0x34] sm:$0xf]
        %v4457 = vld [vmem:[%s4442 + $0x38] sm:$0xf]
        %v4458 = vld [vmem:[%s4442 + $0x3c] sm:$0xf]
        %s4459 = scalar_lea.vmem [#allocation7], 1
        %v4460 = vld [vmem:[%s4459] sm:$0x1]
        %s4461 = scalar_lea.vmem %s13, 64
        %v4462 = vld [vmem:[%s4461] sm:$0xf]
        %v4463 = vld [vmem:[%s4461 + $0x4] sm:$0xf]
        %v4464 = vld [vmem:[%s4461 + $0x8] sm:$0xf]
        %v4465 = vld [vmem:[%s4461 + $0xc] sm:$0xf]
        %v4466 = vld [vmem:[%s4461 + $0x10] sm:$0xf]
        %v4467 = vld [vmem:[%s4461 + $0x14] sm:$0xf]
        %v4468 = vld [vmem:[%s4461 + $0x18] sm:$0xf]
        %v4469 = vld [vmem:[%s4461 + $0x1c] sm:$0xf]
        %v4470 = vld [vmem:[%s4461 + $0x20] sm:$0xf]
        %v4471 = vld [vmem:[%s4461 + $0x24] sm:$0xf]
        %v4472 = vld [vmem:[%s4461 + $0x28] sm:$0xf]
        %v4473 = vld [vmem:[%s4461 + $0x2c] sm:$0xf]
        %v4474 = vld [vmem:[%s4461 + $0x30] sm:$0xf]
        %v4475 = vld [vmem:[%s4461 + $0x34] sm:$0xf]
        %v4476 = vld [vmem:[%s4461 + $0x38] sm:$0xf]
        %v4477 = vld [vmem:[%s4461 + $0x3c] sm:$0xf]
        %s4478 = scalar_lea.vmem %s5, 1
        %v4479 = vld [vmem:[%s4478] sm:$0x1]
        %s4480 = scalar_lea.vmem [#allocation13], 64
        %v4481 = vld [vmem:[%s4480] sm:$0xf]
        %v4482 = vld [vmem:[%s4480 + $0x4] sm:$0xf]
        %v4483 = vld [vmem:[%s4480 + $0x8] sm:$0xf]
        %v4484 = vld [vmem:[%s4480 + $0xc] sm:$0xf]
        %v4485 = vld [vmem:[%s4480 + $0x10] sm:$0xf]
        %v4486 = vld [vmem:[%s4480 + $0x14] sm:$0xf]
        %v4487 = vld [vmem:[%s4480 + $0x18] sm:$0xf]
        %v4488 = vld [vmem:[%s4480 + $0x1c] sm:$0xf]
        %v4489 = vld [vmem:[%s4480 + $0x20] sm:$0xf]
        %v4490 = vld [vmem:[%s4480 + $0x24] sm:$0xf]
        %v4491 = vld [vmem:[%s4480 + $0x28] sm:$0xf]
        %v4492 = vld [vmem:[%s4480 + $0x2c] sm:$0xf]
        %v4493 = vld [vmem:[%s4480 + $0x30] sm:$0xf]
        %v4494 = vld [vmem:[%s4480 + $0x34] sm:$0xf]
        %v4495 = vld [vmem:[%s4480 + $0x38] sm:$0xf]
        %v4496 = vld [vmem:[%s4480 + $0x3c] sm:$0xf]
        %s4497 = scalar_lea.vmem [#allocation9], 1
        %v4498 = vld [vmem:[%s4497] sm:$0x1]
        %s4499 = scalar_lea.vmem [#allocation10], 64
        %v4500 = vld [vmem:[%s4499] sm:$0xf]
        %v4501 = vld [vmem:[%s4499 + $0x4] sm:$0xf]
        %v4502 = vld [vmem:[%s4499 + $0x8] sm:$0xf]
        %v4503 = vld [vmem:[%s4499 + $0xc] sm:$0xf]
        %v4504 = vld [vmem:[%s4499 + $0x10] sm:$0xf]
        %v4505 = vld [vmem:[%s4499 + $0x14] sm:$0xf]
        %v4506 = vld [vmem:[%s4499 + $0x18] sm:$0xf]
        %v4507 = vld [vmem:[%s4499 + $0x1c] sm:$0xf]
        %v4508 = vld [vmem:[%s4499 + $0x20] sm:$0xf]
        %v4509 = vld [vmem:[%s4499 + $0x24] sm:$0xf]
        %v4510 = vld [vmem:[%s4499 + $0x28] sm:$0xf]
        %v4511 = vld [vmem:[%s4499 + $0x2c] sm:$0xf]
        %v4512 = vld [vmem:[%s4499 + $0x30] sm:$0xf]
        %v4513 = vld [vmem:[%s4499 + $0x34] sm:$0xf]
        %v4514 = vld [vmem:[%s4499 + $0x38] sm:$0xf]
        %v4515 = vld [vmem:[%s4499 + $0x3c] sm:$0xf]
        %s4516 = scalar_lea.vmem [#allocation4], 1
        %v4517 = vld [vmem:[%s4516] sm:$0x1]
        %v4518 = vpack.c.bf16 %v4441, %v4441
        %v4520 = vlaneseq
        %v4521 = vshrl.u32 %v4520, 7
        %v4522 = vsub.s32 0, %v4521
        %v4523 = vrot.slane %v4460, %v4522
        %v4541 = vunpack.c.l.b16 %v4443
        %v4542 = vunpack.c.l.b16 %v4444
        %v4543 = vunpack.c.l.b16 %v4445
        %v4544 = vunpack.c.l.b16 %v4446
        %v4545 = vunpack.c.l.b16 %v4447
        %v4546 = vunpack.c.l.b16 %v4448
        %v4547 = vunpack.c.l.b16 %v4449
        %v4548 = vunpack.c.l.b16 %v4450
        %v4549 = vunpack.c.l.b16 %v4451
        %v4550 = vunpack.c.l.b16 %v4452
        %v4551 = vunpack.c.l.b16 %v4453
        %v4552 = vunpack.c.l.b16 %v4454
        %v4553 = vunpack.c.l.b16 %v4455
        %v4554 = vunpack.c.l.b16 %v4456
        %v4555 = vunpack.c.l.b16 %v4457
        %v4556 = vunpack.c.l.b16 %v4458
        %v4557 = vpack.c.b16 %v4542, %v4541
        %v4558 = vpack.c.b16 %v4544, %v4543
        %v4559 = vpack.c.b16 %v4546, %v4545
        %v4560 = vpack.c.b16 %v4548, %v4547
        %v4561 = vpack.c.b16 %v4550, %v4549
        %v4562 = vpack.c.b16 %v4552, %v4551
        %v4563 = vpack.c.b16 %v4554, %v4553
        %v4564 = vpack.c.b16 %v4556, %v4555
        %4573 = vmatprep.subr.bf16.mxu0 0
        %4574 = vmatpush1.bf16.msra.mxu0 %v4564
        %4575 = vmatprep.subr.bf16.mxu0 0
        %4576 = vmatpush1.bf16.msra.mxu0 %v4563
        %4577 = vmatprep.subr.bf16.mxu0 0
        %4578 = vmatpush1.bf16.msra.mxu0 %v4562
        %4579 = vmatprep.subr.bf16.mxu0 0
        %4580 = vmatpush1.bf16.msra.mxu0 %v4561
        %4581 = vmatprep.subr.bf16.mxu0 0
        %4582 = vmatpush1.bf16.msra.mxu0 %v4560
        %4583 = vmatprep.subr.bf16.mxu0 0
        %4584 = vmatpush1.bf16.msra.mxu0 %v4559
        %4585 = vmatprep.subr.bf16.mxu0 0
        %4586 = vmatpush1.bf16.msra.mxu0 %v4558
        %4587 = vmatprep.subr.bf16.mxu0 0
        %4588 = vmatpush1.bf16.msra.mxu0 %v4557
        %4589 = vmatprep.subr.bf16.mxu0 0
        %4590 = vmatpush2.bf16.msra.mxu0 0
        %4591 = vmatprep.subr.bf16.mxu0 0
        %4592 = vmatpush2.bf16.msra.mxu0 0
        %4593 = vmatprep.subr.bf16.mxu0 0
        %4594 = vmatpush2.bf16.msra.mxu0 0
        %4595 = vmatprep.subr.bf16.mxu0 0
        %4596 = vmatpush2.bf16.msra.mxu0 0
        %4597 = vmatprep.subr.bf16.mxu0 0
        %4598 = vmatpush2.bf16.msra.mxu0 0
        %4599 = vmatprep.subr.bf16.mxu0 0
        %4600 = vmatpush2.bf16.msra.mxu0 0
        %4601 = vmatprep.subr.bf16.mxu0 0
        %4602 = vmatpush2.bf16.msra.mxu0 0
        %4603 = vmatprep.subr.bf16.mxu0 0
        %4604 = vmatpush2.bf16.msra.mxu0 0
        %4605 = vmatprep.mubr.bf16.mxu0 0
        %4606 = vmatmul.mubr.bf16.gmra.mxu0 %v4518
        %v4607 = vpop.f32.mrf.mxu0
        %v4608 = vadd.f32 %v4523, %v4607
        %v4609 = vpop.f32.mrf.mxu0
        %v4610 = vpop.f32.mrf.mxu0
        %v4611 = vpop.f32.mrf.mxu0
        %4612 = vdwg.mxu0
        %v4614 = vlaneseq
        %v4615 = vshrl.u32 %v4614, 7
        %v4616 = vsub.s32 0, %v4615
        %v4617 = vrot.slane %v4479, %v4616
        %v4635 = vunpack.c.l.b16 %v4462
        %v4636 = vunpack.c.l.b16 %v4463
        %v4637 = vunpack.c.l.b16 %v4464
        %v4638 = vunpack.c.l.b16 %v4465
        %v4639 = vunpack.c.l.b16 %v4466
        %v4640 = vunpack.c.l.b16 %v4467
        %v4641 = vunpack.c.l.b16 %v4468
        %v4642 = vunpack.c.l.b16 %v4469
        %v4643 = vunpack.c.l.b16 %v4470
        %v4644 = vunpack.c.l.b16 %v4471
        %v4645 = vunpack.c.l.b16 %v4472
        %v4646 = vunpack.c.l.b16 %v4473
        %v4647 = vunpack.c.l.b16 %v4474
        %v4648 = vunpack.c.l.b16 %v4475
        %v4649 = vunpack.c.l.b16 %v4476
        %v4650 = vunpack.c.l.b16 %v4477
        %v4651 = vpack.c.b16 %v4636, %v4635
        %v4652 = vpack.c.b16 %v4638, %v4637
        %v4653 = vpack.c.b16 %v4640, %v4639
        %v4654 = vpack.c.b16 %v4642, %v4641
        %v4655 = vpack.c.b16 %v4644, %v4643
        %v4656 = vpack.c.b16 %v4646, %v4645
        %v4657 = vpack.c.b16 %v4648, %v4647
        %v4658 = vpack.c.b16 %v4650, %v4649
        %4667 = vmatprep.subr.bf16.mxu0 0
        %4668 = vmatpush1.bf16.msra.mxu0 %v4658
        %4669 = vmatprep.subr.bf16.mxu0 0
        %4670 = vmatpush1.bf16.msra.mxu0 %v4657
        %4671 = vmatprep.subr.bf16.mxu0 0
        %4672 = vmatpush1.bf16.msra.mxu0 %v4656
        %4673 = vmatprep.subr.bf16.mxu0 0
        %4674 = vmatpush1.bf16.msra.mxu0 %v4655
        %4675 = vmatprep.subr.bf16.mxu0 0
        %4676 = vmatpush1.bf16.msra.mxu0 %v4654
        %4677 = vmatprep.subr.bf16.mxu0 0
        %4678 = vmatpush1.bf16.msra.mxu0 %v4653
        %4679 = vmatprep.subr.bf16.mxu0 0
        %4680 = vmatpush1.bf16.msra.mxu0 %v4652
        %4681 = vmatprep.subr.bf16.mxu0 0
        %4682 = vmatpush1.bf16.msra.mxu0 %v4651
        %4683 = vmatprep.subr.bf16.mxu0 0
        %4684 = vmatpush2.bf16.msra.mxu0 0
        %4685 = vmatprep.subr.bf16.mxu0 0
        %4686 = vmatpush2.bf16.msra.mxu0 0
        %4687 = vmatprep.subr.bf16.mxu0 0
        %4688 = vmatpush2.bf16.msra.mxu0 0
        %4689 = vmatprep.subr.bf16.mxu0 0
        %4690 = vmatpush2.bf16.msra.mxu0 0
        %4691 = vmatprep.subr.bf16.mxu0 0
        %4692 = vmatpush2.bf16.msra.mxu0 0
        %4693 = vmatprep.subr.bf16.mxu0 0
        %4694 = vmatpush2.bf16.msra.mxu0 0
        %4695 = vmatprep.subr.bf16.mxu0 0
        %4696 = vmatpush2.bf16.msra.mxu0 0
        %4697 = vmatprep.subr.bf16.mxu0 0
        %4698 = vmatpush2.bf16.msra.mxu0 0
        %4699 = vmatprep.mubr.bf16.mxu0 0
        %4700 = vmatmul.mubr.bf16.gmra.mxu0 %v4518
        %v4701 = vpop.f32.mrf.mxu0
        %v4702 = vadd.f32 %v4617, %v4701
        %v4703 = vpop.f32.mrf.mxu0
        %v4704 = vpop.f32.mrf.mxu0
        %v4705 = vpop.f32.mrf.mxu0
        %4706 = vdwg.mxu0
        %v4708 = vlaneseq
        %v4709 = vshrl.u32 %v4708, 7
        %v4710 = vsub.s32 0, %v4709
        %v4711 = vrot.slane %v4498, %v4710
        %v4729 = vunpack.c.l.b16 %v4481
        %v4730 = vunpack.c.l.b16 %v4482
        %v4731 = vunpack.c.l.b16 %v4483
        %v4732 = vunpack.c.l.b16 %v4484
        %v4733 = vunpack.c.l.b16 %v4485
        %v4734 = vunpack.c.l.b16 %v4486
        %v4735 = vunpack.c.l.b16 %v4487
        %v4736 = vunpack.c.l.b16 %v4488
        %v4737 = vunpack.c.l.b16 %v4489
        %v4738 = vunpack.c.l.b16 %v4490
        %v4739 = vunpack.c.l.b16 %v4491
        %v4740 = vunpack.c.l.b16 %v4492
        %v4741 = vunpack.c.l.b16 %v4493
        %v4742 = vunpack.c.l.b16 %v4494
        %v4743 = vunpack.c.l.b16 %v4495
        %v4744 = vunpack.c.l.b16 %v4496
        %v4745 = vpack.c.b16 %v4730, %v4729
        %v4746 = vpack.c.b16 %v4732, %v4731
        %v4747 = vpack.c.b16 %v4734, %v4733
        %v4748 = vpack.c.b16 %v4736, %v4735
        %v4749 = vpack.c.b16 %v4738, %v4737
        %v4750 = vpack.c.b16 %v4740, %v4739
        %v4751 = vpack.c.b16 %v4742, %v4741
        %v4752 = vpack.c.b16 %v4744, %v4743
        %4761 = vmatprep.subr.bf16.mxu0 0
        %4762 = vmatpush1.bf16.msra.mxu0 %v4752
        %4763 = vmatprep.subr.bf16.mxu0 0
        %4764 = vmatpush1.bf16.msra.mxu0 %v4751
        %4765 = vmatprep.subr.bf16.mxu0 0
        %4766 = vmatpush1.bf16.msra.mxu0 %v4750
        %4767 = vmatprep.subr.bf16.mxu0 0
        %4768 = vmatpush1.bf16.msra.mxu0 %v4749
        %4769 = vmatprep.subr.bf16.mxu0 0
        %4770 = vmatpush1.bf16.msra.mxu0 %v4748
        %4771 = vmatprep.subr.bf16.mxu0 0
        %4772 = vmatpush1.bf16.msra.mxu0 %v4747
        %4773 = vmatprep.subr.bf16.mxu0 0
        %4774 = vmatpush1.bf16.msra.mxu0 %v4746
        %4775 = vmatprep.subr.bf16.mxu0 0
        %4776 = vmatpush1.bf16.msra.mxu0 %v4745
        %4777 = vmatprep.subr.bf16.mxu0 0
        %4778 = vmatpush2.bf16.msra.mxu0 0
        %4779 = vmatprep.subr.bf16.mxu0 0
        %4780 = vmatpush2.bf16.msra.mxu0 0
        %4781 = vmatprep.subr.bf16.mxu0 0
        %4782 = vmatpush2.bf16.msra.mxu0 0
        %4783 = vmatprep.subr.bf16.mxu0 0
        %4784 = vmatpush2.bf16.msra.mxu0 0
        %4785 = vmatprep.subr.bf16.mxu0 0
        %4786 = vmatpush2.bf16.msra.mxu0 0
        %4787 = vmatprep.subr.bf16.mxu0 0
        %4788 = vmatpush2.bf16.msra.mxu0 0
        %4789 = vmatprep.subr.bf16.mxu0 0
        %4790 = vmatpush2.bf16.msra.mxu0 0
        %4791 = vmatprep.subr.bf16.mxu0 0
        %4792 = vmatpush2.bf16.msra.mxu0 0
        %4793 = vmatprep.mubr.bf16.mxu0 0
        %4794 = vmatmul.mubr.bf16.gmra.mxu0 %v4518
        %v4795 = vpop.f32.mrf.mxu0
        %v4796 = vadd.f32 %v4711, %v4795
        %v4797 = vpop.f32.mrf.mxu0
        %v4798 = vpop.f32.mrf.mxu0
        %v4799 = vpop.f32.mrf.mxu0
        %4800 = vdwg.mxu0
        %v4801 = vpack.c.bf16 %v4608, %v4608
        %v4802 = vpack.c.bf16 %v4702, %v4702
        %v4804 = vsel %vm2564, %v4801, 0
        %v4807 = vsel %vm2564, %v4802, 0
        %4809 = vmatprep.subr.bf16.mxu0 0
        %4810 = vmatpush1.bf16.xpose.msra.mxu0 0
        %4811 = vmatprep.subr.bf16.mxu0 0
        %4812 = vmatpush1.bf16.xpose.msra.mxu0 0
        %4813 = vmatprep.subr.bf16.mxu0 0
        %4814 = vmatpush1.bf16.xpose.msra.mxu0 0
        %4815 = vmatprep.subr.bf16.mxu0 0
        %4816 = vmatpush1.bf16.xpose.msra.mxu0 0
        %4817 = vmatprep.subr.bf16.mxu0 0
        %4818 = vmatpush1.bf16.xpose.msra.mxu0 0
        %4819 = vmatprep.subr.bf16.mxu0 0
        %4820 = vmatpush1.bf16.xpose.msra.mxu0 0
        %4821 = vmatprep.subr.bf16.mxu0 0
        %4822 = vmatpush1.bf16.xpose.msra.mxu0 0
        %4823 = vmatprep.subr.bf16.mxu0 0
        %4824 = vmatpush1.bf16.xpose.msra.mxu0 %v4807
        %4825 = vmatprep.subr.bf16.mxu0 0
        %4826 = vmatpush2.bf16.xpose.msra.mxu0 0
        %4827 = vmatprep.subr.bf16.mxu0 0
        %4828 = vmatpush2.bf16.xpose.msra.mxu0 0
        %4829 = vmatprep.subr.bf16.mxu0 0
        %4830 = vmatpush2.bf16.xpose.msra.mxu0 0
        %4831 = vmatprep.subr.bf16.mxu0 0
        %4832 = vmatpush2.bf16.xpose.msra.mxu0 0
        %4833 = vmatprep.subr.bf16.mxu0 0
        %4834 = vmatpush2.bf16.xpose.msra.mxu0 0
        %4835 = vmatprep.subr.bf16.mxu0 0
        %4836 = vmatpush2.bf16.xpose.msra.mxu0 0
        %4837 = vmatprep.subr.bf16.mxu0 0
        %4838 = vmatpush2.bf16.xpose.msra.mxu0 0
        %4839 = vmatprep.subr.bf16.mxu0 0
        %4840 = vmatpush2.bf16.xpose.msra.mxu0 0
        %4841 = vmatprep.mubr.bf16.mxu0 0
        %4842 = vmatmul.mubr.bf16.gmra.mxu0 %v4804
        %v4843 = vpop.f32.mrf.mxu0
        %v4844 = vadd.f32 0.0, %v4843
        %v4845 = vpop.f32.mrf.mxu0
        %v4846 = vpop.f32.mrf.mxu0
        %v4847 = vpop.f32.mrf.mxu0
        %4848 = vdwg.mxu0
        %v4849 = vmul.f32 %v4844, 0.17677669
        %v4850 = vadd.f32 %v4849, %v1700
        %v4851 = vsel %vm2613, %v4850, -inf
        %4852 = vmax.xlane.f32.xlu0 %v4851
        %v4853 = vpop.xlane.xlu0 %4852
        %v4854 = vsub.f32 %v4850, %v4853
        %v4855 = vmul.f32 %v4854, 1.442695
        %v4856 = vpow.pop %v4855
        %v4857 = vsel %vm2613, %v4856, 0.0
        %4858 = vadd.xlane.f32.xlu0 %v4857
        %v4859 = vpop.xlane.xlu0 %4858
        %v4860 = vrcp.pop %v4859
        %v4861 = vmul.f32 %v4856, %v4860
        %v4862 = vpack.c.bf16 %v4861, %v4861
        %v4863 = vpack.c.bf16 %v4796, %v4796
        %v4865 = vsel %vm2613, %v4862, 0
        %v4868 = vsel %vm2630, %v4863, 0
        %4870 = vmatprep.subr.bf16.mxu0 0
        %4871 = vmatpush1.bf16.msra.mxu0 0
        %4872 = vmatprep.subr.bf16.mxu0 0
        %4873 = vmatpush1.bf16.msra.mxu0 0
        %4874 = vmatprep.subr.bf16.mxu0 0
        %4875 = vmatpush1.bf16.msra.mxu0 0
        %4876 = vmatprep.subr.bf16.mxu0 0
        %4877 = vmatpush1.bf16.msra.mxu0 0
        %4878 = vmatprep.subr.bf16.mxu0 0
        %4879 = vmatpush1.bf16.msra.mxu0 0
        %4880 = vmatprep.subr.bf16.mxu0 0
        %4881 = vmatpush1.bf16.msra.mxu0 0
        %4882 = vmatprep.subr.bf16.mxu0 0
        %4883 = vmatpush1.bf16.msra.mxu0 0
        %4884 = vmatprep.subr.bf16.mxu0 0
        %4885 = vmatpush1.bf16.msra.mxu0 %v4868
        %4886 = vmatprep.subr.bf16.mxu0 0
        %4887 = vmatpush2.bf16.msra.mxu0 0
        %4888 = vmatprep.subr.bf16.mxu0 0
        %4889 = vmatpush2.bf16.msra.mxu0 0
        %4890 = vmatprep.subr.bf16.mxu0 0
        %4891 = vmatpush2.bf16.msra.mxu0 0
        %4892 = vmatprep.subr.bf16.mxu0 0
        %4893 = vmatpush2.bf16.msra.mxu0 0
        %4894 = vmatprep.subr.bf16.mxu0 0
        %4895 = vmatpush2.bf16.msra.mxu0 0
        %4896 = vmatprep.subr.bf16.mxu0 0
        %4897 = vmatpush2.bf16.msra.mxu0 0
        %4898 = vmatprep.subr.bf16.mxu0 0
        %4899 = vmatpush2.bf16.msra.mxu0 0
        %4900 = vmatprep.subr.bf16.mxu0 0
        %4901 = vmatpush2.bf16.msra.mxu0 0
        %4902 = vmatprep.mubr.bf16.mxu0 0
        %4903 = vmatmul.mubr.bf16.gmra.mxu0 %v4865
        %v4904 = vpop.f32.mrf.mxu0
        %v4905 = vadd.f32 0.0, %v4904
        %v4906 = vpop.f32.mrf.mxu0
        %v4907 = vpop.f32.mrf.mxu0
        %v4908 = vpop.f32.mrf.mxu0
        %4909 = vdwg.mxu0
        %v4910 = vpack.c.bf16 %v4905, %v4905
        %4912 = vrot.lane.b32.xlu0 %v4801, 96
        %v4913 = vpop.permute.xlu0 %4912
        %4915 = vrot.lane.b32.xlu0 %v4802, 96
        %v4916 = vpop.permute.xlu0 %4915
        %v4918 = vsel %vm2564, %v4913, 0
        %v4921 = vsel %vm2564, %v4916, 0
        %4923 = vmatprep.subr.bf16.mxu0 0
        %4924 = vmatpush1.bf16.xpose.msra.mxu0 0
        %4925 = vmatprep.subr.bf16.mxu0 0
        %4926 = vmatpush1.bf16.xpose.msra.mxu0 0
        %4927 = vmatprep.subr.bf16.mxu0 0
        %4928 = vmatpush1.bf16.xpose.msra.mxu0 0
        %4929 = vmatprep.subr.bf16.mxu0 0
        %4930 = vmatpush1.bf16.xpose.msra.mxu0 0
        %4931 = vmatprep.subr.bf16.mxu0 0
        %4932 = vmatpush1.bf16.xpose.msra.mxu0 0
        %4933 = vmatprep.subr.bf16.mxu0 0
        %4934 = vmatpush1.bf16.xpose.msra.mxu0 0
        %4935 = vmatprep.subr.bf16.mxu0 0
        %4936 = vmatpush1.bf16.xpose.msra.mxu0 0
        %4937 = vmatprep.subr.bf16.mxu0 0
        %4938 = vmatpush1.bf16.xpose.msra.mxu0 %v4921
        %4939 = vmatprep.subr.bf16.mxu0 0
        %4940 = vmatpush2.bf16.xpose.msra.mxu0 0
        %4941 = vmatprep.subr.bf16.mxu0 0
        %4942 = vmatpush2.bf16.xpose.msra.mxu0 0
        %4943 = vmatprep.subr.bf16.mxu0 0
        %4944 = vmatpush2.bf16.xpose.msra.mxu0 0
        %4945 = vmatprep.subr.bf16.mxu0 0
        %4946 = vmatpush2.bf16.xpose.msra.mxu0 0
        %4947 = vmatprep.subr.bf16.mxu0 0
        %4948 = vmatpush2.bf16.xpose.msra.mxu0 0
        %4949 = vmatprep.subr.bf16.mxu0 0
        %4950 = vmatpush2.bf16.xpose.msra.mxu0 0
        %4951 = vmatprep.subr.bf16.mxu0 0
        %4952 = vmatpush2.bf16.xpose.msra.mxu0 0
        %4953 = vmatprep.subr.bf16.mxu0 0
        %4954 = vmatpush2.bf16.xpose.msra.mxu0 0
        %4955 = vmatprep.mubr.bf16.mxu0 0
        %4956 = vmatmul.mubr.bf16.gmra.mxu0 %v4918
        %v4957 = vpop.f32.mrf.mxu0
        %v4958 = vadd.f32 0.0, %v4957
        %v4959 = vpop.f32.mrf.mxu0
        %v4960 = vpop.f32.mrf.mxu0
        %v4961 = vpop.f32.mrf.mxu0
        %4962 = vdwg.mxu0
        %v4963 = vmul.f32 %v4958, 0.17677669
        %v4964 = vadd.f32 %v4963, %v1700
        %v4965 = vsel %vm2613, %v4964, -inf
        %4966 = vmax.xlane.f32.xlu0 %v4965
        %v4967 = vpop.xlane.xlu0 %4966
        %v4968 = vsub.f32 %v4964, %v4967
        %v4969 = vmul.f32 %v4968, 1.442695
        %v4970 = vpow.pop %v4969
        %v4971 = vsel %vm2613, %v4970, 0.0
        %4972 = vadd.xlane.f32.xlu0 %v4971
        %v4973 = vpop.xlane.xlu0 %4972
        %v4974 = vrcp.pop %v4973
        %v4975 = vmul.f32 %v4970, %v4974
        %v4976 = vpack.c.bf16 %v4975, %v4975
        %4978 = vrot.lane.b32.xlu0 %v4863, 96
        %v4979 = vpop.permute.xlu0 %4978
        %v4981 = vsel %vm2613, %v4976, 0
        %v4984 = vsel %vm2630, %v4979, 0
        %4986 = vmatprep.subr.bf16.mxu0 0
        %4987 = vmatpush1.bf16.msra.mxu0 0
        %4988 = vmatprep.subr.bf16.mxu0 0
        %4989 = vmatpush1.bf16.msra.mxu0 0
        %4990 = vmatprep.subr.bf16.mxu0 0
        %4991 = vmatpush1.bf16.msra.mxu0 0
        %4992 = vmatprep.subr.bf16.mxu0 0
        %4993 = vmatpush1.bf16.msra.mxu0 0
        %4994 = vmatprep.subr.bf16.mxu0 0
        %4995 = vmatpush1.bf16.msra.mxu0 0
        %4996 = vmatprep.subr.bf16.mxu0 0
        %4997 = vmatpush1.bf16.msra.mxu0 0
        %4998 = vmatprep.subr.bf16.mxu0 0
        %4999 = vmatpush1.bf16.msra.mxu0 0
        %5000 = vmatprep.subr.bf16.mxu0 0
        %5001 = vmatpush1.bf16.msra.mxu0 %v4984
        %5002 = vmatprep.subr.bf16.mxu0 0
        %5003 = vmatpush2.bf16.msra.mxu0 0
        %5004 = vmatprep.subr.bf16.mxu0 0
        %5005 = vmatpush2.bf16.msra.mxu0 0
        %5006 = vmatprep.subr.bf16.mxu0 0
        %5007 = vmatpush2.bf16.msra.mxu0 0
        %5008 = vmatprep.subr.bf16.mxu0 0
        %5009 = vmatpush2.bf16.msra.mxu0 0
        %5010 = vmatprep.subr.bf16.mxu0 0
        %5011 = vmatpush2.bf16.msra.mxu0 0
        %5012 = vmatprep.subr.bf16.mxu0 0
        %5013 = vmatpush2.bf16.msra.mxu0 0
        %5014 = vmatprep.subr.bf16.mxu0 0
        %5015 = vmatpush2.bf16.msra.mxu0 0
        %5016 = vmatprep.subr.bf16.mxu0 0
        %5017 = vmatpush2.bf16.msra.mxu0 0
        %5018 = vmatprep.mubr.bf16.mxu0 0
        %5019 = vmatmul.mubr.bf16.gmra.mxu0 %v4981
        %v5020 = vpop.f32.mrf.mxu0
        %v5021 = vadd.f32 0.0, %v5020
        %v5022 = vpop.f32.mrf.mxu0
        %v5023 = vpop.f32.mrf.mxu0
        %v5024 = vpop.f32.mrf.mxu0
        %5025 = vdwg.mxu0
        %v5026 = vpack.c.bf16 %v5021, %v5021
        %v5031 = vunpack.c.l.b16 %v4504
        %v5032 = vunpack.c.l.b16 %v4505
        %v5033 = vunpack.c.l.b16 %v4506
        %v5034 = vunpack.c.l.b16 %v4507
        %v5035 = vpack.c.b16 %v5032, %v5031
        %v5036 = vpack.c.b16 %v5034, %v5033
        %v5040 = vsel %vm2564, %v5026, 0
        %5042 = vmatprep.subr.bf16.mxu0 0
        %5043 = vmatpush1.bf16.msra.mxu0 0
        %5044 = vmatprep.subr.bf16.mxu0 0
        %5045 = vmatpush1.bf16.msra.mxu0 0
        %5046 = vmatprep.subr.bf16.mxu0 0
        %5047 = vmatpush1.bf16.msra.mxu0 0
        %5048 = vmatprep.subr.bf16.mxu0 0
        %5049 = vmatpush1.bf16.msra.mxu0 0
        %5050 = vmatprep.subr.bf16.mxu0 0
        %5051 = vmatpush1.bf16.msra.mxu0 0
        %5052 = vmatprep.subr.bf16.mxu0 0
        %5053 = vmatpush1.bf16.msra.mxu0 0
        %5054 = vmatprep.subr.bf16.mxu0 0
        %5055 = vmatpush1.bf16.msra.mxu0 %v5036
        %5056 = vmatprep.subr.bf16.mxu0 0
        %5057 = vmatpush1.bf16.msra.mxu0 %v5035
        %5058 = vmatprep.subr.bf16.mxu0 0
        %5059 = vmatpush2.bf16.msra.mxu0 0
        %5060 = vmatprep.subr.bf16.mxu0 0
        %5061 = vmatpush2.bf16.msra.mxu0 0
        %5062 = vmatprep.subr.bf16.mxu0 0
        %5063 = vmatpush2.bf16.msra.mxu0 0
        %5064 = vmatprep.subr.bf16.mxu0 0
        %5065 = vmatpush2.bf16.msra.mxu0 0
        %5066 = vmatprep.subr.bf16.mxu0 0
        %5067 = vmatpush2.bf16.msra.mxu0 0
        %5068 = vmatprep.subr.bf16.mxu0 0
        %5069 = vmatpush2.bf16.msra.mxu0 0
        %5070 = vmatprep.subr.bf16.mxu0 0
        %5071 = vmatpush2.bf16.msra.mxu0 0
        %5072 = vmatprep.subr.bf16.mxu0 0
        %5073 = vmatpush2.bf16.msra.mxu0 0
        %5074 = vmatprep.mubr.bf16.mxu0 0
        %5075 = vmatmul.mubr.bf16.gmra.mxu0 %v5040
        %v5076 = vpop.f32.mrf.mxu0
        %v5077 = vadd.f32 0.0, %v5076
        %v5078 = vpop.f32.mrf.mxu0
        %v5079 = vpop.f32.mrf.mxu0
        %v5080 = vpop.f32.mrf.mxu0
        %5081 = vdwg.mxu0
        %v5086 = vunpack.c.l.b16 %v4500
        %v5087 = vunpack.c.l.b16 %v4501
        %v5088 = vunpack.c.l.b16 %v4502
        %v5089 = vunpack.c.l.b16 %v4503
        %v5090 = vpack.c.b16 %v5087, %v5086
        %v5091 = vpack.c.b16 %v5089, %v5088
        %v5095 = vsel %vm2564, %v4910, 0
        %5097 = vmatprep.subr.bf16.mxu0 0
        %5098 = vmatpush1.bf16.msra.mxu0 0
        %5099 = vmatprep.subr.bf16.mxu0 0
        %5100 = vmatpush1.bf16.msra.mxu0 0
        %5101 = vmatprep.subr.bf16.mxu0 0
        %5102 = vmatpush1.bf16.msra.mxu0 0
        %5103 = vmatprep.subr.bf16.mxu0 0
        %5104 = vmatpush1.bf16.msra.mxu0 0
        %5105 = vmatprep.subr.bf16.mxu0 0
        %5106 = vmatpush1.bf16.msra.mxu0 0
        %5107 = vmatprep.subr.bf16.mxu0 0
        %5108 = vmatpush1.bf16.msra.mxu0 0
        %5109 = vmatprep.subr.bf16.mxu0 0
        %5110 = vmatpush1.bf16.msra.mxu0 %v5091
        %5111 = vmatprep.subr.bf16.mxu0 0
        %5112 = vmatpush1.bf16.msra.mxu0 %v5090
        %5113 = vmatprep.subr.bf16.mxu0 0
        %5114 = vmatpush2.bf16.msra.mxu0 0
        %5115 = vmatprep.subr.bf16.mxu0 0
        %5116 = vmatpush2.bf16.msra.mxu0 0
        %5117 = vmatprep.subr.bf16.mxu0 0
        %5118 = vmatpush2.bf16.msra.mxu0 0
        %5119 = vmatprep.subr.bf16.mxu0 0
        %5120 = vmatpush2.bf16.msra.mxu0 0
        %5121 = vmatprep.subr.bf16.mxu0 0
        %5122 = vmatpush2.bf16.msra.mxu0 0
        %5123 = vmatprep.subr.bf16.mxu0 0
        %5124 = vmatpush2.bf16.msra.mxu0 0
        %5125 = vmatprep.subr.bf16.mxu0 0
        %5126 = vmatpush2.bf16.msra.mxu0 0
        %5127 = vmatprep.subr.bf16.mxu0 0
        %5128 = vmatpush2.bf16.msra.mxu0 0
        %5129 = vmatprep.mubr.bf16.mxu0 0
        %5130 = vmatmul.mubr.bf16.gmra.mxu0 %v5095
        %v5131 = vpop.f32.mrf.mxu0
        %v5132 = vadd.f32 %v5077, %v5131
        %v5133 = vpop.f32.mrf.mxu0
        %v5134 = vpop.f32.mrf.mxu0
        %v5135 = vpop.f32.mrf.mxu0
        %5136 = vdwg.mxu0
        %5137 = vrot.lane.b32.xlu0 %v4801, 64
        %v5138 = vpop.permute.xlu0 %5137
        %5139 = vrot.lane.b32.xlu0 %v4802, 64
        %v5140 = vpop.permute.xlu0 %5139
        %v5142 = vsel %vm2564, %v5138, 0
        %v5145 = vsel %vm2564, %v5140, 0
        %5147 = vmatprep.subr.bf16.mxu0 0
        %5148 = vmatpush1.bf16.xpose.msra.mxu0 0
        %5149 = vmatprep.subr.bf16.mxu0 0
        %5150 = vmatpush1.bf16.xpose.msra.mxu0 0
        %5151 = vmatprep.subr.bf16.mxu0 0
        %5152 = vmatpush1.bf16.xpose.msra.mxu0 0
        %5153 = vmatprep.subr.bf16.mxu0 0
        %5154 = vmatpush1.bf16.xpose.msra.mxu0 0
        %5155 = vmatprep.subr.bf16.mxu0 0
        %5156 = vmatpush1.bf16.xpose.msra.mxu0 0
        %5157 = vmatprep.subr.bf16.mxu0 0
        %5158 = vmatpush1.bf16.xpose.msra.mxu0 0
        %5159 = vmatprep.subr.bf16.mxu0 0
        %5160 = vmatpush1.bf16.xpose.msra.mxu0 0
        %5161 = vmatprep.subr.bf16.mxu0 0
        %5162 = vmatpush1.bf16.xpose.msra.mxu0 %v5145
        %5163 = vmatprep.subr.bf16.mxu0 0
        %5164 = vmatpush2.bf16.xpose.msra.mxu0 0
        %5165 = vmatprep.subr.bf16.mxu0 0
        %5166 = vmatpush2.bf16.xpose.msra.mxu0 0
        %5167 = vmatprep.subr.bf16.mxu0 0
        %5168 = vmatpush2.bf16.xpose.msra.mxu0 0
        %5169 = vmatprep.subr.bf16.mxu0 0
        %5170 = vmatpush2.bf16.xpose.msra.mxu0 0
        %5171 = vmatprep.subr.bf16.mxu0 0
        %5172 = vmatpush2.bf16.xpose.msra.mxu0 0
        %5173 = vmatprep.subr.bf16.mxu0 0
        %5174 = vmatpush2.bf16.xpose.msra.mxu0 0
        %5175 = vmatprep.subr.bf16.mxu0 0
        %5176 = vmatpush2.bf16.xpose.msra.mxu0 0
        %5177 = vmatprep.subr.bf16.mxu0 0
        %5178 = vmatpush2.bf16.xpose.msra.mxu0 0
        %5179 = vmatprep.mubr.bf16.mxu0 0
        %5180 = vmatmul.mubr.bf16.gmra.mxu0 %v5142
        %v5181 = vpop.f32.mrf.mxu0
        %v5182 = vadd.f32 0.0, %v5181
        %v5183 = vpop.f32.mrf.mxu0
        %v5184 = vpop.f32.mrf.mxu0
        %v5185 = vpop.f32.mrf.mxu0
        %5186 = vdwg.mxu0
        %v5187 = vmul.f32 %v5182, 0.17677669
        %v5188 = vadd.f32 %v5187, %v1700
        %v5189 = vsel %vm2613, %v5188, -inf
        %5190 = vmax.xlane.f32.xlu0 %v5189
        %v5191 = vpop.xlane.xlu0 %5190
        %v5192 = vsub.f32 %v5188, %v5191
        %v5193 = vmul.f32 %v5192, 1.442695
        %v5194 = vpow.pop %v5193
        %v5195 = vsel %vm2613, %v5194, 0.0
        %5196 = vadd.xlane.f32.xlu0 %v5195
        %v5197 = vpop.xlane.xlu0 %5196
        %v5198 = vrcp.pop %v5197
        %v5199 = vmul.f32 %v5194, %v5198
        %v5200 = vpack.c.bf16 %v5199, %v5199
        %5201 = vrot.lane.b32.xlu0 %v4863, 64
        %v5202 = vpop.permute.xlu0 %5201
        %v5204 = vsel %vm2613, %v5200, 0
        %v5207 = vsel %vm2630, %v5202, 0
        %5209 = vmatprep.subr.bf16.mxu0 0
        %5210 = vmatpush1.bf16.msra.mxu0 0
        %5211 = vmatprep.subr.bf16.mxu0 0
        %5212 = vmatpush1.bf16.msra.mxu0 0
        %5213 = vmatprep.subr.bf16.mxu0 0
        %5214 = vmatpush1.bf16.msra.mxu0 0
        %5215 = vmatprep.subr.bf16.mxu0 0
        %5216 = vmatpush1.bf16.msra.mxu0 0
        %5217 = vmatprep.subr.bf16.mxu0 0
        %5218 = vmatpush1.bf16.msra.mxu0 0
        %5219 = vmatprep.subr.bf16.mxu0 0
        %5220 = vmatpush1.bf16.msra.mxu0 0
        %5221 = vmatprep.subr.bf16.mxu0 0
        %5222 = vmatpush1.bf16.msra.mxu0 0
        %5223 = vmatprep.subr.bf16.mxu0 0
        %5224 = vmatpush1.bf16.msra.mxu0 %v5207
        %5225 = vmatprep.subr.bf16.mxu0 0
        %5226 = vmatpush2.bf16.msra.mxu0 0
        %5227 = vmatprep.subr.bf16.mxu0 0
        %5228 = vmatpush2.bf16.msra.mxu0 0
        %5229 = vmatprep.subr.bf16.mxu0 0
        %5230 = vmatpush2.bf16.msra.mxu0 0
        %5231 = vmatprep.subr.bf16.mxu0 0
        %5232 = vmatpush2.bf16.msra.mxu0 0
        %5233 = vmatprep.subr.bf16.mxu0 0
        %5234 = vmatpush2.bf16.msra.mxu0 0
        %5235 = vmatprep.subr.bf16.mxu0 0
        %5236 = vmatpush2.bf16.msra.mxu0 0
        %5237 = vmatprep.subr.bf16.mxu0 0
        %5238 = vmatpush2.bf16.msra.mxu0 0
        %5239 = vmatprep.subr.bf16.mxu0 0
        %5240 = vmatpush2.bf16.msra.mxu0 0
        %5241 = vmatprep.mubr.bf16.mxu0 0
        %5242 = vmatmul.mubr.bf16.gmra.mxu0 %v5204
        %v5243 = vpop.f32.mrf.mxu0
        %v5244 = vadd.f32 0.0, %v5243
        %v5245 = vpop.f32.mrf.mxu0
        %v5246 = vpop.f32.mrf.mxu0
        %v5247 = vpop.f32.mrf.mxu0
        %5248 = vdwg.mxu0
        %v5249 = vpack.c.bf16 %v5244, %v5244
        %v5254 = vunpack.c.l.b16 %v4508
        %v5255 = vunpack.c.l.b16 %v4509
        %v5256 = vunpack.c.l.b16 %v4510
        %v5257 = vunpack.c.l.b16 %v4511
        %v5258 = vpack.c.b16 %v5255, %v5254
        %v5259 = vpack.c.b16 %v5257, %v5256
        %v5263 = vsel %vm2564, %v5249, 0
        %5265 = vmatprep.subr.bf16.mxu0 0
        %5266 = vmatpush1.bf16.msra.mxu0 0
        %5267 = vmatprep.subr.bf16.mxu0 0
        %5268 = vmatpush1.bf16.msra.mxu0 0
        %5269 = vmatprep.subr.bf16.mxu0 0
        %5270 = vmatpush1.bf16.msra.mxu0 0
        %5271 = vmatprep.subr.bf16.mxu0 0
        %5272 = vmatpush1.bf16.msra.mxu0 0
        %5273 = vmatprep.subr.bf16.mxu0 0
        %5274 = vmatpush1.bf16.msra.mxu0 0
        %5275 = vmatprep.subr.bf16.mxu0 0
        %5276 = vmatpush1.bf16.msra.mxu0 0
        %5277 = vmatprep.subr.bf16.mxu0 0
        %5278 = vmatpush1.bf16.msra.mxu0 %v5259
        %5279 = vmatprep.subr.bf16.mxu0 0
        %5280 = vmatpush1.bf16.msra.mxu0 %v5258
        %5281 = vmatprep.subr.bf16.mxu0 0
        %5282 = vmatpush2.bf16.msra.mxu0 0
        %5283 = vmatprep.subr.bf16.mxu0 0
        %5284 = vmatpush2.bf16.msra.mxu0 0
        %5285 = vmatprep.subr.bf16.mxu0 0
        %5286 = vmatpush2.bf16.msra.mxu0 0
        %5287 = vmatprep.subr.bf16.mxu0 0
        %5288 = vmatpush2.bf16.msra.mxu0 0
        %5289 = vmatprep.subr.bf16.mxu0 0
        %5290 = vmatpush2.bf16.msra.mxu0 0
        %5291 = vmatprep.subr.bf16.mxu0 0
        %5292 = vmatpush2.bf16.msra.mxu0 0
        %5293 = vmatprep.subr.bf16.mxu0 0
        %5294 = vmatpush2.bf16.msra.mxu0 0
        %5295 = vmatprep.subr.bf16.mxu0 0
        %5296 = vmatpush2.bf16.msra.mxu0 0
        %5297 = vmatprep.mubr.bf16.mxu0 0
        %5298 = vmatmul.mubr.bf16.gmra.mxu0 %v5263
        %v5299 = vpop.f32.mrf.mxu0
        %v5300 = vadd.f32 0.0, %v5299
        %v5301 = vpop.f32.mrf.mxu0
        %v5302 = vpop.f32.mrf.mxu0
        %v5303 = vpop.f32.mrf.mxu0
        %5304 = vdwg.mxu0
        %v5305 = vadd.f32 %v5132, %v5300
        %5306 = vrot.lane.b32.xlu0 %v4801, 32
        %v5307 = vpop.permute.xlu0 %5306
        %5308 = vrot.lane.b32.xlu0 %v4802, 32
        %v5309 = vpop.permute.xlu0 %5308
        %v5311 = vsel %vm2564, %v5307, 0
        %v5314 = vsel %vm2564, %v5309, 0
        %5316 = vmatprep.subr.bf16.mxu0 0
        %5317 = vmatpush1.bf16.xpose.msra.mxu0 0
        %5318 = vmatprep.subr.bf16.mxu0 0
        %5319 = vmatpush1.bf16.xpose.msra.mxu0 0
        %5320 = vmatprep.subr.bf16.mxu0 0
        %5321 = vmatpush1.bf16.xpose.msra.mxu0 0
        %5322 = vmatprep.subr.bf16.mxu0 0
        %5323 = vmatpush1.bf16.xpose.msra.mxu0 0
        %5324 = vmatprep.subr.bf16.mxu0 0
        %5325 = vmatpush1.bf16.xpose.msra.mxu0 0
        %5326 = vmatprep.subr.bf16.mxu0 0
        %5327 = vmatpush1.bf16.xpose.msra.mxu0 0
        %5328 = vmatprep.subr.bf16.mxu0 0
        %5329 = vmatpush1.bf16.xpose.msra.mxu0 0
        %5330 = vmatprep.subr.bf16.mxu0 0
        %5331 = vmatpush1.bf16.xpose.msra.mxu0 %v5314
        %5332 = vmatprep.subr.bf16.mxu0 0
        %5333 = vmatpush2.bf16.xpose.msra.mxu0 0
        %5334 = vmatprep.subr.bf16.mxu0 0
        %5335 = vmatpush2.bf16.xpose.msra.mxu0 0
        %5336 = vmatprep.subr.bf16.mxu0 0
        %5337 = vmatpush2.bf16.xpose.msra.mxu0 0
        %5338 = vmatprep.subr.bf16.mxu0 0
        %5339 = vmatpush2.bf16.xpose.msra.mxu0 0
        %5340 = vmatprep.subr.bf16.mxu0 0
        %5341 = vmatpush2.bf16.xpose.msra.mxu0 0
        %5342 = vmatprep.subr.bf16.mxu0 0
        %5343 = vmatpush2.bf16.xpose.msra.mxu0 0
        %5344 = vmatprep.subr.bf16.mxu0 0
        %5345 = vmatpush2.bf16.xpose.msra.mxu0 0
        %5346 = vmatprep.subr.bf16.mxu0 0
        %5347 = vmatpush2.bf16.xpose.msra.mxu0 0
        %5348 = vmatprep.mubr.bf16.mxu0 0
        %5349 = vmatmul.mubr.bf16.gmra.mxu0 %v5311
        %v5350 = vpop.f32.mrf.mxu0
        %v5351 = vadd.f32 0.0, %v5350
        %v5352 = vpop.f32.mrf.mxu0
        %v5353 = vpop.f32.mrf.mxu0
        %v5354 = vpop.f32.mrf.mxu0
        %5355 = vdwg.mxu0
        %v5356 = vmul.f32 %v5351, 0.17677669
        %v5357 = vadd.f32 %v5356, %v1700
        %v5358 = vsel %vm2613, %v5357, -inf
        %5359 = vmax.xlane.f32.xlu0 %v5358
        %v5360 = vpop.xlane.xlu0 %5359
        %v5361 = vsub.f32 %v5357, %v5360
        %v5362 = vmul.f32 %v5361, 1.442695
        %v5363 = vpow.pop %v5362
        %v5364 = vsel %vm2613, %v5363, 0.0
        %5365 = vadd.xlane.f32.xlu0 %v5364
        %v5366 = vpop.xlane.xlu0 %5365
        %v5367 = vrcp.pop %v5366
        %v5368 = vmul.f32 %v5363, %v5367
        %v5369 = vpack.c.bf16 %v5368, %v5368
        %5370 = vrot.lane.b32.xlu0 %v4863, 32
        %v5371 = vpop.permute.xlu0 %5370
        %v5373 = vsel %vm2613, %v5369, 0
        %v5376 = vsel %vm2630, %v5371, 0
        %5378 = vmatprep.subr.bf16.mxu0 0
        %5379 = vmatpush1.bf16.msra.mxu0 0
        %5380 = vmatprep.subr.bf16.mxu0 0
        %5381 = vmatpush1.bf16.msra.mxu0 0
        %5382 = vmatprep.subr.bf16.mxu0 0
        %5383 = vmatpush1.bf16.msra.mxu0 0
        %5384 = vmatprep.subr.bf16.mxu0 0
        %5385 = vmatpush1.bf16.msra.mxu0 0
        %5386 = vmatprep.subr.bf16.mxu0 0
        %5387 = vmatpush1.bf16.msra.mxu0 0
        %5388 = vmatprep.subr.bf16.mxu0 0
        %5389 = vmatpush1.bf16.msra.mxu0 0
        %5390 = vmatprep.subr.bf16.mxu0 0
        %5391 = vmatpush1.bf16.msra.mxu0 0
        %5392 = vmatprep.subr.bf16.mxu0 0
        %5393 = vmatpush1.bf16.msra.mxu0 %v5376
        %5394 = vmatprep.subr.bf16.mxu0 0
        %5395 = vmatpush2.bf16.msra.mxu0 0
        %5396 = vmatprep.subr.bf16.mxu0 0
        %5397 = vmatpush2.bf16.msra.mxu0 0
        %5398 = vmatprep.subr.bf16.mxu0 0
        %5399 = vmatpush2.bf16.msra.mxu0 0
        %5400 = vmatprep.subr.bf16.mxu0 0
        %5401 = vmatpush2.bf16.msra.mxu0 0
        %5402 = vmatprep.subr.bf16.mxu0 0
        %5403 = vmatpush2.bf16.msra.mxu0 0
        %5404 = vmatprep.subr.bf16.mxu0 0
        %5405 = vmatpush2.bf16.msra.mxu0 0
        %5406 = vmatprep.subr.bf16.mxu0 0
        %5407 = vmatpush2.bf16.msra.mxu0 0
        %5408 = vmatprep.subr.bf16.mxu0 0
        %5409 = vmatpush2.bf16.msra.mxu0 0
        %5410 = vmatprep.mubr.bf16.mxu0 0
        %5411 = vmatmul.mubr.bf16.gmra.mxu0 %v5373
        %v5412 = vpop.f32.mrf.mxu0
        %v5413 = vadd.f32 0.0, %v5412
        %v5414 = vpop.f32.mrf.mxu0
        %v5415 = vpop.f32.mrf.mxu0
        %v5416 = vpop.f32.mrf.mxu0
        %5417 = vdwg.mxu0
        %v5418 = vpack.c.bf16 %v5413, %v5413
        %v5423 = vunpack.c.l.b16 %v4512
        %v5424 = vunpack.c.l.b16 %v4513
        %v5425 = vunpack.c.l.b16 %v4514
        %v5426 = vunpack.c.l.b16 %v4515
        %v5427 = vpack.c.b16 %v5424, %v5423
        %v5428 = vpack.c.b16 %v5426, %v5425
        %v5432 = vsel %vm2564, %v5418, 0
        %5434 = vmatprep.subr.bf16.mxu0 0
        %5435 = vmatpush1.bf16.msra.mxu0 0
        %5436 = vmatprep.subr.bf16.mxu0 0
        %5437 = vmatpush1.bf16.msra.mxu0 0
        %5438 = vmatprep.subr.bf16.mxu0 0
        %5439 = vmatpush1.bf16.msra.mxu0 0
        %5440 = vmatprep.subr.bf16.mxu0 0
        %5441 = vmatpush1.bf16.msra.mxu0 0
        %5442 = vmatprep.subr.bf16.mxu0 0
        %5443 = vmatpush1.bf16.msra.mxu0 0
        %5444 = vmatprep.subr.bf16.mxu0 0
        %5445 = vmatpush1.bf16.msra.mxu0 0
        %5446 = vmatprep.subr.bf16.mxu0 0
        %5447 = vmatpush1.bf16.msra.mxu0 %v5428
        %5448 = vmatprep.subr.bf16.mxu0 0
        %5449 = vmatpush1.bf16.msra.mxu0 %v5427
        %5450 = vmatprep.subr.bf16.mxu0 0
        %5451 = vmatpush2.bf16.msra.mxu0 0
        %5452 = vmatprep.subr.bf16.mxu0 0
        %5453 = vmatpush2.bf16.msra.mxu0 0
        %5454 = vmatprep.subr.bf16.mxu0 0
        %5455 = vmatpush2.bf16.msra.mxu0 0
        %5456 = vmatprep.subr.bf16.mxu0 0
        %5457 = vmatpush2.bf16.msra.mxu0 0
        %5458 = vmatprep.subr.bf16.mxu0 0
        %5459 = vmatpush2.bf16.msra.mxu0 0
        %5460 = vmatprep.subr.bf16.mxu0 0
        %5461 = vmatpush2.bf16.msra.mxu0 0
        %5462 = vmatprep.subr.bf16.mxu0 0
        %5463 = vmatpush2.bf16.msra.mxu0 0
        %5464 = vmatprep.subr.bf16.mxu0 0
        %5465 = vmatpush2.bf16.msra.mxu0 0
        %5466 = vmatprep.mubr.bf16.mxu0 0
        %5467 = vmatmul.mubr.bf16.gmra.mxu0 %v5432
        %v5468 = vpop.f32.mrf.mxu0
        %v5469 = vadd.f32 0.0, %v5468
        %v5470 = vpop.f32.mrf.mxu0
        %v5471 = vpop.f32.mrf.mxu0
        %v5472 = vpop.f32.mrf.mxu0
        %5473 = vdwg.mxu0
        %v5474 = vadd.f32 %v5305, %v5469
        %v5476 = vlaneseq
        %v5477 = vshrl.u32 %v5476, 7
        %v5478 = vsub.s32 0, %v5477
        %v5479 = vrot.slane %v4517, %v5478
        %v5481 = vadd.f32 %v5474, %v5479
        %v5482 = vadd.f32 %v4412, %v5481
        %s5483 = scalar_lea.vmem [#allocation42], 1
        %v5484 = vld [vmem:[%s5483] sm:$0x1]
        %s5485 = scalar_lea.vmem [#allocation40], 1
        %v5486 = vld [vmem:[%s5485] sm:$0x1]
        %5487 = vadd.xlane.f32.xlu0 %v5482
        %v5488 = vpop.xlane.xlu0 %5487
        %v5489 = vmul.f32 %v5488, %v1817
        %v5490 = vsub.f32 %v5482, %v5489
        %v5491 = vmul.f32 %v5490, %v5490
        %5492 = vadd.xlane.f32.xlu0 %v5491
        %v5493 = vpop.xlane.xlu0 %5492
        %v5494 = vmul.f32 %v5493, %v1817
        %v5495 = vadd.f32 %v5494, 1e-05
        %v5496 = vrsqrt.pop %v5495
        %v5497 = vmul.f32 %v5490, %v5496
        %v5499 = vlaneseq
        %v5500 = vshrl.u32 %v5499, 7
        %v5501 = vsub.s32 0, %v5500
        %v5502 = vrot.slane %v5484, %v5501
        %v5504 = vmul.f32 %v5497, %v5502
        %v5506 = vlaneseq
        %v5507 = vshrl.u32 %v5506, 7
        %v5508 = vsub.s32 0, %v5507
        %v5509 = vrot.slane %v5486, %v5508
        %v5511 = vadd.f32 %v5504, %v5509
        %s5512 = scalar_lea.vmem [#allocation21], 128
        %v5513 = vld [vmem:[%s5512] sm:$0xff]
        %v5514 = vld [vmem:[%s5512 + $0x8] sm:$0xff]
        %v5515 = vld [vmem:[%s5512 + $0x10] sm:$0xff]
        %v5516 = vld [vmem:[%s5512 + $0x18] sm:$0xff]
        %v5517 = vld [vmem:[%s5512 + $0x20] sm:$0xff]
        %v5518 = vld [vmem:[%s5512 + $0x28] sm:$0xff]
        %v5519 = vld [vmem:[%s5512 + $0x30] sm:$0xff]
        %v5520 = vld [vmem:[%s5512 + $0x38] sm:$0xff]
        %v5521 = vld [vmem:[%s5512 + $0x40] sm:$0xff]
        %v5522 = vld [vmem:[%s5512 + $0x48] sm:$0xff]
        %v5523 = vld [vmem:[%s5512 + $0x50] sm:$0xff]
        %v5524 = vld [vmem:[%s5512 + $0x58] sm:$0xff]
        %v5525 = vld [vmem:[%s5512 + $0x60] sm:$0xff]
        %v5526 = vld [vmem:[%s5512 + $0x68] sm:$0xff]
        %v5527 = vld [vmem:[%s5512 + $0x70] sm:$0xff]
        %v5528 = vld [vmem:[%s5512 + $0x78] sm:$0xff]
        %s5529 = scalar_lea.vmem [#allocation19], 2
        %v5530 = vld [vmem:[%s5529] sm:$0x3]
        %s5531 = scalar_lea.vmem %s27, 8
        %v5532 = vld [vmem:[%s5531] sm:$0x1f]
        %s5533 = scalar_lea.vmem [#allocation18], 1
        %v5534 = vld [vmem:[%s5533] sm:$0x1]
        %s5535 = scalar_lea.vmem [#allocation16], 1
        %v5536 = vld [vmem:[%s5535] sm:$0x1]
        %s5537 = scalar_lea.vmem [#allocation15], 1
        %v5538 = vld [vmem:[%s5537] sm:$0x1]
        %s5539 = scalar_lea.vmem [#allocation24], 64
        %v5540 = vld [vmem:[%s5539] sm:$0xf]
        %v5541 = vld [vmem:[%s5539 + $0x4] sm:$0xf]
        %v5542 = vld [vmem:[%s5539 + $0x8] sm:$0xf]
        %v5543 = vld [vmem:[%s5539 + $0xc] sm:$0xf]
        %v5544 = vld [vmem:[%s5539 + $0x10] sm:$0xf]
        %v5545 = vld [vmem:[%s5539 + $0x14] sm:$0xf]
        %v5546 = vld [vmem:[%s5539 + $0x18] sm:$0xf]
        %v5547 = vld [vmem:[%s5539 + $0x1c] sm:$0xf]
        %v5548 = vld [vmem:[%s5539 + $0x20] sm:$0xf]
        %v5549 = vld [vmem:[%s5539 + $0x24] sm:$0xf]
        %v5550 = vld [vmem:[%s5539 + $0x28] sm:$0xf]
        %v5551 = vld [vmem:[%s5539 + $0x2c] sm:$0xf]
        %v5552 = vld [vmem:[%s5539 + $0x30] sm:$0xf]
        %v5553 = vld [vmem:[%s5539 + $0x34] sm:$0xf]
        %v5554 = vld [vmem:[%s5539 + $0x38] sm:$0xf]
        %v5555 = vld [vmem:[%s5539 + $0x3c] sm:$0xf]
        %s5556 = scalar_lea.vmem [#allocation22], 1
        %v5557 = vld [vmem:[%s5556] sm:$0x1]
        %v5558 = vpack.c.bf16 %v5511, %v5511
        %v5560 = vlaneseq
        %v5561 = vshrl.u32 %v5560, 7
        %v5562 = vsub.s32 0, %v5561
        %v5563 = vrot.slane %v5530, %v5562
        %v5564 = vlaneseq
        %v5565 = vshrl.u32 %v5564, 7
        %v5566 = vsub.s32 1, %v5565
        %v5567 = vrot.slane %v5530, %v5566
        %v5586 = vunpack.c.l.b16 %v5513
        %v5587 = vunpack.c.h.b16 %v5513
        %v5588 = vunpack.c.l.b16 %v5514
        %v5589 = vunpack.c.h.b16 %v5514
        %v5590 = vunpack.c.l.b16 %v5515
        %v5591 = vunpack.c.h.b16 %v5515
        %v5592 = vunpack.c.l.b16 %v5516
        %v5593 = vunpack.c.h.b16 %v5516
        %v5594 = vunpack.c.l.b16 %v5517
        %v5595 = vunpack.c.h.b16 %v5517
        %v5596 = vunpack.c.l.b16 %v5518
        %v5597 = vunpack.c.h.b16 %v5518
        %v5598 = vunpack.c.l.b16 %v5519
        %v5599 = vunpack.c.h.b16 %v5519
        %v5600 = vunpack.c.l.b16 %v5520
        %v5601 = vunpack.c.h.b16 %v5520
        %v5602 = vunpack.c.l.b16 %v5521
        %v5603 = vunpack.c.h.b16 %v5521
        %v5604 = vunpack.c.l.b16 %v5522
        %v5605 = vunpack.c.h.b16 %v5522
        %v5606 = vunpack.c.l.b16 %v5523
        %v5607 = vunpack.c.h.b16 %v5523
        %v5608 = vunpack.c.l.b16 %v5524
        %v5609 = vunpack.c.h.b16 %v5524
        %v5610 = vunpack.c.l.b16 %v5525
        %v5611 = vunpack.c.h.b16 %v5525
        %v5612 = vunpack.c.l.b16 %v5526
        %v5613 = vunpack.c.h.b16 %v5526
        %v5614 = vunpack.c.l.b16 %v5527
        %v5615 = vunpack.c.h.b16 %v5527
        %v5616 = vunpack.c.l.b16 %v5528
        %v5617 = vunpack.c.h.b16 %v5528
        %v5618 = vpack.c.b16 %v5588, %v5586
        %v5619 = vpack.c.b16 %v5589, %v5587
        %v5620 = vpack.c.b16 %v5592, %v5590
        %v5621 = vpack.c.b16 %v5593, %v5591
        %v5622 = vpack.c.b16 %v5596, %v5594
        %v5623 = vpack.c.b16 %v5597, %v5595
        %v5624 = vpack.c.b16 %v5600, %v5598
        %v5625 = vpack.c.b16 %v5601, %v5599
        %v5626 = vpack.c.b16 %v5604, %v5602
        %v5627 = vpack.c.b16 %v5605, %v5603
        %v5628 = vpack.c.b16 %v5608, %v5606
        %v5629 = vpack.c.b16 %v5609, %v5607
        %v5630 = vpack.c.b16 %v5612, %v5610
        %v5631 = vpack.c.b16 %v5613, %v5611
        %v5632 = vpack.c.b16 %v5616, %v5614
        %v5633 = vpack.c.b16 %v5617, %v5615
        %5650 = vmatprep.subr.bf16.mxu0 %v5633
        %5651 = vmatpush1.bf16.msra.mxu0 %v5632
        %5652 = vmatprep.subr.bf16.mxu0 %v5631
        %5653 = vmatpush1.bf16.msra.mxu0 %v5630
        %5654 = vmatprep.subr.bf16.mxu0 %v5629
        %5655 = vmatpush1.bf16.msra.mxu0 %v5628
        %5656 = vmatprep.subr.bf16.mxu0 %v5627
        %5657 = vmatpush1.bf16.msra.mxu0 %v5626
        %5658 = vmatprep.subr.bf16.mxu0 %v5625
        %5659 = vmatpush1.bf16.msra.mxu0 %v5624
        %5660 = vmatprep.subr.bf16.mxu0 %v5623
        %5661 = vmatpush1.bf16.msra.mxu0 %v5622
        %5662 = vmatprep.subr.bf16.mxu0 %v5621
        %5663 = vmatpush1.bf16.msra.mxu0 %v5620
        %5664 = vmatprep.subr.bf16.mxu0 %v5619
        %5665 = vmatpush1.bf16.msra.mxu0 %v5618
        %5666 = vmatprep.subr.bf16.mxu0 0
        %5667 = vmatpush2.bf16.msra.mxu0 0
        %5668 = vmatprep.subr.bf16.mxu0 0
        %5669 = vmatpush2.bf16.msra.mxu0 0
        %5670 = vmatprep.subr.bf16.mxu0 0
        %5671 = vmatpush2.bf16.msra.mxu0 0
        %5672 = vmatprep.subr.bf16.mxu0 0
        %5673 = vmatpush2.bf16.msra.mxu0 0
        %5674 = vmatprep.subr.bf16.mxu0 0
        %5675 = vmatpush2.bf16.msra.mxu0 0
        %5676 = vmatprep.subr.bf16.mxu0 0
        %5677 = vmatpush2.bf16.msra.mxu0 0
        %5678 = vmatprep.subr.bf16.mxu0 0
        %5679 = vmatpush2.bf16.msra.mxu0 0
        %5680 = vmatprep.subr.bf16.mxu0 0
        %5681 = vmatpush2.bf16.msra.mxu0 0
        %5682 = vmatprep.mubr.bf16.mxu0 0
        %5683 = vmatmul.mubr.bf16.gmra.mxu0 %v5558
        %v5684 = vpop.f32.mrf.mxu0
        %v5685 = vadd.f32 %v5563, %v5684
        %v5686 = vpop.f32.mrf.mxu0
        %v5687 = vadd.f32 %v5567, %v5686
        %v5688 = vpop.f32.mrf.mxu0
        %v5689 = vpop.f32.mrf.mxu0
        %5690 = vdwg.mxu0
        %v5691 = vsub.f32 0.0, %v5687
        %v5692 = vmul.f32 %v5691, 1.442695
        %v5693 = vpow.pop %v5692
        %v5694 = vadd.f32 %v5693, 1.0
        %v5695 = vrcp.pop %v5694
        %v5696 = vmul.f32 1.0, %v5695
        %v5697 = vmul.f32 %v5685, %v5696
        %v5698 = vsel %vm3453, %v5697, 0.0
        %v5699 = vlaneseq
        %v5700 = vshrl.u32 %v5699, 7
        %v5701 = vsub.s32 2, %v5700
        %v5702 = vrot.slane %v5532, %v5701
        %v5703 = vmul.f32 %v5698, %v5702
        %v5704 = vrot.slane %v5698, 6
        %v5705 = vsel %vm3466, %v5704, 0.0
        %v5706 = vlaneseq
        %v5707 = vshrl.u32 %v5706, 7
        %v5708 = vsub.s32 0, %v5707
        %v5709 = vrot.slane %v5532, %v5708
        %v5710 = vmul.f32 %v5705, %v5709
        %v5711 = vadd.f32 %v5703, %v5710
        %v5712 = vrot.slane %v5698, 7
        %v5713 = vsel %vm3480, %v5712, 0.0
        %v5714 = vlaneseq
        %v5715 = vshrl.u32 %v5714, 7
        %v5716 = vsub.s32 1, %v5715
        %v5717 = vrot.slane %v5532, %v5716
        %v5718 = vmul.f32 %v5713, %v5717
        %v5719 = vadd.f32 %v5711, %v5718
        %v5720 = vrot.slane %v5698, 1
        %v5721 = vsel %vm3494, %v5720, 0.0
        %v5722 = vlaneseq
        %v5723 = vshrl.u32 %v5722, 7
        %v5724 = vsub.s32 3, %v5723
        %v5725 = vrot.slane %v5532, %v5724
        %v5726 = vmul.f32 %v5721, %v5725
        %v5727 = vadd.f32 %v5719, %v5726
        %v5728 = vrot.slane %v5698, 2
        %v5729 = vsel %vm3508, %v5728, 0.0
        %v5730 = vlaneseq
        %v5731 = vshrl.u32 %v5730, 7
        %v5732 = vsub.s32 4, %v5731
        %v5733 = vrot.slane %v5532, %v5732
        %v5734 = vmul.f32 %v5729, %v5733
        %v5735 = vadd.f32 %v5727, %v5734
        %v5737 = vlaneseq
        %v5738 = vshrl.u32 %v5737, 7
        %v5739 = vsub.s32 0, %v5738
        %v5740 = vrot.slane %v5534, %v5739
        %v5742 = vadd.f32 %v5735, %v5740
        %v5744 = vlaneseq
        %v5745 = vshrl.u32 %v5744, 7
        %v5746 = vsub.s32 0, %v5745
        %v5747 = vrot.slane %v5536, %v5746
        %v5749 = vmul.f32 %v5742, %v5747
        %v5751 = vlaneseq
        %v5752 = vshrl.u32 %v5751, 7
        %v5753 = vsub.s32 0, %v5752
        %v5754 = vrot.slane %v5538, %v5753
        %v5756 = vadd.f32 %v5749, %v5754
        %v5757 = vsub.f32 0.0, %v5756
        %v5758 = vmul.f32 %v5757, 1.442695
        %v5759 = vpow.pop %v5758
        %v5760 = vadd.f32 %v5759, 1.0
        %v5761 = vrcp.pop %v5760
        %v5762 = vmul.f32 1.0, %v5761
        %v5763 = vmul.f32 %v5756, %v5762
        %v5764 = vpack.c.bf16 %v5763, %v5763
        %v5766 = vlaneseq
        %v5767 = vshrl.u32 %v5766, 7
        %v5768 = vsub.s32 0, %v5767
        %v5769 = vrot.slane %v5557, %v5768
        %v5787 = vunpack.c.l.b16 %v5540
        %v5788 = vunpack.c.l.b16 %v5541
        %v5789 = vunpack.c.l.b16 %v5542
        %v5790 = vunpack.c.l.b16 %v5543
        %v5791 = vunpack.c.l.b16 %v5544
        %v5792 = vunpack.c.l.b16 %v5545
        %v5793 = vunpack.c.l.b16 %v5546
        %v5794 = vunpack.c.l.b16 %v5547
        %v5795 = vunpack.c.l.b16 %v5548
        %v5796 = vunpack.c.l.b16 %v5549
        %v5797 = vunpack.c.l.b16 %v5550
        %v5798 = vunpack.c.l.b16 %v5551
        %v5799 = vunpack.c.l.b16 %v5552
        %v5800 = vunpack.c.l.b16 %v5553
        %v5801 = vunpack.c.l.b16 %v5554
        %v5802 = vunpack.c.l.b16 %v5555
        %v5803 = vpack.c.b16 %v5788, %v5787
        %v5804 = vpack.c.b16 %v5790, %v5789
        %v5805 = vpack.c.b16 %v5792, %v5791
        %v5806 = vpack.c.b16 %v5794, %v5793
        %v5807 = vpack.c.b16 %v5796, %v5795
        %v5808 = vpack.c.b16 %v5798, %v5797
        %v5809 = vpack.c.b16 %v5800, %v5799
        %v5810 = vpack.c.b16 %v5802, %v5801
        %5819 = vmatprep.subr.bf16.mxu0 0
        %5820 = vmatpush1.bf16.msra.mxu0 %v5810
        %5821 = vmatprep.subr.bf16.mxu0 0
        %5822 = vmatpush1.bf16.msra.mxu0 %v5809
        %5823 = vmatprep.subr.bf16.mxu0 0
        %5824 = vmatpush1.bf16.msra.mxu0 %v5808
        %5825 = vmatprep.subr.bf16.mxu0 0
        %5826 = vmatpush1.bf16.msra.mxu0 %v5807
        %5827 = vmatprep.subr.bf16.mxu0 0
        %5828 = vmatpush1.bf16.msra.mxu0 %v5806
        %5829 = vmatprep.subr.bf16.mxu0 0
        %5830 = vmatpush1.bf16.msra.mxu0 %v5805
        %5831 = vmatprep.subr.bf16.mxu0 0
        %5832 = vmatpush1.bf16.msra.mxu0 %v5804
        %5833 = vmatprep.subr.bf16.mxu0 0
        %5834 = vmatpush1.bf16.msra.mxu0 %v5803
        %5835 = vmatprep.subr.bf16.mxu0 0
        %5836 = vmatpush2.bf16.msra.mxu0 0
        %5837 = vmatprep.subr.bf16.mxu0 0
        %5838 = vmatpush2.bf16.msra.mxu0 0
        %5839 = vmatprep.subr.bf16.mxu0 0
        %5840 = vmatpush2.bf16.msra.mxu0 0
        %5841 = vmatprep.subr.bf16.mxu0 0
        %5842 = vmatpush2.bf16.msra.mxu0 0
        %5843 = vmatprep.subr.bf16.mxu0 0
        %5844 = vmatpush2.bf16.msra.mxu0 0
        %5845 = vmatprep.subr.bf16.mxu0 0
        %5846 = vmatpush2.bf16.msra.mxu0 0
        %5847 = vmatprep.subr.bf16.mxu0 0
        %5848 = vmatpush2.bf16.msra.mxu0 0
        %5849 = vmatprep.subr.bf16.mxu0 0
        %5850 = vmatpush2.bf16.msra.mxu0 0
        %5851 = vmatprep.mubr.bf16.mxu0 0
        %5852 = vmatmul.mubr.bf16.gmra.mxu0 %v5764
        %v5853 = vpop.f32.mrf.mxu0
        %v5854 = vadd.f32 %v5769, %v5853
        %v5855 = vpop.f32.mrf.mxu0
        %v5856 = vpop.f32.mrf.mxu0
        %v5857 = vpop.f32.mrf.mxu0
        %5858 = vdwg.mxu0
        %v5859 = vadd.f32 %v5482, %v5854
        %s5860 = scalar_lea.vmem [#allocation48], 1
        %v5861 = vld [vmem:[%s5860] sm:$0x1]
        %s5862 = scalar_lea.vmem [#allocation46], 1
        %v5863 = vld [vmem:[%s5862] sm:$0x1]
        %5864 = vadd.xlane.f32.xlu0 %v5859
        %v5865 = vpop.xlane.xlu0 %5864
        %v5866 = vmul.f32 %v5865, %v1817
        %v5867 = vsub.f32 %v5859, %v5866
        %v5868 = vmul.f32 %v5867, %v5867
        %5869 = vadd.xlane.f32.xlu0 %v5868
        %v5870 = vpop.xlane.xlu0 %5869
        %v5871 = vmul.f32 %v5870, %v1817
        %v5872 = vadd.f32 %v5871, 1e-05
        %v5873 = vrsqrt.pop %v5872
        %v5874 = vmul.f32 %v5867, %v5873
        %v5876 = vlaneseq
        %v5877 = vshrl.u32 %v5876, 7
        %v5878 = vsub.s32 0, %v5877
        %v5879 = vrot.slane %v5861, %v5878
        %v5881 = vmul.f32 %v5874, %v5879
        %v5883 = vlaneseq
        %v5884 = vshrl.u32 %v5883, 7
        %v5885 = vsub.s32 0, %v5884
        %v5886 = vrot.slane %v5863, %v5885
        %v5888 = vadd.f32 %v5881, %v5886
        %s5889 = scalar_lea.vmem [#allocation34], 128
        %v5890 = vld [vmem:[%s5889] sm:$0xff]
        %v5891 = vld [vmem:[%s5889 + $0x8] sm:$0xff]
        %v5892 = vld [vmem:[%s5889 + $0x10] sm:$0xff]
        %v5893 = vld [vmem:[%s5889 + $0x18] sm:$0xff]
        %v5894 = vld [vmem:[%s5889 + $0x20] sm:$0xff]
        %v5895 = vld [vmem:[%s5889 + $0x28] sm:$0xff]
        %v5896 = vld [vmem:[%s5889 + $0x30] sm:$0xff]
        %v5897 = vld [vmem:[%s5889 + $0x38] sm:$0xff]
        %v5898 = vld [vmem:[%s5889 + $0x40] sm:$0xff]
        %v5899 = vld [vmem:[%s5889 + $0x48] sm:$0xff]
        %v5900 = vld [vmem:[%s5889 + $0x50] sm:$0xff]
        %v5901 = vld [vmem:[%s5889 + $0x58] sm:$0xff]
        %v5902 = vld [vmem:[%s5889 + $0x60] sm:$0xff]
        %v5903 = vld [vmem:[%s5889 + $0x68] sm:$0xff]
        %v5904 = vld [vmem:[%s5889 + $0x70] sm:$0xff]
        %v5905 = vld [vmem:[%s5889 + $0x78] sm:$0xff]
        %s5906 = scalar_lea.vmem [#allocation31], 2
        %v5907 = vld [vmem:[%s5906] sm:$0x3]
        %s5908 = scalar_lea.vmem [#allocation36], 128
        %v5909 = vld [vmem:[%s5908] sm:$0xf]
        %v5910 = vld [vmem:[%s5908 + $0x4] sm:$0xf]
        %v5911 = vld [vmem:[%s5908 + $0x8] sm:$0xf]
        %v5912 = vld [vmem:[%s5908 + $0xc] sm:$0xf]
        %v5913 = vld [vmem:[%s5908 + $0x10] sm:$0xf]
        %v5914 = vld [vmem:[%s5908 + $0x14] sm:$0xf]
        %v5915 = vld [vmem:[%s5908 + $0x18] sm:$0xf]
        %v5916 = vld [vmem:[%s5908 + $0x1c] sm:$0xf]
        %v5917 = vld [vmem:[%s5908 + $0x20] sm:$0xf]
        %v5918 = vld [vmem:[%s5908 + $0x24] sm:$0xf]
        %v5919 = vld [vmem:[%s5908 + $0x28] sm:$0xf]
        %v5920 = vld [vmem:[%s5908 + $0x2c] sm:$0xf]
        %v5921 = vld [vmem:[%s5908 + $0x30] sm:$0xf]
        %v5922 = vld [vmem:[%s5908 + $0x34] sm:$0xf]
        %v5923 = vld [vmem:[%s5908 + $0x38] sm:$0xf]
        %v5924 = vld [vmem:[%s5908 + $0x3c] sm:$0xf]
        %v5925 = vld [vmem:[%s5908 + $0x40] sm:$0xf]
        %v5926 = vld [vmem:[%s5908 + $0x44] sm:$0xf]
        %v5927 = vld [vmem:[%s5908 + $0x48] sm:$0xf]
        %v5928 = vld [vmem:[%s5908 + $0x4c] sm:$0xf]
        %v5929 = vld [vmem:[%s5908 + $0x50] sm:$0xf]
        %v5930 = vld [vmem:[%s5908 + $0x54] sm:$0xf]
        %v5931 = vld [vmem:[%s5908 + $0x58] sm:$0xf]
        %v5932 = vld [vmem:[%s5908 + $0x5c] sm:$0xf]
        %v5933 = vld [vmem:[%s5908 + $0x60] sm:$0xf]
        %v5934 = vld [vmem:[%s5908 + $0x64] sm:$0xf]
        %v5935 = vld [vmem:[%s5908 + $0x68] sm:$0xf]
        %v5936 = vld [vmem:[%s5908 + $0x6c] sm:$0xf]
        %v5937 = vld [vmem:[%s5908 + $0x70] sm:$0xf]
        %v5938 = vld [vmem:[%s5908 + $0x74] sm:$0xf]
        %v5939 = vld [vmem:[%s5908 + $0x78] sm:$0xf]
        %v5940 = vld [vmem:[%s5908 + $0x7c] sm:$0xf]
        %s5941 = scalar_lea.vmem [#allocation33], 1
        %v5942 = vld [vmem:[%s5941] sm:$0x1]
        %v5943 = vpack.c.bf16 %v5888, %v5888
        %v5945 = vlaneseq
        %v5946 = vshrl.u32 %v5945, 7
        %v5947 = vsub.s32 0, %v5946
        %v5948 = vrot.slane %v5907, %v5947
        %v5949 = vlaneseq
        %v5950 = vshrl.u32 %v5949, 7
        %v5951 = vsub.s32 1, %v5950
        %v5952 = vrot.slane %v5907, %v5951
        %v5971 = vunpack.c.l.b16 %v5890
        %v5972 = vunpack.c.h.b16 %v5890
        %v5973 = vunpack.c.l.b16 %v5891
        %v5974 = vunpack.c.h.b16 %v5891
        %v5975 = vunpack.c.l.b16 %v5892
        %v5976 = vunpack.c.h.b16 %v5892
        %v5977 = vunpack.c.l.b16 %v5893
        %v5978 = vunpack.c.h.b16 %v5893
        %v5979 = vunpack.c.l.b16 %v5894
        %v5980 = vunpack.c.h.b16 %v5894
        %v5981 = vunpack.c.l.b16 %v5895
        %v5982 = vunpack.c.h.b16 %v5895
        %v5983 = vunpack.c.l.b16 %v5896
        %v5984 = vunpack.c.h.b16 %v5896
        %v5985 = vunpack.c.l.b16 %v5897
        %v5986 = vunpack.c.h.b16 %v5897
        %v5987 = vunpack.c.l.b16 %v5898
        %v5988 = vunpack.c.h.b16 %v5898
        %v5989 = vunpack.c.l.b16 %v5899
        %v5990 = vunpack.c.h.b16 %v5899
        %v5991 = vunpack.c.l.b16 %v5900
        %v5992 = vunpack.c.h.b16 %v5900
        %v5993 = vunpack.c.l.b16 %v5901
        %v5994 = vunpack.c.h.b16 %v5901
        %v5995 = vunpack.c.l.b16 %v5902
        %v5996 = vunpack.c.h.b16 %v5902
        %v5997 = vunpack.c.l.b16 %v5903
        %v5998 = vunpack.c.h.b16 %v5903
        %v5999 = vunpack.c.l.b16 %v5904
        %v6000 = vunpack.c.h.b16 %v5904
        %v6001 = vunpack.c.l.b16 %v5905
        %v6002 = vunpack.c.h.b16 %v5905
        %v6003 = vpack.c.b16 %v5973, %v5971
        %v6004 = vpack.c.b16 %v5974, %v5972
        %v6005 = vpack.c.b16 %v5977, %v5975
        %v6006 = vpack.c.b16 %v5978, %v5976
        %v6007 = vpack.c.b16 %v5981, %v5979
        %v6008 = vpack.c.b16 %v5982, %v5980
        %v6009 = vpack.c.b16 %v5985, %v5983
        %v6010 = vpack.c.b16 %v5986, %v5984
        %v6011 = vpack.c.b16 %v5989, %v5987
        %v6012 = vpack.c.b16 %v5990, %v5988
        %v6013 = vpack.c.b16 %v5993, %v5991
        %v6014 = vpack.c.b16 %v5994, %v5992
        %v6015 = vpack.c.b16 %v5997, %v5995
        %v6016 = vpack.c.b16 %v5998, %v5996
        %v6017 = vpack.c.b16 %v6001, %v5999
        %v6018 = vpack.c.b16 %v6002, %v6000
        %6035 = vmatprep.subr.bf16.mxu0 %v6018
        %6036 = vmatpush1.bf16.msra.mxu0 %v6017
        %6037 = vmatprep.subr.bf16.mxu0 %v6016
        %6038 = vmatpush1.bf16.msra.mxu0 %v6015
        %6039 = vmatprep.subr.bf16.mxu0 %v6014
        %6040 = vmatpush1.bf16.msra.mxu0 %v6013
        %6041 = vmatprep.subr.bf16.mxu0 %v6012
        %6042 = vmatpush1.bf16.msra.mxu0 %v6011
        %6043 = vmatprep.subr.bf16.mxu0 %v6010
        %6044 = vmatpush1.bf16.msra.mxu0 %v6009
        %6045 = vmatprep.subr.bf16.mxu0 %v6008
        %6046 = vmatpush1.bf16.msra.mxu0 %v6007
        %6047 = vmatprep.subr.bf16.mxu0 %v6006
        %6048 = vmatpush1.bf16.msra.mxu0 %v6005
        %6049 = vmatprep.subr.bf16.mxu0 %v6004
        %6050 = vmatpush1.bf16.msra.mxu0 %v6003
        %6051 = vmatprep.subr.bf16.mxu0 0
        %6052 = vmatpush2.bf16.msra.mxu0 0
        %6053 = vmatprep.subr.bf16.mxu0 0
        %6054 = vmatpush2.bf16.msra.mxu0 0
        %6055 = vmatprep.subr.bf16.mxu0 0
        %6056 = vmatpush2.bf16.msra.mxu0 0
        %6057 = vmatprep.subr.bf16.mxu0 0
        %6058 = vmatpush2.bf16.msra.mxu0 0
        %6059 = vmatprep.subr.bf16.mxu0 0
        %6060 = vmatpush2.bf16.msra.mxu0 0
        %6061 = vmatprep.subr.bf16.mxu0 0
        %6062 = vmatpush2.bf16.msra.mxu0 0
        %6063 = vmatprep.subr.bf16.mxu0 0
        %6064 = vmatpush2.bf16.msra.mxu0 0
        %6065 = vmatprep.subr.bf16.mxu0 0
        %6066 = vmatpush2.bf16.msra.mxu0 0
        %6067 = vmatprep.mubr.bf16.mxu0 0
        %6068 = vmatmul.mubr.bf16.gmra.mxu0 %v5943
        %v6069 = vpop.f32.mrf.mxu0
        %v6070 = vadd.f32 %v5948, %v6069
        %v6071 = vpop.f32.mrf.mxu0
        %v6072 = vadd.f32 %v5952, %v6071
        %v6073 = vpop.f32.mrf.mxu0
        %v6074 = vpop.f32.mrf.mxu0
        %6075 = vdwg.mxu0
        %v6076 = vsub.f32 0.0, %v6070
        %v6077 = vsub.f32 0.0, %v6072
        %v6078 = vmul.f32 %v6076, 1.442695
        %v6079 = vpow.pop %v6078
        %v6080 = vmul.f32 %v6077, 1.442695
        %v6081 = vpow.pop %v6080
        %v6082 = vadd.f32 %v6079, 1.0
        %v6083 = vadd.f32 %v6081, 1.0
        %v6084 = vrcp.pop %v6082
        %v6085 = vmul.f32 1.0, %v6084
        %v6086 = vrcp.pop %v6083
        %v6087 = vmul.f32 1.0, %v6086
        %v6088 = vmul.f32 %v6070, %v6085
        %v6089 = vmul.f32 %v6072, %v6087
        %v6090 = vpack.c.bf16 %v6088, %v6088
        %v6091 = vpack.c.bf16 %v6089, %v6089
        %v6093 = vlaneseq
        %v6094 = vshrl.u32 %v6093, 7
        %v6095 = vsub.s32 0, %v6094
        %v6096 = vrot.slane %v5942, %v6095
        %v6130 = vunpack.c.l.b16 %v5909
        %v6131 = vunpack.c.l.b16 %v5910
        %v6132 = vunpack.c.l.b16 %v5911
        %v6133 = vunpack.c.l.b16 %v5912
        %v6134 = vunpack.c.l.b16 %v5913
        %v6135 = vunpack.c.l.b16 %v5914
        %v6136 = vunpack.c.l.b16 %v5915
        %v6137 = vunpack.c.l.b16 %v5916
        %v6138 = vunpack.c.l.b16 %v5917
        %v6139 = vunpack.c.l.b16 %v5918
        %v6140 = vunpack.c.l.b16 %v5919
        %v6141 = vunpack.c.l.b16 %v5920
        %v6142 = vunpack.c.l.b16 %v5921
        %v6143 = vunpack.c.l.b16 %v5922
        %v6144 = vunpack.c.l.b16 %v5923
        %v6145 = vunpack.c.l.b16 %v5924
        %v6146 = vunpack.c.l.b16 %v5925
        %v6147 = vunpack.c.l.b16 %v5926
        %v6148 = vunpack.c.l.b16 %v5927
        %v6149 = vunpack.c.l.b16 %v5928
        %v6150 = vunpack.c.l.b16 %v5929
        %v6151 = vunpack.c.l.b16 %v5930
        %v6152 = vunpack.c.l.b16 %v5931
        %v6153 = vunpack.c.l.b16 %v5932
        %v6154 = vunpack.c.l.b16 %v5933
        %v6155 = vunpack.c.l.b16 %v5934
        %v6156 = vunpack.c.l.b16 %v5935
        %v6157 = vunpack.c.l.b16 %v5936
        %v6158 = vunpack.c.l.b16 %v5937
        %v6159 = vunpack.c.l.b16 %v5938
        %v6160 = vunpack.c.l.b16 %v5939
        %v6161 = vunpack.c.l.b16 %v5940
        %v6162 = vpack.c.b16 %v6131, %v6130
        %v6163 = vpack.c.b16 %v6133, %v6132
        %v6164 = vpack.c.b16 %v6135, %v6134
        %v6165 = vpack.c.b16 %v6137, %v6136
        %v6166 = vpack.c.b16 %v6139, %v6138
        %v6167 = vpack.c.b16 %v6141, %v6140
        %v6168 = vpack.c.b16 %v6143, %v6142
        %v6169 = vpack.c.b16 %v6145, %v6144
        %v6170 = vpack.c.b16 %v6147, %v6146
        %v6171 = vpack.c.b16 %v6149, %v6148
        %v6172 = vpack.c.b16 %v6151, %v6150
        %v6173 = vpack.c.b16 %v6153, %v6152
        %v6174 = vpack.c.b16 %v6155, %v6154
        %v6175 = vpack.c.b16 %v6157, %v6156
        %v6176 = vpack.c.b16 %v6159, %v6158
        %v6177 = vpack.c.b16 %v6161, %v6160
        %6194 = vmatprep.subr.bf16.mxu0 0
        %6195 = vmatpush1.bf16.msra.mxu0 %v6169
        %6196 = vmatprep.subr.bf16.mxu0 0
        %6197 = vmatpush1.bf16.msra.mxu0 %v6168
        %6198 = vmatprep.subr.bf16.mxu0 0
        %6199 = vmatpush1.bf16.msra.mxu0 %v6167
        %6200 = vmatprep.subr.bf16.mxu0 0
        %6201 = vmatpush1.bf16.msra.mxu0 %v6166
        %6202 = vmatprep.subr.bf16.mxu0 0
        %6203 = vmatpush1.bf16.msra.mxu0 %v6165
        %6204 = vmatprep.subr.bf16.mxu0 0
        %6205 = vmatpush1.bf16.msra.mxu0 %v6164
        %6206 = vmatprep.subr.bf16.mxu0 0
        %6207 = vmatpush1.bf16.msra.mxu0 %v6163
        %6208 = vmatprep.subr.bf16.mxu0 0
        %6209 = vmatpush1.bf16.msra.mxu0 %v6162
        %6210 = vmatprep.subr.bf16.mxu0 0
        %6211 = vmatpush2.bf16.msra.mxu0 %v6177
        %6212 = vmatprep.subr.bf16.mxu0 0
        %6213 = vmatpush2.bf16.msra.mxu0 %v6176
        %6214 = vmatprep.subr.bf16.mxu0 0
        %6215 = vmatpush2.bf16.msra.mxu0 %v6175
        %6216 = vmatprep.subr.bf16.mxu0 0
        %6217 = vmatpush2.bf16.msra.mxu0 %v6174
        %6218 = vmatprep.subr.bf16.mxu0 0
        %6219 = vmatpush2.bf16.msra.mxu0 %v6173
        %6220 = vmatprep.subr.bf16.mxu0 0
        %6221 = vmatpush2.bf16.msra.mxu0 %v6172
        %6222 = vmatprep.subr.bf16.mxu0 0
        %6223 = vmatpush2.bf16.msra.mxu0 %v6171
        %6224 = vmatprep.subr.bf16.mxu0 0
        %6225 = vmatpush2.bf16.msra.mxu0 %v6170
        %6226 = vmatprep.mubr.bf16.mxu0 %v6091
        %6227 = vmatmul.mubr.bf16.gmra.mxu0 %v6090
        %v6228 = vpop.f32.mrf.mxu0
        %v6229 = vadd.f32 %v6096, %v6228
        %v6230 = vpop.f32.mrf.mxu0
        %v6231 = vpop.f32.mrf.mxu0
        %v6232 = vpop.f32.mrf.mxu0
        %6233 = vdwg.mxu0
        %v6234 = vmul.f32 %v6229, 0.5
        %v6235 = vadd.f32 %v5859, %v6234
        %s6236 = scalar_lea.vmem [#allocation51], 1
        %v6237 = vld [vmem:[%s6236] sm:$0x1]
        %s6238 = scalar_lea.vmem [#allocation49], 1
        %v6239 = vld [vmem:[%s6238] sm:$0x1]
        %6240 = vadd.xlane.f32.xlu0 %v6235
        %v6241 = vpop.xlane.xlu0 %6240
        %v6242 = vmul.f32 %v6241, %v1817
        %v6243 = vsub.f32 %v6235, %v6242
        %v6244 = vmul.f32 %v6243, %v6243
        %6245 = vadd.xlane.f32.xlu0 %v6244
        %v6246 = vpop.xlane.xlu0 %6245
        %v6247 = vmul.f32 %v6246, %v1817
        %v6248 = vadd.f32 %v6247, 1e-05
        %v6249 = vrsqrt.pop %v6248
        %v6250 = vmul.f32 %v6243, %v6249
        %v6252 = vlaneseq
        %v6253 = vshrl.u32 %v6252, 7
        %v6254 = vsub.s32 0, %v6253
        %v6255 = vrot.slane %v6237, %v6254
        %v6257 = vmul.f32 %v6250, %v6255
        %v6259 = vlaneseq
        %v6260 = vshrl.u32 %v6259, 7
        %v6261 = vsub.s32 0, %v6260
        %v6262 = vrot.slane %v6239, %v6261
        %v6264 = vadd.f32 %v6257, %v6262
        %v6265 = vld [vmem:[#allocation57] sm:$0xf]
        %v6266 = vld [vmem:[#allocation57 + $0x4] sm:$0xf]
        %v6267 = vld [vmem:[#allocation57 + $0x8] sm:$0xf]
        %v6268 = vld [vmem:[#allocation57 + $0xc] sm:$0xf]
        %v6269 = vld [vmem:[#allocation57 + $0x10] sm:$0xf]
        %v6270 = vld [vmem:[#allocation57 + $0x14] sm:$0xf]
        %v6271 = vld [vmem:[#allocation57 + $0x18] sm:$0xf]
        %v6272 = vld [vmem:[#allocation57 + $0x1c] sm:$0xf]
        %v6273 = vld [vmem:[#allocation57 + $0x20] sm:$0xf]
        %v6274 = vld [vmem:[#allocation57 + $0x24] sm:$0xf]
        %v6275 = vld [vmem:[#allocation57 + $0x28] sm:$0xf]
        %v6276 = vld [vmem:[#allocation57 + $0x2c] sm:$0xf]
        %v6277 = vld [vmem:[#allocation57 + $0x30] sm:$0xf]
        %v6278 = vld [vmem:[#allocation57 + $0x34] sm:$0xf]
        %v6279 = vld [vmem:[#allocation57 + $0x38] sm:$0xf]
        %v6280 = vld [vmem:[#allocation57 + $0x3c] sm:$0xf]
        %v6281 = vld [vmem:[#allocation55] sm:$0x1]
        %v6282 = vpack.c.bf16 %v6264, %v6264
        %v6284 = vlaneseq
        %v6285 = vshrl.u32 %v6284, 7
        %v6286 = vsub.s32 0, %v6285
        %v6287 = vrot.slane %v6281, %v6286
        %v6305 = vunpack.c.l.b16 %v6265
        %v6306 = vunpack.c.l.b16 %v6266
        %v6307 = vunpack.c.l.b16 %v6267
        %v6308 = vunpack.c.l.b16 %v6268
        %v6309 = vunpack.c.l.b16 %v6269
        %v6310 = vunpack.c.l.b16 %v6270
        %v6311 = vunpack.c.l.b16 %v6271
        %v6312 = vunpack.c.l.b16 %v6272
        %v6313 = vunpack.c.l.b16 %v6273
        %v6314 = vunpack.c.l.b16 %v6274
        %v6315 = vunpack.c.l.b16 %v6275
        %v6316 = vunpack.c.l.b16 %v6276
        %v6317 = vunpack.c.l.b16 %v6277
        %v6318 = vunpack.c.l.b16 %v6278
        %v6319 = vunpack.c.l.b16 %v6279
        %v6320 = vunpack.c.l.b16 %v6280
        %v6321 = vpack.c.b16 %v6306, %v6305
        %v6322 = vpack.c.b16 %v6308, %v6307
        %v6323 = vpack.c.b16 %v6310, %v6309
        %v6324 = vpack.c.b16 %v6312, %v6311
        %v6325 = vpack.c.b16 %v6314, %v6313
        %v6326 = vpack.c.b16 %v6316, %v6315
        %v6327 = vpack.c.b16 %v6318, %v6317
        %v6328 = vpack.c.b16 %v6320, %v6319
        %6337 = vmatprep.subr.bf16.mxu0 0
        %6338 = vmatpush1.bf16.msra.mxu0 %v6328
        %6339 = vmatprep.subr.bf16.mxu0 0
        %6340 = vmatpush1.bf16.msra.mxu0 %v6327
        %6341 = vmatprep.subr.bf16.mxu0 0
        %6342 = vmatpush1.bf16.msra.mxu0 %v6326
        %6343 = vmatprep.subr.bf16.mxu0 0
        %6344 = vmatpush1.bf16.msra.mxu0 %v6325
        %6345 = vmatprep.subr.bf16.mxu0 0
        %6346 = vmatpush1.bf16.msra.mxu0 %v6324
        %6347 = vmatprep.subr.bf16.mxu0 0
        %6348 = vmatpush1.bf16.msra.mxu0 %v6323
        %6349 = vmatprep.subr.bf16.mxu0 0
        %6350 = vmatpush1.bf16.msra.mxu0 %v6322
        %6351 = vmatprep.subr.bf16.mxu0 0
        %6352 = vmatpush1.bf16.msra.mxu0 %v6321
        %6353 = vmatprep.subr.bf16.mxu0 0
        %6354 = vmatpush2.bf16.msra.mxu0 0
        %6355 = vmatprep.subr.bf16.mxu0 0
        %6356 = vmatpush2.bf16.msra.mxu0 0
        %6357 = vmatprep.subr.bf16.mxu0 0
        %6358 = vmatpush2.bf16.msra.mxu0 0
        %6359 = vmatprep.subr.bf16.mxu0 0
        %6360 = vmatpush2.bf16.msra.mxu0 0
        %6361 = vmatprep.subr.bf16.mxu0 0
        %6362 = vmatpush2.bf16.msra.mxu0 0
        %6363 = vmatprep.subr.bf16.mxu0 0
        %6364 = vmatpush2.bf16.msra.mxu0 0
        %6365 = vmatprep.subr.bf16.mxu0 0
        %6366 = vmatpush2.bf16.msra.mxu0 0
        %6367 = vmatprep.subr.bf16.mxu0 0
        %6368 = vmatpush2.bf16.msra.mxu0 0
        %6369 = vmatprep.mubr.bf16.mxu0 0
        %6370 = vmatmul.mubr.bf16.gmra.mxu0 %v6282
        %v6371 = vpop.f32.mrf.mxu0
        %v6372 = vadd.f32 %v6287, %v6371
        %v6373 = vpop.f32.mrf.mxu0
        %v6374 = vpop.f32.mrf.mxu0
        %v6375 = vpop.f32.mrf.mxu0
        %6376 = vdwg.mxu0
        %6377 = vst [vmem:[%s1685] sm:$0xff] %v6372
        %s6378 = sand.u32 %s951, 1
        %s6379 = scalar_lea.sflag [#allocation6], %s6378
        %s6380 = sand.u32 %s951, 1
        %s6381 = smul.addr %s6380, 8
        %s6382 = scalar_lea.vmem [#allocation58], %s6381
        // Predicated region
        $region317: #{encoder_wrapper_forward.1} parent=175 // pred_check
          %p6383 = pneg %p961
        $region318: #{encoder_wrapper_forward.1} parent=175 // pred_check_branch
          %6385 = sbr.rel (%p6383) target = $region320
        $region319: #{encoder_wrapper_forward.1} parent=175 // pred_region
          %s6387 = ssub.s32 128, 128
          %6388 = vsyncadd %s6379, %s6387
          %s6389 = smul.addr %s119, 128
          %s6390 = scalar_lea.hbm %s81, %s6389
          %s6392 = sshll.u32 %s6382, 4
          %s6393 = int_to_ptr.vmem [resolvable:$true] %s6392
          %6395 = dma.vmem_to_hbm [thread:$0]  %s6393, 128, %s6390, %s6379
        $region320: #{encoder_wrapper_forward.1} parent=175 // pred_fallthru
          _
      $region176: #{encoder_wrapper_forward.1} parent=5 // pred_fallthru
        _
      %p6396 = scmp.le.s32.totalorder 2, %s114
      // Predicated region
      $region321: #{encoder_wrapper_forward.1} parent=5 // pred_check
        %p6397 = pneg %p6396
      $region322: #{encoder_wrapper_forward.1} parent=5 // pred_check_branch
        %6399 = sbr.rel (%p6397) target = $region324
      $region323: #{encoder_wrapper_forward.1} parent=5 // pred_region
        %s6400 = ssub.s32 %s114, 2
        // Predicated region
        $region325: #{encoder_wrapper_forward.1} parent=323 // pred_check
          %p6401 = pneg %p967
        $region326: #{encoder_wrapper_forward.1} parent=323 // pred_check_branch
          %6403 = sbr.rel (%p6401) target = $region328
        $region327: #{encoder_wrapper_forward.1} parent=323 // pred_region
          %s6404 = sand.u32 %s952, 1
          %s6405 = scalar_lea.sflag [#allocation6], %s6404
          %s6406 = sand.u32 %s952, 1
          %s6407 = smul.addr %s6406, 8
          %s6408 = scalar_lea.vmem [#allocation58], %s6407
          %6409 = dma.done %s6405, 128
        $region328: #{encoder_wrapper_forward.1} parent=323 // pred_fallthru
          _
      $region324: #{encoder_wrapper_forward.1} parent=5 // pred_fallthru
        _
    $region6: #{encoder_wrapper_forward.1} parent=1 // loop_footer
      %s118 = sadd.s32 1, %s114
    $region7: #{encoder_wrapper_forward.1} parent=1 // loop_footer_branch
      %113 = sbr.rel target = $region3
    $region8: #{encoder_wrapper_forward.1} parent=1 // loop_exit
      _
    %6410 = vsyncpa [#allocation5], 1
    %s6411 = scalar_lea.sflag [#allocation5], 1
    %6412 = vsyncpa %s6411, 1
    %6413 = vsyncpa [#allocation8], 1
    %6414 = vsyncpa [#allocation11], 1
    %6415 = vsyncpa [#allocation14], 1
    %6416 = vsyncpa [#allocation17], 1
    %6417 = vsyncpa [#allocation20], 1
    %6418 = vsyncpa [#allocation23], 1
    %6419 = vsyncpa [#allocation26], 1
    %6420 = vsyncpa [#allocation29], 1
    %6421 = vsyncpa [#allocation32], 1
    %6422 = vsyncpa [#allocation35], 1
    %6423 = vsyncpa [#allocation38], 1
    %6424 = vsyncpa [#allocation41], 1
    %6425 = vsyncpa [#allocation44], 1
    %6426 = vsyncpa [#allocation47], 1
    %6427 = vsyncpa [#allocation50], 1
    %6428 = vsyncpa [#allocation53], 1
    %6429 = vsyncpa [#allocation56], 1
    %6430 = vsyncpa [#allocation6], 1
    %s6431 = scalar_lea.sflag [#allocation6], 1
    %6432 = vsyncpa %s6431, 1

</llo_original>
